<compile_context>
chip_gen: v5e
topology: v5e:2x2
jax: 0.10.0
libtpu: 0.0.40
codegen_flags: <defaults>
</compile_context>

<pallas_src>
import functools

import jax
import jax.numpy as jnp
import numpy as np
from jax.experimental import pallas as pl
from jax.experimental.pallas import tpu as pltpu


def _cda_kernel(q_ref, vres_ref, ref_ref, vhat_ref, wq_ref, bq_ref,
                bo1_ref, wo2_ref, bo2_ref, out_ref,
                *, h, w, num_heads, num_levels, num_points):
    N = h * w
    LP = num_levels * num_points
    HLP = num_heads * LP
    OFF = 2 * HLP

    q = q_ref[0]                      # (TQ, C) query tokens for this tile
    v_res = vres_ref[0]               # (TQ, C) value rows of this tile (residual)
    refpts = ref_ref[...]             # (TQ, 2) normalized reference points
    TQ, C = q.shape
    f32 = jnp.float32

    # ---- fused query projection: sampling offsets + attention logits --------
    proj = jnp.dot(q, wq_ref[...], preferred_element_type=f32) + bq_ref[...]
    # offset columns were permuted in the wrapper to (xy, head, lvl, pt) so the
    # first HLP lanes are x-offsets, the next HLP are y-offsets.
    off_x = proj[:, :HLP]             # (TQ, HLP)
    off_y = proj[:, HLP:OFF]
    logits = proj[:, OFF:]            # (TQ, HLP) attention logits

    # ---- lane-dense coordinate math for ALL head*level*point offsets --------
    ref0 = refpts[:, 0:1]
    ref1 = refpts[:, 1:2]
    # sampling_locations = ref + offsets / [w, h]  (mmcv semantics), then
    # grid_sample(align_corners=False) pixel coordinates: x indexes the w axis
    # (columns), y indexes the h axis (rows) of the (h, w) value map.
    ix = (ref0 + off_x * (1.0 / w)) * w - 0.5          # (TQ, HLP)
    iy = (ref1 + off_y * (1.0 / h)) * h - 0.5
    x0f = jnp.floor(ix)
    y0f = jnp.floor(iy)
    wx1 = ix - x0f
    wx0 = 1.0 - wx1
    wy1 = iy - y0f
    wy0 = 1.0 - wy1
    x0 = x0f.astype(jnp.int32)
    y0 = y0f.astype(jnp.int32)
    x1 = x0 + 1
    y1 = y0 + 1
    vx0 = (x0 >= 0) & (x0 < w)
    vx1 = (x1 >= 0) & (x1 < w)
    vy0 = (y0 >= 0) & (y0 < h)
    vy1 = (y1 >= 0) & (y1 < h)
    # Validity-masked bilinear weights per corner (padding_mode='zeros').
    # Masking MUST stay on these narrow coefficients: a wrapped out-of-bounds
    # corner lands on a valid lane after the roll and only a zero coefficient
    # keeps it from contributing.
    cw00 = jnp.where(vy0 & vx0, wy0 * wx0, 0.0)
    cw01 = jnp.where(vy0 & vx1, wy0 * wx1, 0.0)
    cw10 = jnp.where(vy1 & vx0, wy1 * wx0, 0.0)
    cw11 = jnp.where(vy1 & vx1, wy1 * wx1, 0.0)
    # Base (y0, x0) flat value index, wrapped into [0, N); whenever SOME corner
    # is valid we have x0 >= -1 and y0 >= -1, hence s00 >= -(w + 1) > -N.
    s00 = y0 * w + x0
    s00 = jnp.where(s00 < 0, s00 + N, s00)

    col = jax.lax.broadcasted_iota(jnp.int32, (TQ, N), 1)

    acc = jnp.zeros((TQ, C), f32)
    # Short static loops: num_heads * num_levels * num_points light iterations
    # over (TQ, N) slabs; one compare + four selects + two rolls per point.
    for hd in range(num_heads):
        base = hd * LP
        # softmax over this head's (levels*points) logits -- computed exactly
        # once per head on tiny (TQ, LP) slabs; exact divide keeps tolerance.
        lg = logits[:, base:base + LP]
        lg = lg - jnp.max(lg, axis=-1, keepdims=True)
        e = jnp.exp(lg)
        attn = e / jnp.sum(e, axis=-1, keepdims=True)              # (TQ, LP)
        # Fold attention into the bilinear corner coefficients (1-vreg-wide
        # multiplies) so the point loop needs no full-width multiplies.
        a00 = attn * cw00[:, base:base + LP]
        a01 = attn * cw01[:, base:base + LP]
        a10 = attn * cw10[:, base:base + LP]
        a11 = attn * cw11[:, base:base + LP]
        s_h = s00[:, base:base + LP]

        vhat_h = vhat_ref[0, hd]                                   # (N, C)

        # Roll linearity: accumulate the y0-row ('top') and y1-row ('bot')
        # contributions separately and apply the roll-by-w once per head.
        top = jnp.zeros((TQ, N), f32)
        bot = jnp.zeros((TQ, N), f32)
        for l in range(num_levels):
            # TODO(synk): num_levels > 1 reuses the same single-level value map.
            for p in range(num_points):
                k = l * num_points + p
                mask = col == s_h[:, k:k + 1]                      # (TQ, N) bool
                top = top + jnp.where(mask, a00[:, k:k + 1], 0.0)
                top = top + pltpu.roll(
                    jnp.where(mask, a01[:, k:k + 1], 0.0), 1, axis=1)
                bot = bot + jnp.where(mask, a10[:, k:k + 1], 0.0)
                bot = bot + pltpu.roll(
                    jnp.where(mask, a11[:, k:k + 1], 0.0), 1, axis=1)
        M = top + pltpu.roll(bot, w, axis=1)
        # Long-K MXU contraction; Wo1 is already folded into vhat (wrapper).
        acc = acc + jnp.dot(M, vhat_h, preferred_element_type=f32)

    msda = acc + bo1_ref[...] + q                    # MSDA residual (identity = query)
    out = jnp.dot(msda, wo2_ref[...], preferred_element_type=f32) + bo2_ref[...]
    out_ref[0] = out + v_res                         # outer residual (+ x_in)


def _pick_q_tile(n, requested):
    """Largest multiple-of-8 divisor of n that is <= requested (else n)."""
    if requested >= 8 and n % requested == 0 and requested % 8 == 0:
        return requested
    for t in range(min(requested, n), 7, -1):
        if n % t == 0 and t % 8 == 0:
            return t
    return n


def cross_deformable_attention(query, value, params, *, num_heads, num_levels,
                               num_points, q_tile=32):
    b, c, w, h = value.shape
    N = w * h
    D = c // num_heads
    q_tile = _pick_q_tile(N, q_tile)
    nqt = N // q_tile

    q_flat = jnp.transpose(query, (0, 2, 3, 1)).reshape(b, N, c)
    v_flat = jnp.transpose(value, (0, 2, 3, 1)).reshape(b, N, c)

    # reference points: meshgrid(arange(h), arange(w)) / [h-1, w-1]
    yy, xx = jnp.meshgrid(jnp.arange(h, dtype=jnp.float32),
                          jnp.arange(w, dtype=jnp.float32), indexing='ij')
    ref = jnp.stack([yy / (h - 1), xx / (w - 1)], axis=-1).reshape(N, 2)

    (wv, bv, woff, boff, wattn, battn, wo1, bo1, wo2, bo2) = params
    OFF = num_heads * num_levels * num_points * 2
    ATT = num_heads * num_levels * num_points

    # Permute sampling-offset columns from (head, lvl, pt, xy) to
    # (xy, head, lvl, pt) so the kernel sees lane-dense x / y halves, and fuse
    # the offset + attention projections into one (C, OFF+ATT) weight.
    perm = np.arange(OFF).reshape(num_heads, num_levels, num_points, 2)
    perm = perm.transpose(3, 0, 1, 2).reshape(-1)
    wq = jnp.concatenate([woff[:, perm], wattn], axis=1)      # (C, OFF+ATT)
    bq = jnp.concatenate([boff[:, perm], battn], axis=1)      # (1, OFF+ATT)

    # Hoist value_proj and the Wo1-folded per-head values out of the kernel:
    #   vhat[b, hd] = (v @ Wv + bv)[:, hd*D:(hd+1)*D] @ Wo1[hd*D:(hd+1)*D, :]
    # is query-tile independent, so compute it once per batch here instead of
    # nqt times inside the kernel.  f32-exact matmuls protect the tolerance.
    hi = jax.lax.Precision.HIGHEST
    v_proj = jnp.einsum('bnc,cd->bnd', v_flat, wv, precision=hi) + bv
    vhat = jnp.einsum('bnhd,hdc->bhnc',
                      v_proj.reshape(b, N, num_heads, D),
                      wo1.reshape(num_heads, D, c), precision=hi)  # (b, H, N, C)

    kernel = functools.partial(_cda_kernel, h=h, w=w, num_heads=num_heads,
                               num_levels=num_levels, num_points=num_points)

    out_flat = pl.pallas_call(
        kernel,
        out_shape=jax.ShapeDtypeStruct((b, N, c), jnp.float32),
        grid_spec=pltpu.PrefetchScalarGridSpec(
            num_scalar_prefetch=0,
            grid=(b, nqt),
            in_specs=[
                pl.BlockSpec((1, q_tile, c), lambda i, j: (i, j, 0)),   # query tile
                pl.BlockSpec((1, q_tile, c), lambda i, j: (i, j, 0)),   # value rows (residual)
                pl.BlockSpec((q_tile, 2), lambda i, j: (j, 0)),         # reference points
                pl.BlockSpec((1, num_heads, N, c),
                             lambda i, j: (i, 0, 0, 0)),                # Wo1-folded values
                pl.BlockSpec((c, OFF + ATT), lambda i, j: (0, 0)),      # fused q-proj W
                pl.BlockSpec((1, OFF + ATT), lambda i, j: (0, 0)),      # fused q-proj b
                pl.BlockSpec((1, c), lambda i, j: (0, 0)),              # MSDA output_proj b
                pl.BlockSpec((c, c), lambda i, j: (0, 0)),              # outer output_proj W
                pl.BlockSpec((1, c), lambda i, j: (0, 0)),              # outer output_proj b
            ],
            out_specs=pl.BlockSpec((1, q_tile, c), lambda i, j: (i, j, 0)),
        ),
        compiler_params=pltpu.CompilerParams(
            dimension_semantics=("parallel", "parallel")),
    )(q_flat, v_flat, ref, vhat, wq, bq, bo1, wo2, bo2)

    return out_flat.reshape(b, w, h, c).transpose(0, 3, 1, 2)


def reference_forward(query, value, params, *, num_heads, num_levels, num_points):
    """Pure-JAX reference mirroring the PyTorch module (gather-based grid_sample)."""
    (wv, bv, woff, boff, wattn, battn, wo1, bo1, wo2, bo2) = params
    b, c, w, h = value.shape
    N = w * h
    D = c // num_heads
    q = jnp.transpose(query, (0, 2, 3, 1)).reshape(b, N, c)
    v = jnp.transpose(value, (0, 2, 3, 1)).reshape(b, N, c)
    yy, xx = jnp.meshgrid(jnp.arange(h, dtype=jnp.float32),
                          jnp.arange(w, dtype=jnp.float32), indexing='ij')
    ref = jnp.stack([yy / (h - 1), xx / (w - 1)], axis=-1).reshape(N, 2)

    v_proj = v @ wv + bv
    off = (q @ woff + boff).reshape(b, N, num_heads, num_levels, num_points, 2)
    logits = (q @ wattn + battn).reshape(b, N, num_heads, num_levels * num_points)
    attn = jax.nn.softmax(logits, axis=-1).reshape(b, N, num_heads, num_levels, num_points)

    norm = jnp.array([w, h], jnp.float32)
    loc = ref[None, :, None, None, None, :] + off / norm
    ix = loc[..., 0] * w - 0.5
    iy = loc[..., 1] * h - 0.5
    x0 = jnp.floor(ix); y0 = jnp.floor(iy)
    wx1 = ix - x0; wx0 = 1.0 - wx1
    wy1 = iy - y0; wy0 = 1.0 - wy1
    x0i = x0.astype(jnp.int32); y0i = y0.astype(jnp.int32)
    x1i = x0i + 1; y1i = y0i + 1

    vg = v_proj.reshape(b, h, w, num_heads, D)
    b_idx = jnp.arange(b).reshape(b, 1, 1, 1, 1)
    hd_idx = jnp.arange(num_heads).reshape(1, 1, num_heads, 1, 1)

    def corner(yi, xi, wgt):
        valid = ((yi >= 0) & (yi < h) & (xi >= 0) & (xi < w)).astype(jnp.float32)
        yc = jnp.clip(yi, 0, h - 1)
        xc = jnp.clip(xi, 0, w - 1)
        vals = vg[b_idx, yc, xc, hd_idx]                         # (b,N,H,L,P,D)
        return vals * (wgt * valid)[..., None]

    sampled = (corner(y0i, x0i, wy0 * wx0) + corner(y0i, x1i, wy0 * wx1) +
               corner(y1i, x0i, wy1 * wx0) + corner(y1i, x1i, wy1 * wx1))
    msda = (attn[..., None] * sampled).sum(axis=(3, 4)).reshape(b, N, c)
    msda = msda @ wo1 + bo1 + q
    out = msda @ wo2 + bo2 + v
    return out.reshape(b, w, h, c).transpose(0, 3, 1, 2)


if __name__ == "__main__":
    # f32-exact matmuls everywhere (wrapper pre-pass + reference) so the
    # kernel-vs-reference comparison only measures the kernel's math.
    jax.config.update("jax_default_matmul_precision", "highest")

    key = jax.random.PRNGKey(0)
    b, c, w, h = 2, 32, 16, 16
    num_heads, num_levels, num_points = 4, 1, 4
    OFF = num_heads * num_levels * num_points * 2
    ATT = num_heads * num_levels * num_points

    ks = jax.random.split(key, 8)
    query = jax.random.normal(ks[0], (b, c, w, h), jnp.float32)
    value = jax.random.normal(ks[1], (b, c, w, h), jnp.float32)

    def linear_init(k, fin, fout, scale):
        kw, kb = jax.random.split(k)
        return (jax.random.normal(kw, (fin, fout), jnp.float32) * scale,
                jax.random.normal(kb, (1, fout), jnp.float32) * 0.01)

    wv, bv = linear_init(ks[2], c, c, 1.0 / np.sqrt(c))        # MSDA value_proj
    woff, boff = linear_init(ks[3], c, OFF, 0.05)              # sampling_offsets
    wattn, battn = linear_init(ks[4], c, ATT, 0.1)             # attention_weights
    wo1, bo1 = linear_init(ks[5], c, c, 1.0 / np.sqrt(c))      # MSDA output_proj
    wo2, bo2 = linear_init(ks[6], c, c, 1.0 / np.sqrt(c))      # outer output_proj
    params = (wv, bv, woff, boff, wattn, battn, wo1, bo1, wo2, bo2)

    out = cross_deformable_attention(query, value, params, num_heads=num_heads,
                                     num_levels=num_levels, num_points=num_points)
    out = jax.block_until_ready(out)

    ref_out = jax.block_until_ready(
        reference_forward(query, value, params, num_heads=num_heads,
                          num_levels=num_levels, num_points=num_points))
    np.testing.assert_allclose(np.asarray(out), np.asarray(ref_out),
                               rtol=2e-3, atol=2e-3)
    print("KERNEL_OK")
</pallas_src>

<mosaic_0001>
module attributes {stable_mosaic.version = 11 : i64} {
  func.func @_cda_kernel(%arg0: i32, %arg1: i32, %arg2: memref<1x32x32xf32, #tpu.memory_space<vmem>>, %arg3: memref<1x32x32xf32, #tpu.memory_space<vmem>>, %arg4: memref<32x2xf32, #tpu.memory_space<vmem>>, %arg5: memref<1x4x256x32xf32, #tpu.memory_space<vmem>>, %arg6: memref<32x48xf32, #tpu.memory_space<vmem>>, %arg7: memref<1x48xf32, #tpu.memory_space<vmem>>, %arg8: memref<1x32xf32, #tpu.memory_space<vmem>>, %arg9: memref<32x32xf32, #tpu.memory_space<vmem>>, %arg10: memref<1x32xf32, #tpu.memory_space<vmem>>, %arg11: memref<1x32x32xf32, #tpu.memory_space<vmem>>) attributes {dimension_semantics = [#tpu.dimension_semantics<parallel>, #tpu.dimension_semantics<parallel>], iteration_bounds = array<i64: 2, 8>, scalar_prefetch = 0 : i64, scratch_operands = 0 : i64, tpu.core_type = #tpu.core_type<tc>, window_params = [{transform_indices = @transform_0, window_bounds = array<i64: 1, 32, 32>}, {transform_indices = @transform_1, window_bounds = array<i64: 1, 32, 32>}, {transform_indices = @transform_2, window_bounds = array<i64: 32, 2>}, {transform_indices = @transform_3, window_bounds = array<i64: 1, 4, 256, 32>}, {pipeline_mode = #tpu.pipeline_mode<synchronous>, transform_indices = @transform_4, window_bounds = array<i64: 32, 48>}, {pipeline_mode = #tpu.pipeline_mode<synchronous>, transform_indices = @transform_5, window_bounds = array<i64: 1, 48>}, {pipeline_mode = #tpu.pipeline_mode<synchronous>, transform_indices = @transform_6, window_bounds = array<i64: 1, 32>}, {pipeline_mode = #tpu.pipeline_mode<synchronous>, transform_indices = @transform_7, window_bounds = array<i64: 32, 32>}, {pipeline_mode = #tpu.pipeline_mode<synchronous>, transform_indices = @transform_8, window_bounds = array<i64: 1, 32>}, {transform_indices = @transform_9, window_bounds = array<i64: 1, 32, 32>}]} {
    %c0 = arith.constant 0 : index
    %c0_0 = arith.constant 0 : index
    %c0_1 = arith.constant 0 : index
    %0 = vector.load %arg2[%c0, %c0_0, %c0_1] : memref<1x32x32xf32, #tpu.memory_space<vmem>>, vector<1x32x32xf32>
    %1 = vector.shape_cast %0 : vector<1x32x32xf32> to vector<32x32xf32>
    %c0_2 = arith.constant 0 : index
    %c0_3 = arith.constant 0 : index
    %c0_4 = arith.constant 0 : index
    %2 = vector.load %arg3[%c0_2, %c0_3, %c0_4] : memref<1x32x32xf32, #tpu.memory_space<vmem>>, vector<1x32x32xf32>
    %3 = vector.shape_cast %2 : vector<1x32x32xf32> to vector<32x32xf32>
    %c0_5 = arith.constant 0 : index
    %c0_6 = arith.constant 0 : index
    %4 = vector.load %arg4[%c0_5, %c0_6] : memref<32x2xf32, #tpu.memory_space<vmem>>, vector<32x2xf32>
    %c0_7 = arith.constant 0 : index
    %c0_8 = arith.constant 0 : index
    %5 = vector.load %arg6[%c0_7, %c0_8] : memref<32x48xf32, #tpu.memory_space<vmem>>, vector<32x48xf32>
    %cst = arith.constant dense<0.000000e+00> : vector<32x48xf32>
    %6 = tpu.matmul %1, %5, %cst {dimension_numbers = #tpu.dot_dimension_numbers<[1], [0], [0], [1], [0, 0, 1, 1], [], []>, precision = #tpu.contract_precision<fp32>} : vector<32x32xf32>, vector<32x48xf32>, vector<32x48xf32> -> vector<32x48xf32>
    %c0_9 = arith.constant 0 : index
    %c0_10 = arith.constant 0 : index
    %7 = vector.load %arg7[%c0_9, %c0_10] : memref<1x48xf32, #tpu.memory_space<vmem>>, vector<1x48xf32>
    %8 = vector.broadcast %7 : vector<1x48xf32> to vector<32x48xf32>
    %9 = arith.addf %6, %8 : vector<32x48xf32>
    %10 = vector.extract_strided_slice %9 {offsets = [0, 0], sizes = [32, 16], strides = [1, 1]} : vector<32x48xf32> to vector<32x16xf32>
    %11 = vector.extract_strided_slice %9 {offsets = [0, 16], sizes = [32, 16], strides = [1, 1]} : vector<32x48xf32> to vector<32x16xf32>
    %12 = vector.extract_strided_slice %9 {offsets = [0, 32], sizes = [32, 16], strides = [1, 1]} : vector<32x48xf32> to vector<32x16xf32>
    %13 = vector.extract_strided_slice %4 {offsets = [0, 0], sizes = [32, 1], strides = [1, 1]} : vector<32x2xf32> to vector<32x1xf32>
    %14 = vector.extract_strided_slice %4 {offsets = [0, 1], sizes = [32, 1], strides = [1, 1]} : vector<32x2xf32> to vector<32x1xf32>
    %cst_11 = arith.constant 6.250000e-02 : f32
    %15 = vector.broadcast %cst_11 : f32 to vector<32x16xf32>
    %16 = arith.mulf %10, %15 : vector<32x16xf32>
    %17 = vector.broadcast %13 : vector<32x1xf32> to vector<32x16xf32>
    %18 = arith.addf %17, %16 : vector<32x16xf32>
    %cst_12 = arith.constant 1.600000e+01 : f32
    %19 = vector.broadcast %cst_12 : f32 to vector<32x16xf32>
    %20 = arith.mulf %18, %19 : vector<32x16xf32>
    %cst_13 = arith.constant 5.000000e-01 : f32
    %21 = vector.broadcast %cst_13 : f32 to vector<32x16xf32>
    %22 = arith.subf %20, %21 : vector<32x16xf32>
    %cst_14 = arith.constant 6.250000e-02 : f32
    %23 = vector.broadcast %cst_14 : f32 to vector<32x16xf32>
    %24 = arith.mulf %11, %23 : vector<32x16xf32>
    %25 = vector.broadcast %14 : vector<32x1xf32> to vector<32x16xf32>
    %26 = arith.addf %25, %24 : vector<32x16xf32>
    %cst_15 = arith.constant 1.600000e+01 : f32
    %27 = vector.broadcast %cst_15 : f32 to vector<32x16xf32>
    %28 = arith.mulf %26, %27 : vector<32x16xf32>
    %cst_16 = arith.constant 5.000000e-01 : f32
    %29 = vector.broadcast %cst_16 : f32 to vector<32x16xf32>
    %30 = arith.subf %28, %29 : vector<32x16xf32>
    %31 = math.floor %22 : vector<32x16xf32>
    %32 = math.floor %30 : vector<32x16xf32>
    %33 = arith.subf %22, %31 : vector<32x16xf32>
    %cst_17 = arith.constant 1.000000e+00 : f32
    %34 = vector.broadcast %cst_17 : f32 to vector<32x16xf32>
    %35 = arith.subf %34, %33 : vector<32x16xf32>
    %36 = arith.subf %30, %32 : vector<32x16xf32>
    %cst_18 = arith.constant 1.000000e+00 : f32
    %37 = vector.broadcast %cst_18 : f32 to vector<32x16xf32>
    %38 = arith.subf %37, %36 : vector<32x16xf32>
    %39 = arith.fptosi %31 : vector<32x16xf32> to vector<32x16xi32>
    %40 = arith.fptosi %32 : vector<32x16xf32> to vector<32x16xi32>
    %c1_i32 = arith.constant 1 : i32
    %41 = vector.broadcast %c1_i32 : i32 to vector<32x16xi32>
    %42 = arith.addi %39, %41 : vector<32x16xi32>
    %c1_i32_19 = arith.constant 1 : i32
    %43 = vector.broadcast %c1_i32_19 : i32 to vector<32x16xi32>
    %44 = arith.addi %40, %43 : vector<32x16xi32>
    %c0_i32 = arith.constant 0 : i32
    %45 = vector.broadcast %c0_i32 : i32 to vector<32x16xi32>
    %46 = arith.cmpi sge, %39, %45 : vector<32x16xi32>
    %c16_i32 = arith.constant 16 : i32
    %47 = vector.broadcast %c16_i32 : i32 to vector<32x16xi32>
    %48 = arith.cmpi slt, %39, %47 : vector<32x16xi32>
    %49 = arith.andi %46, %48 : vector<32x16xi1>
    %c0_i32_20 = arith.constant 0 : i32
    %50 = vector.broadcast %c0_i32_20 : i32 to vector<32x16xi32>
    %51 = arith.cmpi sge, %42, %50 : vector<32x16xi32>
    %c16_i32_21 = arith.constant 16 : i32
    %52 = vector.broadcast %c16_i32_21 : i32 to vector<32x16xi32>
    %53 = arith.cmpi slt, %42, %52 : vector<32x16xi32>
    %54 = arith.andi %51, %53 : vector<32x16xi1>
    %c0_i32_22 = arith.constant 0 : i32
    %55 = vector.broadcast %c0_i32_22 : i32 to vector<32x16xi32>
    %56 = arith.cmpi sge, %40, %55 : vector<32x16xi32>
    %c16_i32_23 = arith.constant 16 : i32
    %57 = vector.broadcast %c16_i32_23 : i32 to vector<32x16xi32>
    %58 = arith.cmpi slt, %40, %57 : vector<32x16xi32>
    %59 = arith.andi %56, %58 : vector<32x16xi1>
    %c0_i32_24 = arith.constant 0 : i32
    %60 = vector.broadcast %c0_i32_24 : i32 to vector<32x16xi32>
    %61 = arith.cmpi sge, %44, %60 : vector<32x16xi32>
    %c16_i32_25 = arith.constant 16 : i32
    %62 = vector.broadcast %c16_i32_25 : i32 to vector<32x16xi32>
    %63 = arith.cmpi slt, %44, %62 : vector<32x16xi32>
    %64 = arith.andi %61, %63 : vector<32x16xi1>
    %65 = arith.andi %59, %49 : vector<32x16xi1>
    %66 = arith.mulf %38, %35 : vector<32x16xf32>
    %cst_26 = arith.constant 0.000000e+00 : f32
    %67 = vector.broadcast %cst_26 : f32 to vector<32x16xf32>
    %68 = arith.select %65, %66, %67 : vector<32x16xi1>, vector<32x16xf32>
    %69 = arith.andi %59, %54 : vector<32x16xi1>
    %70 = arith.mulf %38, %33 : vector<32x16xf32>
    %cst_27 = arith.constant 0.000000e+00 : f32
    %71 = vector.broadcast %cst_27 : f32 to vector<32x16xf32>
    %72 = arith.select %69, %70, %71 : vector<32x16xi1>, vector<32x16xf32>
    %73 = arith.andi %64, %49 : vector<32x16xi1>
    %74 = arith.mulf %36, %35 : vector<32x16xf32>
    %cst_28 = arith.constant 0.000000e+00 : f32
    %75 = vector.broadcast %cst_28 : f32 to vector<32x16xf32>
    %76 = arith.select %73, %74, %75 : vector<32x16xi1>, vector<32x16xf32>
    %77 = arith.andi %64, %54 : vector<32x16xi1>
    %78 = arith.mulf %36, %33 : vector<32x16xf32>
    %cst_29 = arith.constant 0.000000e+00 : f32
    %79 = vector.broadcast %cst_29 : f32 to vector<32x16xf32>
    %80 = arith.select %77, %78, %79 : vector<32x16xi1>, vector<32x16xf32>
    %c16_i32_30 = arith.constant 16 : i32
    %81 = vector.broadcast %c16_i32_30 : i32 to vector<32x16xi32>
    %82 = arith.muli %40, %81 : vector<32x16xi32>
    %83 = arith.addi %82, %39 : vector<32x16xi32>
    %c0_i32_31 = arith.constant 0 : i32
    %84 = vector.broadcast %c0_i32_31 : i32 to vector<32x16xi32>
    %85 = arith.cmpi slt, %83, %84 : vector<32x16xi32>
    %c256_i32 = arith.constant 256 : i32
    %86 = vector.broadcast %c256_i32 : i32 to vector<32x16xi32>
    %87 = arith.addi %83, %86 : vector<32x16xi32>
    %88 = arith.select %85, %87, %83 : vector<32x16xi1>, vector<32x16xi32>
    %89 = tpu.iota {dimensions = array<i32: 1>} : vector<32x256xi32>
    %cst_32 = arith.constant 0.000000e+00 : f32
    %90 = vector.broadcast %cst_32 : f32 to vector<32x32xf32>
    %91 = vector.extract_strided_slice %12 {offsets = [0, 0], sizes = [32, 4], strides = [1, 1]} : vector<32x16xf32> to vector<32x4xf32>
    %cst_33 = arith.constant dense<0xFF800000> : vector<32xf32>
    %92 = vector.multi_reduction <maximumf>, %91, %cst_33 [1] : vector<32x4xf32> to vector<32xf32>
    %93 = vector.shape_cast %92 : vector<32xf32> to vector<32x1xf32>
    %94 = vector.broadcast %93 : vector<32x1xf32> to vector<32x4xf32>
    %95 = arith.subf %91, %94 : vector<32x4xf32>
    %96 = math.exp %95 : vector<32x4xf32>
    %cst_34 = arith.constant dense<0.000000e+00> : vector<32xf32>
    %97 = vector.multi_reduction <add>, %96, %cst_34 [1] : vector<32x4xf32> to vector<32xf32>
    %98 = vector.shape_cast %97 : vector<32xf32> to vector<32x1xf32>
    %99 = vector.broadcast %98 : vector<32x1xf32> to vector<32x4xf32>
    %100 = arith.divf %96, %99 : vector<32x4xf32>
    %101 = vector.extract_strided_slice %68 {offsets = [0, 0], sizes = [32, 4], strides = [1, 1]} : vector<32x16xf32> to vector<32x4xf32>
    %102 = arith.mulf %100, %101 : vector<32x4xf32>
    %103 = vector.extract_strided_slice %72 {offsets = [0, 0], sizes = [32, 4], strides = [1, 1]} : vector<32x16xf32> to vector<32x4xf32>
    %104 = arith.mulf %100, %103 : vector<32x4xf32>
    %105 = vector.extract_strided_slice %76 {offsets = [0, 0], sizes = [32, 4], strides = [1, 1]} : vector<32x16xf32> to vector<32x4xf32>
    %106 = arith.mulf %100, %105 : vector<32x4xf32>
    %107 = vector.extract_strided_slice %80 {offsets = [0, 0], sizes = [32, 4], strides = [1, 1]} : vector<32x16xf32> to vector<32x4xf32>
    %108 = arith.mulf %100, %107 : vector<32x4xf32>
    %109 = vector.extract_strided_slice %88 {offsets = [0, 0], sizes = [32, 4], strides = [1, 1]} : vector<32x16xi32> to vector<32x4xi32>
    %c0_35 = arith.constant 0 : index
    %c0_36 = arith.constant 0 : index
    %c0_37 = arith.constant 0 : index
    %c0_38 = arith.constant 0 : index
    %110 = vector.load %arg5[%c0_35, %c0_36, %c0_37, %c0_38] : memref<1x4x256x32xf32, #tpu.memory_space<vmem>>, vector<1x1x256x32xf32>
    %111 = vector.shape_cast %110 : vector<1x1x256x32xf32> to vector<256x32xf32>
    %cst_39 = arith.constant 0.000000e+00 : f32
    %112 = vector.broadcast %cst_39 : f32 to vector<32x256xf32>
    %cst_40 = arith.constant 0.000000e+00 : f32
    %113 = vector.broadcast %cst_40 : f32 to vector<32x256xf32>
    %114 = vector.extract_strided_slice %109 {offsets = [0, 0], sizes = [32, 1], strides = [1, 1]} : vector<32x4xi32> to vector<32x1xi32>
    %115 = vector.broadcast %114 : vector<32x1xi32> to vector<32x256xi32>
    %116 = arith.cmpi eq, %89, %115 : vector<32x256xi32>
    %117 = vector.extract_strided_slice %102 {offsets = [0, 0], sizes = [32, 1], strides = [1, 1]} : vector<32x4xf32> to vector<32x1xf32>
    %cst_41 = arith.constant 0.000000e+00 : f32
    %118 = vector.shape_cast %117 : vector<32x1xf32> to vector<32x1xf32>
    %119 = vector.broadcast %118 : vector<32x1xf32> to vector<32x256xf32>
    %120 = vector.broadcast %cst_41 : f32 to vector<32x256xf32>
    %121 = arith.select %116, %119, %120 : vector<32x256xi1>, vector<32x256xf32>
    %122 = arith.addf %112, %121 : vector<32x256xf32>
    %123 = vector.extract_strided_slice %104 {offsets = [0, 0], sizes = [32, 1], strides = [1, 1]} : vector<32x4xf32> to vector<32x1xf32>
    %cst_42 = arith.constant 0.000000e+00 : f32
    %124 = vector.shape_cast %123 : vector<32x1xf32> to vector<32x1xf32>
    %125 = vector.broadcast %124 : vector<32x1xf32> to vector<32x256xf32>
    %126 = vector.broadcast %cst_42 : f32 to vector<32x256xf32>
    %127 = arith.select %116, %125, %126 : vector<32x256xi1>, vector<32x256xf32>
    %c1_i32_43 = arith.constant 1 : i32
    %128 = tpu.dynamic_rotate %127 by %c1_i32_43 dim 1 : vector<32x256xf32>, i32 -> vector<32x256xf32>
    %129 = arith.addf %122, %128 : vector<32x256xf32>
    %130 = vector.extract_strided_slice %106 {offsets = [0, 0], sizes = [32, 1], strides = [1, 1]} : vector<32x4xf32> to vector<32x1xf32>
    %cst_44 = arith.constant 0.000000e+00 : f32
    %131 = vector.shape_cast %130 : vector<32x1xf32> to vector<32x1xf32>
    %132 = vector.broadcast %131 : vector<32x1xf32> to vector<32x256xf32>
    %133 = vector.broadcast %cst_44 : f32 to vector<32x256xf32>
    %134 = arith.select %116, %132, %133 : vector<32x256xi1>, vector<32x256xf32>
    %135 = arith.addf %113, %134 : vector<32x256xf32>
    %136 = vector.extract_strided_slice %108 {offsets = [0, 0], sizes = [32, 1], strides = [1, 1]} : vector<32x4xf32> to vector<32x1xf32>
    %cst_45 = arith.constant 0.000000e+00 : f32
    %137 = vector.shape_cast %136 : vector<32x1xf32> to vector<32x1xf32>
    %138 = vector.broadcast %137 : vector<32x1xf32> to vector<32x256xf32>
    %139 = vector.broadcast %cst_45 : f32 to vector<32x256xf32>
    %140 = arith.select %116, %138, %139 : vector<32x256xi1>, vector<32x256xf32>
    %c1_i32_46 = arith.constant 1 : i32
    %141 = tpu.dynamic_rotate %140 by %c1_i32_46 dim 1 : vector<32x256xf32>, i32 -> vector<32x256xf32>
    %142 = arith.addf %135, %141 : vector<32x256xf32>
    %143 = vector.extract_strided_slice %109 {offsets = [0, 1], sizes = [32, 1], strides = [1, 1]} : vector<32x4xi32> to vector<32x1xi32>
    %144 = vector.broadcast %143 : vector<32x1xi32> to vector<32x256xi32>
    %145 = arith.cmpi eq, %89, %144 : vector<32x256xi32>
    %146 = vector.extract_strided_slice %102 {offsets = [0, 1], sizes = [32, 1], strides = [1, 1]} : vector<32x4xf32> to vector<32x1xf32>
    %cst_47 = arith.constant 0.000000e+00 : f32
    %147 = vector.shape_cast %146 : vector<32x1xf32> to vector<32x1xf32>
    %148 = vector.broadcast %147 : vector<32x1xf32> to vector<32x256xf32>
    %149 = vector.broadcast %cst_47 : f32 to vector<32x256xf32>
    %150 = arith.select %145, %148, %149 : vector<32x256xi1>, vector<32x256xf32>
    %151 = arith.addf %129, %150 : vector<32x256xf32>
    %152 = vector.extract_strided_slice %104 {offsets = [0, 1], sizes = [32, 1], strides = [1, 1]} : vector<32x4xf32> to vector<32x1xf32>
    %cst_48 = arith.constant 0.000000e+00 : f32
    %153 = vector.shape_cast %152 : vector<32x1xf32> to vector<32x1xf32>
    %154 = vector.broadcast %153 : vector<32x1xf32> to vector<32x256xf32>
    %155 = vector.broadcast %cst_48 : f32 to vector<32x256xf32>
    %156 = arith.select %145, %154, %155 : vector<32x256xi1>, vector<32x256xf32>
    %c1_i32_49 = arith.constant 1 : i32
    %157 = tpu.dynamic_rotate %156 by %c1_i32_49 dim 1 : vector<32x256xf32>, i32 -> vector<32x256xf32>
    %158 = arith.addf %151, %157 : vector<32x256xf32>
    %159 = vector.extract_strided_slice %106 {offsets = [0, 1], sizes = [32, 1], strides = [1, 1]} : vector<32x4xf32> to vector<32x1xf32>
    %cst_50 = arith.constant 0.000000e+00 : f32
    %160 = vector.shape_cast %159 : vector<32x1xf32> to vector<32x1xf32>
    %161 = vector.broadcast %160 : vector<32x1xf32> to vector<32x256xf32>
    %162 = vector.broadcast %cst_50 : f32 to vector<32x256xf32>
    %163 = arith.select %145, %161, %162 : vector<32x256xi1>, vector<32x256xf32>
    %164 = arith.addf %142, %163 : vector<32x256xf32>
    %165 = vector.extract_strided_slice %108 {offsets = [0, 1], sizes = [32, 1], strides = [1, 1]} : vector<32x4xf32> to vector<32x1xf32>
    %cst_51 = arith.constant 0.000000e+00 : f32
    %166 = vector.shape_cast %165 : vector<32x1xf32> to vector<32x1xf32>
    %167 = vector.broadcast %166 : vector<32x1xf32> to vector<32x256xf32>
    %168 = vector.broadcast %cst_51 : f32 to vector<32x256xf32>
    %169 = arith.select %145, %167, %168 : vector<32x256xi1>, vector<32x256xf32>
    %c1_i32_52 = arith.constant 1 : i32
    %170 = tpu.dynamic_rotate %169 by %c1_i32_52 dim 1 : vector<32x256xf32>, i32 -> vector<32x256xf32>
    %171 = arith.addf %164, %170 : vector<32x256xf32>
    %172 = vector.extract_strided_slice %109 {offsets = [0, 2], sizes = [32, 1], strides = [1, 1]} : vector<32x4xi32> to vector<32x1xi32>
    %173 = vector.broadcast %172 : vector<32x1xi32> to vector<32x256xi32>
    %174 = arith.cmpi eq, %89, %173 : vector<32x256xi32>
    %175 = vector.extract_strided_slice %102 {offsets = [0, 2], sizes = [32, 1], strides = [1, 1]} : vector<32x4xf32> to vector<32x1xf32>
    %cst_53 = arith.constant 0.000000e+00 : f32
    %176 = vector.shape_cast %175 : vector<32x1xf32> to vector<32x1xf32>
    %177 = vector.broadcast %176 : vector<32x1xf32> to vector<32x256xf32>
    %178 = vector.broadcast %cst_53 : f32 to vector<32x256xf32>
    %179 = arith.select %174, %177, %178 : vector<32x256xi1>, vector<32x256xf32>
    %180 = arith.addf %158, %179 : vector<32x256xf32>
    %181 = vector.extract_strided_slice %104 {offsets = [0, 2], sizes = [32, 1], strides = [1, 1]} : vector<32x4xf32> to vector<32x1xf32>
    %cst_54 = arith.constant 0.000000e+00 : f32
    %182 = vector.shape_cast %181 : vector<32x1xf32> to vector<32x1xf32>
    %183 = vector.broadcast %182 : vector<32x1xf32> to vector<32x256xf32>
    %184 = vector.broadcast %cst_54 : f32 to vector<32x256xf32>
    %185 = arith.select %174, %183, %184 : vector<32x256xi1>, vector<32x256xf32>
    %c1_i32_55 = arith.constant 1 : i32
    %186 = tpu.dynamic_rotate %185 by %c1_i32_55 dim 1 : vector<32x256xf32>, i32 -> vector<32x256xf32>
    %187 = arith.addf %180, %186 : vector<32x256xf32>
    %188 = vector.extract_strided_slice %106 {offsets = [0, 2], sizes = [32, 1], strides = [1, 1]} : vector<32x4xf32> to vector<32x1xf32>
    %cst_56 = arith.constant 0.000000e+00 : f32
    %189 = vector.shape_cast %188 : vector<32x1xf32> to vector<32x1xf32>
    %190 = vector.broadcast %189 : vector<32x1xf32> to vector<32x256xf32>
    %191 = vector.broadcast %cst_56 : f32 to vector<32x256xf32>
    %192 = arith.select %174, %190, %191 : vector<32x256xi1>, vector<32x256xf32>
    %193 = arith.addf %171, %192 : vector<32x256xf32>
    %194 = vector.extract_strided_slice %108 {offsets = [0, 2], sizes = [32, 1], strides = [1, 1]} : vector<32x4xf32> to vector<32x1xf32>
    %cst_57 = arith.constant 0.000000e+00 : f32
    %195 = vector.shape_cast %194 : vector<32x1xf32> to vector<32x1xf32>
    %196 = vector.broadcast %195 : vector<32x1xf32> to vector<32x256xf32>
    %197 = vector.broadcast %cst_57 : f32 to vector<32x256xf32>
    %198 = arith.select %174, %196, %197 : vector<32x256xi1>, vector<32x256xf32>
    %c1_i32_58 = arith.constant 1 : i32
    %199 = tpu.dynamic_rotate %198 by %c1_i32_58 dim 1 : vector<32x256xf32>, i32 -> vector<32x256xf32>
    %200 = arith.addf %193, %199 : vector<32x256xf32>
    %201 = vector.extract_strided_slice %109 {offsets = [0, 3], sizes = [32, 1], strides = [1, 1]} : vector<32x4xi32> to vector<32x1xi32>
    %202 = vector.broadcast %201 : vector<32x1xi32> to vector<32x256xi32>
    %203 = arith.cmpi eq, %89, %202 : vector<32x256xi32>
    %204 = vector.extract_strided_slice %102 {offsets = [0, 3], sizes = [32, 1], strides = [1, 1]} : vector<32x4xf32> to vector<32x1xf32>
    %cst_59 = arith.constant 0.000000e+00 : f32
    %205 = vector.shape_cast %204 : vector<32x1xf32> to vector<32x1xf32>
    %206 = vector.broadcast %205 : vector<32x1xf32> to vector<32x256xf32>
    %207 = vector.broadcast %cst_59 : f32 to vector<32x256xf32>
    %208 = arith.select %203, %206, %207 : vector<32x256xi1>, vector<32x256xf32>
    %209 = arith.addf %187, %208 : vector<32x256xf32>
    %210 = vector.extract_strided_slice %104 {offsets = [0, 3], sizes = [32, 1], strides = [1, 1]} : vector<32x4xf32> to vector<32x1xf32>
    %cst_60 = arith.constant 0.000000e+00 : f32
    %211 = vector.shape_cast %210 : vector<32x1xf32> to vector<32x1xf32>
    %212 = vector.broadcast %211 : vector<32x1xf32> to vector<32x256xf32>
    %213 = vector.broadcast %cst_60 : f32 to vector<32x256xf32>
    %214 = arith.select %203, %212, %213 : vector<32x256xi1>, vector<32x256xf32>
    %c1_i32_61 = arith.constant 1 : i32
    %215 = tpu.dynamic_rotate %214 by %c1_i32_61 dim 1 : vector<32x256xf32>, i32 -> vector<32x256xf32>
    %216 = arith.addf %209, %215 : vector<32x256xf32>
    %217 = vector.extract_strided_slice %106 {offsets = [0, 3], sizes = [32, 1], strides = [1, 1]} : vector<32x4xf32> to vector<32x1xf32>
    %cst_62 = arith.constant 0.000000e+00 : f32
    %218 = vector.shape_cast %217 : vector<32x1xf32> to vector<32x1xf32>
    %219 = vector.broadcast %218 : vector<32x1xf32> to vector<32x256xf32>
    %220 = vector.broadcast %cst_62 : f32 to vector<32x256xf32>
    %221 = arith.select %203, %219, %220 : vector<32x256xi1>, vector<32x256xf32>
    %222 = arith.addf %200, %221 : vector<32x256xf32>
    %223 = vector.extract_strided_slice %108 {offsets = [0, 3], sizes = [32, 1], strides = [1, 1]} : vector<32x4xf32> to vector<32x1xf32>
    %cst_63 = arith.constant 0.000000e+00 : f32
    %224 = vector.shape_cast %223 : vector<32x1xf32> to vector<32x1xf32>
    %225 = vector.broadcast %224 : vector<32x1xf32> to vector<32x256xf32>
    %226 = vector.broadcast %cst_63 : f32 to vector<32x256xf32>
    %227 = arith.select %203, %225, %226 : vector<32x256xi1>, vector<32x256xf32>
    %c1_i32_64 = arith.constant 1 : i32
    %228 = tpu.dynamic_rotate %227 by %c1_i32_64 dim 1 : vector<32x256xf32>, i32 -> vector<32x256xf32>
    %229 = arith.addf %222, %228 : vector<32x256xf32>
    %c16_i32_65 = arith.constant 16 : i32
    %230 = tpu.dynamic_rotate %229 by %c16_i32_65 dim 1 : vector<32x256xf32>, i32 -> vector<32x256xf32>
    %231 = arith.addf %216, %230 : vector<32x256xf32>
    %cst_66 = arith.constant dense<0.000000e+00> : vector<32x32xf32>
    %232 = tpu.matmul %231, %111, %cst_66 {dimension_numbers = #tpu.dot_dimension_numbers<[1], [0], [0], [1], [0, 0, 1, 1], [], []>, precision = #tpu.contract_precision<fp32>} : vector<32x256xf32>, vector<256x32xf32>, vector<32x32xf32> -> vector<32x32xf32>
    %233 = arith.addf %90, %232 : vector<32x32xf32>
    %234 = vector.extract_strided_slice %12 {offsets = [0, 4], sizes = [32, 4], strides = [1, 1]} : vector<32x16xf32> to vector<32x4xf32>
    %cst_67 = arith.constant dense<0xFF800000> : vector<32xf32>
    %235 = vector.multi_reduction <maximumf>, %234, %cst_67 [1] : vector<32x4xf32> to vector<32xf32>
    %236 = vector.shape_cast %235 : vector<32xf32> to vector<32x1xf32>
    %237 = vector.broadcast %236 : vector<32x1xf32> to vector<32x4xf32>
    %238 = arith.subf %234, %237 : vector<32x4xf32>
    %239 = math.exp %238 : vector<32x4xf32>
    %cst_68 = arith.constant dense<0.000000e+00> : vector<32xf32>
    %240 = vector.multi_reduction <add>, %239, %cst_68 [1] : vector<32x4xf32> to vector<32xf32>
    %241 = vector.shape_cast %240 : vector<32xf32> to vector<32x1xf32>
    %242 = vector.broadcast %241 : vector<32x1xf32> to vector<32x4xf32>
    %243 = arith.divf %239, %242 : vector<32x4xf32>
    %244 = vector.extract_strided_slice %68 {offsets = [0, 4], sizes = [32, 4], strides = [1, 1]} : vector<32x16xf32> to vector<32x4xf32>
    %245 = arith.mulf %243, %244 : vector<32x4xf32>
    %246 = vector.extract_strided_slice %72 {offsets = [0, 4], sizes = [32, 4], strides = [1, 1]} : vector<32x16xf32> to vector<32x4xf32>
    %247 = arith.mulf %243, %246 : vector<32x4xf32>
    %248 = vector.extract_strided_slice %76 {offsets = [0, 4], sizes = [32, 4], strides = [1, 1]} : vector<32x16xf32> to vector<32x4xf32>
    %249 = arith.mulf %243, %248 : vector<32x4xf32>
    %250 = vector.extract_strided_slice %80 {offsets = [0, 4], sizes = [32, 4], strides = [1, 1]} : vector<32x16xf32> to vector<32x4xf32>
    %251 = arith.mulf %243, %250 : vector<32x4xf32>
    %252 = vector.extract_strided_slice %88 {offsets = [0, 4], sizes = [32, 4], strides = [1, 1]} : vector<32x16xi32> to vector<32x4xi32>
    %c0_69 = arith.constant 0 : index
    %c1 = arith.constant 1 : index
    %c0_70 = arith.constant 0 : index
    %c0_71 = arith.constant 0 : index
    %253 = vector.load %arg5[%c0_69, %c1, %c0_70, %c0_71] : memref<1x4x256x32xf32, #tpu.memory_space<vmem>>, vector<1x1x256x32xf32>
    %254 = vector.shape_cast %253 : vector<1x1x256x32xf32> to vector<256x32xf32>
    %cst_72 = arith.constant 0.000000e+00 : f32
    %255 = vector.broadcast %cst_72 : f32 to vector<32x256xf32>
    %cst_73 = arith.constant 0.000000e+00 : f32
    %256 = vector.broadcast %cst_73 : f32 to vector<32x256xf32>
    %257 = vector.extract_strided_slice %252 {offsets = [0, 0], sizes = [32, 1], strides = [1, 1]} : vector<32x4xi32> to vector<32x1xi32>
    %258 = vector.broadcast %257 : vector<32x1xi32> to vector<32x256xi32>
    %259 = arith.cmpi eq, %89, %258 : vector<32x256xi32>
    %260 = vector.extract_strided_slice %245 {offsets = [0, 0], sizes = [32, 1], strides = [1, 1]} : vector<32x4xf32> to vector<32x1xf32>
    %cst_74 = arith.constant 0.000000e+00 : f32
    %261 = vector.shape_cast %260 : vector<32x1xf32> to vector<32x1xf32>
    %262 = vector.broadcast %261 : vector<32x1xf32> to vector<32x256xf32>
    %263 = vector.broadcast %cst_74 : f32 to vector<32x256xf32>
    %264 = arith.select %259, %262, %263 : vector<32x256xi1>, vector<32x256xf32>
    %265 = arith.addf %255, %264 : vector<32x256xf32>
    %266 = vector.extract_strided_slice %247 {offsets = [0, 0], sizes = [32, 1], strides = [1, 1]} : vector<32x4xf32> to vector<32x1xf32>
    %cst_75 = arith.constant 0.000000e+00 : f32
    %267 = vector.shape_cast %266 : vector<32x1xf32> to vector<32x1xf32>
    %268 = vector.broadcast %267 : vector<32x1xf32> to vector<32x256xf32>
    %269 = vector.broadcast %cst_75 : f32 to vector<32x256xf32>
    %270 = arith.select %259, %268, %269 : vector<32x256xi1>, vector<32x256xf32>
    %c1_i32_76 = arith.constant 1 : i32
    %271 = tpu.dynamic_rotate %270 by %c1_i32_76 dim 1 : vector<32x256xf32>, i32 -> vector<32x256xf32>
    %272 = arith.addf %265, %271 : vector<32x256xf32>
    %273 = vector.extract_strided_slice %249 {offsets = [0, 0], sizes = [32, 1], strides = [1, 1]} : vector<32x4xf32> to vector<32x1xf32>
    %cst_77 = arith.constant 0.000000e+00 : f32
    %274 = vector.shape_cast %273 : vector<32x1xf32> to vector<32x1xf32>
    %275 = vector.broadcast %274 : vector<32x1xf32> to vector<32x256xf32>
    %276 = vector.broadcast %cst_77 : f32 to vector<32x256xf32>
    %277 = arith.select %259, %275, %276 : vector<32x256xi1>, vector<32x256xf32>
    %278 = arith.addf %256, %277 : vector<32x256xf32>
    %279 = vector.extract_strided_slice %251 {offsets = [0, 0], sizes = [32, 1], strides = [1, 1]} : vector<32x4xf32> to vector<32x1xf32>
    %cst_78 = arith.constant 0.000000e+00 : f32
    %280 = vector.shape_cast %279 : vector<32x1xf32> to vector<32x1xf32>
    %281 = vector.broadcast %280 : vector<32x1xf32> to vector<32x256xf32>
    %282 = vector.broadcast %cst_78 : f32 to vector<32x256xf32>
    %283 = arith.select %259, %281, %282 : vector<32x256xi1>, vector<32x256xf32>
    %c1_i32_79 = arith.constant 1 : i32
    %284 = tpu.dynamic_rotate %283 by %c1_i32_79 dim 1 : vector<32x256xf32>, i32 -> vector<32x256xf32>
    %285 = arith.addf %278, %284 : vector<32x256xf32>
    %286 = vector.extract_strided_slice %252 {offsets = [0, 1], sizes = [32, 1], strides = [1, 1]} : vector<32x4xi32> to vector<32x1xi32>
    %287 = vector.broadcast %286 : vector<32x1xi32> to vector<32x256xi32>
    %288 = arith.cmpi eq, %89, %287 : vector<32x256xi32>
    %289 = vector.extract_strided_slice %245 {offsets = [0, 1], sizes = [32, 1], strides = [1, 1]} : vector<32x4xf32> to vector<32x1xf32>
    %cst_80 = arith.constant 0.000000e+00 : f32
    %290 = vector.shape_cast %289 : vector<32x1xf32> to vector<32x1xf32>
    %291 = vector.broadcast %290 : vector<32x1xf32> to vector<32x256xf32>
    %292 = vector.broadcast %cst_80 : f32 to vector<32x256xf32>
    %293 = arith.select %288, %291, %292 : vector<32x256xi1>, vector<32x256xf32>
    %294 = arith.addf %272, %293 : vector<32x256xf32>
    %295 = vector.extract_strided_slice %247 {offsets = [0, 1], sizes = [32, 1], strides = [1, 1]} : vector<32x4xf32> to vector<32x1xf32>
    %cst_81 = arith.constant 0.000000e+00 : f32
    %296 = vector.shape_cast %295 : vector<32x1xf32> to vector<32x1xf32>
    %297 = vector.broadcast %296 : vector<32x1xf32> to vector<32x256xf32>
    %298 = vector.broadcast %cst_81 : f32 to vector<32x256xf32>
    %299 = arith.select %288, %297, %298 : vector<32x256xi1>, vector<32x256xf32>
    %c1_i32_82 = arith.constant 1 : i32
    %300 = tpu.dynamic_rotate %299 by %c1_i32_82 dim 1 : vector<32x256xf32>, i32 -> vector<32x256xf32>
    %301 = arith.addf %294, %300 : vector<32x256xf32>
    %302 = vector.extract_strided_slice %249 {offsets = [0, 1], sizes = [32, 1], strides = [1, 1]} : vector<32x4xf32> to vector<32x1xf32>
    %cst_83 = arith.constant 0.000000e+00 : f32
    %303 = vector.shape_cast %302 : vector<32x1xf32> to vector<32x1xf32>
    %304 = vector.broadcast %303 : vector<32x1xf32> to vector<32x256xf32>
    %305 = vector.broadcast %cst_83 : f32 to vector<32x256xf32>
    %306 = arith.select %288, %304, %305 : vector<32x256xi1>, vector<32x256xf32>
    %307 = arith.addf %285, %306 : vector<32x256xf32>
    %308 = vector.extract_strided_slice %251 {offsets = [0, 1], sizes = [32, 1], strides = [1, 1]} : vector<32x4xf32> to vector<32x1xf32>
    %cst_84 = arith.constant 0.000000e+00 : f32
    %309 = vector.shape_cast %308 : vector<32x1xf32> to vector<32x1xf32>
    %310 = vector.broadcast %309 : vector<32x1xf32> to vector<32x256xf32>
    %311 = vector.broadcast %cst_84 : f32 to vector<32x256xf32>
    %312 = arith.select %288, %310, %311 : vector<32x256xi1>, vector<32x256xf32>
    %c1_i32_85 = arith.constant 1 : i32
    %313 = tpu.dynamic_rotate %312 by %c1_i32_85 dim 1 : vector<32x256xf32>, i32 -> vector<32x256xf32>
    %314 = arith.addf %307, %313 : vector<32x256xf32>
    %315 = vector.extract_strided_slice %252 {offsets = [0, 2], sizes = [32, 1], strides = [1, 1]} : vector<32x4xi32> to vector<32x1xi32>
    %316 = vector.broadcast %315 : vector<32x1xi32> to vector<32x256xi32>
    %317 = arith.cmpi eq, %89, %316 : vector<32x256xi32>
    %318 = vector.extract_strided_slice %245 {offsets = [0, 2], sizes = [32, 1], strides = [1, 1]} : vector<32x4xf32> to vector<32x1xf32>
    %cst_86 = arith.constant 0.000000e+00 : f32
    %319 = vector.shape_cast %318 : vector<32x1xf32> to vector<32x1xf32>
    %320 = vector.broadcast %319 : vector<32x1xf32> to vector<32x256xf32>
    %321 = vector.broadcast %cst_86 : f32 to vector<32x256xf32>
    %322 = arith.select %317, %320, %321 : vector<32x256xi1>, vector<32x256xf32>
    %323 = arith.addf %301, %322 : vector<32x256xf32>
    %324 = vector.extract_strided_slice %247 {offsets = [0, 2], sizes = [32, 1], strides = [1, 1]} : vector<32x4xf32> to vector<32x1xf32>
    %cst_87 = arith.constant 0.000000e+00 : f32
    %325 = vector.shape_cast %324 : vector<32x1xf32> to vector<32x1xf32>
    %326 = vector.broadcast %325 : vector<32x1xf32> to vector<32x256xf32>
    %327 = vector.broadcast %cst_87 : f32 to vector<32x256xf32>
    %328 = arith.select %317, %326, %327 : vector<32x256xi1>, vector<32x256xf32>
    %c1_i32_88 = arith.constant 1 : i32
    %329 = tpu.dynamic_rotate %328 by %c1_i32_88 dim 1 : vector<32x256xf32>, i32 -> vector<32x256xf32>
    %330 = arith.addf %323, %329 : vector<32x256xf32>
    %331 = vector.extract_strided_slice %249 {offsets = [0, 2], sizes = [32, 1], strides = [1, 1]} : vector<32x4xf32> to vector<32x1xf32>
    %cst_89 = arith.constant 0.000000e+00 : f32
    %332 = vector.shape_cast %331 : vector<32x1xf32> to vector<32x1xf32>
    %333 = vector.broadcast %332 : vector<32x1xf32> to vector<32x256xf32>
    %334 = vector.broadcast %cst_89 : f32 to vector<32x256xf32>
    %335 = arith.select %317, %333, %334 : vector<32x256xi1>, vector<32x256xf32>
    %336 = arith.addf %314, %335 : vector<32x256xf32>
    %337 = vector.extract_strided_slice %251 {offsets = [0, 2], sizes = [32, 1], strides = [1, 1]} : vector<32x4xf32> to vector<32x1xf32>
    %cst_90 = arith.constant 0.000000e+00 : f32
    %338 = vector.shape_cast %337 : vector<32x1xf32> to vector<32x1xf32>
    %339 = vector.broadcast %338 : vector<32x1xf32> to vector<32x256xf32>
    %340 = vector.broadcast %cst_90 : f32 to vector<32x256xf32>
    %341 = arith.select %317, %339, %340 : vector<32x256xi1>, vector<32x256xf32>
    %c1_i32_91 = arith.constant 1 : i32
    %342 = tpu.dynamic_rotate %341 by %c1_i32_91 dim 1 : vector<32x256xf32>, i32 -> vector<32x256xf32>
    %343 = arith.addf %336, %342 : vector<32x256xf32>
    %344 = vector.extract_strided_slice %252 {offsets = [0, 3], sizes = [32, 1], strides = [1, 1]} : vector<32x4xi32> to vector<32x1xi32>
    %345 = vector.broadcast %344 : vector<32x1xi32> to vector<32x256xi32>
    %346 = arith.cmpi eq, %89, %345 : vector<32x256xi32>
    %347 = vector.extract_strided_slice %245 {offsets = [0, 3], sizes = [32, 1], strides = [1, 1]} : vector<32x4xf32> to vector<32x1xf32>
    %cst_92 = arith.constant 0.000000e+00 : f32
    %348 = vector.shape_cast %347 : vector<32x1xf32> to vector<32x1xf32>
    %349 = vector.broadcast %348 : vector<32x1xf32> to vector<32x256xf32>
    %350 = vector.broadcast %cst_92 : f32 to vector<32x256xf32>
    %351 = arith.select %346, %349, %350 : vector<32x256xi1>, vector<32x256xf32>
    %352 = arith.addf %330, %351 : vector<32x256xf32>
    %353 = vector.extract_strided_slice %247 {offsets = [0, 3], sizes = [32, 1], strides = [1, 1]} : vector<32x4xf32> to vector<32x1xf32>
    %cst_93 = arith.constant 0.000000e+00 : f32
    %354 = vector.shape_cast %353 : vector<32x1xf32> to vector<32x1xf32>
    %355 = vector.broadcast %354 : vector<32x1xf32> to vector<32x256xf32>
    %356 = vector.broadcast %cst_93 : f32 to vector<32x256xf32>
    %357 = arith.select %346, %355, %356 : vector<32x256xi1>, vector<32x256xf32>
    %c1_i32_94 = arith.constant 1 : i32
    %358 = tpu.dynamic_rotate %357 by %c1_i32_94 dim 1 : vector<32x256xf32>, i32 -> vector<32x256xf32>
    %359 = arith.addf %352, %358 : vector<32x256xf32>
    %360 = vector.extract_strided_slice %249 {offsets = [0, 3], sizes = [32, 1], strides = [1, 1]} : vector<32x4xf32> to vector<32x1xf32>
    %cst_95 = arith.constant 0.000000e+00 : f32
    %361 = vector.shape_cast %360 : vector<32x1xf32> to vector<32x1xf32>
    %362 = vector.broadcast %361 : vector<32x1xf32> to vector<32x256xf32>
    %363 = vector.broadcast %cst_95 : f32 to vector<32x256xf32>
    %364 = arith.select %346, %362, %363 : vector<32x256xi1>, vector<32x256xf32>
    %365 = arith.addf %343, %364 : vector<32x256xf32>
    %366 = vector.extract_strided_slice %251 {offsets = [0, 3], sizes = [32, 1], strides = [1, 1]} : vector<32x4xf32> to vector<32x1xf32>
    %cst_96 = arith.constant 0.000000e+00 : f32
    %367 = vector.shape_cast %366 : vector<32x1xf32> to vector<32x1xf32>
    %368 = vector.broadcast %367 : vector<32x1xf32> to vector<32x256xf32>
    %369 = vector.broadcast %cst_96 : f32 to vector<32x256xf32>
    %370 = arith.select %346, %368, %369 : vector<32x256xi1>, vector<32x256xf32>
    %c1_i32_97 = arith.constant 1 : i32
    %371 = tpu.dynamic_rotate %370 by %c1_i32_97 dim 1 : vector<32x256xf32>, i32 -> vector<32x256xf32>
    %372 = arith.addf %365, %371 : vector<32x256xf32>
    %c16_i32_98 = arith.constant 16 : i32
    %373 = tpu.dynamic_rotate %372 by %c16_i32_98 dim 1 : vector<32x256xf32>, i32 -> vector<32x256xf32>
    %374 = arith.addf %359, %373 : vector<32x256xf32>
    %cst_99 = arith.constant dense<0.000000e+00> : vector<32x32xf32>
    %375 = tpu.matmul %374, %254, %cst_99 {dimension_numbers = #tpu.dot_dimension_numbers<[1], [0], [0], [1], [0, 0, 1, 1], [], []>, precision = #tpu.contract_precision<fp32>} : vector<32x256xf32>, vector<256x32xf32>, vector<32x32xf32> -> vector<32x32xf32>
    %376 = arith.addf %233, %375 : vector<32x32xf32>
    %377 = vector.extract_strided_slice %12 {offsets = [0, 8], sizes = [32, 4], strides = [1, 1]} : vector<32x16xf32> to vector<32x4xf32>
    %cst_100 = arith.constant dense<0xFF800000> : vector<32xf32>
    %378 = vector.multi_reduction <maximumf>, %377, %cst_100 [1] : vector<32x4xf32> to vector<32xf32>
    %379 = vector.shape_cast %378 : vector<32xf32> to vector<32x1xf32>
    %380 = vector.broadcast %379 : vector<32x1xf32> to vector<32x4xf32>
    %381 = arith.subf %377, %380 : vector<32x4xf32>
    %382 = math.exp %381 : vector<32x4xf32>
    %cst_101 = arith.constant dense<0.000000e+00> : vector<32xf32>
    %383 = vector.multi_reduction <add>, %382, %cst_101 [1] : vector<32x4xf32> to vector<32xf32>
    %384 = vector.shape_cast %383 : vector<32xf32> to vector<32x1xf32>
    %385 = vector.broadcast %384 : vector<32x1xf32> to vector<32x4xf32>
    %386 = arith.divf %382, %385 : vector<32x4xf32>
    %387 = vector.extract_strided_slice %68 {offsets = [0, 8], sizes = [32, 4], strides = [1, 1]} : vector<32x16xf32> to vector<32x4xf32>
    %388 = arith.mulf %386, %387 : vector<32x4xf32>
    %389 = vector.extract_strided_slice %72 {offsets = [0, 8], sizes = [32, 4], strides = [1, 1]} : vector<32x16xf32> to vector<32x4xf32>
    %390 = arith.mulf %386, %389 : vector<32x4xf32>
    %391 = vector.extract_strided_slice %76 {offsets = [0, 8], sizes = [32, 4], strides = [1, 1]} : vector<32x16xf32> to vector<32x4xf32>
    %392 = arith.mulf %386, %391 : vector<32x4xf32>
    %393 = vector.extract_strided_slice %80 {offsets = [0, 8], sizes = [32, 4], strides = [1, 1]} : vector<32x16xf32> to vector<32x4xf32>
    %394 = arith.mulf %386, %393 : vector<32x4xf32>
    %395 = vector.extract_strided_slice %88 {offsets = [0, 8], sizes = [32, 4], strides = [1, 1]} : vector<32x16xi32> to vector<32x4xi32>
    %c0_102 = arith.constant 0 : index
    %c2 = arith.constant 2 : index
    %c0_103 = arith.constant 0 : index
    %c0_104 = arith.constant 0 : index
    %396 = vector.load %arg5[%c0_102, %c2, %c0_103, %c0_104] : memref<1x4x256x32xf32, #tpu.memory_space<vmem>>, vector<1x1x256x32xf32>
    %397 = vector.shape_cast %396 : vector<1x1x256x32xf32> to vector<256x32xf32>
    %cst_105 = arith.constant 0.000000e+00 : f32
    %398 = vector.broadcast %cst_105 : f32 to vector<32x256xf32>
    %cst_106 = arith.constant 0.000000e+00 : f32
    %399 = vector.broadcast %cst_106 : f32 to vector<32x256xf32>
    %400 = vector.extract_strided_slice %395 {offsets = [0, 0], sizes = [32, 1], strides = [1, 1]} : vector<32x4xi32> to vector<32x1xi32>
    %401 = vector.broadcast %400 : vector<32x1xi32> to vector<32x256xi32>
    %402 = arith.cmpi eq, %89, %401 : vector<32x256xi32>
    %403 = vector.extract_strided_slice %388 {offsets = [0, 0], sizes = [32, 1], strides = [1, 1]} : vector<32x4xf32> to vector<32x1xf32>
    %cst_107 = arith.constant 0.000000e+00 : f32
    %404 = vector.shape_cast %403 : vector<32x1xf32> to vector<32x1xf32>
    %405 = vector.broadcast %404 : vector<32x1xf32> to vector<32x256xf32>
    %406 = vector.broadcast %cst_107 : f32 to vector<32x256xf32>
    %407 = arith.select %402, %405, %406 : vector<32x256xi1>, vector<32x256xf32>
    %408 = arith.addf %398, %407 : vector<32x256xf32>
    %409 = vector.extract_strided_slice %390 {offsets = [0, 0], sizes = [32, 1], strides = [1, 1]} : vector<32x4xf32> to vector<32x1xf32>
    %cst_108 = arith.constant 0.000000e+00 : f32
    %410 = vector.shape_cast %409 : vector<32x1xf32> to vector<32x1xf32>
    %411 = vector.broadcast %410 : vector<32x1xf32> to vector<32x256xf32>
    %412 = vector.broadcast %cst_108 : f32 to vector<32x256xf32>
    %413 = arith.select %402, %411, %412 : vector<32x256xi1>, vector<32x256xf32>
    %c1_i32_109 = arith.constant 1 : i32
    %414 = tpu.dynamic_rotate %413 by %c1_i32_109 dim 1 : vector<32x256xf32>, i32 -> vector<32x256xf32>
    %415 = arith.addf %408, %414 : vector<32x256xf32>
    %416 = vector.extract_strided_slice %392 {offsets = [0, 0], sizes = [32, 1], strides = [1, 1]} : vector<32x4xf32> to vector<32x1xf32>
    %cst_110 = arith.constant 0.000000e+00 : f32
    %417 = vector.shape_cast %416 : vector<32x1xf32> to vector<32x1xf32>
    %418 = vector.broadcast %417 : vector<32x1xf32> to vector<32x256xf32>
    %419 = vector.broadcast %cst_110 : f32 to vector<32x256xf32>
    %420 = arith.select %402, %418, %419 : vector<32x256xi1>, vector<32x256xf32>
    %421 = arith.addf %399, %420 : vector<32x256xf32>
    %422 = vector.extract_strided_slice %394 {offsets = [0, 0], sizes = [32, 1], strides = [1, 1]} : vector<32x4xf32> to vector<32x1xf32>
    %cst_111 = arith.constant 0.000000e+00 : f32
    %423 = vector.shape_cast %422 : vector<32x1xf32> to vector<32x1xf32>
    %424 = vector.broadcast %423 : vector<32x1xf32> to vector<32x256xf32>
    %425 = vector.broadcast %cst_111 : f32 to vector<32x256xf32>
    %426 = arith.select %402, %424, %425 : vector<32x256xi1>, vector<32x256xf32>
    %c1_i32_112 = arith.constant 1 : i32
    %427 = tpu.dynamic_rotate %426 by %c1_i32_112 dim 1 : vector<32x256xf32>, i32 -> vector<32x256xf32>
    %428 = arith.addf %421, %427 : vector<32x256xf32>
    %429 = vector.extract_strided_slice %395 {offsets = [0, 1], sizes = [32, 1], strides = [1, 1]} : vector<32x4xi32> to vector<32x1xi32>
    %430 = vector.broadcast %429 : vector<32x1xi32> to vector<32x256xi32>
    %431 = arith.cmpi eq, %89, %430 : vector<32x256xi32>
    %432 = vector.extract_strided_slice %388 {offsets = [0, 1], sizes = [32, 1], strides = [1, 1]} : vector<32x4xf32> to vector<32x1xf32>
    %cst_113 = arith.constant 0.000000e+00 : f32
    %433 = vector.shape_cast %432 : vector<32x1xf32> to vector<32x1xf32>
    %434 = vector.broadcast %433 : vector<32x1xf32> to vector<32x256xf32>
    %435 = vector.broadcast %cst_113 : f32 to vector<32x256xf32>
    %436 = arith.select %431, %434, %435 : vector<32x256xi1>, vector<32x256xf32>
    %437 = arith.addf %415, %436 : vector<32x256xf32>
    %438 = vector.extract_strided_slice %390 {offsets = [0, 1], sizes = [32, 1], strides = [1, 1]} : vector<32x4xf32> to vector<32x1xf32>
    %cst_114 = arith.constant 0.000000e+00 : f32
    %439 = vector.shape_cast %438 : vector<32x1xf32> to vector<32x1xf32>
    %440 = vector.broadcast %439 : vector<32x1xf32> to vector<32x256xf32>
    %441 = vector.broadcast %cst_114 : f32 to vector<32x256xf32>
    %442 = arith.select %431, %440, %441 : vector<32x256xi1>, vector<32x256xf32>
    %c1_i32_115 = arith.constant 1 : i32
    %443 = tpu.dynamic_rotate %442 by %c1_i32_115 dim 1 : vector<32x256xf32>, i32 -> vector<32x256xf32>
    %444 = arith.addf %437, %443 : vector<32x256xf32>
    %445 = vector.extract_strided_slice %392 {offsets = [0, 1], sizes = [32, 1], strides = [1, 1]} : vector<32x4xf32> to vector<32x1xf32>
    %cst_116 = arith.constant 0.000000e+00 : f32
    %446 = vector.shape_cast %445 : vector<32x1xf32> to vector<32x1xf32>
    %447 = vector.broadcast %446 : vector<32x1xf32> to vector<32x256xf32>
    %448 = vector.broadcast %cst_116 : f32 to vector<32x256xf32>
    %449 = arith.select %431, %447, %448 : vector<32x256xi1>, vector<32x256xf32>
    %450 = arith.addf %428, %449 : vector<32x256xf32>
    %451 = vector.extract_strided_slice %394 {offsets = [0, 1], sizes = [32, 1], strides = [1, 1]} : vector<32x4xf32> to vector<32x1xf32>
    %cst_117 = arith.constant 0.000000e+00 : f32
    %452 = vector.shape_cast %451 : vector<32x1xf32> to vector<32x1xf32>
    %453 = vector.broadcast %452 : vector<32x1xf32> to vector<32x256xf32>
    %454 = vector.broadcast %cst_117 : f32 to vector<32x256xf32>
    %455 = arith.select %431, %453, %454 : vector<32x256xi1>, vector<32x256xf32>
    %c1_i32_118 = arith.constant 1 : i32
    %456 = tpu.dynamic_rotate %455 by %c1_i32_118 dim 1 : vector<32x256xf32>, i32 -> vector<32x256xf32>
    %457 = arith.addf %450, %456 : vector<32x256xf32>
    %458 = vector.extract_strided_slice %395 {offsets = [0, 2], sizes = [32, 1], strides = [1, 1]} : vector<32x4xi32> to vector<32x1xi32>
    %459 = vector.broadcast %458 : vector<32x1xi32> to vector<32x256xi32>
    %460 = arith.cmpi eq, %89, %459 : vector<32x256xi32>
    %461 = vector.extract_strided_slice %388 {offsets = [0, 2], sizes = [32, 1], strides = [1, 1]} : vector<32x4xf32> to vector<32x1xf32>
    %cst_119 = arith.constant 0.000000e+00 : f32
    %462 = vector.shape_cast %461 : vector<32x1xf32> to vector<32x1xf32>
    %463 = vector.broadcast %462 : vector<32x1xf32> to vector<32x256xf32>
    %464 = vector.broadcast %cst_119 : f32 to vector<32x256xf32>
    %465 = arith.select %460, %463, %464 : vector<32x256xi1>, vector<32x256xf32>
    %466 = arith.addf %444, %465 : vector<32x256xf32>
    %467 = vector.extract_strided_slice %390 {offsets = [0, 2], sizes = [32, 1], strides = [1, 1]} : vector<32x4xf32> to vector<32x1xf32>
    %cst_120 = arith.constant 0.000000e+00 : f32
    %468 = vector.shape_cast %467 : vector<32x1xf32> to vector<32x1xf32>
    %469 = vector.broadcast %468 : vector<32x1xf32> to vector<32x256xf32>
    %470 = vector.broadcast %cst_120 : f32 to vector<32x256xf32>
    %471 = arith.select %460, %469, %470 : vector<32x256xi1>, vector<32x256xf32>
    %c1_i32_121 = arith.constant 1 : i32
    %472 = tpu.dynamic_rotate %471 by %c1_i32_121 dim 1 : vector<32x256xf32>, i32 -> vector<32x256xf32>
    %473 = arith.addf %466, %472 : vector<32x256xf32>
    %474 = vector.extract_strided_slice %392 {offsets = [0, 2], sizes = [32, 1], strides = [1, 1]} : vector<32x4xf32> to vector<32x1xf32>
    %cst_122 = arith.constant 0.000000e+00 : f32
    %475 = vector.shape_cast %474 : vector<32x1xf32> to vector<32x1xf32>
    %476 = vector.broadcast %475 : vector<32x1xf32> to vector<32x256xf32>
    %477 = vector.broadcast %cst_122 : f32 to vector<32x256xf32>
    %478 = arith.select %460, %476, %477 : vector<32x256xi1>, vector<32x256xf32>
    %479 = arith.addf %457, %478 : vector<32x256xf32>
    %480 = vector.extract_strided_slice %394 {offsets = [0, 2], sizes = [32, 1], strides = [1, 1]} : vector<32x4xf32> to vector<32x1xf32>
    %cst_123 = arith.constant 0.000000e+00 : f32
    %481 = vector.shape_cast %480 : vector<32x1xf32> to vector<32x1xf32>
    %482 = vector.broadcast %481 : vector<32x1xf32> to vector<32x256xf32>
    %483 = vector.broadcast %cst_123 : f32 to vector<32x256xf32>
    %484 = arith.select %460, %482, %483 : vector<32x256xi1>, vector<32x256xf32>
    %c1_i32_124 = arith.constant 1 : i32
    %485 = tpu.dynamic_rotate %484 by %c1_i32_124 dim 1 : vector<32x256xf32>, i32 -> vector<32x256xf32>
    %486 = arith.addf %479, %485 : vector<32x256xf32>
    %487 = vector.extract_strided_slice %395 {offsets = [0, 3], sizes = [32, 1], strides = [1, 1]} : vector<32x4xi32> to vector<32x1xi32>
    %488 = vector.broadcast %487 : vector<32x1xi32> to vector<32x256xi32>
    %489 = arith.cmpi eq, %89, %488 : vector<32x256xi32>
    %490 = vector.extract_strided_slice %388 {offsets = [0, 3], sizes = [32, 1], strides = [1, 1]} : vector<32x4xf32> to vector<32x1xf32>
    %cst_125 = arith.constant 0.000000e+00 : f32
    %491 = vector.shape_cast %490 : vector<32x1xf32> to vector<32x1xf32>
    %492 = vector.broadcast %491 : vector<32x1xf32> to vector<32x256xf32>
    %493 = vector.broadcast %cst_125 : f32 to vector<32x256xf32>
    %494 = arith.select %489, %492, %493 : vector<32x256xi1>, vector<32x256xf32>
    %495 = arith.addf %473, %494 : vector<32x256xf32>
    %496 = vector.extract_strided_slice %390 {offsets = [0, 3], sizes = [32, 1], strides = [1, 1]} : vector<32x4xf32> to vector<32x1xf32>
    %cst_126 = arith.constant 0.000000e+00 : f32
    %497 = vector.shape_cast %496 : vector<32x1xf32> to vector<32x1xf32>
    %498 = vector.broadcast %497 : vector<32x1xf32> to vector<32x256xf32>
    %499 = vector.broadcast %cst_126 : f32 to vector<32x256xf32>
    %500 = arith.select %489, %498, %499 : vector<32x256xi1>, vector<32x256xf32>
    %c1_i32_127 = arith.constant 1 : i32
    %501 = tpu.dynamic_rotate %500 by %c1_i32_127 dim 1 : vector<32x256xf32>, i32 -> vector<32x256xf32>
    %502 = arith.addf %495, %501 : vector<32x256xf32>
    %503 = vector.extract_strided_slice %392 {offsets = [0, 3], sizes = [32, 1], strides = [1, 1]} : vector<32x4xf32> to vector<32x1xf32>
    %cst_128 = arith.constant 0.000000e+00 : f32
    %504 = vector.shape_cast %503 : vector<32x1xf32> to vector<32x1xf32>
    %505 = vector.broadcast %504 : vector<32x1xf32> to vector<32x256xf32>
    %506 = vector.broadcast %cst_128 : f32 to vector<32x256xf32>
    %507 = arith.select %489, %505, %506 : vector<32x256xi1>, vector<32x256xf32>
    %508 = arith.addf %486, %507 : vector<32x256xf32>
    %509 = vector.extract_strided_slice %394 {offsets = [0, 3], sizes = [32, 1], strides = [1, 1]} : vector<32x4xf32> to vector<32x1xf32>
    %cst_129 = arith.constant 0.000000e+00 : f32
    %510 = vector.shape_cast %509 : vector<32x1xf32> to vector<32x1xf32>
    %511 = vector.broadcast %510 : vector<32x1xf32> to vector<32x256xf32>
    %512 = vector.broadcast %cst_129 : f32 to vector<32x256xf32>
    %513 = arith.select %489, %511, %512 : vector<32x256xi1>, vector<32x256xf32>
    %c1_i32_130 = arith.constant 1 : i32
    %514 = tpu.dynamic_rotate %513 by %c1_i32_130 dim 1 : vector<32x256xf32>, i32 -> vector<32x256xf32>
    %515 = arith.addf %508, %514 : vector<32x256xf32>
    %c16_i32_131 = arith.constant 16 : i32
    %516 = tpu.dynamic_rotate %515 by %c16_i32_131 dim 1 : vector<32x256xf32>, i32 -> vector<32x256xf32>
    %517 = arith.addf %502, %516 : vector<32x256xf32>
    %cst_132 = arith.constant dense<0.000000e+00> : vector<32x32xf32>
    %518 = tpu.matmul %517, %397, %cst_132 {dimension_numbers = #tpu.dot_dimension_numbers<[1], [0], [0], [1], [0, 0, 1, 1], [], []>, precision = #tpu.contract_precision<fp32>} : vector<32x256xf32>, vector<256x32xf32>, vector<32x32xf32> -> vector<32x32xf32>
    %519 = arith.addf %376, %518 : vector<32x32xf32>
    %520 = vector.extract_strided_slice %12 {offsets = [0, 12], sizes = [32, 4], strides = [1, 1]} : vector<32x16xf32> to vector<32x4xf32>
    %cst_133 = arith.constant dense<0xFF800000> : vector<32xf32>
    %521 = vector.multi_reduction <maximumf>, %520, %cst_133 [1] : vector<32x4xf32> to vector<32xf32>
    %522 = vector.shape_cast %521 : vector<32xf32> to vector<32x1xf32>
    %523 = vector.broadcast %522 : vector<32x1xf32> to vector<32x4xf32>
    %524 = arith.subf %520, %523 : vector<32x4xf32>
    %525 = math.exp %524 : vector<32x4xf32>
    %cst_134 = arith.constant dense<0.000000e+00> : vector<32xf32>
    %526 = vector.multi_reduction <add>, %525, %cst_134 [1] : vector<32x4xf32> to vector<32xf32>
    %527 = vector.shape_cast %526 : vector<32xf32> to vector<32x1xf32>
    %528 = vector.broadcast %527 : vector<32x1xf32> to vector<32x4xf32>
    %529 = arith.divf %525, %528 : vector<32x4xf32>
    %530 = vector.extract_strided_slice %68 {offsets = [0, 12], sizes = [32, 4], strides = [1, 1]} : vector<32x16xf32> to vector<32x4xf32>
    %531 = arith.mulf %529, %530 : vector<32x4xf32>
    %532 = vector.extract_strided_slice %72 {offsets = [0, 12], sizes = [32, 4], strides = [1, 1]} : vector<32x16xf32> to vector<32x4xf32>
    %533 = arith.mulf %529, %532 : vector<32x4xf32>
    %534 = vector.extract_strided_slice %76 {offsets = [0, 12], sizes = [32, 4], strides = [1, 1]} : vector<32x16xf32> to vector<32x4xf32>
    %535 = arith.mulf %529, %534 : vector<32x4xf32>
    %536 = vector.extract_strided_slice %80 {offsets = [0, 12], sizes = [32, 4], strides = [1, 1]} : vector<32x16xf32> to vector<32x4xf32>
    %537 = arith.mulf %529, %536 : vector<32x4xf32>
    %538 = vector.extract_strided_slice %88 {offsets = [0, 12], sizes = [32, 4], strides = [1, 1]} : vector<32x16xi32> to vector<32x4xi32>
    %c0_135 = arith.constant 0 : index
    %c3 = arith.constant 3 : index
    %c0_136 = arith.constant 0 : index
    %c0_137 = arith.constant 0 : index
    %539 = vector.load %arg5[%c0_135, %c3, %c0_136, %c0_137] : memref<1x4x256x32xf32, #tpu.memory_space<vmem>>, vector<1x1x256x32xf32>
    %540 = vector.shape_cast %539 : vector<1x1x256x32xf32> to vector<256x32xf32>
    %cst_138 = arith.constant 0.000000e+00 : f32
    %541 = vector.broadcast %cst_138 : f32 to vector<32x256xf32>
    %cst_139 = arith.constant 0.000000e+00 : f32
    %542 = vector.broadcast %cst_139 : f32 to vector<32x256xf32>
    %543 = vector.extract_strided_slice %538 {offsets = [0, 0], sizes = [32, 1], strides = [1, 1]} : vector<32x4xi32> to vector<32x1xi32>
    %544 = vector.broadcast %543 : vector<32x1xi32> to vector<32x256xi32>
    %545 = arith.cmpi eq, %89, %544 : vector<32x256xi32>
    %546 = vector.extract_strided_slice %531 {offsets = [0, 0], sizes = [32, 1], strides = [1, 1]} : vector<32x4xf32> to vector<32x1xf32>
    %cst_140 = arith.constant 0.000000e+00 : f32
    %547 = vector.shape_cast %546 : vector<32x1xf32> to vector<32x1xf32>
    %548 = vector.broadcast %547 : vector<32x1xf32> to vector<32x256xf32>
    %549 = vector.broadcast %cst_140 : f32 to vector<32x256xf32>
    %550 = arith.select %545, %548, %549 : vector<32x256xi1>, vector<32x256xf32>
    %551 = arith.addf %541, %550 : vector<32x256xf32>
    %552 = vector.extract_strided_slice %533 {offsets = [0, 0], sizes = [32, 1], strides = [1, 1]} : vector<32x4xf32> to vector<32x1xf32>
    %cst_141 = arith.constant 0.000000e+00 : f32
    %553 = vector.shape_cast %552 : vector<32x1xf32> to vector<32x1xf32>
    %554 = vector.broadcast %553 : vector<32x1xf32> to vector<32x256xf32>
    %555 = vector.broadcast %cst_141 : f32 to vector<32x256xf32>
    %556 = arith.select %545, %554, %555 : vector<32x256xi1>, vector<32x256xf32>
    %c1_i32_142 = arith.constant 1 : i32
    %557 = tpu.dynamic_rotate %556 by %c1_i32_142 dim 1 : vector<32x256xf32>, i32 -> vector<32x256xf32>
    %558 = arith.addf %551, %557 : vector<32x256xf32>
    %559 = vector.extract_strided_slice %535 {offsets = [0, 0], sizes = [32, 1], strides = [1, 1]} : vector<32x4xf32> to vector<32x1xf32>
    %cst_143 = arith.constant 0.000000e+00 : f32
    %560 = vector.shape_cast %559 : vector<32x1xf32> to vector<32x1xf32>
    %561 = vector.broadcast %560 : vector<32x1xf32> to vector<32x256xf32>
    %562 = vector.broadcast %cst_143 : f32 to vector<32x256xf32>
    %563 = arith.select %545, %561, %562 : vector<32x256xi1>, vector<32x256xf32>
    %564 = arith.addf %542, %563 : vector<32x256xf32>
    %565 = vector.extract_strided_slice %537 {offsets = [0, 0], sizes = [32, 1], strides = [1, 1]} : vector<32x4xf32> to vector<32x1xf32>
    %cst_144 = arith.constant 0.000000e+00 : f32
    %566 = vector.shape_cast %565 : vector<32x1xf32> to vector<32x1xf32>
    %567 = vector.broadcast %566 : vector<32x1xf32> to vector<32x256xf32>
    %568 = vector.broadcast %cst_144 : f32 to vector<32x256xf32>
    %569 = arith.select %545, %567, %568 : vector<32x256xi1>, vector<32x256xf32>
    %c1_i32_145 = arith.constant 1 : i32
    %570 = tpu.dynamic_rotate %569 by %c1_i32_145 dim 1 : vector<32x256xf32>, i32 -> vector<32x256xf32>
    %571 = arith.addf %564, %570 : vector<32x256xf32>
    %572 = vector.extract_strided_slice %538 {offsets = [0, 1], sizes = [32, 1], strides = [1, 1]} : vector<32x4xi32> to vector<32x1xi32>
    %573 = vector.broadcast %572 : vector<32x1xi32> to vector<32x256xi32>
    %574 = arith.cmpi eq, %89, %573 : vector<32x256xi32>
    %575 = vector.extract_strided_slice %531 {offsets = [0, 1], sizes = [32, 1], strides = [1, 1]} : vector<32x4xf32> to vector<32x1xf32>
    %cst_146 = arith.constant 0.000000e+00 : f32
    %576 = vector.shape_cast %575 : vector<32x1xf32> to vector<32x1xf32>
    %577 = vector.broadcast %576 : vector<32x1xf32> to vector<32x256xf32>
    %578 = vector.broadcast %cst_146 : f32 to vector<32x256xf32>
    %579 = arith.select %574, %577, %578 : vector<32x256xi1>, vector<32x256xf32>
    %580 = arith.addf %558, %579 : vector<32x256xf32>
    %581 = vector.extract_strided_slice %533 {offsets = [0, 1], sizes = [32, 1], strides = [1, 1]} : vector<32x4xf32> to vector<32x1xf32>
    %cst_147 = arith.constant 0.000000e+00 : f32
    %582 = vector.shape_cast %581 : vector<32x1xf32> to vector<32x1xf32>
    %583 = vector.broadcast %582 : vector<32x1xf32> to vector<32x256xf32>
    %584 = vector.broadcast %cst_147 : f32 to vector<32x256xf32>
    %585 = arith.select %574, %583, %584 : vector<32x256xi1>, vector<32x256xf32>
    %c1_i32_148 = arith.constant 1 : i32
    %586 = tpu.dynamic_rotate %585 by %c1_i32_148 dim 1 : vector<32x256xf32>, i32 -> vector<32x256xf32>
    %587 = arith.addf %580, %586 : vector<32x256xf32>
    %588 = vector.extract_strided_slice %535 {offsets = [0, 1], sizes = [32, 1], strides = [1, 1]} : vector<32x4xf32> to vector<32x1xf32>
    %cst_149 = arith.constant 0.000000e+00 : f32
    %589 = vector.shape_cast %588 : vector<32x1xf32> to vector<32x1xf32>
    %590 = vector.broadcast %589 : vector<32x1xf32> to vector<32x256xf32>
    %591 = vector.broadcast %cst_149 : f32 to vector<32x256xf32>
    %592 = arith.select %574, %590, %591 : vector<32x256xi1>, vector<32x256xf32>
    %593 = arith.addf %571, %592 : vector<32x256xf32>
    %594 = vector.extract_strided_slice %537 {offsets = [0, 1], sizes = [32, 1], strides = [1, 1]} : vector<32x4xf32> to vector<32x1xf32>
    %cst_150 = arith.constant 0.000000e+00 : f32
    %595 = vector.shape_cast %594 : vector<32x1xf32> to vector<32x1xf32>
    %596 = vector.broadcast %595 : vector<32x1xf32> to vector<32x256xf32>
    %597 = vector.broadcast %cst_150 : f32 to vector<32x256xf32>
    %598 = arith.select %574, %596, %597 : vector<32x256xi1>, vector<32x256xf32>
    %c1_i32_151 = arith.constant 1 : i32
    %599 = tpu.dynamic_rotate %598 by %c1_i32_151 dim 1 : vector<32x256xf32>, i32 -> vector<32x256xf32>
    %600 = arith.addf %593, %599 : vector<32x256xf32>
    %601 = vector.extract_strided_slice %538 {offsets = [0, 2], sizes = [32, 1], strides = [1, 1]} : vector<32x4xi32> to vector<32x1xi32>
    %602 = vector.broadcast %601 : vector<32x1xi32> to vector<32x256xi32>
    %603 = arith.cmpi eq, %89, %602 : vector<32x256xi32>
    %604 = vector.extract_strided_slice %531 {offsets = [0, 2], sizes = [32, 1], strides = [1, 1]} : vector<32x4xf32> to vector<32x1xf32>
    %cst_152 = arith.constant 0.000000e+00 : f32
    %605 = vector.shape_cast %604 : vector<32x1xf32> to vector<32x1xf32>
    %606 = vector.broadcast %605 : vector<32x1xf32> to vector<32x256xf32>
    %607 = vector.broadcast %cst_152 : f32 to vector<32x256xf32>
    %608 = arith.select %603, %606, %607 : vector<32x256xi1>, vector<32x256xf32>
    %609 = arith.addf %587, %608 : vector<32x256xf32>
    %610 = vector.extract_strided_slice %533 {offsets = [0, 2], sizes = [32, 1], strides = [1, 1]} : vector<32x4xf32> to vector<32x1xf32>
    %cst_153 = arith.constant 0.000000e+00 : f32
    %611 = vector.shape_cast %610 : vector<32x1xf32> to vector<32x1xf32>
    %612 = vector.broadcast %611 : vector<32x1xf32> to vector<32x256xf32>
    %613 = vector.broadcast %cst_153 : f32 to vector<32x256xf32>
    %614 = arith.select %603, %612, %613 : vector<32x256xi1>, vector<32x256xf32>
    %c1_i32_154 = arith.constant 1 : i32
    %615 = tpu.dynamic_rotate %614 by %c1_i32_154 dim 1 : vector<32x256xf32>, i32 -> vector<32x256xf32>
    %616 = arith.addf %609, %615 : vector<32x256xf32>
    %617 = vector.extract_strided_slice %535 {offsets = [0, 2], sizes = [32, 1], strides = [1, 1]} : vector<32x4xf32> to vector<32x1xf32>
    %cst_155 = arith.constant 0.000000e+00 : f32
    %618 = vector.shape_cast %617 : vector<32x1xf32> to vector<32x1xf32>
    %619 = vector.broadcast %618 : vector<32x1xf32> to vector<32x256xf32>
    %620 = vector.broadcast %cst_155 : f32 to vector<32x256xf32>
    %621 = arith.select %603, %619, %620 : vector<32x256xi1>, vector<32x256xf32>
    %622 = arith.addf %600, %621 : vector<32x256xf32>
    %623 = vector.extract_strided_slice %537 {offsets = [0, 2], sizes = [32, 1], strides = [1, 1]} : vector<32x4xf32> to vector<32x1xf32>
    %cst_156 = arith.constant 0.000000e+00 : f32
    %624 = vector.shape_cast %623 : vector<32x1xf32> to vector<32x1xf32>
    %625 = vector.broadcast %624 : vector<32x1xf32> to vector<32x256xf32>
    %626 = vector.broadcast %cst_156 : f32 to vector<32x256xf32>
    %627 = arith.select %603, %625, %626 : vector<32x256xi1>, vector<32x256xf32>
    %c1_i32_157 = arith.constant 1 : i32
    %628 = tpu.dynamic_rotate %627 by %c1_i32_157 dim 1 : vector<32x256xf32>, i32 -> vector<32x256xf32>
    %629 = arith.addf %622, %628 : vector<32x256xf32>
    %630 = vector.extract_strided_slice %538 {offsets = [0, 3], sizes = [32, 1], strides = [1, 1]} : vector<32x4xi32> to vector<32x1xi32>
    %631 = vector.broadcast %630 : vector<32x1xi32> to vector<32x256xi32>
    %632 = arith.cmpi eq, %89, %631 : vector<32x256xi32>
    %633 = vector.extract_strided_slice %531 {offsets = [0, 3], sizes = [32, 1], strides = [1, 1]} : vector<32x4xf32> to vector<32x1xf32>
    %cst_158 = arith.constant 0.000000e+00 : f32
    %634 = vector.shape_cast %633 : vector<32x1xf32> to vector<32x1xf32>
    %635 = vector.broadcast %634 : vector<32x1xf32> to vector<32x256xf32>
    %636 = vector.broadcast %cst_158 : f32 to vector<32x256xf32>
    %637 = arith.select %632, %635, %636 : vector<32x256xi1>, vector<32x256xf32>
    %638 = arith.addf %616, %637 : vector<32x256xf32>
    %639 = vector.extract_strided_slice %533 {offsets = [0, 3], sizes = [32, 1], strides = [1, 1]} : vector<32x4xf32> to vector<32x1xf32>
    %cst_159 = arith.constant 0.000000e+00 : f32
    %640 = vector.shape_cast %639 : vector<32x1xf32> to vector<32x1xf32>
    %641 = vector.broadcast %640 : vector<32x1xf32> to vector<32x256xf32>
    %642 = vector.broadcast %cst_159 : f32 to vector<32x256xf32>
    %643 = arith.select %632, %641, %642 : vector<32x256xi1>, vector<32x256xf32>
    %c1_i32_160 = arith.constant 1 : i32
    %644 = tpu.dynamic_rotate %643 by %c1_i32_160 dim 1 : vector<32x256xf32>, i32 -> vector<32x256xf32>
    %645 = arith.addf %638, %644 : vector<32x256xf32>
    %646 = vector.extract_strided_slice %535 {offsets = [0, 3], sizes = [32, 1], strides = [1, 1]} : vector<32x4xf32> to vector<32x1xf32>
    %cst_161 = arith.constant 0.000000e+00 : f32
    %647 = vector.shape_cast %646 : vector<32x1xf32> to vector<32x1xf32>
    %648 = vector.broadcast %647 : vector<32x1xf32> to vector<32x256xf32>
    %649 = vector.broadcast %cst_161 : f32 to vector<32x256xf32>
    %650 = arith.select %632, %648, %649 : vector<32x256xi1>, vector<32x256xf32>
    %651 = arith.addf %629, %650 : vector<32x256xf32>
    %652 = vector.extract_strided_slice %537 {offsets = [0, 3], sizes = [32, 1], strides = [1, 1]} : vector<32x4xf32> to vector<32x1xf32>
    %cst_162 = arith.constant 0.000000e+00 : f32
    %653 = vector.shape_cast %652 : vector<32x1xf32> to vector<32x1xf32>
    %654 = vector.broadcast %653 : vector<32x1xf32> to vector<32x256xf32>
    %655 = vector.broadcast %cst_162 : f32 to vector<32x256xf32>
    %656 = arith.select %632, %654, %655 : vector<32x256xi1>, vector<32x256xf32>
    %c1_i32_163 = arith.constant 1 : i32
    %657 = tpu.dynamic_rotate %656 by %c1_i32_163 dim 1 : vector<32x256xf32>, i32 -> vector<32x256xf32>
    %658 = arith.addf %651, %657 : vector<32x256xf32>
    %c16_i32_164 = arith.constant 16 : i32
    %659 = tpu.dynamic_rotate %658 by %c16_i32_164 dim 1 : vector<32x256xf32>, i32 -> vector<32x256xf32>
    %660 = arith.addf %645, %659 : vector<32x256xf32>
    %cst_165 = arith.constant dense<0.000000e+00> : vector<32x32xf32>
    %661 = tpu.matmul %660, %540, %cst_165 {dimension_numbers = #tpu.dot_dimension_numbers<[1], [0], [0], [1], [0, 0, 1, 1], [], []>, precision = #tpu.contract_precision<fp32>} : vector<32x256xf32>, vector<256x32xf32>, vector<32x32xf32> -> vector<32x32xf32>
    %662 = arith.addf %519, %661 : vector<32x32xf32>
    %c0_166 = arith.constant 0 : index
    %c0_167 = arith.constant 0 : index
    %663 = vector.load %arg8[%c0_166, %c0_167] : memref<1x32xf32, #tpu.memory_space<vmem>>, vector<1x32xf32>
    %664 = vector.broadcast %663 : vector<1x32xf32> to vector<32x32xf32>
    %665 = arith.addf %662, %664 : vector<32x32xf32>
    %666 = arith.addf %665, %1 : vector<32x32xf32>
    %c0_168 = arith.constant 0 : index
    %c0_169 = arith.constant 0 : index
    %667 = vector.load %arg9[%c0_168, %c0_169] : memref<32x32xf32, #tpu.memory_space<vmem>>, vector<32x32xf32>
    %cst_170 = arith.constant dense<0.000000e+00> : vector<32x32xf32>
    %668 = tpu.matmul %666, %667, %cst_170 {dimension_numbers = #tpu.dot_dimension_numbers<[1], [0], [0], [1], [0, 0, 1, 1], [], []>, precision = #tpu.contract_precision<fp32>} : vector<32x32xf32>, vector<32x32xf32>, vector<32x32xf32> -> vector<32x32xf32>
    %c0_171 = arith.constant 0 : index
    %c0_172 = arith.constant 0 : index
    %669 = vector.load %arg10[%c0_171, %c0_172] : memref<1x32xf32, #tpu.memory_space<vmem>>, vector<1x32xf32>
    %670 = vector.broadcast %669 : vector<1x32xf32> to vector<32x32xf32>
    %671 = arith.addf %668, %670 : vector<32x32xf32>
    %672 = arith.addf %671, %3 : vector<32x32xf32>
    %c0_173 = arith.constant 0 : index
    %c0_174 = arith.constant 0 : index
    %c0_175 = arith.constant 0 : index
    %673 = vector.load %arg11[%c0_173, %c0_174, %c0_175] : memref<1x32x32xf32, #tpu.memory_space<vmem>>, vector<1x32x32xf32>
    %674 = vector.shape_cast %673 : vector<1x32x32xf32> to vector<32x32xf32>
    %675 = vector.shape_cast %672 : vector<32x32xf32> to vector<1x32x32xf32>
    tpu.vector_store %arg11[%c0_173, %c0_174, %c0_175], %675 {strides = array<i32>} : memref<1x32x32xf32, #tpu.memory_space<vmem>>, vector<1x32x32xf32>,
    return
  }
  func.func @transform_0(%arg0: i32, %arg1: i32) -> (i32, i32, i32) {
    %c0_i32 = arith.constant 0 : i32
    %c0_i32_0 = arith.constant 0 : i32
    return %arg0, %arg1, %c0_i32 : i32, i32, i32
  }
  func.func @transform_1(%arg0: i32, %arg1: i32) -> (i32, i32, i32) {
    %c0_i32 = arith.constant 0 : i32
    %c0_i32_0 = arith.constant 0 : i32
    return %arg0, %arg1, %c0_i32 : i32, i32, i32
  }
  func.func @transform_2(%arg0: i32, %arg1: i32) -> (i32, i32) {
    %c0_i32 = arith.constant 0 : i32
    %c0_i32_0 = arith.constant 0 : i32
    return %arg1, %c0_i32 : i32, i32
  }
  func.func @transform_3(%arg0: i32, %arg1: i32) -> (i32, i32, i32, i32) {
    %c0_i32 = arith.constant 0 : i32
    %c0_i32_0 = arith.constant 0 : i32
    %c0_i32_1 = arith.constant 0 : i32
    %c0_i32_2 = arith.constant 0 : i32
    return %arg0, %c0_i32, %c0_i32_0, %c0_i32_1 : i32, i32, i32, i32
  }
  func.func @transform_4(%arg0: i32, %arg1: i32) -> (i32, i32) {
    %c0_i32 = arith.constant 0 : i32
    %c0_i32_0 = arith.constant 0 : i32
    %c0_i32_1 = arith.constant 0 : i32
    return %c0_i32, %c0_i32_0 : i32, i32
  }
  func.func @transform_5(%arg0: i32, %arg1: i32) -> (i32, i32) {
    %c0_i32 = arith.constant 0 : i32
    %c0_i32_0 = arith.constant 0 : i32
    %c0_i32_1 = arith.constant 0 : i32
    return %c0_i32, %c0_i32_0 : i32, i32
  }
  func.func @transform_6(%arg0: i32, %arg1: i32) -> (i32, i32) {
    %c0_i32 = arith.constant 0 : i32
    %c0_i32_0 = arith.constant 0 : i32
    %c0_i32_1 = arith.constant 0 : i32
    return %c0_i32, %c0_i32_0 : i32, i32
  }
  func.func @transform_7(%arg0: i32, %arg1: i32) -> (i32, i32) {
    %c0_i32 = arith.constant 0 : i32
    %c0_i32_0 = arith.constant 0 : i32
    %c0_i32_1 = arith.constant 0 : i32
    return %c0_i32, %c0_i32_0 : i32, i32
  }
  func.func @transform_8(%arg0: i32, %arg1: i32) -> (i32, i32) {
    %c0_i32 = arith.constant 0 : i32
    %c0_i32_0 = arith.constant 0 : i32
    %c0_i32_1 = arith.constant 0 : i32
    return %c0_i32, %c0_i32_0 : i32, i32
  }
  func.func @transform_9(%arg0: i32, %arg1: i32) -> (i32, i32, i32) {
    %c0_i32 = arith.constant 0 : i32
    %c0_i32_0 = arith.constant 0 : i32
    return %arg0, %arg1, %c0_i32 : i32, i32, i32
  }
}

</mosaic_0001>

<llo_original>
// kernel: tpu_custom_call.1
$region0: #{tpu_custom_call.1}
  #allocation0 [shape = 'u32[]', space=smem, size = 0x4, offset = 0x4, fixed_abs, tag = 'smem constant byte address 0x4 - core index']
  #allocation1 [shape = 'u32[72,128]{1,0:T(1,128)}', space=vmem, size = 0x9000, scoped, tag = 'internal scratch']
  %s0 = inlined_call_operand.vmem [shape: f32[2,256,32], index: 0, kind: input, shape index: {}]
  %s1 = inlined_call_operand.vmem [shape: f32[2,256,32], index: 1, kind: input, shape index: {}]
  %s2 = inlined_call_operand.vmem [shape: f32[256,2], index: 2, kind: input, shape index: {}]
  %s3 = inlined_call_operand.vmem [shape: f32[2,4,256,32], index: 3, kind: input, shape index: {}]
  %s4 = inlined_call_operand.vmem [shape: f32[32,48], index: 4, kind: input, shape index: {}]
  %s5 = inlined_call_operand.vmem [shape: f32[1,48], index: 5, kind: input, shape index: {}]
  %s6 = inlined_call_operand.vmem [shape: f32[1,32], index: 6, kind: input, shape index: {}]
  %s7 = inlined_call_operand.vmem [shape: f32[32,32], index: 7, kind: input, shape index: {}]
  %s8 = inlined_call_operand.vmem [shape: f32[1,32], index: 8, kind: input, shape index: {}]
  %s9 = inlined_call_operand.vmem [shape: f32[2,256,32], index: 9, kind: output, shape index: {}]
  %s10 = sld [smem:[#allocation0]]
  $region69: #{tpu_custom_call.1} parent=0
    _
  %s12 = ssub.s32 1, %s10
  %s13 = scalar_select 0, %s12, %s10
  loop: start=0, step=1, limit=18
  $region2: #{tpu_custom_call.1} parent=0 // loop_pre_header
    _
  $region3: #{tpu_custom_call.1} parent=0 // loop_header
    %s15 = sphi 0, %s19
    %p16 = scmp.ge.s32.totalorder %s15, 18
    %s22 = sphi 0, %s34
    %s23 = sphi 0, %s30
    %s24 = sphi 0, %s22
    %s25 = sphi 0, %s23
    %s26 = sphi 0, %s24
    %s27 = sphi 0, %s25
    %s39 = sphi 0, %s41
    %s42 = sphi 0, %s39
    %s43 = sphi 0, %s42
    %s59 = sphi 0, %s43
    %s67 = sphi 0, %s69
    %s70 = sphi 0, %s67
    %s71 = sphi 0, %s70
    %s87 = sphi 0, %s71
    %s93 = sphi 0, %s95
    %s96 = sphi 0, %s93
    %s97 = sphi 0, %s96
    %s113 = sphi 0, %s97
    %s119 = sphi 0, %s121
    %s122 = sphi 0, %s119
    %s123 = sphi 0, %s122
    %s139 = sphi 0, %s123
    %s143 = sphi 0, %s143
    %s145 = sphi 0, %s143
    %s146 = sphi 0, %s145
    %s160 = sphi 0, %s146
    %s164 = sphi 0, %s164
    %s166 = sphi 0, %s164
    %s167 = sphi 0, %s166
    %s181 = sphi 0, %s167
    %s185 = sphi 0, %s185
    %s187 = sphi 0, %s185
    %s188 = sphi 0, %s187
    %s202 = sphi 0, %s188
    %s206 = sphi 0, %s206
    %s208 = sphi 0, %s206
    %s209 = sphi 0, %s208
    %s223 = sphi 0, %s209
    %s227 = sphi 0, %s227
    %s229 = sphi 0, %s227
    %s230 = sphi 0, %s229
    %s244 = sphi 0, %s230
    %s252 = sphi 0, %s254
    %s255 = sphi 0, %s252
    %s256 = sphi 0, %s255
    %s272 = sphi 0, %s256
  $region4: #{tpu_custom_call.1} parent=0 // loop_header_branch
    %18 = sbr.rel (%p16) target = $region8
  $region5: #{tpu_custom_call.1} parent=0 // loop_body
    %s20 = ssub.s32 %s15, 1
    %s21 = ssub.s32 %s15, 2
    %s28 = sadd.s32 1, %s23
    %p29 = scmp.ge.s32.totalorder %s28, 8
    %s30 = scalar_select %p29, 0, %s28
    %s31 = sadd.s32 1, %s22
    %s32 = scalar_select %p29, %s31, %s22
    %p33 = scmp.ge.s32.totalorder %s32, 2
    %s34 = scalar_select %p33, 0, %s32
    %s35 = ssub.s32 %s22, %s34
    %s36 = ssub.s32 %s23, %s30
    %s37 = sor.u32 %s35, %s36
    %p38 = scmp.eq.s32.totalorder %s37, 0
    %s40 = sadd.s32 %s39, 1
    %s41 = scalar_select %p38, %s39, %s40
    %p44 = pneg %p38
    %p45 = scmp.eq.s32.totalorder %s15, 15
    %p46 = por %p44, %p45
    %p47 = scmp.ne.s32.totalorder %s39, %s42
    %p48 = scmp.eq.s32.totalorder %s15, 0
    %p49 = por %p47, %p48
    %p50 = scmp.ne.s32.totalorder %s39, %s42
    %p51 = scmp.eq.s32.totalorder %s20, 15
    %p52 = por %p50, %p51
    %p53 = scmp.ne.s32.totalorder %s42, %s43
    %p54 = scmp.eq.s32.totalorder %s20, 0
    %p55 = por %p53, %p54
    %p56 = scmp.ne.s32.totalorder %s42, %s43
    %p57 = scmp.eq.s32.totalorder %s21, 15
    %p58 = por %p56, %p57
    %p60 = scmp.ne.s32.totalorder %s43, %s59
    %p61 = scmp.eq.s32.totalorder %s21, 0
    %p62 = por %p60, %p61
    %s63 = ssub.s32 %s22, %s34
    %s64 = ssub.s32 %s23, %s30
    %s65 = sor.u32 %s63, %s64
    %p66 = scmp.eq.s32.totalorder %s65, 0
    %s68 = sadd.s32 %s67, 1
    %s69 = scalar_select %p66, %s67, %s68
    %p72 = pneg %p66
    %p73 = scmp.eq.s32.totalorder %s15, 15
    %p74 = por %p72, %p73
    %p75 = scmp.ne.s32.totalorder %s67, %s70
    %p76 = scmp.eq.s32.totalorder %s15, 0
    %p77 = por %p75, %p76
    %p78 = scmp.ne.s32.totalorder %s67, %s70
    %p79 = scmp.eq.s32.totalorder %s20, 15
    %p80 = por %p78, %p79
    %p81 = scmp.ne.s32.totalorder %s70, %s71
    %p82 = scmp.eq.s32.totalorder %s20, 0
    %p83 = por %p81, %p82
    %p84 = scmp.ne.s32.totalorder %s70, %s71
    %p85 = scmp.eq.s32.totalorder %s21, 15
    %p86 = por %p84, %p85
    %p88 = scmp.ne.s32.totalorder %s71, %s87
    %p89 = scmp.eq.s32.totalorder %s21, 0
    %p90 = por %p88, %p89
    %s91 = ssub.s32 %s23, %s30
    %p92 = scmp.eq.s32.totalorder %s91, 0
    %s94 = sadd.s32 %s93, 1
    %s95 = scalar_select %p92, %s93, %s94
    %p98 = pneg %p92
    %p99 = scmp.eq.s32.totalorder %s15, 15
    %p100 = por %p98, %p99
    %p101 = scmp.ne.s32.totalorder %s93, %s96
    %p102 = scmp.eq.s32.totalorder %s15, 0
    %p103 = por %p101, %p102
    %p104 = scmp.ne.s32.totalorder %s93, %s96
    %p105 = scmp.eq.s32.totalorder %s20, 15
    %p106 = por %p104, %p105
    %p107 = scmp.ne.s32.totalorder %s96, %s97
    %p108 = scmp.eq.s32.totalorder %s20, 0
    %p109 = por %p107, %p108
    %p110 = scmp.ne.s32.totalorder %s96, %s97
    %p111 = scmp.eq.s32.totalorder %s21, 15
    %p112 = por %p110, %p111
    %p114 = scmp.ne.s32.totalorder %s97, %s113
    %p115 = scmp.eq.s32.totalorder %s21, 0
    %p116 = por %p114, %p115
    %s117 = ssub.s32 %s22, %s34
    %p118 = scmp.eq.s32.totalorder %s117, 0
    %s120 = sadd.s32 %s119, 1
    %s121 = scalar_select %p118, %s119, %s120
    %p124 = pneg %p118
    %p125 = scmp.eq.s32.totalorder %s15, 15
    %p126 = por %p124, %p125
    %p127 = scmp.ne.s32.totalorder %s119, %s122
    %p128 = scmp.eq.s32.totalorder %s15, 0
    %p129 = por %p127, %p128
    %p130 = scmp.ne.s32.totalorder %s119, %s122
    %p131 = scmp.eq.s32.totalorder %s20, 15
    %p132 = por %p130, %p131
    %p133 = scmp.ne.s32.totalorder %s122, %s123
    %p134 = scmp.eq.s32.totalorder %s20, 0
    %p135 = por %p133, %p134
    %p136 = scmp.ne.s32.totalorder %s122, %s123
    %p137 = scmp.eq.s32.totalorder %s21, 15
    %p138 = por %p136, %p137
    %p140 = scmp.ne.s32.totalorder %s123, %s139
    %p141 = scmp.eq.s32.totalorder %s21, 0
    %p142 = por %p140, %p141
    %s144 = sadd.s32 %s143, 1
    %p147 = scmp.eq.s32.totalorder %s15, 15
    %p148 = scmp.ne.s32.totalorder %s143, %s145
    %p149 = scmp.eq.s32.totalorder %s15, 0
    %p150 = por %p148, %p149
    %p151 = scmp.ne.s32.totalorder %s143, %s145
    %p152 = scmp.eq.s32.totalorder %s20, 15
    %p153 = por %p151, %p152
    %p154 = scmp.ne.s32.totalorder %s145, %s146
    %p155 = scmp.eq.s32.totalorder %s20, 0
    %p156 = por %p154, %p155
    %p157 = scmp.ne.s32.totalorder %s145, %s146
    %p158 = scmp.eq.s32.totalorder %s21, 15
    %p159 = por %p157, %p158
    %p161 = scmp.ne.s32.totalorder %s146, %s160
    %p162 = scmp.eq.s32.totalorder %s21, 0
    %p163 = por %p161, %p162
    %s165 = sadd.s32 %s164, 1
    %p168 = scmp.eq.s32.totalorder %s15, 15
    %p169 = scmp.ne.s32.totalorder %s164, %s166
    %p170 = scmp.eq.s32.totalorder %s15, 0
    %p171 = por %p169, %p170
    %p172 = scmp.ne.s32.totalorder %s164, %s166
    %p173 = scmp.eq.s32.totalorder %s20, 15
    %p174 = por %p172, %p173
    %p175 = scmp.ne.s32.totalorder %s166, %s167
    %p176 = scmp.eq.s32.totalorder %s20, 0
    %p177 = por %p175, %p176
    %p178 = scmp.ne.s32.totalorder %s166, %s167
    %p179 = scmp.eq.s32.totalorder %s21, 15
    %p180 = por %p178, %p179
    %p182 = scmp.ne.s32.totalorder %s167, %s181
    %p183 = scmp.eq.s32.totalorder %s21, 0
    %p184 = por %p182, %p183
    %s186 = sadd.s32 %s185, 1
    %p189 = scmp.eq.s32.totalorder %s15, 15
    %p190 = scmp.ne.s32.totalorder %s185, %s187
    %p191 = scmp.eq.s32.totalorder %s15, 0
    %p192 = por %p190, %p191
    %p193 = scmp.ne.s32.totalorder %s185, %s187
    %p194 = scmp.eq.s32.totalorder %s20, 15
    %p195 = por %p193, %p194
    %p196 = scmp.ne.s32.totalorder %s187, %s188
    %p197 = scmp.eq.s32.totalorder %s20, 0
    %p198 = por %p196, %p197
    %p199 = scmp.ne.s32.totalorder %s187, %s188
    %p200 = scmp.eq.s32.totalorder %s21, 15
    %p201 = por %p199, %p200
    %p203 = scmp.ne.s32.totalorder %s188, %s202
    %p204 = scmp.eq.s32.totalorder %s21, 0
    %p205 = por %p203, %p204
    %s207 = sadd.s32 %s206, 1
    %p210 = scmp.eq.s32.totalorder %s15, 15
    %p211 = scmp.ne.s32.totalorder %s206, %s208
    %p212 = scmp.eq.s32.totalorder %s15, 0
    %p213 = por %p211, %p212
    %p214 = scmp.ne.s32.totalorder %s206, %s208
    %p215 = scmp.eq.s32.totalorder %s20, 15
    %p216 = por %p214, %p215
    %p217 = scmp.ne.s32.totalorder %s208, %s209
    %p218 = scmp.eq.s32.totalorder %s20, 0
    %p219 = por %p217, %p218
    %p220 = scmp.ne.s32.totalorder %s208, %s209
    %p221 = scmp.eq.s32.totalorder %s21, 15
    %p222 = por %p220, %p221
    %p224 = scmp.ne.s32.totalorder %s209, %s223
    %p225 = scmp.eq.s32.totalorder %s21, 0
    %p226 = por %p224, %p225
    %s228 = sadd.s32 %s227, 1
    %p231 = scmp.eq.s32.totalorder %s15, 15
    %p232 = scmp.ne.s32.totalorder %s227, %s229
    %p233 = scmp.eq.s32.totalorder %s15, 0
    %p234 = por %p232, %p233
    %p235 = scmp.ne.s32.totalorder %s227, %s229
    %p236 = scmp.eq.s32.totalorder %s20, 15
    %p237 = por %p235, %p236
    %p238 = scmp.ne.s32.totalorder %s229, %s230
    %p239 = scmp.eq.s32.totalorder %s20, 0
    %p240 = por %p238, %p239
    %p241 = scmp.ne.s32.totalorder %s229, %s230
    %p242 = scmp.eq.s32.totalorder %s21, 15
    %p243 = por %p241, %p242
    %p245 = scmp.ne.s32.totalorder %s230, %s244
    %p246 = scmp.eq.s32.totalorder %s21, 0
    %p247 = por %p245, %p246
    %s248 = ssub.s32 %s22, %s34
    %s249 = ssub.s32 %s23, %s30
    %s250 = sor.u32 %s248, %s249
    %p251 = scmp.eq.s32.totalorder %s250, 0
    %s253 = sadd.s32 %s252, 1
    %s254 = scalar_select %p251, %s252, %s253
    %p257 = pneg %p251
    %p258 = scmp.eq.s32.totalorder %s15, 15
    %p259 = por %p257, %p258
    %p260 = scmp.ne.s32.totalorder %s252, %s255
    %p261 = scmp.eq.s32.totalorder %s15, 0
    %p262 = por %p260, %p261
    %p263 = scmp.ne.s32.totalorder %s252, %s255
    %p264 = scmp.eq.s32.totalorder %s20, 15
    %p265 = por %p263, %p264
    %p266 = scmp.ne.s32.totalorder %s255, %s256
    %p267 = scmp.eq.s32.totalorder %s20, 0
    %p268 = por %p266, %p267
    %p269 = scmp.ne.s32.totalorder %s255, %s256
    %p270 = scmp.eq.s32.totalorder %s21, 15
    %p271 = por %p269, %p270
    %p273 = scmp.ne.s32.totalorder %s256, %s272
    %p274 = scmp.eq.s32.totalorder %s21, 0
    %p275 = por %p273, %p274
    %p276 = scmp.le.s32.totalorder 1, %s15
    %p277 = scmp.lt.s32.totalorder %s15, 17
    %p278 = pnand %p276, %p277
    %p279 = pneg %p278
    // Predicated region
    $region9: #{tpu_custom_call.1} parent=5 // pred_check
      _
    $region10: #{tpu_custom_call.1} parent=5 // pred_check_branch
      %281 = sbr.rel (%p278) target = $region12
    $region11: #{tpu_custom_call.1} parent=5 // pred_region
      %s282 = ssub.s32 %s15, 1
      // Predicated region
      $region13: #{tpu_custom_call.1} parent=11 // pred_check
        %p283 = pneg %p156
      $region14: #{tpu_custom_call.1} parent=11 // pred_check_branch
        %285 = sbr.rel (%p283) target = $region16
      $region15: #{tpu_custom_call.1} parent=11 // pred_region
        _
      $region16: #{tpu_custom_call.1} parent=11 // pred_fallthru
        _
      // Predicated region
      $region17: #{tpu_custom_call.1} parent=11 // pred_check
        %p286 = pneg %p177
      $region18: #{tpu_custom_call.1} parent=11 // pred_check_branch
        %288 = sbr.rel (%p286) target = $region20
      $region19: #{tpu_custom_call.1} parent=11 // pred_region
        _
      $region20: #{tpu_custom_call.1} parent=11 // pred_fallthru
        _
      // Predicated region
      $region21: #{tpu_custom_call.1} parent=11 // pred_check
        %p289 = pneg %p198
      $region22: #{tpu_custom_call.1} parent=11 // pred_check_branch
        %291 = sbr.rel (%p289) target = $region24
      $region23: #{tpu_custom_call.1} parent=11 // pred_region
        _
      $region24: #{tpu_custom_call.1} parent=11 // pred_fallthru
        _
      // Predicated region
      $region25: #{tpu_custom_call.1} parent=11 // pred_check
        %p292 = pneg %p219
      $region26: #{tpu_custom_call.1} parent=11 // pred_check_branch
        %294 = sbr.rel (%p292) target = $region28
      $region27: #{tpu_custom_call.1} parent=11 // pred_region
        _
      $region28: #{tpu_custom_call.1} parent=11 // pred_fallthru
        _
      // Predicated region
      $region29: #{tpu_custom_call.1} parent=11 // pred_check
        %p295 = pneg %p240
      $region30: #{tpu_custom_call.1} parent=11 // pred_check_branch
        %297 = sbr.rel (%p295) target = $region32
      $region31: #{tpu_custom_call.1} parent=11 // pred_region
        _
      $region32: #{tpu_custom_call.1} parent=11 // pred_fallthru
        _
    $region12: #{tpu_custom_call.1} parent=5 // pred_fallthru
      _
    %p298 = scmp.lt.s32.totalorder %s15, 16
    // Predicated region
    $region33: #{tpu_custom_call.1} parent=5 // pred_check
      %p299 = pneg %p298
    $region34: #{tpu_custom_call.1} parent=5 // pred_check_branch
      %301 = sbr.rel (%p299) target = $region36
    $region35: #{tpu_custom_call.1} parent=5 // pred_region
      // Predicated region
      $region37: #{tpu_custom_call.1} parent=35 // pred_check
        %p302 = pneg %p49
      $region38: #{tpu_custom_call.1} parent=35 // pred_check_branch
        %304 = sbr.rel (%p302) target = $region40
      $region39: #{tpu_custom_call.1} parent=35 // pred_region
        %s305 = smul.u32 4, %s23
        %p306 = scmp.lt.s32.totalorder %s22, 1
        %s307 = scalar_select %p306, %s22, 1
        %p308 = scmp.lt.s32.totalorder %s305, 31
        %s309 = scalar_select %p308, %s305, 31
        %s310 = smul.addr %s307, 32
        %s311 = sadd.s32 %s309, %s310
        %s312 = smul.addr %s311, 8
        %s313 = scalar_lea.vmem %s0, %s312
        %s314 = smul.u32 4, %s23
      $region40: #{tpu_custom_call.1} parent=35 // pred_fallthru
        _
      // Predicated region
      $region41: #{tpu_custom_call.1} parent=35 // pred_check
        %p315 = pneg %p77
      $region42: #{tpu_custom_call.1} parent=35 // pred_check_branch
        %317 = sbr.rel (%p315) target = $region44
      $region43: #{tpu_custom_call.1} parent=35 // pred_region
        %s318 = smul.u32 4, %s23
        %p319 = scmp.lt.s32.totalorder %s22, 1
        %s320 = scalar_select %p319, %s22, 1
        %p321 = scmp.lt.s32.totalorder %s318, 31
        %s322 = scalar_select %p321, %s318, 31
        %s323 = smul.addr %s320, 32
        %s324 = sadd.s32 %s322, %s323
        %s325 = smul.addr %s324, 8
        %s326 = scalar_lea.vmem %s1, %s325
        %s327 = smul.u32 4, %s23
      $region44: #{tpu_custom_call.1} parent=35 // pred_fallthru
        _
      // Predicated region
      $region45: #{tpu_custom_call.1} parent=35 // pred_check
        %p328 = pneg %p103
      $region46: #{tpu_custom_call.1} parent=35 // pred_check_branch
        %330 = sbr.rel (%p328) target = $region48
      $region47: #{tpu_custom_call.1} parent=35 // pred_region
        %s331 = smul.u32 4, %s23
        %p332 = scmp.lt.s32.totalorder %s331, 31
        %s333 = scalar_select %p332, %s331, 31
        %s334 = smul.addr %s333, 8
        %s335 = scalar_lea.vmem %s2, %s334
        %s336 = smul.u32 4, %s23
      $region48: #{tpu_custom_call.1} parent=35 // pred_fallthru
        _
      // Predicated region
      $region49: #{tpu_custom_call.1} parent=35 // pred_check
        %p337 = pneg %p129
      $region50: #{tpu_custom_call.1} parent=35 // pred_check_branch
        %339 = sbr.rel (%p337) target = $region52
      $region51: #{tpu_custom_call.1} parent=35 // pred_region
        %p340 = scmp.lt.s32.totalorder %s22, 1
        %s341 = scalar_select %p340, %s22, 1
        %s342 = smul.addr %s341, 128
        %s343 = smul.addr %s342, 8
        %s344 = scalar_lea.vmem %s3, %s343
      $region52: #{tpu_custom_call.1} parent=35 // pred_fallthru
        _
    $region36: #{tpu_custom_call.1} parent=5 // pred_fallthru
      _
    %p345 = scmp.le.s32.totalorder 1, %s15
    %p346 = scmp.lt.s32.totalorder %s15, 17
    %p347 = pnand %p345, %p346
    %p348 = pneg %p347
    // Predicated region
    $region53: #{tpu_custom_call.1} parent=5 // pred_check
      _
    $region54: #{tpu_custom_call.1} parent=5 // pred_check_branch
      %350 = sbr.rel (%p347) target = $region56
    $region55: #{tpu_custom_call.1} parent=5 // pred_region
      %s351 = ssub.s32 %s15, 1
      %s352 = smul.u32 4, %s25
      %p353 = scmp.lt.s32.totalorder %s24, 1
      %s354 = scalar_select %p353, %s24, 1
      %p355 = scmp.lt.s32.totalorder %s352, 31
      %s356 = scalar_select %p355, %s352, 31
      %s357 = smul.addr %s354, 32
      %s358 = sadd.s32 %s356, %s357
      %s359 = smul.addr %s358, 8
      %s360 = scalar_lea.vmem %s0, %s359
      %p361 = pneg %p55
      %p362 = pneg %p52
      %s363 = smul.u32 4, %s25
      %p364 = scmp.lt.s32.totalorder %s24, 1
      %s365 = scalar_select %p364, %s24, 1
      %p366 = scmp.lt.s32.totalorder %s363, 31
      %s367 = scalar_select %p366, %s363, 31
      %s368 = smul.addr %s365, 32
      %s369 = sadd.s32 %s367, %s368
      %s370 = smul.addr %s369, 8
      %s371 = scalar_lea.vmem %s1, %s370
      %p372 = pneg %p83
      %p373 = pneg %p80
      %s374 = smul.u32 4, %s25
      %p375 = scmp.lt.s32.totalorder %s374, 31
      %s376 = scalar_select %p375, %s374, 31
      %s377 = smul.addr %s376, 8
      %s378 = scalar_lea.vmem %s2, %s377
      %p379 = pneg %p109
      %p380 = pneg %p106
      %p381 = scmp.lt.s32.totalorder %s24, 1
      %s382 = scalar_select %p381, %s24, 1
      %s383 = smul.addr %s382, 128
      %s384 = smul.addr %s383, 8
      %s385 = scalar_lea.vmem %s3, %s384
      %p386 = pneg %p135
      %p387 = pneg %p132
      %p388 = pneg %p156
      %p389 = pneg %p153
      %p390 = pneg %p177
      %p391 = pneg %p174
      %p392 = pneg %p198
      %p393 = pneg %p195
      %p394 = pneg %p219
      %p395 = pneg %p216
      %p396 = pneg %p240
      %p397 = pneg %p237
      %p398 = pneg %p268
      %p399 = pneg %p265
      %s400 = smul.u32 4, %s25
      %p401 = scmp.lt.s32.totalorder %s24, 1
      %s402 = scalar_select %p401, %s24, 1
      %p403 = scmp.lt.s32.totalorder %s400, 31
      %s404 = scalar_select %p403, %s400, 31
      %s405 = smul.addr %s402, 32
      %s406 = sadd.s32 %s404, %s405
      %s407 = smul.addr %s406, 8
      %s408 = scalar_lea.vmem %s9, %s407
      %s409 = smul.u32 4, %s25
      %p410 = scmp.lt.s32.totalorder %s24, 1
      %s411 = scalar_select %p410, %s24, 1
      %p412 = scmp.lt.s32.totalorder %s409, 31
      %s413 = scalar_select %p412, %s409, 31
      %s414 = smul.addr %s411, 32
      %s415 = sadd.s32 %s413, %s414
      %s416 = smul.addr %s415, 8
      %s417 = scalar_lea.vmem %s0, %s416
      %s418 = smul.u32 4, %s25
      %s419 = smul.u32 4, %s25
      %p420 = scmp.lt.s32.totalorder %s24, 1
      %s421 = scalar_select %p420, %s24, 1
      %p422 = scmp.lt.s32.totalorder %s419, 31
      %s423 = scalar_select %p422, %s419, 31
      %s424 = smul.addr %s421, 32
      %s425 = sadd.s32 %s423, %s424
      %s426 = smul.addr %s425, 8
      %s427 = scalar_lea.vmem %s1, %s426
      %s428 = smul.u32 4, %s25
      %s429 = smul.u32 4, %s25
      %p430 = scmp.lt.s32.totalorder %s429, 31
      %s431 = scalar_select %p430, %s429, 31
      %s432 = smul.addr %s431, 8
      %s433 = scalar_lea.vmem %s2, %s432
      %s434 = smul.u32 4, %s25
      %p435 = scmp.lt.s32.totalorder %s24, 1
      %s436 = scalar_select %p435, %s24, 1
      %s437 = smul.addr %s436, 128
      %s438 = smul.addr %s437, 8
      %s439 = scalar_lea.vmem %s3, %s438
      %s440 = smul.u32 4, %s25
      %p441 = scmp.lt.s32.totalorder %s24, 1
      %s442 = scalar_select %p441, %s24, 1
      %p443 = scmp.lt.s32.totalorder %s440, 31
      %s444 = scalar_select %p443, %s440, 31
      %s445 = smul.addr %s442, 32
      %s446 = sadd.s32 %s444, %s445
      %s447 = smul.addr %s446, 8
      %s448 = scalar_lea.vmem %s9, %s447
      %s449 = smul.u32 4, %s25
      %v450 = vld [vmem:[%s417] sm:$0xff]
      %v451 = vld [vmem:[%s417 + $0x8] sm:$0xff]
      %v452 = vld [vmem:[%s417 + $0x10] sm:$0xff]
      %v453 = vld [vmem:[%s417 + $0x18] sm:$0xff]
      %v454 = vld [vmem:[%s427] sm:$0xff]
      %v455 = vld [vmem:[%s427 + $0x8] sm:$0xff]
      %v456 = vld [vmem:[%s427 + $0x10] sm:$0xff]
      %v457 = vld [vmem:[%s427 + $0x18] sm:$0xff]
      %v458 = vld [vmem:[%s433] sm:$0xff]
      %v459 = vld [vmem:[%s433 + $0x8] sm:$0xff]
      %v460 = vld [vmem:[%s433 + $0x10] sm:$0xff]
      %v461 = vld [vmem:[%s433 + $0x18] sm:$0xff]
      %v462 = vld [vmem:[%s4] sm:$0xff]
      %v463 = vld [vmem:[%s4 + $0x8] sm:$0xff]
      %v464 = vld [vmem:[%s4 + $0x10] sm:$0xff]
      %v465 = vld [vmem:[%s4 + $0x18] sm:$0xff]
      %v466 = vld [vmem:[%s5] sm:$0x1]
      %v468 = vperm.slane %v466, 0
      %vm470 = vcmask 261120
      %v472 = vsel %vm470, %v450, 0
      %v475 = vsel %vm470, %v451, 0
      %v478 = vsel %vm470, %v452, 0
      %v481 = vsel %vm470, %v453, 0
      %483 = vmatpush.msra.mxu0 0.0
      %484 = vmatpush.msra.mxu0 0.0
      %485 = vmatpush.msra.mxu0 0.0
      %486 = vmatpush.msra.mxu0 0.0
      %487 = vmatpush.msra.mxu0 0.0
      %488 = vmatpush.msra.mxu0 0.0
      %489 = vmatpush.msra.mxu0 0.0
      %490 = vmatpush.msra.mxu0 0.0
      %491 = vmatpush.msra.mxu0 0.0
      %492 = vmatpush.msra.mxu0 0.0
      %493 = vmatpush.msra.mxu0 0.0
      %494 = vmatpush.msra.mxu0 0.0
      %v495 = vand.u32 %v465, 4294901760
      %496 = vmatpush.msra.mxu0 %v495
      %v497 = vand.u32 %v464, 4294901760
      %498 = vmatpush.msra.mxu0 %v497
      %v499 = vand.u32 %v463, 4294901760
      %500 = vmatpush.msra.mxu0 %v499
      %v501 = vand.u32 %v462, 4294901760
      %502 = vmatpush.msra.mxu0 %v501
      %v503 = vand.u32 %v472, 4294901760
      %v504 = vsub.f32 %v472, %v503
      %v505 = vand.u32 %v504, 4294901760
      %v506 = vsub.f32 %v504, %v505
      %v507 = vand.u32 %v506, 4294901760
      %508 = vmatmul.f32.gmra.mxu0 %v507
      %v509 = vpop.f32.mrf.mxu0
      %v510 = vadd.f32 %v468, %v509
      %v511 = vand.u32 %v475, 4294901760
      %v512 = vsub.f32 %v475, %v511
      %v513 = vand.u32 %v512, 4294901760
      %v514 = vsub.f32 %v512, %v513
      %v515 = vand.u32 %v514, 4294901760
      %516 = vmatmul.f32.gmra.mxu0 %v515
      %v517 = vpop.f32.mrf.mxu0
      %v518 = vadd.f32 %v468, %v517
      %v519 = vand.u32 %v478, 4294901760
      %v520 = vsub.f32 %v478, %v519
      %v521 = vand.u32 %v520, 4294901760
      %v522 = vsub.f32 %v520, %v521
      %v523 = vand.u32 %v522, 4294901760
      %524 = vmatmul.f32.gmra.mxu0 %v523
      %v525 = vpop.f32.mrf.mxu0
      %v526 = vadd.f32 %v468, %v525
      %v527 = vand.u32 %v481, 4294901760
      %v528 = vsub.f32 %v481, %v527
      %v529 = vand.u32 %v528, 4294901760
      %v530 = vsub.f32 %v528, %v529
      %v531 = vand.u32 %v530, 4294901760
      %532 = vmatmul.f32.gmra.mxu0 %v531
      %v533 = vpop.f32.mrf.mxu0
      %v534 = vadd.f32 %v468, %v533
      %535 = vdwg.mxu0
      %536 = vmatpush.msra.mxu0 0.0
      %537 = vmatpush.msra.mxu0 0.0
      %538 = vmatpush.msra.mxu0 0.0
      %539 = vmatpush.msra.mxu0 0.0
      %540 = vmatpush.msra.mxu0 0.0
      %541 = vmatpush.msra.mxu0 0.0
      %542 = vmatpush.msra.mxu0 0.0
      %543 = vmatpush.msra.mxu0 0.0
      %544 = vmatpush.msra.mxu0 0.0
      %545 = vmatpush.msra.mxu0 0.0
      %546 = vmatpush.msra.mxu0 0.0
      %547 = vmatpush.msra.mxu0 0.0
      %v548 = vand.u32 %v465, 4294901760
      %v549 = vsub.f32 %v465, %v548
      %v550 = vand.u32 %v549, 4294901760
      %v551 = vsub.f32 %v549, %v550
      %v552 = vand.u32 %v551, 4294901760
      %553 = vmatpush.msra.mxu0 %v552
      %v554 = vand.u32 %v464, 4294901760
      %v555 = vsub.f32 %v464, %v554
      %v556 = vand.u32 %v555, 4294901760
      %v557 = vsub.f32 %v555, %v556
      %v558 = vand.u32 %v557, 4294901760
      %559 = vmatpush.msra.mxu0 %v558
      %v560 = vand.u32 %v463, 4294901760
      %v561 = vsub.f32 %v463, %v560
      %v562 = vand.u32 %v561, 4294901760
      %v563 = vsub.f32 %v561, %v562
      %v564 = vand.u32 %v563, 4294901760
      %565 = vmatpush.msra.mxu0 %v564
      %v566 = vand.u32 %v462, 4294901760
      %v567 = vsub.f32 %v462, %v566
      %v568 = vand.u32 %v567, 4294901760
      %v569 = vsub.f32 %v567, %v568
      %v570 = vand.u32 %v569, 4294901760
      %571 = vmatpush.msra.mxu0 %v570
      %v572 = vand.u32 %v472, 4294901760
      %573 = vmatmul.f32.gmra.mxu0 %v572
      %v574 = vpop.f32.mrf.mxu0
      %v575 = vadd.f32 %v510, %v574
      %v576 = vand.u32 %v475, 4294901760
      %577 = vmatmul.f32.gmra.mxu0 %v576
      %v578 = vpop.f32.mrf.mxu0
      %v579 = vadd.f32 %v518, %v578
      %v580 = vand.u32 %v478, 4294901760
      %581 = vmatmul.f32.gmra.mxu0 %v580
      %v582 = vpop.f32.mrf.mxu0
      %v583 = vadd.f32 %v526, %v582
      %v584 = vand.u32 %v481, 4294901760
      %585 = vmatmul.f32.gmra.mxu0 %v584
      %v586 = vpop.f32.mrf.mxu0
      %v587 = vadd.f32 %v534, %v586
      %588 = vdwg.mxu0
      %589 = vmatpush.msra.mxu0 0.0
      %590 = vmatpush.msra.mxu0 0.0
      %591 = vmatpush.msra.mxu0 0.0
      %592 = vmatpush.msra.mxu0 0.0
      %593 = vmatpush.msra.mxu0 0.0
      %594 = vmatpush.msra.mxu0 0.0
      %595 = vmatpush.msra.mxu0 0.0
      %596 = vmatpush.msra.mxu0 0.0
      %597 = vmatpush.msra.mxu0 0.0
      %598 = vmatpush.msra.mxu0 0.0
      %599 = vmatpush.msra.mxu0 0.0
      %600 = vmatpush.msra.mxu0 0.0
      %v601 = vand.u32 %v465, 4294901760
      %v602 = vsub.f32 %v465, %v601
      %603 = vmatpush.msra.mxu0 %v602
      %v604 = vand.u32 %v464, 4294901760
      %v605 = vsub.f32 %v464, %v604
      %606 = vmatpush.msra.mxu0 %v605
      %v607 = vand.u32 %v463, 4294901760
      %v608 = vsub.f32 %v463, %v607
      %609 = vmatpush.msra.mxu0 %v608
      %v610 = vand.u32 %v462, 4294901760
      %v611 = vsub.f32 %v462, %v610
      %612 = vmatpush.msra.mxu0 %v611
      %v613 = vand.u32 %v472, 4294901760
      %v614 = vsub.f32 %v472, %v613
      %615 = vmatmul.f32.gmra.mxu0 %v614
      %v616 = vpop.f32.mrf.mxu0
      %v617 = vadd.f32 %v575, %v616
      %v618 = vand.u32 %v475, 4294901760
      %v619 = vsub.f32 %v475, %v618
      %620 = vmatmul.f32.gmra.mxu0 %v619
      %v621 = vpop.f32.mrf.mxu0
      %v622 = vadd.f32 %v579, %v621
      %v623 = vand.u32 %v478, 4294901760
      %v624 = vsub.f32 %v478, %v623
      %625 = vmatmul.f32.gmra.mxu0 %v624
      %v626 = vpop.f32.mrf.mxu0
      %v627 = vadd.f32 %v583, %v626
      %v628 = vand.u32 %v481, 4294901760
      %v629 = vsub.f32 %v481, %v628
      %630 = vmatmul.f32.gmra.mxu0 %v629
      %v631 = vpop.f32.mrf.mxu0
      %v632 = vadd.f32 %v587, %v631
      %633 = vdwg.mxu0
      %634 = vmatpush.msra.mxu0 0.0
      %635 = vmatpush.msra.mxu0 0.0
      %636 = vmatpush.msra.mxu0 0.0
      %637 = vmatpush.msra.mxu0 0.0
      %638 = vmatpush.msra.mxu0 0.0
      %639 = vmatpush.msra.mxu0 0.0
      %640 = vmatpush.msra.mxu0 0.0
      %641 = vmatpush.msra.mxu0 0.0
      %642 = vmatpush.msra.mxu0 0.0
      %643 = vmatpush.msra.mxu0 0.0
      %644 = vmatpush.msra.mxu0 0.0
      %645 = vmatpush.msra.mxu0 0.0
      %v646 = vand.u32 %v465, 4294901760
      %647 = vmatpush.msra.mxu0 %v646
      %v648 = vand.u32 %v464, 4294901760
      %649 = vmatpush.msra.mxu0 %v648
      %v650 = vand.u32 %v463, 4294901760
      %651 = vmatpush.msra.mxu0 %v650
      %v652 = vand.u32 %v462, 4294901760
      %653 = vmatpush.msra.mxu0 %v652
      %v654 = vand.u32 %v472, 4294901760
      %v655 = vsub.f32 %v472, %v654
      %v656 = vand.u32 %v655, 4294901760
      %657 = vmatmul.f32.gmra.mxu0 %v656
      %v658 = vpop.f32.mrf.mxu0
      %v659 = vadd.f32 %v617, %v658
      %v660 = vand.u32 %v475, 4294901760
      %v661 = vsub.f32 %v475, %v660
      %v662 = vand.u32 %v661, 4294901760
      %663 = vmatmul.f32.gmra.mxu0 %v662
      %v664 = vpop.f32.mrf.mxu0
      %v665 = vadd.f32 %v622, %v664
      %v666 = vand.u32 %v478, 4294901760
      %v667 = vsub.f32 %v478, %v666
      %v668 = vand.u32 %v667, 4294901760
      %669 = vmatmul.f32.gmra.mxu0 %v668
      %v670 = vpop.f32.mrf.mxu0
      %v671 = vadd.f32 %v627, %v670
      %v672 = vand.u32 %v481, 4294901760
      %v673 = vsub.f32 %v481, %v672
      %v674 = vand.u32 %v673, 4294901760
      %675 = vmatmul.f32.gmra.mxu0 %v674
      %v676 = vpop.f32.mrf.mxu0
      %v677 = vadd.f32 %v632, %v676
      %678 = vdwg.mxu0
      %679 = vmatpush.msra.mxu0 0.0
      %680 = vmatpush.msra.mxu0 0.0
      %681 = vmatpush.msra.mxu0 0.0
      %682 = vmatpush.msra.mxu0 0.0
      %683 = vmatpush.msra.mxu0 0.0
      %684 = vmatpush.msra.mxu0 0.0
      %685 = vmatpush.msra.mxu0 0.0
      %686 = vmatpush.msra.mxu0 0.0
      %687 = vmatpush.msra.mxu0 0.0
      %688 = vmatpush.msra.mxu0 0.0
      %689 = vmatpush.msra.mxu0 0.0
      %690 = vmatpush.msra.mxu0 0.0
      %v691 = vand.u32 %v465, 4294901760
      %v692 = vsub.f32 %v465, %v691
      %v693 = vand.u32 %v692, 4294901760
      %694 = vmatpush.msra.mxu0 %v693
      %v695 = vand.u32 %v464, 4294901760
      %v696 = vsub.f32 %v464, %v695
      %v697 = vand.u32 %v696, 4294901760
      %698 = vmatpush.msra.mxu0 %v697
      %v699 = vand.u32 %v463, 4294901760
      %v700 = vsub.f32 %v463, %v699
      %v701 = vand.u32 %v700, 4294901760
      %702 = vmatpush.msra.mxu0 %v701
      %v703 = vand.u32 %v462, 4294901760
      %v704 = vsub.f32 %v462, %v703
      %v705 = vand.u32 %v704, 4294901760
      %706 = vmatpush.msra.mxu0 %v705
      %v707 = vand.u32 %v472, 4294901760
      %708 = vmatmul.f32.gmra.mxu0 %v707
      %v709 = vpop.f32.mrf.mxu0
      %v710 = vadd.f32 %v659, %v709
      %v711 = vand.u32 %v475, 4294901760
      %712 = vmatmul.f32.gmra.mxu0 %v711
      %v713 = vpop.f32.mrf.mxu0
      %v714 = vadd.f32 %v665, %v713
      %v715 = vand.u32 %v478, 4294901760
      %716 = vmatmul.f32.gmra.mxu0 %v715
      %v717 = vpop.f32.mrf.mxu0
      %v718 = vadd.f32 %v671, %v717
      %v719 = vand.u32 %v481, 4294901760
      %720 = vmatmul.f32.gmra.mxu0 %v719
      %v721 = vpop.f32.mrf.mxu0
      %v722 = vadd.f32 %v677, %v721
      %723 = vdwg.mxu0
      %724 = vmatpush.msra.mxu0 0.0
      %725 = vmatpush.msra.mxu0 0.0
      %726 = vmatpush.msra.mxu0 0.0
      %727 = vmatpush.msra.mxu0 0.0
      %728 = vmatpush.msra.mxu0 0.0
      %729 = vmatpush.msra.mxu0 0.0
      %730 = vmatpush.msra.mxu0 0.0
      %731 = vmatpush.msra.mxu0 0.0
      %732 = vmatpush.msra.mxu0 0.0
      %733 = vmatpush.msra.mxu0 0.0
      %734 = vmatpush.msra.mxu0 0.0
      %735 = vmatpush.msra.mxu0 0.0
      %v736 = vand.u32 %v465, 4294901760
      %737 = vmatpush.msra.mxu0 %v736
      %v738 = vand.u32 %v464, 4294901760
      %739 = vmatpush.msra.mxu0 %v738
      %v740 = vand.u32 %v463, 4294901760
      %741 = vmatpush.msra.mxu0 %v740
      %v742 = vand.u32 %v462, 4294901760
      %743 = vmatpush.msra.mxu0 %v742
      %v744 = vand.u32 %v472, 4294901760
      %745 = vmatmul.f32.gmra.mxu0 %v744
      %v746 = vpop.f32.mrf.mxu0
      %v747 = vadd.f32 %v710, %v746
      %v748 = vand.u32 %v475, 4294901760
      %749 = vmatmul.f32.gmra.mxu0 %v748
      %v750 = vpop.f32.mrf.mxu0
      %v751 = vadd.f32 %v714, %v750
      %v752 = vand.u32 %v478, 4294901760
      %753 = vmatmul.f32.gmra.mxu0 %v752
      %v754 = vpop.f32.mrf.mxu0
      %v755 = vadd.f32 %v718, %v754
      %v756 = vand.u32 %v481, 4294901760
      %757 = vmatmul.f32.gmra.mxu0 %v756
      %v758 = vpop.f32.mrf.mxu0
      %v759 = vadd.f32 %v722, %v758
      %760 = vdwg.mxu0
      %v761 = vmul.f32 %v747, 0.0625
      %v762 = vmul.f32 %v751, 0.0625
      %v763 = vmul.f32 %v755, 0.0625
      %v764 = vmul.f32 %v759, 0.0625
      %766 = vset.pattern.permute.xlu0 0
      %767 = vperm.xlu0 %766, %v458
      %v768 = vpop.permute.xlu0 %767
      %771 = vset.pattern.permute.xlu0 0
      %772 = vperm.xlu0 %771, %v459
      %v773 = vpop.permute.xlu0 %772
      %776 = vset.pattern.permute.xlu0 0
      %777 = vperm.xlu0 %776, %v460
      %v778 = vpop.permute.xlu0 %777
      %781 = vset.pattern.permute.xlu0 0
      %782 = vperm.xlu0 %781, %v461
      %v783 = vpop.permute.xlu0 %782
      %v785 = vadd.f32 %v768, %v761
      %v786 = vadd.f32 %v773, %v762
      %v787 = vadd.f32 %v778, %v763
      %v788 = vadd.f32 %v783, %v764
      %v789 = vmul.f32 %v785, 16.0
      %v790 = vmul.f32 %v786, 16.0
      %v791 = vmul.f32 %v787, 16.0
      %v792 = vmul.f32 %v788, 16.0
      %v793 = vsub.f32 %v789, 0.5
      %v794 = vsub.f32 %v790, 0.5
      %v795 = vsub.f32 %v791, 0.5
      %v796 = vsub.f32 %v792, 0.5
      %797 = vset.pattern.permute.xlu0 1
      %798 = vperm.xlu0 %797, %v458
      %v799 = vpop.permute.xlu0 %798
      %801 = vset.pattern.permute.xlu0 1
      %802 = vperm.xlu0 %801, %v459
      %v803 = vpop.permute.xlu0 %802
      %805 = vset.pattern.permute.xlu0 1
      %806 = vperm.xlu0 %805, %v460
      %v807 = vpop.permute.xlu0 %806
      %809 = vset.pattern.permute.xlu0 1
      %810 = vperm.xlu0 %809, %v461
      %v811 = vpop.permute.xlu0 %810
      %v813 = vadd.f32 %v799, %v761
      %v814 = vadd.f32 %v803, %v762
      %v815 = vadd.f32 %v807, %v763
      %v816 = vadd.f32 %v811, %v764
      %v817 = vmul.f32 %v813, 16.0
      %v818 = vmul.f32 %v814, 16.0
      %v819 = vmul.f32 %v815, 16.0
      %v820 = vmul.f32 %v816, 16.0
      %v821 = vsub.f32 %v817, 0.5
      %v822 = vsub.f32 %v818, 0.5
      %v823 = vsub.f32 %v819, 0.5
      %v824 = vsub.f32 %v820, 0.5
      %v825 = vfloor.f32 %v793
      %v826 = vfloor.f32 %v794
      %v827 = vfloor.f32 %v795
      %v828 = vfloor.f32 %v796
      %v829 = vfloor.f32 %v821
      %v830 = vfloor.f32 %v822
      %v831 = vfloor.f32 %v823
      %v832 = vfloor.f32 %v824
      %v833 = vsub.f32 %v793, %v825
      %v834 = vsub.f32 %v794, %v826
      %v835 = vsub.f32 %v795, %v827
      %v836 = vsub.f32 %v796, %v828
      %v837 = vsub.f32 1.0, %v833
      %v838 = vsub.f32 1.0, %v834
      %v839 = vsub.f32 1.0, %v835
      %v840 = vsub.f32 1.0, %v836
      %v841 = vsub.f32 %v821, %v829
      %v842 = vsub.f32 %v822, %v830
      %v843 = vsub.f32 %v823, %v831
      %v844 = vsub.f32 %v824, %v832
      %v845 = vsub.f32 1.0, %v841
      %v846 = vsub.f32 1.0, %v842
      %v847 = vsub.f32 1.0, %v843
      %v848 = vsub.f32 1.0, %v844
      %v849 = vcvt.f32.s32.to.zero.pseudo %v825
      %v850 = vcvt.f32.s32.to.zero.pseudo %v826
      %v851 = vcvt.f32.s32.to.zero.pseudo %v827
      %v852 = vcvt.f32.s32.to.zero.pseudo %v828
      %v853 = vcvt.f32.s32.to.zero.pseudo %v829
      %v854 = vcvt.f32.s32.to.zero.pseudo %v830
      %v855 = vcvt.f32.s32.to.zero.pseudo %v831
      %v856 = vcvt.f32.s32.to.zero.pseudo %v832
      %v857 = vadd.s32 %v849, 1
      %v858 = vadd.s32 %v850, 1
      %v859 = vadd.s32 %v851, 1
      %v860 = vadd.s32 %v852, 1
      %v861 = vadd.s32 %v853, 1
      %v862 = vadd.s32 %v854, 1
      %v863 = vadd.s32 %v855, 1
      %v864 = vadd.s32 %v856, 1
      %vm865 = vcmp.ge.s32.totalorder %v849, 0
      %vm866 = vcmp.ge.s32.totalorder %v850, 0
      %vm867 = vcmp.ge.s32.totalorder %v851, 0
      %vm868 = vcmp.ge.s32.totalorder %v852, 0
      %vm869 = vcmp.lt.s32.totalorder %v849, 16
      %vm870 = vcmp.lt.s32.totalorder %v850, 16
      %vm871 = vcmp.lt.s32.totalorder %v851, 16
      %vm872 = vcmp.lt.s32.totalorder %v852, 16
      %vm873 = vmand %vm865, %vm869
      %vm874 = vmand %vm866, %vm870
      %vm875 = vmand %vm867, %vm871
      %vm876 = vmand %vm868, %vm872
      %vm877 = vcmp.ge.s32.totalorder %v857, 0
      %vm878 = vcmp.ge.s32.totalorder %v858, 0
      %vm879 = vcmp.ge.s32.totalorder %v859, 0
      %vm880 = vcmp.ge.s32.totalorder %v860, 0
      %vm881 = vcmp.lt.s32.totalorder %v857, 16
      %vm882 = vcmp.lt.s32.totalorder %v858, 16
      %vm883 = vcmp.lt.s32.totalorder %v859, 16
      %vm884 = vcmp.lt.s32.totalorder %v860, 16
      %vm885 = vmand %vm877, %vm881
      %vm886 = vmand %vm878, %vm882
      %vm887 = vmand %vm879, %vm883
      %vm888 = vmand %vm880, %vm884
      %vm889 = vcmp.ge.s32.totalorder %v853, 0
      %vm890 = vcmp.ge.s32.totalorder %v854, 0
      %vm891 = vcmp.ge.s32.totalorder %v855, 0
      %vm892 = vcmp.ge.s32.totalorder %v856, 0
      %vm893 = vcmp.lt.s32.totalorder %v853, 16
      %vm894 = vcmp.lt.s32.totalorder %v854, 16
      %vm895 = vcmp.lt.s32.totalorder %v855, 16
      %vm896 = vcmp.lt.s32.totalorder %v856, 16
      %vm897 = vmand %vm889, %vm893
      %vm898 = vmand %vm890, %vm894
      %vm899 = vmand %vm891, %vm895
      %vm900 = vmand %vm892, %vm896
      %vm901 = vcmp.ge.s32.totalorder %v861, 0
      %vm902 = vcmp.ge.s32.totalorder %v862, 0
      %vm903 = vcmp.ge.s32.totalorder %v863, 0
      %vm904 = vcmp.ge.s32.totalorder %v864, 0
      %vm905 = vcmp.lt.s32.totalorder %v861, 16
      %vm906 = vcmp.lt.s32.totalorder %v862, 16
      %vm907 = vcmp.lt.s32.totalorder %v863, 16
      %vm908 = vcmp.lt.s32.totalorder %v864, 16
      %vm909 = vmand %vm901, %vm905
      %vm910 = vmand %vm902, %vm906
      %vm911 = vmand %vm903, %vm907
      %vm912 = vmand %vm904, %vm908
      %v913 = vsel %vm873, 1, 0
      %v914 = vsel %vm874, 1, 0
      %v915 = vsel %vm875, 1, 0
      %v916 = vsel %vm876, 1, 0
      %917 = vrot.lane.b32.xlu0 %v913, 16
      %v918 = vpop.permute.xlu0 %917
      %919 = vrot.lane.b32.xlu0 %v914, 16
      %v920 = vpop.permute.xlu0 %919
      %921 = vrot.lane.b32.xlu0 %v915, 16
      %v922 = vpop.permute.xlu0 %921
      %923 = vrot.lane.b32.xlu0 %v916, 16
      %v924 = vpop.permute.xlu0 %923
      %vm925 = vcmp.ne.s32.totalorder %v918, 0
      %vm926 = vcmp.ne.s32.totalorder %v920, 0
      %vm927 = vcmp.ne.s32.totalorder %v922, 0
      %vm928 = vcmp.ne.s32.totalorder %v924, 0
      %vm929 = vmand %vm897, %vm925
      %vm930 = vmand %vm898, %vm926
      %vm931 = vmand %vm899, %vm927
      %vm932 = vmand %vm900, %vm928
      %937 = vrot.lane.b32.xlu0 %v837, 16
      %v938 = vpop.permute.xlu0 %937
      %939 = vrot.lane.b32.xlu0 %v838, 16
      %v940 = vpop.permute.xlu0 %939
      %941 = vrot.lane.b32.xlu0 %v839, 16
      %v942 = vpop.permute.xlu0 %941
      %943 = vrot.lane.b32.xlu0 %v840, 16
      %v944 = vpop.permute.xlu0 %943
      %v949 = vmul.f32 %v845, %v938
      %v950 = vmul.f32 %v846, %v940
      %v951 = vmul.f32 %v847, %v942
      %v952 = vmul.f32 %v848, %v944
      %v953 = vsel %vm929, %v949, 0.0
      %v954 = vsel %vm930, %v950, 0.0
      %v955 = vsel %vm931, %v951, 0.0
      %v956 = vsel %vm932, %v952, 0.0
      %v957 = vsel %vm885, 1, 0
      %v958 = vsel %vm886, 1, 0
      %v959 = vsel %vm887, 1, 0
      %v960 = vsel %vm888, 1, 0
      %961 = vrot.lane.b32.xlu0 %v957, 16
      %v962 = vpop.permute.xlu0 %961
      %963 = vrot.lane.b32.xlu0 %v958, 16
      %v964 = vpop.permute.xlu0 %963
      %965 = vrot.lane.b32.xlu0 %v959, 16
      %v966 = vpop.permute.xlu0 %965
      %967 = vrot.lane.b32.xlu0 %v960, 16
      %v968 = vpop.permute.xlu0 %967
      %vm969 = vcmp.ne.s32.totalorder %v962, 0
      %vm970 = vcmp.ne.s32.totalorder %v964, 0
      %vm971 = vcmp.ne.s32.totalorder %v966, 0
      %vm972 = vcmp.ne.s32.totalorder %v968, 0
      %vm973 = vmand %vm897, %vm969
      %vm974 = vmand %vm898, %vm970
      %vm975 = vmand %vm899, %vm971
      %vm976 = vmand %vm900, %vm972
      %981 = vrot.lane.b32.xlu0 %v833, 16
      %v982 = vpop.permute.xlu0 %981
      %983 = vrot.lane.b32.xlu0 %v834, 16
      %v984 = vpop.permute.xlu0 %983
      %985 = vrot.lane.b32.xlu0 %v835, 16
      %v986 = vpop.permute.xlu0 %985
      %987 = vrot.lane.b32.xlu0 %v836, 16
      %v988 = vpop.permute.xlu0 %987
      %v993 = vmul.f32 %v845, %v982
      %v994 = vmul.f32 %v846, %v984
      %v995 = vmul.f32 %v847, %v986
      %v996 = vmul.f32 %v848, %v988
      %v997 = vsel %vm973, %v993, 0.0
      %v998 = vsel %vm974, %v994, 0.0
      %v999 = vsel %vm975, %v995, 0.0
      %v1000 = vsel %vm976, %v996, 0.0
      %vm1001 = vmand %vm909, %vm925
      %vm1002 = vmand %vm910, %vm926
      %vm1003 = vmand %vm911, %vm927
      %vm1004 = vmand %vm912, %vm928
      %v1005 = vmul.f32 %v841, %v938
      %v1006 = vmul.f32 %v842, %v940
      %v1007 = vmul.f32 %v843, %v942
      %v1008 = vmul.f32 %v844, %v944
      %v1009 = vsel %vm1001, %v1005, 0.0
      %v1010 = vsel %vm1002, %v1006, 0.0
      %v1011 = vsel %vm1003, %v1007, 0.0
      %v1012 = vsel %vm1004, %v1008, 0.0
      %vm1013 = vmand %vm909, %vm969
      %vm1014 = vmand %vm910, %vm970
      %vm1015 = vmand %vm911, %vm971
      %vm1016 = vmand %vm912, %vm972
      %v1017 = vmul.f32 %v841, %v982
      %v1018 = vmul.f32 %v842, %v984
      %v1019 = vmul.f32 %v843, %v986
      %v1020 = vmul.f32 %v844, %v988
      %v1021 = vsel %vm1013, %v1017, 0.0
      %v1022 = vsel %vm1014, %v1018, 0.0
      %v1023 = vsel %vm1015, %v1019, 0.0
      %v1024 = vsel %vm1016, %v1020, 0.0
      %v1025 = vmul.u32 %v853, 16
      %v1026 = vmul.u32 %v854, 16
      %v1027 = vmul.u32 %v855, 16
      %v1028 = vmul.u32 %v856, 16
      %1029 = vrot.lane.b32.xlu0 %v849, 16
      %v1030 = vpop.permute.xlu0 %1029
      %1031 = vrot.lane.b32.xlu0 %v850, 16
      %v1032 = vpop.permute.xlu0 %1031
      %1033 = vrot.lane.b32.xlu0 %v851, 16
      %v1034 = vpop.permute.xlu0 %1033
      %1035 = vrot.lane.b32.xlu0 %v852, 16
      %v1036 = vpop.permute.xlu0 %1035
      %v1037 = vadd.s32 %v1025, %v1030
      %v1038 = vadd.s32 %v1026, %v1032
      %v1039 = vadd.s32 %v1027, %v1034
      %v1040 = vadd.s32 %v1028, %v1036
      %vm1041 = vcmp.lt.s32.totalorder %v1037, 0
      %vm1042 = vcmp.lt.s32.totalorder %v1038, 0
      %vm1043 = vcmp.lt.s32.totalorder %v1039, 0
      %vm1044 = vcmp.lt.s32.totalorder %v1040, 0
      %v1045 = vadd.s32 %v1037, 256
      %v1046 = vadd.s32 %v1038, 256
      %v1047 = vadd.s32 %v1039, 256
      %v1048 = vadd.s32 %v1040, 256
      %v1049 = vsel %vm1041, %v1045, %v1037
      %v1050 = vsel %vm1042, %v1046, %v1038
      %v1051 = vsel %vm1043, %v1047, %v1039
      %v1052 = vsel %vm1044, %v1048, %v1040
      %v1053 = vlaneseq
      %v1054 = vand.u32 %v1053, 127
      %v1055 = vadd.s32 %v1054, 128
      %vm1056 = vcmask 294144
      %v1057 = vsel %vm1056, %v747, -inf
      %1058 = vmax.xlane.f32.xlu0 %v1057
      %v1059 = vpop.xlane.xlu0 %1058
      %v1060 = vsel %vm1056, %v751, -inf
      %1061 = vmax.xlane.f32.xlu0 %v1060
      %v1062 = vpop.xlane.xlu0 %1061
      %v1063 = vsel %vm1056, %v755, -inf
      %1064 = vmax.xlane.f32.xlu0 %v1063
      %v1065 = vpop.xlane.xlu0 %1064
      %v1066 = vsel %vm1056, %v759, -inf
      %1067 = vmax.xlane.f32.xlu0 %v1066
      %v1068 = vpop.xlane.xlu0 %1067
      %v1069 = vsub.f32 %v747, %v1059
      %v1070 = vsub.f32 %v751, %v1062
      %v1071 = vsub.f32 %v755, %v1065
      %v1072 = vsub.f32 %v759, %v1068
      %v1073 = vmul.f32 %v1069, 1.442695
      %v1074 = vpow.pop %v1073
      %v1075 = vmul.f32 %v1070, 1.442695
      %v1076 = vpow.pop %v1075
      %v1077 = vmul.f32 %v1071, 1.442695
      %v1078 = vpow.pop %v1077
      %v1079 = vmul.f32 %v1072, 1.442695
      %v1080 = vpow.pop %v1079
      %1085 = vrot.lane.b32.xlu0 %v1074, 96
      %v1086 = vpop.permute.xlu0 %1085
      %1087 = vrot.lane.b32.xlu0 %v1076, 96
      %v1088 = vpop.permute.xlu0 %1087
      %1089 = vrot.lane.b32.xlu0 %v1078, 96
      %v1090 = vpop.permute.xlu0 %1089
      %1091 = vrot.lane.b32.xlu0 %v1080, 96
      %v1092 = vpop.permute.xlu0 %1091
      %vm1097 = vcmask 31744
      %v1098 = vsel %vm1097, %v1086, 0.0
      %1099 = vadd.xlane.f32.xlu0 %v1098
      %v1100 = vpop.xlane.xlu0 %1099
      %v1101 = vsel %vm1097, %v1088, 0.0
      %1102 = vadd.xlane.f32.xlu0 %v1101
      %v1103 = vpop.xlane.xlu0 %1102
      %v1104 = vsel %vm1097, %v1090, 0.0
      %1105 = vadd.xlane.f32.xlu0 %v1104
      %v1106 = vpop.xlane.xlu0 %1105
      %v1107 = vsel %vm1097, %v1092, 0.0
      %1108 = vadd.xlane.f32.xlu0 %v1107
      %v1109 = vpop.xlane.xlu0 %1108
      %v1110 = vrcp.pop %v1100
      %v1111 = vmul.f32 %v1100, %v1110
      %v1112 = vsub.f32 1.0, %v1111
      %v1113 = vmul.f32 %v1110, %v1112
      %v1114 = vadd.f32 %v1110, %v1113
      %vm1115 = vweird.f32 %v1100
      %vm1116 = vweird.f32 %v1110
      %vm1117 = vmor %vm1115, %vm1116
      %v1118 = vsel %vm1117, %v1110, %v1114
      %v1119 = vand.u32 2147483647, %v1100
      %vm1120 = vcmp.eq.f32.partialorder %v1119, 8.507059e+37
      %v1121 = vand.u32 %v1100, 2147483648
      %v1122 = vor.u32 1.1754944e-38, %v1121
      %v1123 = vsel %vm1120, %v1122, %v1118
      %v1124 = vmul.f32 %v1074, %v1123
      %v1125 = vrcp.pop %v1103
      %v1126 = vmul.f32 %v1103, %v1125
      %v1127 = vsub.f32 1.0, %v1126
      %v1128 = vmul.f32 %v1125, %v1127
      %v1129 = vadd.f32 %v1125, %v1128
      %vm1130 = vweird.f32 %v1103
      %vm1131 = vweird.f32 %v1125
      %vm1132 = vmor %vm1130, %vm1131
      %v1133 = vsel %vm1132, %v1125, %v1129
      %v1134 = vand.u32 2147483647, %v1103
      %vm1135 = vcmp.eq.f32.partialorder %v1134, 8.507059e+37
      %v1136 = vand.u32 %v1103, 2147483648
      %v1137 = vor.u32 1.1754944e-38, %v1136
      %v1138 = vsel %vm1135, %v1137, %v1133
      %v1139 = vmul.f32 %v1076, %v1138
      %v1140 = vrcp.pop %v1106
      %v1141 = vmul.f32 %v1106, %v1140
      %v1142 = vsub.f32 1.0, %v1141
      %v1143 = vmul.f32 %v1140, %v1142
      %v1144 = vadd.f32 %v1140, %v1143
      %vm1145 = vweird.f32 %v1106
      %vm1146 = vweird.f32 %v1140
      %vm1147 = vmor %vm1145, %vm1146
      %v1148 = vsel %vm1147, %v1140, %v1144
      %v1149 = vand.u32 2147483647, %v1106
      %vm1150 = vcmp.eq.f32.partialorder %v1149, 8.507059e+37
      %v1151 = vand.u32 %v1106, 2147483648
      %v1152 = vor.u32 1.1754944e-38, %v1151
      %v1153 = vsel %vm1150, %v1152, %v1148
      %v1154 = vmul.f32 %v1078, %v1153
      %v1155 = vrcp.pop %v1109
      %v1156 = vmul.f32 %v1109, %v1155
      %v1157 = vsub.f32 1.0, %v1156
      %v1158 = vmul.f32 %v1155, %v1157
      %v1159 = vadd.f32 %v1155, %v1158
      %vm1160 = vweird.f32 %v1109
      %vm1161 = vweird.f32 %v1155
      %vm1162 = vmor %vm1160, %vm1161
      %v1163 = vsel %vm1162, %v1155, %v1159
      %v1164 = vand.u32 2147483647, %v1109
      %vm1165 = vcmp.eq.f32.partialorder %v1164, 8.507059e+37
      %v1166 = vand.u32 %v1109, 2147483648
      %v1167 = vor.u32 1.1754944e-38, %v1166
      %v1168 = vsel %vm1165, %v1167, %v1163
      %v1169 = vmul.f32 %v1080, %v1168
      %1174 = vrot.lane.b32.xlu0 %v953, 16
      %v1175 = vpop.permute.xlu0 %1174
      %1176 = vrot.lane.b32.xlu0 %v954, 16
      %v1177 = vpop.permute.xlu0 %1176
      %1178 = vrot.lane.b32.xlu0 %v955, 16
      %v1179 = vpop.permute.xlu0 %1178
      %1180 = vrot.lane.b32.xlu0 %v956, 16
      %v1181 = vpop.permute.xlu0 %1180
      %v1186 = vmul.f32 %v1124, %v1175
      %v1187 = vmul.f32 %v1139, %v1177
      %v1188 = vmul.f32 %v1154, %v1179
      %v1189 = vmul.f32 %v1169, %v1181
      %1194 = vrot.lane.b32.xlu0 %v997, 16
      %v1195 = vpop.permute.xlu0 %1194
      %1196 = vrot.lane.b32.xlu0 %v998, 16
      %v1197 = vpop.permute.xlu0 %1196
      %1198 = vrot.lane.b32.xlu0 %v999, 16
      %v1199 = vpop.permute.xlu0 %1198
      %1200 = vrot.lane.b32.xlu0 %v1000, 16
      %v1201 = vpop.permute.xlu0 %1200
      %v1206 = vmul.f32 %v1124, %v1195
      %v1207 = vmul.f32 %v1139, %v1197
      %v1208 = vmul.f32 %v1154, %v1199
      %v1209 = vmul.f32 %v1169, %v1201
      %1214 = vrot.lane.b32.xlu0 %v1009, 16
      %v1215 = vpop.permute.xlu0 %1214
      %1216 = vrot.lane.b32.xlu0 %v1010, 16
      %v1217 = vpop.permute.xlu0 %1216
      %1218 = vrot.lane.b32.xlu0 %v1011, 16
      %v1219 = vpop.permute.xlu0 %1218
      %1220 = vrot.lane.b32.xlu0 %v1012, 16
      %v1221 = vpop.permute.xlu0 %1220
      %v1226 = vmul.f32 %v1124, %v1215
      %v1227 = vmul.f32 %v1139, %v1217
      %v1228 = vmul.f32 %v1154, %v1219
      %v1229 = vmul.f32 %v1169, %v1221
      %1234 = vrot.lane.b32.xlu0 %v1021, 16
      %v1235 = vpop.permute.xlu0 %1234
      %1236 = vrot.lane.b32.xlu0 %v1022, 16
      %v1237 = vpop.permute.xlu0 %1236
      %1238 = vrot.lane.b32.xlu0 %v1023, 16
      %v1239 = vpop.permute.xlu0 %1238
      %1240 = vrot.lane.b32.xlu0 %v1024, 16
      %v1241 = vpop.permute.xlu0 %1240
      %v1246 = vmul.f32 %v1124, %v1235
      %v1247 = vmul.f32 %v1139, %v1237
      %v1248 = vmul.f32 %v1154, %v1239
      %v1249 = vmul.f32 %v1169, %v1241
      %v1250 = vld [vmem:[%s439] sm:$0xff]
      %v1251 = vld [vmem:[%s439 + $0x8] sm:$0xff]
      %v1252 = vld [vmem:[%s439 + $0x10] sm:$0xff]
      %v1253 = vld [vmem:[%s439 + $0x18] sm:$0xff]
      %v1254 = vld [vmem:[%s439 + $0x20] sm:$0xff]
      %v1255 = vld [vmem:[%s439 + $0x28] sm:$0xff]
      %v1256 = vld [vmem:[%s439 + $0x30] sm:$0xff]
      %v1257 = vld [vmem:[%s439 + $0x38] sm:$0xff]
      %v1258 = vld [vmem:[%s439 + $0x40] sm:$0xff]
      %v1259 = vld [vmem:[%s439 + $0x48] sm:$0xff]
      %v1260 = vld [vmem:[%s439 + $0x50] sm:$0xff]
      %v1261 = vld [vmem:[%s439 + $0x58] sm:$0xff]
      %v1262 = vld [vmem:[%s439 + $0x60] sm:$0xff]
      %v1263 = vld [vmem:[%s439 + $0x68] sm:$0xff]
      %v1264 = vld [vmem:[%s439 + $0x70] sm:$0xff]
      %v1265 = vld [vmem:[%s439 + $0x78] sm:$0xff]
      %v1266 = vld [vmem:[%s439 + $0x80] sm:$0xff]
      %v1267 = vld [vmem:[%s439 + $0x88] sm:$0xff]
      %v1268 = vld [vmem:[%s439 + $0x90] sm:$0xff]
      %v1269 = vld [vmem:[%s439 + $0x98] sm:$0xff]
      %v1270 = vld [vmem:[%s439 + $0xa0] sm:$0xff]
      %v1271 = vld [vmem:[%s439 + $0xa8] sm:$0xff]
      %v1272 = vld [vmem:[%s439 + $0xb0] sm:$0xff]
      %v1273 = vld [vmem:[%s439 + $0xb8] sm:$0xff]
      %v1274 = vld [vmem:[%s439 + $0xc0] sm:$0xff]
      %v1275 = vld [vmem:[%s439 + $0xc8] sm:$0xff]
      %v1276 = vld [vmem:[%s439 + $0xd0] sm:$0xff]
      %v1277 = vld [vmem:[%s439 + $0xd8] sm:$0xff]
      %v1278 = vld [vmem:[%s439 + $0xe0] sm:$0xff]
      %v1279 = vld [vmem:[%s439 + $0xe8] sm:$0xff]
      %v1280 = vld [vmem:[%s439 + $0xf0] sm:$0xff]
      %v1281 = vld [vmem:[%s439 + $0xf8] sm:$0xff]
      %1282 = vset.pattern.permute.xlu0 16
      %1283 = vperm.xlu0 %1282, %v1049
      %v1284 = vpop.permute.xlu0 %1283
      %1285 = vset.pattern.permute.xlu0 16
      %1286 = vperm.xlu0 %1285, %v1050
      %v1287 = vpop.permute.xlu0 %1286
      %1288 = vset.pattern.permute.xlu0 16
      %1289 = vperm.xlu0 %1288, %v1051
      %v1290 = vpop.permute.xlu0 %1289
      %1291 = vset.pattern.permute.xlu0 16
      %1292 = vperm.xlu0 %1291, %v1052
      %v1293 = vpop.permute.xlu0 %1292
      %vm1294 = vcmp.eq.s32.totalorder %v1054, %v1284
      %vm1295 = vcmp.eq.s32.totalorder %v1055, %v1284
      %vm1296 = vcmp.eq.s32.totalorder %v1054, %v1287
      %vm1297 = vcmp.eq.s32.totalorder %v1055, %v1287
      %vm1298 = vcmp.eq.s32.totalorder %v1054, %v1290
      %vm1299 = vcmp.eq.s32.totalorder %v1055, %v1290
      %vm1300 = vcmp.eq.s32.totalorder %v1054, %v1293
      %vm1301 = vcmp.eq.s32.totalorder %v1055, %v1293
      %1303 = vset.pattern.permute.xlu0 32
      %1304 = vperm.xlu0 %1303, %v1186
      %v1305 = vpop.permute.xlu0 %1304
      %1308 = vset.pattern.permute.xlu0 32
      %1309 = vperm.xlu0 %1308, %v1187
      %v1310 = vpop.permute.xlu0 %1309
      %1313 = vset.pattern.permute.xlu0 32
      %1314 = vperm.xlu0 %1313, %v1188
      %v1315 = vpop.permute.xlu0 %1314
      %1318 = vset.pattern.permute.xlu0 32
      %1319 = vperm.xlu0 %1318, %v1189
      %v1320 = vpop.permute.xlu0 %1319
      %v1322 = vsel %vm1294, %v1305, 0.0
      %v1323 = vsel %vm1295, %v1305, 0.0
      %v1324 = vsel %vm1296, %v1310, 0.0
      %v1325 = vsel %vm1297, %v1310, 0.0
      %v1326 = vsel %vm1298, %v1315, 0.0
      %v1327 = vsel %vm1299, %v1315, 0.0
      %v1328 = vsel %vm1300, %v1320, 0.0
      %v1329 = vsel %vm1301, %v1320, 0.0
      %v1330 = vadd.f32 %v1322, 0.0
      %v1331 = vadd.f32 %v1323, 0.0
      %v1332 = vadd.f32 %v1324, 0.0
      %v1333 = vadd.f32 %v1325, 0.0
      %v1334 = vadd.f32 %v1326, 0.0
      %v1335 = vadd.f32 %v1327, 0.0
      %v1336 = vadd.f32 %v1328, 0.0
      %v1337 = vadd.f32 %v1329, 0.0
      %1339 = vset.pattern.permute.xlu0 32
      %1340 = vperm.xlu0 %1339, %v1206
      %v1341 = vpop.permute.xlu0 %1340
      %1344 = vset.pattern.permute.xlu0 32
      %1345 = vperm.xlu0 %1344, %v1207
      %v1346 = vpop.permute.xlu0 %1345
      %1349 = vset.pattern.permute.xlu0 32
      %1350 = vperm.xlu0 %1349, %v1208
      %v1351 = vpop.permute.xlu0 %1350
      %1354 = vset.pattern.permute.xlu0 32
      %1355 = vperm.xlu0 %1354, %v1209
      %v1356 = vpop.permute.xlu0 %1355
      %v1358 = vsel %vm1294, %v1341, 0.0
      %v1359 = vsel %vm1295, %v1341, 0.0
      %v1360 = vsel %vm1296, %v1346, 0.0
      %v1361 = vsel %vm1297, %v1346, 0.0
      %v1362 = vsel %vm1298, %v1351, 0.0
      %v1363 = vsel %vm1299, %v1351, 0.0
      %v1364 = vsel %vm1300, %v1356, 0.0
      %v1365 = vsel %vm1301, %v1356, 0.0
      %1366 = vrot.lane.b32.xlu0 %v1358, 1
      %v1367 = vpop.permute.xlu0 %1366
      %1368 = vrot.lane.b32.xlu0 %v1360, 1
      %v1369 = vpop.permute.xlu0 %1368
      %1370 = vrot.lane.b32.xlu0 %v1362, 1
      %v1371 = vpop.permute.xlu0 %1370
      %1372 = vrot.lane.b32.xlu0 %v1364, 1
      %v1373 = vpop.permute.xlu0 %1372
      %1374 = vrot.lane.b32.xlu0 %v1359, 1
      %v1375 = vpop.permute.xlu0 %1374
      %1376 = vrot.lane.b32.xlu0 %v1361, 1
      %v1377 = vpop.permute.xlu0 %1376
      %1378 = vrot.lane.b32.xlu0 %v1363, 1
      %v1379 = vpop.permute.xlu0 %1378
      %1380 = vrot.lane.b32.xlu0 %v1365, 1
      %v1381 = vpop.permute.xlu0 %1380
      %vm1382 = vcmp.lt.s32.totalorder %v1054, 1
      %v1383 = vsel %vm1382, %v1367, %v1375
      %v1384 = vsel %vm1382, %v1369, %v1377
      %v1385 = vsel %vm1382, %v1371, %v1379
      %v1386 = vsel %vm1382, %v1373, %v1381
      %v1387 = vsel %vm1382, %v1375, %v1367
      %v1388 = vsel %vm1382, %v1377, %v1369
      %v1389 = vsel %vm1382, %v1379, %v1371
      %v1390 = vsel %vm1382, %v1381, %v1373
      %v1391 = vadd.f32 %v1330, %v1387
      %v1392 = vadd.f32 %v1331, %v1383
      %v1393 = vadd.f32 %v1332, %v1388
      %v1394 = vadd.f32 %v1333, %v1384
      %v1395 = vadd.f32 %v1334, %v1389
      %v1396 = vadd.f32 %v1335, %v1385
      %v1397 = vadd.f32 %v1336, %v1390
      %v1398 = vadd.f32 %v1337, %v1386
      %1400 = vset.pattern.permute.xlu0 32
      %1401 = vperm.xlu0 %1400, %v1226
      %v1402 = vpop.permute.xlu0 %1401
      %1405 = vset.pattern.permute.xlu0 32
      %1406 = vperm.xlu0 %1405, %v1227
      %v1407 = vpop.permute.xlu0 %1406
      %1410 = vset.pattern.permute.xlu0 32
      %1411 = vperm.xlu0 %1410, %v1228
      %v1412 = vpop.permute.xlu0 %1411
      %1415 = vset.pattern.permute.xlu0 32
      %1416 = vperm.xlu0 %1415, %v1229
      %v1417 = vpop.permute.xlu0 %1416
      %v1419 = vsel %vm1294, %v1402, 0.0
      %v1420 = vsel %vm1295, %v1402, 0.0
      %v1421 = vsel %vm1296, %v1407, 0.0
      %v1422 = vsel %vm1297, %v1407, 0.0
      %v1423 = vsel %vm1298, %v1412, 0.0
      %v1424 = vsel %vm1299, %v1412, 0.0
      %v1425 = vsel %vm1300, %v1417, 0.0
      %v1426 = vsel %vm1301, %v1417, 0.0
      %v1427 = vadd.f32 %v1419, 0.0
      %v1428 = vadd.f32 %v1420, 0.0
      %v1429 = vadd.f32 %v1421, 0.0
      %v1430 = vadd.f32 %v1422, 0.0
      %v1431 = vadd.f32 %v1423, 0.0
      %v1432 = vadd.f32 %v1424, 0.0
      %v1433 = vadd.f32 %v1425, 0.0
      %v1434 = vadd.f32 %v1426, 0.0
      %1436 = vset.pattern.permute.xlu0 32
      %1437 = vperm.xlu0 %1436, %v1246
      %v1438 = vpop.permute.xlu0 %1437
      %1441 = vset.pattern.permute.xlu0 32
      %1442 = vperm.xlu0 %1441, %v1247
      %v1443 = vpop.permute.xlu0 %1442
      %1446 = vset.pattern.permute.xlu0 32
      %1447 = vperm.xlu0 %1446, %v1248
      %v1448 = vpop.permute.xlu0 %1447
      %1451 = vset.pattern.permute.xlu0 32
      %1452 = vperm.xlu0 %1451, %v1249
      %v1453 = vpop.permute.xlu0 %1452
      %v1455 = vsel %vm1294, %v1438, 0.0
      %v1456 = vsel %vm1295, %v1438, 0.0
      %v1457 = vsel %vm1296, %v1443, 0.0
      %v1458 = vsel %vm1297, %v1443, 0.0
      %v1459 = vsel %vm1298, %v1448, 0.0
      %v1460 = vsel %vm1299, %v1448, 0.0
      %v1461 = vsel %vm1300, %v1453, 0.0
      %v1462 = vsel %vm1301, %v1453, 0.0
      %1463 = vrot.lane.b32.xlu0 %v1455, 1
      %v1464 = vpop.permute.xlu0 %1463
      %1465 = vrot.lane.b32.xlu0 %v1457, 1
      %v1466 = vpop.permute.xlu0 %1465
      %1467 = vrot.lane.b32.xlu0 %v1459, 1
      %v1468 = vpop.permute.xlu0 %1467
      %1469 = vrot.lane.b32.xlu0 %v1461, 1
      %v1470 = vpop.permute.xlu0 %1469
      %1471 = vrot.lane.b32.xlu0 %v1456, 1
      %v1472 = vpop.permute.xlu0 %1471
      %1473 = vrot.lane.b32.xlu0 %v1458, 1
      %v1474 = vpop.permute.xlu0 %1473
      %1475 = vrot.lane.b32.xlu0 %v1460, 1
      %v1476 = vpop.permute.xlu0 %1475
      %1477 = vrot.lane.b32.xlu0 %v1462, 1
      %v1478 = vpop.permute.xlu0 %1477
      %v1479 = vsel %vm1382, %v1464, %v1472
      %v1480 = vsel %vm1382, %v1466, %v1474
      %v1481 = vsel %vm1382, %v1468, %v1476
      %v1482 = vsel %vm1382, %v1470, %v1478
      %v1483 = vsel %vm1382, %v1472, %v1464
      %v1484 = vsel %vm1382, %v1474, %v1466
      %v1485 = vsel %vm1382, %v1476, %v1468
      %v1486 = vsel %vm1382, %v1478, %v1470
      %v1487 = vadd.f32 %v1427, %v1483
      %v1488 = vadd.f32 %v1428, %v1479
      %v1489 = vadd.f32 %v1429, %v1484
      %v1490 = vadd.f32 %v1430, %v1480
      %v1491 = vadd.f32 %v1431, %v1485
      %v1492 = vadd.f32 %v1432, %v1481
      %v1493 = vadd.f32 %v1433, %v1486
      %v1494 = vadd.f32 %v1434, %v1482
      %1495 = vset.pattern.permute.xlu0 17
      %1496 = vperm.xlu0 %1495, %v1049
      %v1497 = vpop.permute.xlu0 %1496
      %1498 = vset.pattern.permute.xlu0 17
      %1499 = vperm.xlu0 %1498, %v1050
      %v1500 = vpop.permute.xlu0 %1499
      %1501 = vset.pattern.permute.xlu0 17
      %1502 = vperm.xlu0 %1501, %v1051
      %v1503 = vpop.permute.xlu0 %1502
      %1504 = vset.pattern.permute.xlu0 17
      %1505 = vperm.xlu0 %1504, %v1052
      %v1506 = vpop.permute.xlu0 %1505
      %vm1507 = vcmp.eq.s32.totalorder %v1054, %v1497
      %vm1508 = vcmp.eq.s32.totalorder %v1055, %v1497
      %vm1509 = vcmp.eq.s32.totalorder %v1054, %v1500
      %vm1510 = vcmp.eq.s32.totalorder %v1055, %v1500
      %vm1511 = vcmp.eq.s32.totalorder %v1054, %v1503
      %vm1512 = vcmp.eq.s32.totalorder %v1055, %v1503
      %vm1513 = vcmp.eq.s32.totalorder %v1054, %v1506
      %vm1514 = vcmp.eq.s32.totalorder %v1055, %v1506
      %1515 = vset.pattern.permute.xlu0 33
      %1516 = vperm.xlu0 %1515, %v1186
      %v1517 = vpop.permute.xlu0 %1516
      %1519 = vset.pattern.permute.xlu0 33
      %1520 = vperm.xlu0 %1519, %v1187
      %v1521 = vpop.permute.xlu0 %1520
      %1523 = vset.pattern.permute.xlu0 33
      %1524 = vperm.xlu0 %1523, %v1188
      %v1525 = vpop.permute.xlu0 %1524
      %1527 = vset.pattern.permute.xlu0 33
      %1528 = vperm.xlu0 %1527, %v1189
      %v1529 = vpop.permute.xlu0 %1528
      %v1531 = vsel %vm1507, %v1517, 0.0
      %v1532 = vsel %vm1508, %v1517, 0.0
      %v1533 = vsel %vm1509, %v1521, 0.0
      %v1534 = vsel %vm1510, %v1521, 0.0
      %v1535 = vsel %vm1511, %v1525, 0.0
      %v1536 = vsel %vm1512, %v1525, 0.0
      %v1537 = vsel %vm1513, %v1529, 0.0
      %v1538 = vsel %vm1514, %v1529, 0.0
      %v1539 = vadd.f32 %v1391, %v1531
      %v1540 = vadd.f32 %v1392, %v1532
      %v1541 = vadd.f32 %v1393, %v1533
      %v1542 = vadd.f32 %v1394, %v1534
      %v1543 = vadd.f32 %v1395, %v1535
      %v1544 = vadd.f32 %v1396, %v1536
      %v1545 = vadd.f32 %v1397, %v1537
      %v1546 = vadd.f32 %v1398, %v1538
      %1547 = vset.pattern.permute.xlu0 33
      %1548 = vperm.xlu0 %1547, %v1206
      %v1549 = vpop.permute.xlu0 %1548
      %1551 = vset.pattern.permute.xlu0 33
      %1552 = vperm.xlu0 %1551, %v1207
      %v1553 = vpop.permute.xlu0 %1552
      %1555 = vset.pattern.permute.xlu0 33
      %1556 = vperm.xlu0 %1555, %v1208
      %v1557 = vpop.permute.xlu0 %1556
      %1559 = vset.pattern.permute.xlu0 33
      %1560 = vperm.xlu0 %1559, %v1209
      %v1561 = vpop.permute.xlu0 %1560
      %v1563 = vsel %vm1507, %v1549, 0.0
      %v1564 = vsel %vm1508, %v1549, 0.0
      %v1565 = vsel %vm1509, %v1553, 0.0
      %v1566 = vsel %vm1510, %v1553, 0.0
      %v1567 = vsel %vm1511, %v1557, 0.0
      %v1568 = vsel %vm1512, %v1557, 0.0
      %v1569 = vsel %vm1513, %v1561, 0.0
      %v1570 = vsel %vm1514, %v1561, 0.0
      %1571 = vrot.lane.b32.xlu0 %v1563, 1
      %v1572 = vpop.permute.xlu0 %1571
      %1573 = vrot.lane.b32.xlu0 %v1565, 1
      %v1574 = vpop.permute.xlu0 %1573
      %1575 = vrot.lane.b32.xlu0 %v1567, 1
      %v1576 = vpop.permute.xlu0 %1575
      %1577 = vrot.lane.b32.xlu0 %v1569, 1
      %v1578 = vpop.permute.xlu0 %1577
      %1579 = vrot.lane.b32.xlu0 %v1564, 1
      %v1580 = vpop.permute.xlu0 %1579
      %1581 = vrot.lane.b32.xlu0 %v1566, 1
      %v1582 = vpop.permute.xlu0 %1581
      %1583 = vrot.lane.b32.xlu0 %v1568, 1
      %v1584 = vpop.permute.xlu0 %1583
      %1585 = vrot.lane.b32.xlu0 %v1570, 1
      %v1586 = vpop.permute.xlu0 %1585
      %v1587 = vsel %vm1382, %v1572, %v1580
      %v1588 = vsel %vm1382, %v1574, %v1582
      %v1589 = vsel %vm1382, %v1576, %v1584
      %v1590 = vsel %vm1382, %v1578, %v1586
      %v1591 = vsel %vm1382, %v1580, %v1572
      %v1592 = vsel %vm1382, %v1582, %v1574
      %v1593 = vsel %vm1382, %v1584, %v1576
      %v1594 = vsel %vm1382, %v1586, %v1578
      %v1595 = vadd.f32 %v1539, %v1591
      %v1596 = vadd.f32 %v1540, %v1587
      %v1597 = vadd.f32 %v1541, %v1592
      %v1598 = vadd.f32 %v1542, %v1588
      %v1599 = vadd.f32 %v1543, %v1593
      %v1600 = vadd.f32 %v1544, %v1589
      %v1601 = vadd.f32 %v1545, %v1594
      %v1602 = vadd.f32 %v1546, %v1590
      %1603 = vset.pattern.permute.xlu0 33
      %1604 = vperm.xlu0 %1603, %v1226
      %v1605 = vpop.permute.xlu0 %1604
      %1607 = vset.pattern.permute.xlu0 33
      %1608 = vperm.xlu0 %1607, %v1227
      %v1609 = vpop.permute.xlu0 %1608
      %1611 = vset.pattern.permute.xlu0 33
      %1612 = vperm.xlu0 %1611, %v1228
      %v1613 = vpop.permute.xlu0 %1612
      %1615 = vset.pattern.permute.xlu0 33
      %1616 = vperm.xlu0 %1615, %v1229
      %v1617 = vpop.permute.xlu0 %1616
      %v1619 = vsel %vm1507, %v1605, 0.0
      %v1620 = vsel %vm1508, %v1605, 0.0
      %v1621 = vsel %vm1509, %v1609, 0.0
      %v1622 = vsel %vm1510, %v1609, 0.0
      %v1623 = vsel %vm1511, %v1613, 0.0
      %v1624 = vsel %vm1512, %v1613, 0.0
      %v1625 = vsel %vm1513, %v1617, 0.0
      %v1626 = vsel %vm1514, %v1617, 0.0
      %v1627 = vadd.f32 %v1487, %v1619
      %v1628 = vadd.f32 %v1488, %v1620
      %v1629 = vadd.f32 %v1489, %v1621
      %v1630 = vadd.f32 %v1490, %v1622
      %v1631 = vadd.f32 %v1491, %v1623
      %v1632 = vadd.f32 %v1492, %v1624
      %v1633 = vadd.f32 %v1493, %v1625
      %v1634 = vadd.f32 %v1494, %v1626
      %1635 = vset.pattern.permute.xlu0 33
      %1636 = vperm.xlu0 %1635, %v1246
      %v1637 = vpop.permute.xlu0 %1636
      %1639 = vset.pattern.permute.xlu0 33
      %1640 = vperm.xlu0 %1639, %v1247
      %v1641 = vpop.permute.xlu0 %1640
      %1643 = vset.pattern.permute.xlu0 33
      %1644 = vperm.xlu0 %1643, %v1248
      %v1645 = vpop.permute.xlu0 %1644
      %1647 = vset.pattern.permute.xlu0 33
      %1648 = vperm.xlu0 %1647, %v1249
      %v1649 = vpop.permute.xlu0 %1648
      %v1651 = vsel %vm1507, %v1637, 0.0
      %v1652 = vsel %vm1508, %v1637, 0.0
      %v1653 = vsel %vm1509, %v1641, 0.0
      %v1654 = vsel %vm1510, %v1641, 0.0
      %v1655 = vsel %vm1511, %v1645, 0.0
      %v1656 = vsel %vm1512, %v1645, 0.0
      %v1657 = vsel %vm1513, %v1649, 0.0
      %v1658 = vsel %vm1514, %v1649, 0.0
      %1659 = vrot.lane.b32.xlu0 %v1651, 1
      %v1660 = vpop.permute.xlu0 %1659
      %1661 = vrot.lane.b32.xlu0 %v1653, 1
      %v1662 = vpop.permute.xlu0 %1661
      %1663 = vrot.lane.b32.xlu0 %v1655, 1
      %v1664 = vpop.permute.xlu0 %1663
      %1665 = vrot.lane.b32.xlu0 %v1657, 1
      %v1666 = vpop.permute.xlu0 %1665
      %1667 = vrot.lane.b32.xlu0 %v1652, 1
      %v1668 = vpop.permute.xlu0 %1667
      %1669 = vrot.lane.b32.xlu0 %v1654, 1
      %v1670 = vpop.permute.xlu0 %1669
      %1671 = vrot.lane.b32.xlu0 %v1656, 1
      %v1672 = vpop.permute.xlu0 %1671
      %1673 = vrot.lane.b32.xlu0 %v1658, 1
      %v1674 = vpop.permute.xlu0 %1673
      %v1675 = vsel %vm1382, %v1660, %v1668
      %v1676 = vsel %vm1382, %v1662, %v1670
      %v1677 = vsel %vm1382, %v1664, %v1672
      %v1678 = vsel %vm1382, %v1666, %v1674
      %v1679 = vsel %vm1382, %v1668, %v1660
      %v1680 = vsel %vm1382, %v1670, %v1662
      %v1681 = vsel %vm1382, %v1672, %v1664
      %v1682 = vsel %vm1382, %v1674, %v1666
      %v1683 = vadd.f32 %v1627, %v1679
      %v1684 = vadd.f32 %v1628, %v1675
      %v1685 = vadd.f32 %v1629, %v1680
      %v1686 = vadd.f32 %v1630, %v1676
      %v1687 = vadd.f32 %v1631, %v1681
      %v1688 = vadd.f32 %v1632, %v1677
      %v1689 = vadd.f32 %v1633, %v1682
      %v1690 = vadd.f32 %v1634, %v1678
      %1691 = vset.pattern.permute.xlu0 18
      %1692 = vperm.xlu0 %1691, %v1049
      %v1693 = vpop.permute.xlu0 %1692
      %1694 = vset.pattern.permute.xlu0 18
      %1695 = vperm.xlu0 %1694, %v1050
      %v1696 = vpop.permute.xlu0 %1695
      %1697 = vset.pattern.permute.xlu0 18
      %1698 = vperm.xlu0 %1697, %v1051
      %v1699 = vpop.permute.xlu0 %1698
      %1700 = vset.pattern.permute.xlu0 18
      %1701 = vperm.xlu0 %1700, %v1052
      %v1702 = vpop.permute.xlu0 %1701
      %vm1703 = vcmp.eq.s32.totalorder %v1054, %v1693
      %vm1704 = vcmp.eq.s32.totalorder %v1055, %v1693
      %vm1705 = vcmp.eq.s32.totalorder %v1054, %v1696
      %vm1706 = vcmp.eq.s32.totalorder %v1055, %v1696
      %vm1707 = vcmp.eq.s32.totalorder %v1054, %v1699
      %vm1708 = vcmp.eq.s32.totalorder %v1055, %v1699
      %vm1709 = vcmp.eq.s32.totalorder %v1054, %v1702
      %vm1710 = vcmp.eq.s32.totalorder %v1055, %v1702
      %1711 = vset.pattern.permute.xlu0 34
      %1712 = vperm.xlu0 %1711, %v1186
      %v1713 = vpop.permute.xlu0 %1712
      %1715 = vset.pattern.permute.xlu0 34
      %1716 = vperm.xlu0 %1715, %v1187
      %v1717 = vpop.permute.xlu0 %1716
      %1719 = vset.pattern.permute.xlu0 34
      %1720 = vperm.xlu0 %1719, %v1188
      %v1721 = vpop.permute.xlu0 %1720
      %1723 = vset.pattern.permute.xlu0 34
      %1724 = vperm.xlu0 %1723, %v1189
      %v1725 = vpop.permute.xlu0 %1724
      %v1727 = vsel %vm1703, %v1713, 0.0
      %v1728 = vsel %vm1704, %v1713, 0.0
      %v1729 = vsel %vm1705, %v1717, 0.0
      %v1730 = vsel %vm1706, %v1717, 0.0
      %v1731 = vsel %vm1707, %v1721, 0.0
      %v1732 = vsel %vm1708, %v1721, 0.0
      %v1733 = vsel %vm1709, %v1725, 0.0
      %v1734 = vsel %vm1710, %v1725, 0.0
      %v1735 = vadd.f32 %v1595, %v1727
      %v1736 = vadd.f32 %v1596, %v1728
      %v1737 = vadd.f32 %v1597, %v1729
      %v1738 = vadd.f32 %v1598, %v1730
      %v1739 = vadd.f32 %v1599, %v1731
      %v1740 = vadd.f32 %v1600, %v1732
      %v1741 = vadd.f32 %v1601, %v1733
      %v1742 = vadd.f32 %v1602, %v1734
      %1743 = vset.pattern.permute.xlu0 34
      %1744 = vperm.xlu0 %1743, %v1206
      %v1745 = vpop.permute.xlu0 %1744
      %1747 = vset.pattern.permute.xlu0 34
      %1748 = vperm.xlu0 %1747, %v1207
      %v1749 = vpop.permute.xlu0 %1748
      %1751 = vset.pattern.permute.xlu0 34
      %1752 = vperm.xlu0 %1751, %v1208
      %v1753 = vpop.permute.xlu0 %1752
      %1755 = vset.pattern.permute.xlu0 34
      %1756 = vperm.xlu0 %1755, %v1209
      %v1757 = vpop.permute.xlu0 %1756
      %v1759 = vsel %vm1703, %v1745, 0.0
      %v1760 = vsel %vm1704, %v1745, 0.0
      %v1761 = vsel %vm1705, %v1749, 0.0
      %v1762 = vsel %vm1706, %v1749, 0.0
      %v1763 = vsel %vm1707, %v1753, 0.0
      %v1764 = vsel %vm1708, %v1753, 0.0
      %v1765 = vsel %vm1709, %v1757, 0.0
      %v1766 = vsel %vm1710, %v1757, 0.0
      %1767 = vrot.lane.b32.xlu0 %v1759, 1
      %v1768 = vpop.permute.xlu0 %1767
      %1769 = vrot.lane.b32.xlu0 %v1761, 1
      %v1770 = vpop.permute.xlu0 %1769
      %1771 = vrot.lane.b32.xlu0 %v1763, 1
      %v1772 = vpop.permute.xlu0 %1771
      %1773 = vrot.lane.b32.xlu0 %v1765, 1
      %v1774 = vpop.permute.xlu0 %1773
      %1775 = vrot.lane.b32.xlu0 %v1760, 1
      %v1776 = vpop.permute.xlu0 %1775
      %1777 = vrot.lane.b32.xlu0 %v1762, 1
      %v1778 = vpop.permute.xlu0 %1777
      %1779 = vrot.lane.b32.xlu0 %v1764, 1
      %v1780 = vpop.permute.xlu0 %1779
      %1781 = vrot.lane.b32.xlu0 %v1766, 1
      %v1782 = vpop.permute.xlu0 %1781
      %v1783 = vsel %vm1382, %v1768, %v1776
      %v1784 = vsel %vm1382, %v1770, %v1778
      %v1785 = vsel %vm1382, %v1772, %v1780
      %v1786 = vsel %vm1382, %v1774, %v1782
      %v1787 = vsel %vm1382, %v1776, %v1768
      %v1788 = vsel %vm1382, %v1778, %v1770
      %v1789 = vsel %vm1382, %v1780, %v1772
      %v1790 = vsel %vm1382, %v1782, %v1774
      %v1791 = vadd.f32 %v1735, %v1787
      %v1792 = vadd.f32 %v1736, %v1783
      %v1793 = vadd.f32 %v1737, %v1788
      %v1794 = vadd.f32 %v1738, %v1784
      %v1795 = vadd.f32 %v1739, %v1789
      %v1796 = vadd.f32 %v1740, %v1785
      %v1797 = vadd.f32 %v1741, %v1790
      %v1798 = vadd.f32 %v1742, %v1786
      %1799 = vset.pattern.permute.xlu0 34
      %1800 = vperm.xlu0 %1799, %v1226
      %v1801 = vpop.permute.xlu0 %1800
      %1803 = vset.pattern.permute.xlu0 34
      %1804 = vperm.xlu0 %1803, %v1227
      %v1805 = vpop.permute.xlu0 %1804
      %1807 = vset.pattern.permute.xlu0 34
      %1808 = vperm.xlu0 %1807, %v1228
      %v1809 = vpop.permute.xlu0 %1808
      %1811 = vset.pattern.permute.xlu0 34
      %1812 = vperm.xlu0 %1811, %v1229
      %v1813 = vpop.permute.xlu0 %1812
      %v1815 = vsel %vm1703, %v1801, 0.0
      %v1816 = vsel %vm1704, %v1801, 0.0
      %v1817 = vsel %vm1705, %v1805, 0.0
      %v1818 = vsel %vm1706, %v1805, 0.0
      %v1819 = vsel %vm1707, %v1809, 0.0
      %v1820 = vsel %vm1708, %v1809, 0.0
      %v1821 = vsel %vm1709, %v1813, 0.0
      %v1822 = vsel %vm1710, %v1813, 0.0
      %v1823 = vadd.f32 %v1683, %v1815
      %v1824 = vadd.f32 %v1684, %v1816
      %v1825 = vadd.f32 %v1685, %v1817
      %v1826 = vadd.f32 %v1686, %v1818
      %v1827 = vadd.f32 %v1687, %v1819
      %v1828 = vadd.f32 %v1688, %v1820
      %v1829 = vadd.f32 %v1689, %v1821
      %v1830 = vadd.f32 %v1690, %v1822
      %1831 = vset.pattern.permute.xlu0 34
      %1832 = vperm.xlu0 %1831, %v1246
      %v1833 = vpop.permute.xlu0 %1832
      %1835 = vset.pattern.permute.xlu0 34
      %1836 = vperm.xlu0 %1835, %v1247
      %v1837 = vpop.permute.xlu0 %1836
      %1839 = vset.pattern.permute.xlu0 34
      %1840 = vperm.xlu0 %1839, %v1248
      %v1841 = vpop.permute.xlu0 %1840
      %1843 = vset.pattern.permute.xlu0 34
      %1844 = vperm.xlu0 %1843, %v1249
      %v1845 = vpop.permute.xlu0 %1844
      %v1847 = vsel %vm1703, %v1833, 0.0
      %v1848 = vsel %vm1704, %v1833, 0.0
      %v1849 = vsel %vm1705, %v1837, 0.0
      %v1850 = vsel %vm1706, %v1837, 0.0
      %v1851 = vsel %vm1707, %v1841, 0.0
      %v1852 = vsel %vm1708, %v1841, 0.0
      %v1853 = vsel %vm1709, %v1845, 0.0
      %v1854 = vsel %vm1710, %v1845, 0.0
      %1855 = vrot.lane.b32.xlu0 %v1847, 1
      %v1856 = vpop.permute.xlu0 %1855
      %1857 = vrot.lane.b32.xlu0 %v1849, 1
      %v1858 = vpop.permute.xlu0 %1857
      %1859 = vrot.lane.b32.xlu0 %v1851, 1
      %v1860 = vpop.permute.xlu0 %1859
      %1861 = vrot.lane.b32.xlu0 %v1853, 1
      %v1862 = vpop.permute.xlu0 %1861
      %1863 = vrot.lane.b32.xlu0 %v1848, 1
      %v1864 = vpop.permute.xlu0 %1863
      %1865 = vrot.lane.b32.xlu0 %v1850, 1
      %v1866 = vpop.permute.xlu0 %1865
      %1867 = vrot.lane.b32.xlu0 %v1852, 1
      %v1868 = vpop.permute.xlu0 %1867
      %1869 = vrot.lane.b32.xlu0 %v1854, 1
      %v1870 = vpop.permute.xlu0 %1869
      %v1871 = vsel %vm1382, %v1856, %v1864
      %v1872 = vsel %vm1382, %v1858, %v1866
      %v1873 = vsel %vm1382, %v1860, %v1868
      %v1874 = vsel %vm1382, %v1862, %v1870
      %v1875 = vsel %vm1382, %v1864, %v1856
      %v1876 = vsel %vm1382, %v1866, %v1858
      %v1877 = vsel %vm1382, %v1868, %v1860
      %v1878 = vsel %vm1382, %v1870, %v1862
      %v1879 = vadd.f32 %v1823, %v1875
      %v1880 = vadd.f32 %v1824, %v1871
      %v1881 = vadd.f32 %v1825, %v1876
      %v1882 = vadd.f32 %v1826, %v1872
      %v1883 = vadd.f32 %v1827, %v1877
      %v1884 = vadd.f32 %v1828, %v1873
      %v1885 = vadd.f32 %v1829, %v1878
      %v1886 = vadd.f32 %v1830, %v1874
      %1887 = vset.pattern.permute.xlu0 19
      %1888 = vperm.xlu0 %1887, %v1049
      %v1889 = vpop.permute.xlu0 %1888
      %1890 = vset.pattern.permute.xlu0 19
      %1891 = vperm.xlu0 %1890, %v1050
      %v1892 = vpop.permute.xlu0 %1891
      %1893 = vset.pattern.permute.xlu0 19
      %1894 = vperm.xlu0 %1893, %v1051
      %v1895 = vpop.permute.xlu0 %1894
      %1896 = vset.pattern.permute.xlu0 19
      %1897 = vperm.xlu0 %1896, %v1052
      %v1898 = vpop.permute.xlu0 %1897
      %vm1899 = vcmp.eq.s32.totalorder %v1054, %v1889
      %vm1900 = vcmp.eq.s32.totalorder %v1055, %v1889
      %vm1901 = vcmp.eq.s32.totalorder %v1054, %v1892
      %vm1902 = vcmp.eq.s32.totalorder %v1055, %v1892
      %vm1903 = vcmp.eq.s32.totalorder %v1054, %v1895
      %vm1904 = vcmp.eq.s32.totalorder %v1055, %v1895
      %vm1905 = vcmp.eq.s32.totalorder %v1054, %v1898
      %vm1906 = vcmp.eq.s32.totalorder %v1055, %v1898
      %1907 = vset.pattern.permute.xlu0 35
      %1908 = vperm.xlu0 %1907, %v1186
      %v1909 = vpop.permute.xlu0 %1908
      %1911 = vset.pattern.permute.xlu0 35
      %1912 = vperm.xlu0 %1911, %v1187
      %v1913 = vpop.permute.xlu0 %1912
      %1915 = vset.pattern.permute.xlu0 35
      %1916 = vperm.xlu0 %1915, %v1188
      %v1917 = vpop.permute.xlu0 %1916
      %1919 = vset.pattern.permute.xlu0 35
      %1920 = vperm.xlu0 %1919, %v1189
      %v1921 = vpop.permute.xlu0 %1920
      %v1923 = vsel %vm1899, %v1909, 0.0
      %v1924 = vsel %vm1900, %v1909, 0.0
      %v1925 = vsel %vm1901, %v1913, 0.0
      %v1926 = vsel %vm1902, %v1913, 0.0
      %v1927 = vsel %vm1903, %v1917, 0.0
      %v1928 = vsel %vm1904, %v1917, 0.0
      %v1929 = vsel %vm1905, %v1921, 0.0
      %v1930 = vsel %vm1906, %v1921, 0.0
      %v1931 = vadd.f32 %v1791, %v1923
      %v1932 = vadd.f32 %v1792, %v1924
      %v1933 = vadd.f32 %v1793, %v1925
      %v1934 = vadd.f32 %v1794, %v1926
      %v1935 = vadd.f32 %v1795, %v1927
      %v1936 = vadd.f32 %v1796, %v1928
      %v1937 = vadd.f32 %v1797, %v1929
      %v1938 = vadd.f32 %v1798, %v1930
      %1939 = vset.pattern.permute.xlu0 35
      %1940 = vperm.xlu0 %1939, %v1206
      %v1941 = vpop.permute.xlu0 %1940
      %1943 = vset.pattern.permute.xlu0 35
      %1944 = vperm.xlu0 %1943, %v1207
      %v1945 = vpop.permute.xlu0 %1944
      %1947 = vset.pattern.permute.xlu0 35
      %1948 = vperm.xlu0 %1947, %v1208
      %v1949 = vpop.permute.xlu0 %1948
      %1951 = vset.pattern.permute.xlu0 35
      %1952 = vperm.xlu0 %1951, %v1209
      %v1953 = vpop.permute.xlu0 %1952
      %v1955 = vsel %vm1899, %v1941, 0.0
      %v1956 = vsel %vm1900, %v1941, 0.0
      %v1957 = vsel %vm1901, %v1945, 0.0
      %v1958 = vsel %vm1902, %v1945, 0.0
      %v1959 = vsel %vm1903, %v1949, 0.0
      %v1960 = vsel %vm1904, %v1949, 0.0
      %v1961 = vsel %vm1905, %v1953, 0.0
      %v1962 = vsel %vm1906, %v1953, 0.0
      %1963 = vrot.lane.b32.xlu0 %v1955, 1
      %v1964 = vpop.permute.xlu0 %1963
      %1965 = vrot.lane.b32.xlu0 %v1957, 1
      %v1966 = vpop.permute.xlu0 %1965
      %1967 = vrot.lane.b32.xlu0 %v1959, 1
      %v1968 = vpop.permute.xlu0 %1967
      %1969 = vrot.lane.b32.xlu0 %v1961, 1
      %v1970 = vpop.permute.xlu0 %1969
      %1971 = vrot.lane.b32.xlu0 %v1956, 1
      %v1972 = vpop.permute.xlu0 %1971
      %1973 = vrot.lane.b32.xlu0 %v1958, 1
      %v1974 = vpop.permute.xlu0 %1973
      %1975 = vrot.lane.b32.xlu0 %v1960, 1
      %v1976 = vpop.permute.xlu0 %1975
      %1977 = vrot.lane.b32.xlu0 %v1962, 1
      %v1978 = vpop.permute.xlu0 %1977
      %v1979 = vsel %vm1382, %v1964, %v1972
      %v1980 = vsel %vm1382, %v1966, %v1974
      %v1981 = vsel %vm1382, %v1968, %v1976
      %v1982 = vsel %vm1382, %v1970, %v1978
      %v1983 = vsel %vm1382, %v1972, %v1964
      %v1984 = vsel %vm1382, %v1974, %v1966
      %v1985 = vsel %vm1382, %v1976, %v1968
      %v1986 = vsel %vm1382, %v1978, %v1970
      %v1987 = vadd.f32 %v1931, %v1983
      %v1988 = vadd.f32 %v1932, %v1979
      %v1989 = vadd.f32 %v1933, %v1984
      %v1990 = vadd.f32 %v1934, %v1980
      %v1991 = vadd.f32 %v1935, %v1985
      %v1992 = vadd.f32 %v1936, %v1981
      %v1993 = vadd.f32 %v1937, %v1986
      %v1994 = vadd.f32 %v1938, %v1982
      %1995 = vset.pattern.permute.xlu0 35
      %1996 = vperm.xlu0 %1995, %v1226
      %v1997 = vpop.permute.xlu0 %1996
      %1999 = vset.pattern.permute.xlu0 35
      %2000 = vperm.xlu0 %1999, %v1227
      %v2001 = vpop.permute.xlu0 %2000
      %2003 = vset.pattern.permute.xlu0 35
      %2004 = vperm.xlu0 %2003, %v1228
      %v2005 = vpop.permute.xlu0 %2004
      %2007 = vset.pattern.permute.xlu0 35
      %2008 = vperm.xlu0 %2007, %v1229
      %v2009 = vpop.permute.xlu0 %2008
      %v2011 = vsel %vm1899, %v1997, 0.0
      %v2012 = vsel %vm1900, %v1997, 0.0
      %v2013 = vsel %vm1901, %v2001, 0.0
      %v2014 = vsel %vm1902, %v2001, 0.0
      %v2015 = vsel %vm1903, %v2005, 0.0
      %v2016 = vsel %vm1904, %v2005, 0.0
      %v2017 = vsel %vm1905, %v2009, 0.0
      %v2018 = vsel %vm1906, %v2009, 0.0
      %v2019 = vadd.f32 %v1879, %v2011
      %v2020 = vadd.f32 %v1880, %v2012
      %v2021 = vadd.f32 %v1881, %v2013
      %v2022 = vadd.f32 %v1882, %v2014
      %v2023 = vadd.f32 %v1883, %v2015
      %v2024 = vadd.f32 %v1884, %v2016
      %v2025 = vadd.f32 %v1885, %v2017
      %v2026 = vadd.f32 %v1886, %v2018
      %2027 = vset.pattern.permute.xlu0 35
      %2028 = vperm.xlu0 %2027, %v1246
      %v2029 = vpop.permute.xlu0 %2028
      %2031 = vset.pattern.permute.xlu0 35
      %2032 = vperm.xlu0 %2031, %v1247
      %v2033 = vpop.permute.xlu0 %2032
      %2035 = vset.pattern.permute.xlu0 35
      %2036 = vperm.xlu0 %2035, %v1248
      %v2037 = vpop.permute.xlu0 %2036
      %2039 = vset.pattern.permute.xlu0 35
      %2040 = vperm.xlu0 %2039, %v1249
      %v2041 = vpop.permute.xlu0 %2040
      %v2043 = vsel %vm1899, %v2029, 0.0
      %v2044 = vsel %vm1900, %v2029, 0.0
      %v2045 = vsel %vm1901, %v2033, 0.0
      %v2046 = vsel %vm1902, %v2033, 0.0
      %v2047 = vsel %vm1903, %v2037, 0.0
      %v2048 = vsel %vm1904, %v2037, 0.0
      %v2049 = vsel %vm1905, %v2041, 0.0
      %v2050 = vsel %vm1906, %v2041, 0.0
      %2051 = vrot.lane.b32.xlu0 %v2043, 1
      %v2052 = vpop.permute.xlu0 %2051
      %2053 = vrot.lane.b32.xlu0 %v2045, 1
      %v2054 = vpop.permute.xlu0 %2053
      %2055 = vrot.lane.b32.xlu0 %v2047, 1
      %v2056 = vpop.permute.xlu0 %2055
      %2057 = vrot.lane.b32.xlu0 %v2049, 1
      %v2058 = vpop.permute.xlu0 %2057
      %2059 = vrot.lane.b32.xlu0 %v2044, 1
      %v2060 = vpop.permute.xlu0 %2059
      %2061 = vrot.lane.b32.xlu0 %v2046, 1
      %v2062 = vpop.permute.xlu0 %2061
      %2063 = vrot.lane.b32.xlu0 %v2048, 1
      %v2064 = vpop.permute.xlu0 %2063
      %2065 = vrot.lane.b32.xlu0 %v2050, 1
      %v2066 = vpop.permute.xlu0 %2065
      %v2067 = vsel %vm1382, %v2052, %v2060
      %v2068 = vsel %vm1382, %v2054, %v2062
      %v2069 = vsel %vm1382, %v2056, %v2064
      %v2070 = vsel %vm1382, %v2058, %v2066
      %v2071 = vsel %vm1382, %v2060, %v2052
      %v2072 = vsel %vm1382, %v2062, %v2054
      %v2073 = vsel %vm1382, %v2064, %v2056
      %v2074 = vsel %vm1382, %v2066, %v2058
      %v2075 = vadd.f32 %v2019, %v2071
      %v2076 = vadd.f32 %v2020, %v2067
      %v2077 = vadd.f32 %v2021, %v2072
      %v2078 = vadd.f32 %v2022, %v2068
      %v2079 = vadd.f32 %v2023, %v2073
      %v2080 = vadd.f32 %v2024, %v2069
      %v2081 = vadd.f32 %v2025, %v2074
      %v2082 = vadd.f32 %v2026, %v2070
      %2083 = vrot.lane.b32.xlu0 %v2075, 16
      %v2084 = vpop.permute.xlu0 %2083
      %2085 = vrot.lane.b32.xlu0 %v2077, 16
      %v2086 = vpop.permute.xlu0 %2085
      %2087 = vrot.lane.b32.xlu0 %v2079, 16
      %v2088 = vpop.permute.xlu0 %2087
      %2089 = vrot.lane.b32.xlu0 %v2081, 16
      %v2090 = vpop.permute.xlu0 %2089
      %2091 = vrot.lane.b32.xlu0 %v2076, 16
      %v2092 = vpop.permute.xlu0 %2091
      %2093 = vrot.lane.b32.xlu0 %v2078, 16
      %v2094 = vpop.permute.xlu0 %2093
      %2095 = vrot.lane.b32.xlu0 %v2080, 16
      %v2096 = vpop.permute.xlu0 %2095
      %2097 = vrot.lane.b32.xlu0 %v2082, 16
      %v2098 = vpop.permute.xlu0 %2097
      %vm2099 = vcmp.lt.s32.totalorder %v1054, 16
      %v2100 = vsel %vm2099, %v2084, %v2092
      %v2101 = vsel %vm2099, %v2086, %v2094
      %v2102 = vsel %vm2099, %v2088, %v2096
      %v2103 = vsel %vm2099, %v2090, %v2098
      %v2104 = vsel %vm2099, %v2092, %v2084
      %v2105 = vsel %vm2099, %v2094, %v2086
      %v2106 = vsel %vm2099, %v2096, %v2088
      %v2107 = vsel %vm2099, %v2098, %v2090
      %v2108 = vadd.f32 %v1987, %v2104
      %v2109 = vadd.f32 %v1988, %v2100
      %v2110 = vadd.f32 %v1989, %v2105
      %v2111 = vadd.f32 %v1990, %v2101
      %v2112 = vadd.f32 %v1991, %v2106
      %v2113 = vadd.f32 %v1992, %v2102
      %v2114 = vadd.f32 %v1993, %v2107
      %v2115 = vadd.f32 %v1994, %v2103
      %vm2116 = vcmask 326944
      %v2117 = vsel %vm2116, %v747, -inf
      %2118 = vmax.xlane.f32.xlu0 %v2117
      %v2119 = vpop.xlane.xlu0 %2118
      %v2120 = vsel %vm2116, %v751, -inf
      %2121 = vmax.xlane.f32.xlu0 %v2120
      %v2122 = vpop.xlane.xlu0 %2121
      %v2123 = vsel %vm2116, %v755, -inf
      %2124 = vmax.xlane.f32.xlu0 %v2123
      %v2125 = vpop.xlane.xlu0 %2124
      %v2126 = vsel %vm2116, %v759, -inf
      %2127 = vmax.xlane.f32.xlu0 %v2126
      %v2128 = vpop.xlane.xlu0 %2127
      %v2129 = vsub.f32 %v747, %v2119
      %v2130 = vsub.f32 %v751, %v2122
      %v2131 = vsub.f32 %v755, %v2125
      %v2132 = vsub.f32 %v759, %v2128
      %v2133 = vmul.f32 %v2129, 1.442695
      %v2134 = vpow.pop %v2133
      %v2135 = vmul.f32 %v2130, 1.442695
      %v2136 = vpow.pop %v2135
      %v2137 = vmul.f32 %v2131, 1.442695
      %v2138 = vpow.pop %v2137
      %v2139 = vmul.f32 %v2132, 1.442695
      %v2140 = vpow.pop %v2139
      %2145 = vrot.lane.b32.xlu0 %v2134, 92
      %v2146 = vpop.permute.xlu0 %2145
      %2147 = vrot.lane.b32.xlu0 %v2136, 92
      %v2148 = vpop.permute.xlu0 %2147
      %2149 = vrot.lane.b32.xlu0 %v2138, 92
      %v2150 = vpop.permute.xlu0 %2149
      %2151 = vrot.lane.b32.xlu0 %v2140, 92
      %v2152 = vpop.permute.xlu0 %2151
      %v2157 = vsel %vm1097, %v2146, 0.0
      %2158 = vadd.xlane.f32.xlu0 %v2157
      %v2159 = vpop.xlane.xlu0 %2158
      %v2160 = vsel %vm1097, %v2148, 0.0
      %2161 = vadd.xlane.f32.xlu0 %v2160
      %v2162 = vpop.xlane.xlu0 %2161
      %v2163 = vsel %vm1097, %v2150, 0.0
      %2164 = vadd.xlane.f32.xlu0 %v2163
      %v2165 = vpop.xlane.xlu0 %2164
      %v2166 = vsel %vm1097, %v2152, 0.0
      %2167 = vadd.xlane.f32.xlu0 %v2166
      %v2168 = vpop.xlane.xlu0 %2167
      %v2169 = vrcp.pop %v2159
      %v2170 = vmul.f32 %v2159, %v2169
      %v2171 = vsub.f32 1.0, %v2170
      %v2172 = vmul.f32 %v2169, %v2171
      %v2173 = vadd.f32 %v2169, %v2172
      %vm2174 = vweird.f32 %v2159
      %vm2175 = vweird.f32 %v2169
      %vm2176 = vmor %vm2174, %vm2175
      %v2177 = vsel %vm2176, %v2169, %v2173
      %v2178 = vand.u32 2147483647, %v2159
      %vm2179 = vcmp.eq.f32.partialorder %v2178, 8.507059e+37
      %v2180 = vand.u32 %v2159, 2147483648
      %v2181 = vor.u32 1.1754944e-38, %v2180
      %v2182 = vsel %vm2179, %v2181, %v2177
      %v2183 = vmul.f32 %v2134, %v2182
      %v2184 = vrcp.pop %v2162
      %v2185 = vmul.f32 %v2162, %v2184
      %v2186 = vsub.f32 1.0, %v2185
      %v2187 = vmul.f32 %v2184, %v2186
      %v2188 = vadd.f32 %v2184, %v2187
      %vm2189 = vweird.f32 %v2162
      %vm2190 = vweird.f32 %v2184
      %vm2191 = vmor %vm2189, %vm2190
      %v2192 = vsel %vm2191, %v2184, %v2188
      %v2193 = vand.u32 2147483647, %v2162
      %vm2194 = vcmp.eq.f32.partialorder %v2193, 8.507059e+37
      %v2195 = vand.u32 %v2162, 2147483648
      %v2196 = vor.u32 1.1754944e-38, %v2195
      %v2197 = vsel %vm2194, %v2196, %v2192
      %v2198 = vmul.f32 %v2136, %v2197
      %v2199 = vrcp.pop %v2165
      %v2200 = vmul.f32 %v2165, %v2199
      %v2201 = vsub.f32 1.0, %v2200
      %v2202 = vmul.f32 %v2199, %v2201
      %v2203 = vadd.f32 %v2199, %v2202
      %vm2204 = vweird.f32 %v2165
      %vm2205 = vweird.f32 %v2199
      %vm2206 = vmor %vm2204, %vm2205
      %v2207 = vsel %vm2206, %v2199, %v2203
      %v2208 = vand.u32 2147483647, %v2165
      %vm2209 = vcmp.eq.f32.partialorder %v2208, 8.507059e+37
      %v2210 = vand.u32 %v2165, 2147483648
      %v2211 = vor.u32 1.1754944e-38, %v2210
      %v2212 = vsel %vm2209, %v2211, %v2207
      %v2213 = vmul.f32 %v2138, %v2212
      %v2214 = vrcp.pop %v2168
      %v2215 = vmul.f32 %v2168, %v2214
      %v2216 = vsub.f32 1.0, %v2215
      %v2217 = vmul.f32 %v2214, %v2216
      %v2218 = vadd.f32 %v2214, %v2217
      %vm2219 = vweird.f32 %v2168
      %vm2220 = vweird.f32 %v2214
      %vm2221 = vmor %vm2219, %vm2220
      %v2222 = vsel %vm2221, %v2214, %v2218
      %v2223 = vand.u32 2147483647, %v2168
      %vm2224 = vcmp.eq.f32.partialorder %v2223, 8.507059e+37
      %v2225 = vand.u32 %v2168, 2147483648
      %v2226 = vor.u32 1.1754944e-38, %v2225
      %v2227 = vsel %vm2224, %v2226, %v2222
      %v2228 = vmul.f32 %v2140, %v2227
      %v2229 = vmul.f32 %v2183, %v1175
      %v2230 = vmul.f32 %v2198, %v1177
      %v2231 = vmul.f32 %v2213, %v1179
      %v2232 = vmul.f32 %v2228, %v1181
      %v2233 = vmul.f32 %v2183, %v1195
      %v2234 = vmul.f32 %v2198, %v1197
      %v2235 = vmul.f32 %v2213, %v1199
      %v2236 = vmul.f32 %v2228, %v1201
      %v2237 = vmul.f32 %v2183, %v1215
      %v2238 = vmul.f32 %v2198, %v1217
      %v2239 = vmul.f32 %v2213, %v1219
      %v2240 = vmul.f32 %v2228, %v1221
      %v2241 = vmul.f32 %v2183, %v1235
      %v2242 = vmul.f32 %v2198, %v1237
      %v2243 = vmul.f32 %v2213, %v1239
      %v2244 = vmul.f32 %v2228, %v1241
      %s2245 = scalar_lea.vmem %s439, 256
      %v2246 = vld [vmem:[%s2245] sm:$0xff]
      %v2247 = vld [vmem:[%s2245 + $0x8] sm:$0xff]
      %v2248 = vld [vmem:[%s2245 + $0x10] sm:$0xff]
      %v2249 = vld [vmem:[%s2245 + $0x18] sm:$0xff]
      %v2250 = vld [vmem:[%s2245 + $0x20] sm:$0xff]
      %v2251 = vld [vmem:[%s2245 + $0x28] sm:$0xff]
      %v2252 = vld [vmem:[%s2245 + $0x30] sm:$0xff]
      %v2253 = vld [vmem:[%s2245 + $0x38] sm:$0xff]
      %v2254 = vld [vmem:[%s2245 + $0x40] sm:$0xff]
      %v2255 = vld [vmem:[%s2245 + $0x48] sm:$0xff]
      %v2256 = vld [vmem:[%s2245 + $0x50] sm:$0xff]
      %v2257 = vld [vmem:[%s2245 + $0x58] sm:$0xff]
      %v2258 = vld [vmem:[%s2245 + $0x60] sm:$0xff]
      %v2259 = vld [vmem:[%s2245 + $0x68] sm:$0xff]
      %v2260 = vld [vmem:[%s2245 + $0x70] sm:$0xff]
      %v2261 = vld [vmem:[%s2245 + $0x78] sm:$0xff]
      %v2262 = vld [vmem:[%s2245 + $0x80] sm:$0xff]
      %v2263 = vld [vmem:[%s2245 + $0x88] sm:$0xff]
      %v2264 = vld [vmem:[%s2245 + $0x90] sm:$0xff]
      %v2265 = vld [vmem:[%s2245 + $0x98] sm:$0xff]
      %v2266 = vld [vmem:[%s2245 + $0xa0] sm:$0xff]
      %v2267 = vld [vmem:[%s2245 + $0xa8] sm:$0xff]
      %v2268 = vld [vmem:[%s2245 + $0xb0] sm:$0xff]
      %v2269 = vld [vmem:[%s2245 + $0xb8] sm:$0xff]
      %v2270 = vld [vmem:[%s2245 + $0xc0] sm:$0xff]
      %v2271 = vld [vmem:[%s2245 + $0xc8] sm:$0xff]
      %v2272 = vld [vmem:[%s2245 + $0xd0] sm:$0xff]
      %v2273 = vld [vmem:[%s2245 + $0xd8] sm:$0xff]
      %v2274 = vld [vmem:[%s2245 + $0xe0] sm:$0xff]
      %v2275 = vld [vmem:[%s2245 + $0xe8] sm:$0xff]
      %v2276 = vld [vmem:[%s2245 + $0xf0] sm:$0xff]
      %v2277 = vld [vmem:[%s2245 + $0xf8] sm:$0xff]
      %2278 = vset.pattern.permute.xlu0 20
      %2279 = vperm.xlu0 %2278, %v1049
      %v2280 = vpop.permute.xlu0 %2279
      %2281 = vset.pattern.permute.xlu0 20
      %2282 = vperm.xlu0 %2281, %v1050
      %v2283 = vpop.permute.xlu0 %2282
      %2284 = vset.pattern.permute.xlu0 20
      %2285 = vperm.xlu0 %2284, %v1051
      %v2286 = vpop.permute.xlu0 %2285
      %2287 = vset.pattern.permute.xlu0 20
      %2288 = vperm.xlu0 %2287, %v1052
      %v2289 = vpop.permute.xlu0 %2288
      %vm2290 = vcmp.eq.s32.totalorder %v1054, %v2280
      %vm2291 = vcmp.eq.s32.totalorder %v1055, %v2280
      %vm2292 = vcmp.eq.s32.totalorder %v1054, %v2283
      %vm2293 = vcmp.eq.s32.totalorder %v1055, %v2283
      %vm2294 = vcmp.eq.s32.totalorder %v1054, %v2286
      %vm2295 = vcmp.eq.s32.totalorder %v1055, %v2286
      %vm2296 = vcmp.eq.s32.totalorder %v1054, %v2289
      %vm2297 = vcmp.eq.s32.totalorder %v1055, %v2289
      %2299 = vset.pattern.permute.xlu0 36
      %2300 = vperm.xlu0 %2299, %v2229
      %v2301 = vpop.permute.xlu0 %2300
      %2304 = vset.pattern.permute.xlu0 36
      %2305 = vperm.xlu0 %2304, %v2230
      %v2306 = vpop.permute.xlu0 %2305
      %2309 = vset.pattern.permute.xlu0 36
      %2310 = vperm.xlu0 %2309, %v2231
      %v2311 = vpop.permute.xlu0 %2310
      %2314 = vset.pattern.permute.xlu0 36
      %2315 = vperm.xlu0 %2314, %v2232
      %v2316 = vpop.permute.xlu0 %2315
      %v2318 = vsel %vm2290, %v2301, 0.0
      %v2319 = vsel %vm2291, %v2301, 0.0
      %v2320 = vsel %vm2292, %v2306, 0.0
      %v2321 = vsel %vm2293, %v2306, 0.0
      %v2322 = vsel %vm2294, %v2311, 0.0
      %v2323 = vsel %vm2295, %v2311, 0.0
      %v2324 = vsel %vm2296, %v2316, 0.0
      %v2325 = vsel %vm2297, %v2316, 0.0
      %v2326 = vadd.f32 %v2318, 0.0
      %v2327 = vadd.f32 %v2319, 0.0
      %v2328 = vadd.f32 %v2320, 0.0
      %v2329 = vadd.f32 %v2321, 0.0
      %v2330 = vadd.f32 %v2322, 0.0
      %v2331 = vadd.f32 %v2323, 0.0
      %v2332 = vadd.f32 %v2324, 0.0
      %v2333 = vadd.f32 %v2325, 0.0
      %2335 = vset.pattern.permute.xlu0 36
      %2336 = vperm.xlu0 %2335, %v2233
      %v2337 = vpop.permute.xlu0 %2336
      %2340 = vset.pattern.permute.xlu0 36
      %2341 = vperm.xlu0 %2340, %v2234
      %v2342 = vpop.permute.xlu0 %2341
      %2345 = vset.pattern.permute.xlu0 36
      %2346 = vperm.xlu0 %2345, %v2235
      %v2347 = vpop.permute.xlu0 %2346
      %2350 = vset.pattern.permute.xlu0 36
      %2351 = vperm.xlu0 %2350, %v2236
      %v2352 = vpop.permute.xlu0 %2351
      %v2354 = vsel %vm2290, %v2337, 0.0
      %v2355 = vsel %vm2291, %v2337, 0.0
      %v2356 = vsel %vm2292, %v2342, 0.0
      %v2357 = vsel %vm2293, %v2342, 0.0
      %v2358 = vsel %vm2294, %v2347, 0.0
      %v2359 = vsel %vm2295, %v2347, 0.0
      %v2360 = vsel %vm2296, %v2352, 0.0
      %v2361 = vsel %vm2297, %v2352, 0.0
      %2362 = vrot.lane.b32.xlu0 %v2354, 1
      %v2363 = vpop.permute.xlu0 %2362
      %2364 = vrot.lane.b32.xlu0 %v2356, 1
      %v2365 = vpop.permute.xlu0 %2364
      %2366 = vrot.lane.b32.xlu0 %v2358, 1
      %v2367 = vpop.permute.xlu0 %2366
      %2368 = vrot.lane.b32.xlu0 %v2360, 1
      %v2369 = vpop.permute.xlu0 %2368
      %2370 = vrot.lane.b32.xlu0 %v2355, 1
      %v2371 = vpop.permute.xlu0 %2370
      %2372 = vrot.lane.b32.xlu0 %v2357, 1
      %v2373 = vpop.permute.xlu0 %2372
      %2374 = vrot.lane.b32.xlu0 %v2359, 1
      %v2375 = vpop.permute.xlu0 %2374
      %2376 = vrot.lane.b32.xlu0 %v2361, 1
      %v2377 = vpop.permute.xlu0 %2376
      %v2378 = vsel %vm1382, %v2363, %v2371
      %v2379 = vsel %vm1382, %v2365, %v2373
      %v2380 = vsel %vm1382, %v2367, %v2375
      %v2381 = vsel %vm1382, %v2369, %v2377
      %v2382 = vsel %vm1382, %v2371, %v2363
      %v2383 = vsel %vm1382, %v2373, %v2365
      %v2384 = vsel %vm1382, %v2375, %v2367
      %v2385 = vsel %vm1382, %v2377, %v2369
      %v2386 = vadd.f32 %v2326, %v2382
      %v2387 = vadd.f32 %v2327, %v2378
      %v2388 = vadd.f32 %v2328, %v2383
      %v2389 = vadd.f32 %v2329, %v2379
      %v2390 = vadd.f32 %v2330, %v2384
      %v2391 = vadd.f32 %v2331, %v2380
      %v2392 = vadd.f32 %v2332, %v2385
      %v2393 = vadd.f32 %v2333, %v2381
      %2395 = vset.pattern.permute.xlu0 36
      %2396 = vperm.xlu0 %2395, %v2237
      %v2397 = vpop.permute.xlu0 %2396
      %2400 = vset.pattern.permute.xlu0 36
      %2401 = vperm.xlu0 %2400, %v2238
      %v2402 = vpop.permute.xlu0 %2401
      %2405 = vset.pattern.permute.xlu0 36
      %2406 = vperm.xlu0 %2405, %v2239
      %v2407 = vpop.permute.xlu0 %2406
      %2410 = vset.pattern.permute.xlu0 36
      %2411 = vperm.xlu0 %2410, %v2240
      %v2412 = vpop.permute.xlu0 %2411
      %v2414 = vsel %vm2290, %v2397, 0.0
      %v2415 = vsel %vm2291, %v2397, 0.0
      %v2416 = vsel %vm2292, %v2402, 0.0
      %v2417 = vsel %vm2293, %v2402, 0.0
      %v2418 = vsel %vm2294, %v2407, 0.0
      %v2419 = vsel %vm2295, %v2407, 0.0
      %v2420 = vsel %vm2296, %v2412, 0.0
      %v2421 = vsel %vm2297, %v2412, 0.0
      %v2422 = vadd.f32 %v2414, 0.0
      %v2423 = vadd.f32 %v2415, 0.0
      %v2424 = vadd.f32 %v2416, 0.0
      %v2425 = vadd.f32 %v2417, 0.0
      %v2426 = vadd.f32 %v2418, 0.0
      %v2427 = vadd.f32 %v2419, 0.0
      %v2428 = vadd.f32 %v2420, 0.0
      %v2429 = vadd.f32 %v2421, 0.0
      %2431 = vset.pattern.permute.xlu0 36
      %2432 = vperm.xlu0 %2431, %v2241
      %v2433 = vpop.permute.xlu0 %2432
      %2436 = vset.pattern.permute.xlu0 36
      %2437 = vperm.xlu0 %2436, %v2242
      %v2438 = vpop.permute.xlu0 %2437
      %2441 = vset.pattern.permute.xlu0 36
      %2442 = vperm.xlu0 %2441, %v2243
      %v2443 = vpop.permute.xlu0 %2442
      %2446 = vset.pattern.permute.xlu0 36
      %2447 = vperm.xlu0 %2446, %v2244
      %v2448 = vpop.permute.xlu0 %2447
      %v2450 = vsel %vm2290, %v2433, 0.0
      %v2451 = vsel %vm2291, %v2433, 0.0
      %v2452 = vsel %vm2292, %v2438, 0.0
      %v2453 = vsel %vm2293, %v2438, 0.0
      %v2454 = vsel %vm2294, %v2443, 0.0
      %v2455 = vsel %vm2295, %v2443, 0.0
      %v2456 = vsel %vm2296, %v2448, 0.0
      %v2457 = vsel %vm2297, %v2448, 0.0
      %2458 = vrot.lane.b32.xlu0 %v2450, 1
      %v2459 = vpop.permute.xlu0 %2458
      %2460 = vrot.lane.b32.xlu0 %v2452, 1
      %v2461 = vpop.permute.xlu0 %2460
      %2462 = vrot.lane.b32.xlu0 %v2454, 1
      %v2463 = vpop.permute.xlu0 %2462
      %2464 = vrot.lane.b32.xlu0 %v2456, 1
      %v2465 = vpop.permute.xlu0 %2464
      %2466 = vrot.lane.b32.xlu0 %v2451, 1
      %v2467 = vpop.permute.xlu0 %2466
      %2468 = vrot.lane.b32.xlu0 %v2453, 1
      %v2469 = vpop.permute.xlu0 %2468
      %2470 = vrot.lane.b32.xlu0 %v2455, 1
      %v2471 = vpop.permute.xlu0 %2470
      %2472 = vrot.lane.b32.xlu0 %v2457, 1
      %v2473 = vpop.permute.xlu0 %2472
      %v2474 = vsel %vm1382, %v2459, %v2467
      %v2475 = vsel %vm1382, %v2461, %v2469
      %v2476 = vsel %vm1382, %v2463, %v2471
      %v2477 = vsel %vm1382, %v2465, %v2473
      %v2478 = vsel %vm1382, %v2467, %v2459
      %v2479 = vsel %vm1382, %v2469, %v2461
      %v2480 = vsel %vm1382, %v2471, %v2463
      %v2481 = vsel %vm1382, %v2473, %v2465
      %v2482 = vadd.f32 %v2422, %v2478
      %v2483 = vadd.f32 %v2423, %v2474
      %v2484 = vadd.f32 %v2424, %v2479
      %v2485 = vadd.f32 %v2425, %v2475
      %v2486 = vadd.f32 %v2426, %v2480
      %v2487 = vadd.f32 %v2427, %v2476
      %v2488 = vadd.f32 %v2428, %v2481
      %v2489 = vadd.f32 %v2429, %v2477
      %2490 = vset.pattern.permute.xlu0 21
      %2491 = vperm.xlu0 %2490, %v1049
      %v2492 = vpop.permute.xlu0 %2491
      %2493 = vset.pattern.permute.xlu0 21
      %2494 = vperm.xlu0 %2493, %v1050
      %v2495 = vpop.permute.xlu0 %2494
      %2496 = vset.pattern.permute.xlu0 21
      %2497 = vperm.xlu0 %2496, %v1051
      %v2498 = vpop.permute.xlu0 %2497
      %2499 = vset.pattern.permute.xlu0 21
      %2500 = vperm.xlu0 %2499, %v1052
      %v2501 = vpop.permute.xlu0 %2500
      %vm2502 = vcmp.eq.s32.totalorder %v1054, %v2492
      %vm2503 = vcmp.eq.s32.totalorder %v1055, %v2492
      %vm2504 = vcmp.eq.s32.totalorder %v1054, %v2495
      %vm2505 = vcmp.eq.s32.totalorder %v1055, %v2495
      %vm2506 = vcmp.eq.s32.totalorder %v1054, %v2498
      %vm2507 = vcmp.eq.s32.totalorder %v1055, %v2498
      %vm2508 = vcmp.eq.s32.totalorder %v1054, %v2501
      %vm2509 = vcmp.eq.s32.totalorder %v1055, %v2501
      %2510 = vset.pattern.permute.xlu0 37
      %2511 = vperm.xlu0 %2510, %v2229
      %v2512 = vpop.permute.xlu0 %2511
      %2514 = vset.pattern.permute.xlu0 37
      %2515 = vperm.xlu0 %2514, %v2230
      %v2516 = vpop.permute.xlu0 %2515
      %2518 = vset.pattern.permute.xlu0 37
      %2519 = vperm.xlu0 %2518, %v2231
      %v2520 = vpop.permute.xlu0 %2519
      %2522 = vset.pattern.permute.xlu0 37
      %2523 = vperm.xlu0 %2522, %v2232
      %v2524 = vpop.permute.xlu0 %2523
      %v2526 = vsel %vm2502, %v2512, 0.0
      %v2527 = vsel %vm2503, %v2512, 0.0
      %v2528 = vsel %vm2504, %v2516, 0.0
      %v2529 = vsel %vm2505, %v2516, 0.0
      %v2530 = vsel %vm2506, %v2520, 0.0
      %v2531 = vsel %vm2507, %v2520, 0.0
      %v2532 = vsel %vm2508, %v2524, 0.0
      %v2533 = vsel %vm2509, %v2524, 0.0
      %v2534 = vadd.f32 %v2386, %v2526
      %v2535 = vadd.f32 %v2387, %v2527
      %v2536 = vadd.f32 %v2388, %v2528
      %v2537 = vadd.f32 %v2389, %v2529
      %v2538 = vadd.f32 %v2390, %v2530
      %v2539 = vadd.f32 %v2391, %v2531
      %v2540 = vadd.f32 %v2392, %v2532
      %v2541 = vadd.f32 %v2393, %v2533
      %2542 = vset.pattern.permute.xlu0 37
      %2543 = vperm.xlu0 %2542, %v2233
      %v2544 = vpop.permute.xlu0 %2543
      %2546 = vset.pattern.permute.xlu0 37
      %2547 = vperm.xlu0 %2546, %v2234
      %v2548 = vpop.permute.xlu0 %2547
      %2550 = vset.pattern.permute.xlu0 37
      %2551 = vperm.xlu0 %2550, %v2235
      %v2552 = vpop.permute.xlu0 %2551
      %2554 = vset.pattern.permute.xlu0 37
      %2555 = vperm.xlu0 %2554, %v2236
      %v2556 = vpop.permute.xlu0 %2555
      %v2558 = vsel %vm2502, %v2544, 0.0
      %v2559 = vsel %vm2503, %v2544, 0.0
      %v2560 = vsel %vm2504, %v2548, 0.0
      %v2561 = vsel %vm2505, %v2548, 0.0
      %v2562 = vsel %vm2506, %v2552, 0.0
      %v2563 = vsel %vm2507, %v2552, 0.0
      %v2564 = vsel %vm2508, %v2556, 0.0
      %v2565 = vsel %vm2509, %v2556, 0.0
      %2566 = vrot.lane.b32.xlu0 %v2558, 1
      %v2567 = vpop.permute.xlu0 %2566
      %2568 = vrot.lane.b32.xlu0 %v2560, 1
      %v2569 = vpop.permute.xlu0 %2568
      %2570 = vrot.lane.b32.xlu0 %v2562, 1
      %v2571 = vpop.permute.xlu0 %2570
      %2572 = vrot.lane.b32.xlu0 %v2564, 1
      %v2573 = vpop.permute.xlu0 %2572
      %2574 = vrot.lane.b32.xlu0 %v2559, 1
      %v2575 = vpop.permute.xlu0 %2574
      %2576 = vrot.lane.b32.xlu0 %v2561, 1
      %v2577 = vpop.permute.xlu0 %2576
      %2578 = vrot.lane.b32.xlu0 %v2563, 1
      %v2579 = vpop.permute.xlu0 %2578
      %2580 = vrot.lane.b32.xlu0 %v2565, 1
      %v2581 = vpop.permute.xlu0 %2580
      %v2582 = vsel %vm1382, %v2567, %v2575
      %v2583 = vsel %vm1382, %v2569, %v2577
      %v2584 = vsel %vm1382, %v2571, %v2579
      %v2585 = vsel %vm1382, %v2573, %v2581
      %v2586 = vsel %vm1382, %v2575, %v2567
      %v2587 = vsel %vm1382, %v2577, %v2569
      %v2588 = vsel %vm1382, %v2579, %v2571
      %v2589 = vsel %vm1382, %v2581, %v2573
      %v2590 = vadd.f32 %v2534, %v2586
      %v2591 = vadd.f32 %v2535, %v2582
      %v2592 = vadd.f32 %v2536, %v2587
      %v2593 = vadd.f32 %v2537, %v2583
      %v2594 = vadd.f32 %v2538, %v2588
      %v2595 = vadd.f32 %v2539, %v2584
      %v2596 = vadd.f32 %v2540, %v2589
      %v2597 = vadd.f32 %v2541, %v2585
      %2598 = vset.pattern.permute.xlu0 37
      %2599 = vperm.xlu0 %2598, %v2237
      %v2600 = vpop.permute.xlu0 %2599
      %2602 = vset.pattern.permute.xlu0 37
      %2603 = vperm.xlu0 %2602, %v2238
      %v2604 = vpop.permute.xlu0 %2603
      %2606 = vset.pattern.permute.xlu0 37
      %2607 = vperm.xlu0 %2606, %v2239
      %v2608 = vpop.permute.xlu0 %2607
      %2610 = vset.pattern.permute.xlu0 37
      %2611 = vperm.xlu0 %2610, %v2240
      %v2612 = vpop.permute.xlu0 %2611
      %v2614 = vsel %vm2502, %v2600, 0.0
      %v2615 = vsel %vm2503, %v2600, 0.0
      %v2616 = vsel %vm2504, %v2604, 0.0
      %v2617 = vsel %vm2505, %v2604, 0.0
      %v2618 = vsel %vm2506, %v2608, 0.0
      %v2619 = vsel %vm2507, %v2608, 0.0
      %v2620 = vsel %vm2508, %v2612, 0.0
      %v2621 = vsel %vm2509, %v2612, 0.0
      %v2622 = vadd.f32 %v2482, %v2614
      %v2623 = vadd.f32 %v2483, %v2615
      %v2624 = vadd.f32 %v2484, %v2616
      %v2625 = vadd.f32 %v2485, %v2617
      %v2626 = vadd.f32 %v2486, %v2618
      %v2627 = vadd.f32 %v2487, %v2619
      %v2628 = vadd.f32 %v2488, %v2620
      %v2629 = vadd.f32 %v2489, %v2621
      %2630 = vset.pattern.permute.xlu0 37
      %2631 = vperm.xlu0 %2630, %v2241
      %v2632 = vpop.permute.xlu0 %2631
      %2634 = vset.pattern.permute.xlu0 37
      %2635 = vperm.xlu0 %2634, %v2242
      %v2636 = vpop.permute.xlu0 %2635
      %2638 = vset.pattern.permute.xlu0 37
      %2639 = vperm.xlu0 %2638, %v2243
      %v2640 = vpop.permute.xlu0 %2639
      %2642 = vset.pattern.permute.xlu0 37
      %2643 = vperm.xlu0 %2642, %v2244
      %v2644 = vpop.permute.xlu0 %2643
      %v2646 = vsel %vm2502, %v2632, 0.0
      %v2647 = vsel %vm2503, %v2632, 0.0
      %v2648 = vsel %vm2504, %v2636, 0.0
      %v2649 = vsel %vm2505, %v2636, 0.0
      %v2650 = vsel %vm2506, %v2640, 0.0
      %v2651 = vsel %vm2507, %v2640, 0.0
      %v2652 = vsel %vm2508, %v2644, 0.0
      %v2653 = vsel %vm2509, %v2644, 0.0
      %2654 = vrot.lane.b32.xlu0 %v2646, 1
      %v2655 = vpop.permute.xlu0 %2654
      %2656 = vrot.lane.b32.xlu0 %v2648, 1
      %v2657 = vpop.permute.xlu0 %2656
      %2658 = vrot.lane.b32.xlu0 %v2650, 1
      %v2659 = vpop.permute.xlu0 %2658
      %2660 = vrot.lane.b32.xlu0 %v2652, 1
      %v2661 = vpop.permute.xlu0 %2660
      %2662 = vrot.lane.b32.xlu0 %v2647, 1
      %v2663 = vpop.permute.xlu0 %2662
      %2664 = vrot.lane.b32.xlu0 %v2649, 1
      %v2665 = vpop.permute.xlu0 %2664
      %2666 = vrot.lane.b32.xlu0 %v2651, 1
      %v2667 = vpop.permute.xlu0 %2666
      %2668 = vrot.lane.b32.xlu0 %v2653, 1
      %v2669 = vpop.permute.xlu0 %2668
      %v2670 = vsel %vm1382, %v2655, %v2663
      %v2671 = vsel %vm1382, %v2657, %v2665
      %v2672 = vsel %vm1382, %v2659, %v2667
      %v2673 = vsel %vm1382, %v2661, %v2669
      %v2674 = vsel %vm1382, %v2663, %v2655
      %v2675 = vsel %vm1382, %v2665, %v2657
      %v2676 = vsel %vm1382, %v2667, %v2659
      %v2677 = vsel %vm1382, %v2669, %v2661
      %v2678 = vadd.f32 %v2622, %v2674
      %v2679 = vadd.f32 %v2623, %v2670
      %v2680 = vadd.f32 %v2624, %v2675
      %v2681 = vadd.f32 %v2625, %v2671
      %v2682 = vadd.f32 %v2626, %v2676
      %v2683 = vadd.f32 %v2627, %v2672
      %v2684 = vadd.f32 %v2628, %v2677
      %v2685 = vadd.f32 %v2629, %v2673
      %2686 = vset.pattern.permute.xlu0 22
      %2687 = vperm.xlu0 %2686, %v1049
      %v2688 = vpop.permute.xlu0 %2687
      %2689 = vset.pattern.permute.xlu0 22
      %2690 = vperm.xlu0 %2689, %v1050
      %v2691 = vpop.permute.xlu0 %2690
      %2692 = vset.pattern.permute.xlu0 22
      %2693 = vperm.xlu0 %2692, %v1051
      %v2694 = vpop.permute.xlu0 %2693
      %2695 = vset.pattern.permute.xlu0 22
      %2696 = vperm.xlu0 %2695, %v1052
      %v2697 = vpop.permute.xlu0 %2696
      %vm2698 = vcmp.eq.s32.totalorder %v1054, %v2688
      %vm2699 = vcmp.eq.s32.totalorder %v1055, %v2688
      %vm2700 = vcmp.eq.s32.totalorder %v1054, %v2691
      %vm2701 = vcmp.eq.s32.totalorder %v1055, %v2691
      %vm2702 = vcmp.eq.s32.totalorder %v1054, %v2694
      %vm2703 = vcmp.eq.s32.totalorder %v1055, %v2694
      %vm2704 = vcmp.eq.s32.totalorder %v1054, %v2697
      %vm2705 = vcmp.eq.s32.totalorder %v1055, %v2697
      %2706 = vset.pattern.permute.xlu0 38
      %2707 = vperm.xlu0 %2706, %v2229
      %v2708 = vpop.permute.xlu0 %2707
      %2710 = vset.pattern.permute.xlu0 38
      %2711 = vperm.xlu0 %2710, %v2230
      %v2712 = vpop.permute.xlu0 %2711
      %2714 = vset.pattern.permute.xlu0 38
      %2715 = vperm.xlu0 %2714, %v2231
      %v2716 = vpop.permute.xlu0 %2715
      %2718 = vset.pattern.permute.xlu0 38
      %2719 = vperm.xlu0 %2718, %v2232
      %v2720 = vpop.permute.xlu0 %2719
      %v2722 = vsel %vm2698, %v2708, 0.0
      %v2723 = vsel %vm2699, %v2708, 0.0
      %v2724 = vsel %vm2700, %v2712, 0.0
      %v2725 = vsel %vm2701, %v2712, 0.0
      %v2726 = vsel %vm2702, %v2716, 0.0
      %v2727 = vsel %vm2703, %v2716, 0.0
      %v2728 = vsel %vm2704, %v2720, 0.0
      %v2729 = vsel %vm2705, %v2720, 0.0
      %v2730 = vadd.f32 %v2590, %v2722
      %v2731 = vadd.f32 %v2591, %v2723
      %v2732 = vadd.f32 %v2592, %v2724
      %v2733 = vadd.f32 %v2593, %v2725
      %v2734 = vadd.f32 %v2594, %v2726
      %v2735 = vadd.f32 %v2595, %v2727
      %v2736 = vadd.f32 %v2596, %v2728
      %v2737 = vadd.f32 %v2597, %v2729
      %2738 = vset.pattern.permute.xlu0 38
      %2739 = vperm.xlu0 %2738, %v2233
      %v2740 = vpop.permute.xlu0 %2739
      %2742 = vset.pattern.permute.xlu0 38
      %2743 = vperm.xlu0 %2742, %v2234
      %v2744 = vpop.permute.xlu0 %2743
      %2746 = vset.pattern.permute.xlu0 38
      %2747 = vperm.xlu0 %2746, %v2235
      %v2748 = vpop.permute.xlu0 %2747
      %2750 = vset.pattern.permute.xlu0 38
      %2751 = vperm.xlu0 %2750, %v2236
      %v2752 = vpop.permute.xlu0 %2751
      %v2754 = vsel %vm2698, %v2740, 0.0
      %v2755 = vsel %vm2699, %v2740, 0.0
      %v2756 = vsel %vm2700, %v2744, 0.0
      %v2757 = vsel %vm2701, %v2744, 0.0
      %v2758 = vsel %vm2702, %v2748, 0.0
      %v2759 = vsel %vm2703, %v2748, 0.0
      %v2760 = vsel %vm2704, %v2752, 0.0
      %v2761 = vsel %vm2705, %v2752, 0.0
      %2762 = vrot.lane.b32.xlu0 %v2754, 1
      %v2763 = vpop.permute.xlu0 %2762
      %2764 = vrot.lane.b32.xlu0 %v2756, 1
      %v2765 = vpop.permute.xlu0 %2764
      %2766 = vrot.lane.b32.xlu0 %v2758, 1
      %v2767 = vpop.permute.xlu0 %2766
      %2768 = vrot.lane.b32.xlu0 %v2760, 1
      %v2769 = vpop.permute.xlu0 %2768
      %2770 = vrot.lane.b32.xlu0 %v2755, 1
      %v2771 = vpop.permute.xlu0 %2770
      %2772 = vrot.lane.b32.xlu0 %v2757, 1
      %v2773 = vpop.permute.xlu0 %2772
      %2774 = vrot.lane.b32.xlu0 %v2759, 1
      %v2775 = vpop.permute.xlu0 %2774
      %2776 = vrot.lane.b32.xlu0 %v2761, 1
      %v2777 = vpop.permute.xlu0 %2776
      %v2778 = vsel %vm1382, %v2763, %v2771
      %v2779 = vsel %vm1382, %v2765, %v2773
      %v2780 = vsel %vm1382, %v2767, %v2775
      %v2781 = vsel %vm1382, %v2769, %v2777
      %v2782 = vsel %vm1382, %v2771, %v2763
      %v2783 = vsel %vm1382, %v2773, %v2765
      %v2784 = vsel %vm1382, %v2775, %v2767
      %v2785 = vsel %vm1382, %v2777, %v2769
      %v2786 = vadd.f32 %v2730, %v2782
      %v2787 = vadd.f32 %v2731, %v2778
      %v2788 = vadd.f32 %v2732, %v2783
      %v2789 = vadd.f32 %v2733, %v2779
      %v2790 = vadd.f32 %v2734, %v2784
      %v2791 = vadd.f32 %v2735, %v2780
      %v2792 = vadd.f32 %v2736, %v2785
      %v2793 = vadd.f32 %v2737, %v2781
      %2794 = vset.pattern.permute.xlu0 38
      %2795 = vperm.xlu0 %2794, %v2237
      %v2796 = vpop.permute.xlu0 %2795
      %2798 = vset.pattern.permute.xlu0 38
      %2799 = vperm.xlu0 %2798, %v2238
      %v2800 = vpop.permute.xlu0 %2799
      %2802 = vset.pattern.permute.xlu0 38
      %2803 = vperm.xlu0 %2802, %v2239
      %v2804 = vpop.permute.xlu0 %2803
      %2806 = vset.pattern.permute.xlu0 38
      %2807 = vperm.xlu0 %2806, %v2240
      %v2808 = vpop.permute.xlu0 %2807
      %v2810 = vsel %vm2698, %v2796, 0.0
      %v2811 = vsel %vm2699, %v2796, 0.0
      %v2812 = vsel %vm2700, %v2800, 0.0
      %v2813 = vsel %vm2701, %v2800, 0.0
      %v2814 = vsel %vm2702, %v2804, 0.0
      %v2815 = vsel %vm2703, %v2804, 0.0
      %v2816 = vsel %vm2704, %v2808, 0.0
      %v2817 = vsel %vm2705, %v2808, 0.0
      %v2818 = vadd.f32 %v2678, %v2810
      %v2819 = vadd.f32 %v2679, %v2811
      %v2820 = vadd.f32 %v2680, %v2812
      %v2821 = vadd.f32 %v2681, %v2813
      %v2822 = vadd.f32 %v2682, %v2814
      %v2823 = vadd.f32 %v2683, %v2815
      %v2824 = vadd.f32 %v2684, %v2816
      %v2825 = vadd.f32 %v2685, %v2817
      %2826 = vset.pattern.permute.xlu0 38
      %2827 = vperm.xlu0 %2826, %v2241
      %v2828 = vpop.permute.xlu0 %2827
      %2830 = vset.pattern.permute.xlu0 38
      %2831 = vperm.xlu0 %2830, %v2242
      %v2832 = vpop.permute.xlu0 %2831
      %2834 = vset.pattern.permute.xlu0 38
      %2835 = vperm.xlu0 %2834, %v2243
      %v2836 = vpop.permute.xlu0 %2835
      %2838 = vset.pattern.permute.xlu0 38
      %2839 = vperm.xlu0 %2838, %v2244
      %v2840 = vpop.permute.xlu0 %2839
      %v2842 = vsel %vm2698, %v2828, 0.0
      %v2843 = vsel %vm2699, %v2828, 0.0
      %v2844 = vsel %vm2700, %v2832, 0.0
      %v2845 = vsel %vm2701, %v2832, 0.0
      %v2846 = vsel %vm2702, %v2836, 0.0
      %v2847 = vsel %vm2703, %v2836, 0.0
      %v2848 = vsel %vm2704, %v2840, 0.0
      %v2849 = vsel %vm2705, %v2840, 0.0
      %2850 = vrot.lane.b32.xlu0 %v2842, 1
      %v2851 = vpop.permute.xlu0 %2850
      %2852 = vrot.lane.b32.xlu0 %v2844, 1
      %v2853 = vpop.permute.xlu0 %2852
      %2854 = vrot.lane.b32.xlu0 %v2846, 1
      %v2855 = vpop.permute.xlu0 %2854
      %2856 = vrot.lane.b32.xlu0 %v2848, 1
      %v2857 = vpop.permute.xlu0 %2856
      %2858 = vrot.lane.b32.xlu0 %v2843, 1
      %v2859 = vpop.permute.xlu0 %2858
      %2860 = vrot.lane.b32.xlu0 %v2845, 1
      %v2861 = vpop.permute.xlu0 %2860
      %2862 = vrot.lane.b32.xlu0 %v2847, 1
      %v2863 = vpop.permute.xlu0 %2862
      %2864 = vrot.lane.b32.xlu0 %v2849, 1
      %v2865 = vpop.permute.xlu0 %2864
      %v2866 = vsel %vm1382, %v2851, %v2859
      %v2867 = vsel %vm1382, %v2853, %v2861
      %v2868 = vsel %vm1382, %v2855, %v2863
      %v2869 = vsel %vm1382, %v2857, %v2865
      %v2870 = vsel %vm1382, %v2859, %v2851
      %v2871 = vsel %vm1382, %v2861, %v2853
      %v2872 = vsel %vm1382, %v2863, %v2855
      %v2873 = vsel %vm1382, %v2865, %v2857
      %v2874 = vadd.f32 %v2818, %v2870
      %v2875 = vadd.f32 %v2819, %v2866
      %v2876 = vadd.f32 %v2820, %v2871
      %v2877 = vadd.f32 %v2821, %v2867
      %v2878 = vadd.f32 %v2822, %v2872
      %v2879 = vadd.f32 %v2823, %v2868
      %v2880 = vadd.f32 %v2824, %v2873
      %v2881 = vadd.f32 %v2825, %v2869
      %2882 = vset.pattern.permute.xlu0 23
      %2883 = vperm.xlu0 %2882, %v1049
      %v2884 = vpop.permute.xlu0 %2883
      %2885 = vset.pattern.permute.xlu0 23
      %2886 = vperm.xlu0 %2885, %v1050
      %v2887 = vpop.permute.xlu0 %2886
      %2888 = vset.pattern.permute.xlu0 23
      %2889 = vperm.xlu0 %2888, %v1051
      %v2890 = vpop.permute.xlu0 %2889
      %2891 = vset.pattern.permute.xlu0 23
      %2892 = vperm.xlu0 %2891, %v1052
      %v2893 = vpop.permute.xlu0 %2892
      %vm2894 = vcmp.eq.s32.totalorder %v1054, %v2884
      %vm2895 = vcmp.eq.s32.totalorder %v1055, %v2884
      %vm2896 = vcmp.eq.s32.totalorder %v1054, %v2887
      %vm2897 = vcmp.eq.s32.totalorder %v1055, %v2887
      %vm2898 = vcmp.eq.s32.totalorder %v1054, %v2890
      %vm2899 = vcmp.eq.s32.totalorder %v1055, %v2890
      %vm2900 = vcmp.eq.s32.totalorder %v1054, %v2893
      %vm2901 = vcmp.eq.s32.totalorder %v1055, %v2893
      %2902 = vset.pattern.permute.xlu0 39
      %2903 = vperm.xlu0 %2902, %v2229
      %v2904 = vpop.permute.xlu0 %2903
      %2906 = vset.pattern.permute.xlu0 39
      %2907 = vperm.xlu0 %2906, %v2230
      %v2908 = vpop.permute.xlu0 %2907
      %2910 = vset.pattern.permute.xlu0 39
      %2911 = vperm.xlu0 %2910, %v2231
      %v2912 = vpop.permute.xlu0 %2911
      %2914 = vset.pattern.permute.xlu0 39
      %2915 = vperm.xlu0 %2914, %v2232
      %v2916 = vpop.permute.xlu0 %2915
      %v2918 = vsel %vm2894, %v2904, 0.0
      %v2919 = vsel %vm2895, %v2904, 0.0
      %v2920 = vsel %vm2896, %v2908, 0.0
      %v2921 = vsel %vm2897, %v2908, 0.0
      %v2922 = vsel %vm2898, %v2912, 0.0
      %v2923 = vsel %vm2899, %v2912, 0.0
      %v2924 = vsel %vm2900, %v2916, 0.0
      %v2925 = vsel %vm2901, %v2916, 0.0
      %v2926 = vadd.f32 %v2786, %v2918
      %v2927 = vadd.f32 %v2787, %v2919
      %v2928 = vadd.f32 %v2788, %v2920
      %v2929 = vadd.f32 %v2789, %v2921
      %v2930 = vadd.f32 %v2790, %v2922
      %v2931 = vadd.f32 %v2791, %v2923
      %v2932 = vadd.f32 %v2792, %v2924
      %v2933 = vadd.f32 %v2793, %v2925
      %2934 = vset.pattern.permute.xlu0 39
      %2935 = vperm.xlu0 %2934, %v2233
      %v2936 = vpop.permute.xlu0 %2935
      %2938 = vset.pattern.permute.xlu0 39
      %2939 = vperm.xlu0 %2938, %v2234
      %v2940 = vpop.permute.xlu0 %2939
      %2942 = vset.pattern.permute.xlu0 39
      %2943 = vperm.xlu0 %2942, %v2235
      %v2944 = vpop.permute.xlu0 %2943
      %2946 = vset.pattern.permute.xlu0 39
      %2947 = vperm.xlu0 %2946, %v2236
      %v2948 = vpop.permute.xlu0 %2947
      %v2950 = vsel %vm2894, %v2936, 0.0
      %v2951 = vsel %vm2895, %v2936, 0.0
      %v2952 = vsel %vm2896, %v2940, 0.0
      %v2953 = vsel %vm2897, %v2940, 0.0
      %v2954 = vsel %vm2898, %v2944, 0.0
      %v2955 = vsel %vm2899, %v2944, 0.0
      %v2956 = vsel %vm2900, %v2948, 0.0
      %v2957 = vsel %vm2901, %v2948, 0.0
      %2958 = vrot.lane.b32.xlu0 %v2950, 1
      %v2959 = vpop.permute.xlu0 %2958
      %2960 = vrot.lane.b32.xlu0 %v2952, 1
      %v2961 = vpop.permute.xlu0 %2960
      %2962 = vrot.lane.b32.xlu0 %v2954, 1
      %v2963 = vpop.permute.xlu0 %2962
      %2964 = vrot.lane.b32.xlu0 %v2956, 1
      %v2965 = vpop.permute.xlu0 %2964
      %2966 = vrot.lane.b32.xlu0 %v2951, 1
      %v2967 = vpop.permute.xlu0 %2966
      %2968 = vrot.lane.b32.xlu0 %v2953, 1
      %v2969 = vpop.permute.xlu0 %2968
      %2970 = vrot.lane.b32.xlu0 %v2955, 1
      %v2971 = vpop.permute.xlu0 %2970
      %2972 = vrot.lane.b32.xlu0 %v2957, 1
      %v2973 = vpop.permute.xlu0 %2972
      %v2974 = vsel %vm1382, %v2959, %v2967
      %v2975 = vsel %vm1382, %v2961, %v2969
      %v2976 = vsel %vm1382, %v2963, %v2971
      %v2977 = vsel %vm1382, %v2965, %v2973
      %v2978 = vsel %vm1382, %v2967, %v2959
      %v2979 = vsel %vm1382, %v2969, %v2961
      %v2980 = vsel %vm1382, %v2971, %v2963
      %v2981 = vsel %vm1382, %v2973, %v2965
      %v2982 = vadd.f32 %v2926, %v2978
      %v2983 = vadd.f32 %v2927, %v2974
      %v2984 = vadd.f32 %v2928, %v2979
      %v2985 = vadd.f32 %v2929, %v2975
      %v2986 = vadd.f32 %v2930, %v2980
      %v2987 = vadd.f32 %v2931, %v2976
      %v2988 = vadd.f32 %v2932, %v2981
      %v2989 = vadd.f32 %v2933, %v2977
      %2990 = vset.pattern.permute.xlu0 39
      %2991 = vperm.xlu0 %2990, %v2237
      %v2992 = vpop.permute.xlu0 %2991
      %2994 = vset.pattern.permute.xlu0 39
      %2995 = vperm.xlu0 %2994, %v2238
      %v2996 = vpop.permute.xlu0 %2995
      %2998 = vset.pattern.permute.xlu0 39
      %2999 = vperm.xlu0 %2998, %v2239
      %v3000 = vpop.permute.xlu0 %2999
      %3002 = vset.pattern.permute.xlu0 39
      %3003 = vperm.xlu0 %3002, %v2240
      %v3004 = vpop.permute.xlu0 %3003
      %v3006 = vsel %vm2894, %v2992, 0.0
      %v3007 = vsel %vm2895, %v2992, 0.0
      %v3008 = vsel %vm2896, %v2996, 0.0
      %v3009 = vsel %vm2897, %v2996, 0.0
      %v3010 = vsel %vm2898, %v3000, 0.0
      %v3011 = vsel %vm2899, %v3000, 0.0
      %v3012 = vsel %vm2900, %v3004, 0.0
      %v3013 = vsel %vm2901, %v3004, 0.0
      %v3014 = vadd.f32 %v2874, %v3006
      %v3015 = vadd.f32 %v2875, %v3007
      %v3016 = vadd.f32 %v2876, %v3008
      %v3017 = vadd.f32 %v2877, %v3009
      %v3018 = vadd.f32 %v2878, %v3010
      %v3019 = vadd.f32 %v2879, %v3011
      %v3020 = vadd.f32 %v2880, %v3012
      %v3021 = vadd.f32 %v2881, %v3013
      %3022 = vset.pattern.permute.xlu0 39
      %3023 = vperm.xlu0 %3022, %v2241
      %v3024 = vpop.permute.xlu0 %3023
      %3026 = vset.pattern.permute.xlu0 39
      %3027 = vperm.xlu0 %3026, %v2242
      %v3028 = vpop.permute.xlu0 %3027
      %3030 = vset.pattern.permute.xlu0 39
      %3031 = vperm.xlu0 %3030, %v2243
      %v3032 = vpop.permute.xlu0 %3031
      %3034 = vset.pattern.permute.xlu0 39
      %3035 = vperm.xlu0 %3034, %v2244
      %v3036 = vpop.permute.xlu0 %3035
      %v3038 = vsel %vm2894, %v3024, 0.0
      %v3039 = vsel %vm2895, %v3024, 0.0
      %v3040 = vsel %vm2896, %v3028, 0.0
      %v3041 = vsel %vm2897, %v3028, 0.0
      %v3042 = vsel %vm2898, %v3032, 0.0
      %v3043 = vsel %vm2899, %v3032, 0.0
      %v3044 = vsel %vm2900, %v3036, 0.0
      %v3045 = vsel %vm2901, %v3036, 0.0
      %3046 = vrot.lane.b32.xlu0 %v3038, 1
      %v3047 = vpop.permute.xlu0 %3046
      %3048 = vrot.lane.b32.xlu0 %v3040, 1
      %v3049 = vpop.permute.xlu0 %3048
      %3050 = vrot.lane.b32.xlu0 %v3042, 1
      %v3051 = vpop.permute.xlu0 %3050
      %3052 = vrot.lane.b32.xlu0 %v3044, 1
      %v3053 = vpop.permute.xlu0 %3052
      %3054 = vrot.lane.b32.xlu0 %v3039, 1
      %v3055 = vpop.permute.xlu0 %3054
      %3056 = vrot.lane.b32.xlu0 %v3041, 1
      %v3057 = vpop.permute.xlu0 %3056
      %3058 = vrot.lane.b32.xlu0 %v3043, 1
      %v3059 = vpop.permute.xlu0 %3058
      %3060 = vrot.lane.b32.xlu0 %v3045, 1
      %v3061 = vpop.permute.xlu0 %3060
      %v3062 = vsel %vm1382, %v3047, %v3055
      %v3063 = vsel %vm1382, %v3049, %v3057
      %v3064 = vsel %vm1382, %v3051, %v3059
      %v3065 = vsel %vm1382, %v3053, %v3061
      %v3066 = vsel %vm1382, %v3055, %v3047
      %v3067 = vsel %vm1382, %v3057, %v3049
      %v3068 = vsel %vm1382, %v3059, %v3051
      %v3069 = vsel %vm1382, %v3061, %v3053
      %v3070 = vadd.f32 %v3014, %v3066
      %v3071 = vadd.f32 %v3015, %v3062
      %v3072 = vadd.f32 %v3016, %v3067
      %v3073 = vadd.f32 %v3017, %v3063
      %v3074 = vadd.f32 %v3018, %v3068
      %v3075 = vadd.f32 %v3019, %v3064
      %v3076 = vadd.f32 %v3020, %v3069
      %v3077 = vadd.f32 %v3021, %v3065
      %3078 = vrot.lane.b32.xlu0 %v3070, 16
      %v3079 = vpop.permute.xlu0 %3078
      %3080 = vrot.lane.b32.xlu0 %v3072, 16
      %v3081 = vpop.permute.xlu0 %3080
      %3082 = vrot.lane.b32.xlu0 %v3074, 16
      %v3083 = vpop.permute.xlu0 %3082
      %3084 = vrot.lane.b32.xlu0 %v3076, 16
      %v3085 = vpop.permute.xlu0 %3084
      %3086 = vrot.lane.b32.xlu0 %v3071, 16
      %v3087 = vpop.permute.xlu0 %3086
      %3088 = vrot.lane.b32.xlu0 %v3073, 16
      %v3089 = vpop.permute.xlu0 %3088
      %3090 = vrot.lane.b32.xlu0 %v3075, 16
      %v3091 = vpop.permute.xlu0 %3090
      %3092 = vrot.lane.b32.xlu0 %v3077, 16
      %v3093 = vpop.permute.xlu0 %3092
      %v3094 = vsel %vm2099, %v3079, %v3087
      %v3095 = vsel %vm2099, %v3081, %v3089
      %v3096 = vsel %vm2099, %v3083, %v3091
      %v3097 = vsel %vm2099, %v3085, %v3093
      %v3098 = vsel %vm2099, %v3087, %v3079
      %v3099 = vsel %vm2099, %v3089, %v3081
      %v3100 = vsel %vm2099, %v3091, %v3083
      %v3101 = vsel %vm2099, %v3093, %v3085
      %v3102 = vadd.f32 %v2982, %v3098
      %v3103 = vadd.f32 %v2983, %v3094
      %v3104 = vadd.f32 %v2984, %v3099
      %v3105 = vadd.f32 %v2985, %v3095
      %v3106 = vadd.f32 %v2986, %v3100
      %v3107 = vadd.f32 %v2987, %v3096
      %v3108 = vadd.f32 %v2988, %v3101
      %v3109 = vadd.f32 %v2989, %v3097
      %v3110 = vand.u32 %v2261, 4294901760
      %3111 = vmatpush.msra.mxu0 %v3110
      %v3112 = vand.u32 %v2260, 4294901760
      %3113 = vmatpush.msra.mxu0 %v3112
      %v3114 = vand.u32 %v2259, 4294901760
      %3115 = vmatpush.msra.mxu0 %v3114
      %v3116 = vand.u32 %v2258, 4294901760
      %3117 = vmatpush.msra.mxu0 %v3116
      %v3118 = vand.u32 %v2257, 4294901760
      %3119 = vmatpush.msra.mxu0 %v3118
      %v3120 = vand.u32 %v2256, 4294901760
      %3121 = vmatpush.msra.mxu0 %v3120
      %v3122 = vand.u32 %v2255, 4294901760
      %3123 = vmatpush.msra.mxu0 %v3122
      %v3124 = vand.u32 %v2254, 4294901760
      %3125 = vmatpush.msra.mxu0 %v3124
      %v3126 = vand.u32 %v2253, 4294901760
      %3127 = vmatpush.msra.mxu0 %v3126
      %v3128 = vand.u32 %v2252, 4294901760
      %3129 = vmatpush.msra.mxu0 %v3128
      %v3130 = vand.u32 %v2251, 4294901760
      %3131 = vmatpush.msra.mxu0 %v3130
      %v3132 = vand.u32 %v2250, 4294901760
      %3133 = vmatpush.msra.mxu0 %v3132
      %v3134 = vand.u32 %v2249, 4294901760
      %3135 = vmatpush.msra.mxu0 %v3134
      %v3136 = vand.u32 %v2248, 4294901760
      %3137 = vmatpush.msra.mxu0 %v3136
      %v3138 = vand.u32 %v2247, 4294901760
      %3139 = vmatpush.msra.mxu0 %v3138
      %v3140 = vand.u32 %v2246, 4294901760
      %3141 = vmatpush.msra.mxu0 %v3140
      %v3142 = vand.u32 %v3102, 4294901760
      %v3143 = vsub.f32 %v3102, %v3142
      %v3144 = vand.u32 %v3143, 4294901760
      %v3145 = vsub.f32 %v3143, %v3144
      %v3146 = vand.u32 %v3145, 4294901760
      %3147 = vmatmul.f32.gmra.mxu0 %v3146
      %v3148 = vpop.f32.mrf.mxu0
      %v3149 = vadd.f32 0.0, %v3148
      %v3150 = vand.u32 %v3104, 4294901760
      %v3151 = vsub.f32 %v3104, %v3150
      %v3152 = vand.u32 %v3151, 4294901760
      %v3153 = vsub.f32 %v3151, %v3152
      %v3154 = vand.u32 %v3153, 4294901760
      %3155 = vmatmul.f32.gmra.mxu0 %v3154
      %v3156 = vpop.f32.mrf.mxu0
      %v3157 = vadd.f32 0.0, %v3156
      %v3158 = vand.u32 %v3106, 4294901760
      %v3159 = vsub.f32 %v3106, %v3158
      %v3160 = vand.u32 %v3159, 4294901760
      %v3161 = vsub.f32 %v3159, %v3160
      %v3162 = vand.u32 %v3161, 4294901760
      %3163 = vmatmul.f32.gmra.mxu0 %v3162
      %v3164 = vpop.f32.mrf.mxu0
      %v3165 = vadd.f32 0.0, %v3164
      %v3166 = vand.u32 %v3108, 4294901760
      %v3167 = vsub.f32 %v3108, %v3166
      %v3168 = vand.u32 %v3167, 4294901760
      %v3169 = vsub.f32 %v3167, %v3168
      %v3170 = vand.u32 %v3169, 4294901760
      %3171 = vmatmul.f32.gmra.mxu0 %v3170
      %v3172 = vpop.f32.mrf.mxu0
      %v3173 = vadd.f32 0.0, %v3172
      %3174 = vdwg.mxu0
      %v3175 = vand.u32 %v2261, 4294901760
      %v3176 = vsub.f32 %v2261, %v3175
      %v3177 = vand.u32 %v3176, 4294901760
      %v3178 = vsub.f32 %v3176, %v3177
      %v3179 = vand.u32 %v3178, 4294901760
      %3180 = vmatpush.msra.mxu0 %v3179
      %v3181 = vand.u32 %v2260, 4294901760
      %v3182 = vsub.f32 %v2260, %v3181
      %v3183 = vand.u32 %v3182, 4294901760
      %v3184 = vsub.f32 %v3182, %v3183
      %v3185 = vand.u32 %v3184, 4294901760
      %3186 = vmatpush.msra.mxu0 %v3185
      %v3187 = vand.u32 %v2259, 4294901760
      %v3188 = vsub.f32 %v2259, %v3187
      %v3189 = vand.u32 %v3188, 4294901760
      %v3190 = vsub.f32 %v3188, %v3189
      %v3191 = vand.u32 %v3190, 4294901760
      %3192 = vmatpush.msra.mxu0 %v3191
      %v3193 = vand.u32 %v2258, 4294901760
      %v3194 = vsub.f32 %v2258, %v3193
      %v3195 = vand.u32 %v3194, 4294901760
      %v3196 = vsub.f32 %v3194, %v3195
      %v3197 = vand.u32 %v3196, 4294901760
      %3198 = vmatpush.msra.mxu0 %v3197
      %v3199 = vand.u32 %v2257, 4294901760
      %v3200 = vsub.f32 %v2257, %v3199
      %v3201 = vand.u32 %v3200, 4294901760
      %v3202 = vsub.f32 %v3200, %v3201
      %v3203 = vand.u32 %v3202, 4294901760
      %3204 = vmatpush.msra.mxu0 %v3203
      %v3205 = vand.u32 %v2256, 4294901760
      %v3206 = vsub.f32 %v2256, %v3205
      %v3207 = vand.u32 %v3206, 4294901760
      %v3208 = vsub.f32 %v3206, %v3207
      %v3209 = vand.u32 %v3208, 4294901760
      %3210 = vmatpush.msra.mxu0 %v3209
      %v3211 = vand.u32 %v2255, 4294901760
      %v3212 = vsub.f32 %v2255, %v3211
      %v3213 = vand.u32 %v3212, 4294901760
      %v3214 = vsub.f32 %v3212, %v3213
      %v3215 = vand.u32 %v3214, 4294901760
      %3216 = vmatpush.msra.mxu0 %v3215
      %v3217 = vand.u32 %v2254, 4294901760
      %v3218 = vsub.f32 %v2254, %v3217
      %v3219 = vand.u32 %v3218, 4294901760
      %v3220 = vsub.f32 %v3218, %v3219
      %v3221 = vand.u32 %v3220, 4294901760
      %3222 = vmatpush.msra.mxu0 %v3221
      %v3223 = vand.u32 %v2253, 4294901760
      %v3224 = vsub.f32 %v2253, %v3223
      %v3225 = vand.u32 %v3224, 4294901760
      %v3226 = vsub.f32 %v3224, %v3225
      %v3227 = vand.u32 %v3226, 4294901760
      %3228 = vmatpush.msra.mxu0 %v3227
      %v3229 = vand.u32 %v2252, 4294901760
      %v3230 = vsub.f32 %v2252, %v3229
      %v3231 = vand.u32 %v3230, 4294901760
      %v3232 = vsub.f32 %v3230, %v3231
      %v3233 = vand.u32 %v3232, 4294901760
      %3234 = vmatpush.msra.mxu0 %v3233
      %v3235 = vand.u32 %v2251, 4294901760
      %v3236 = vsub.f32 %v2251, %v3235
      %v3237 = vand.u32 %v3236, 4294901760
      %v3238 = vsub.f32 %v3236, %v3237
      %v3239 = vand.u32 %v3238, 4294901760
      %3240 = vmatpush.msra.mxu0 %v3239
      %v3241 = vand.u32 %v2250, 4294901760
      %v3242 = vsub.f32 %v2250, %v3241
      %v3243 = vand.u32 %v3242, 4294901760
      %v3244 = vsub.f32 %v3242, %v3243
      %v3245 = vand.u32 %v3244, 4294901760
      %3246 = vmatpush.msra.mxu0 %v3245
      %v3247 = vand.u32 %v2249, 4294901760
      %v3248 = vsub.f32 %v2249, %v3247
      %v3249 = vand.u32 %v3248, 4294901760
      %v3250 = vsub.f32 %v3248, %v3249
      %v3251 = vand.u32 %v3250, 4294901760
      %3252 = vmatpush.msra.mxu0 %v3251
      %v3253 = vand.u32 %v2248, 4294901760
      %v3254 = vsub.f32 %v2248, %v3253
      %v3255 = vand.u32 %v3254, 4294901760
      %v3256 = vsub.f32 %v3254, %v3255
      %v3257 = vand.u32 %v3256, 4294901760
      %3258 = vmatpush.msra.mxu0 %v3257
      %v3259 = vand.u32 %v2247, 4294901760
      %v3260 = vsub.f32 %v2247, %v3259
      %v3261 = vand.u32 %v3260, 4294901760
      %v3262 = vsub.f32 %v3260, %v3261
      %v3263 = vand.u32 %v3262, 4294901760
      %3264 = vmatpush.msra.mxu0 %v3263
      %v3265 = vand.u32 %v2246, 4294901760
      %v3266 = vsub.f32 %v2246, %v3265
      %v3267 = vand.u32 %v3266, 4294901760
      %v3268 = vsub.f32 %v3266, %v3267
      %v3269 = vand.u32 %v3268, 4294901760
      %3270 = vmatpush.msra.mxu0 %v3269
      %v3271 = vand.u32 %v3102, 4294901760
      %3272 = vmatmul.f32.gmra.mxu0 %v3271
      %v3273 = vpop.f32.mrf.mxu0
      %v3274 = vadd.f32 %v3149, %v3273
      %v3275 = vand.u32 %v3104, 4294901760
      %3276 = vmatmul.f32.gmra.mxu0 %v3275
      %v3277 = vpop.f32.mrf.mxu0
      %v3278 = vadd.f32 %v3157, %v3277
      %v3279 = vand.u32 %v3106, 4294901760
      %3280 = vmatmul.f32.gmra.mxu0 %v3279
      %v3281 = vpop.f32.mrf.mxu0
      %v3282 = vadd.f32 %v3165, %v3281
      %v3283 = vand.u32 %v3108, 4294901760
      %3284 = vmatmul.f32.gmra.mxu0 %v3283
      %v3285 = vpop.f32.mrf.mxu0
      %v3286 = vadd.f32 %v3173, %v3285
      %3287 = vdwg.mxu0
      %v3288 = vand.u32 %v2261, 4294901760
      %v3289 = vsub.f32 %v2261, %v3288
      %3290 = vmatpush.msra.mxu0 %v3289
      %v3291 = vand.u32 %v2260, 4294901760
      %v3292 = vsub.f32 %v2260, %v3291
      %3293 = vmatpush.msra.mxu0 %v3292
      %v3294 = vand.u32 %v2259, 4294901760
      %v3295 = vsub.f32 %v2259, %v3294
      %3296 = vmatpush.msra.mxu0 %v3295
      %v3297 = vand.u32 %v2258, 4294901760
      %v3298 = vsub.f32 %v2258, %v3297
      %3299 = vmatpush.msra.mxu0 %v3298
      %v3300 = vand.u32 %v2257, 4294901760
      %v3301 = vsub.f32 %v2257, %v3300
      %3302 = vmatpush.msra.mxu0 %v3301
      %v3303 = vand.u32 %v2256, 4294901760
      %v3304 = vsub.f32 %v2256, %v3303
      %3305 = vmatpush.msra.mxu0 %v3304
      %v3306 = vand.u32 %v2255, 4294901760
      %v3307 = vsub.f32 %v2255, %v3306
      %3308 = vmatpush.msra.mxu0 %v3307
      %v3309 = vand.u32 %v2254, 4294901760
      %v3310 = vsub.f32 %v2254, %v3309
      %3311 = vmatpush.msra.mxu0 %v3310
      %v3312 = vand.u32 %v2253, 4294901760
      %v3313 = vsub.f32 %v2253, %v3312
      %3314 = vmatpush.msra.mxu0 %v3313
      %v3315 = vand.u32 %v2252, 4294901760
      %v3316 = vsub.f32 %v2252, %v3315
      %3317 = vmatpush.msra.mxu0 %v3316
      %v3318 = vand.u32 %v2251, 4294901760
      %v3319 = vsub.f32 %v2251, %v3318
      %3320 = vmatpush.msra.mxu0 %v3319
      %v3321 = vand.u32 %v2250, 4294901760
      %v3322 = vsub.f32 %v2250, %v3321
      %3323 = vmatpush.msra.mxu0 %v3322
      %v3324 = vand.u32 %v2249, 4294901760
      %v3325 = vsub.f32 %v2249, %v3324
      %3326 = vmatpush.msra.mxu0 %v3325
      %v3327 = vand.u32 %v2248, 4294901760
      %v3328 = vsub.f32 %v2248, %v3327
      %3329 = vmatpush.msra.mxu0 %v3328
      %v3330 = vand.u32 %v2247, 4294901760
      %v3331 = vsub.f32 %v2247, %v3330
      %3332 = vmatpush.msra.mxu0 %v3331
      %v3333 = vand.u32 %v2246, 4294901760
      %v3334 = vsub.f32 %v2246, %v3333
      %3335 = vmatpush.msra.mxu0 %v3334
      %v3336 = vand.u32 %v3102, 4294901760
      %v3337 = vsub.f32 %v3102, %v3336
      %3338 = vmatmul.f32.gmra.mxu0 %v3337
      %v3339 = vpop.f32.mrf.mxu0
      %v3340 = vadd.f32 %v3274, %v3339
      %v3341 = vand.u32 %v3104, 4294901760
      %v3342 = vsub.f32 %v3104, %v3341
      %3343 = vmatmul.f32.gmra.mxu0 %v3342
      %v3344 = vpop.f32.mrf.mxu0
      %v3345 = vadd.f32 %v3278, %v3344
      %v3346 = vand.u32 %v3106, 4294901760
      %v3347 = vsub.f32 %v3106, %v3346
      %3348 = vmatmul.f32.gmra.mxu0 %v3347
      %v3349 = vpop.f32.mrf.mxu0
      %v3350 = vadd.f32 %v3282, %v3349
      %v3351 = vand.u32 %v3108, 4294901760
      %v3352 = vsub.f32 %v3108, %v3351
      %3353 = vmatmul.f32.gmra.mxu0 %v3352
      %v3354 = vpop.f32.mrf.mxu0
      %v3355 = vadd.f32 %v3286, %v3354
      %3356 = vdwg.mxu0
      %v3357 = vand.u32 %v2261, 4294901760
      %3358 = vmatpush.msra.mxu0 %v3357
      %v3359 = vand.u32 %v2260, 4294901760
      %3360 = vmatpush.msra.mxu0 %v3359
      %v3361 = vand.u32 %v2259, 4294901760
      %3362 = vmatpush.msra.mxu0 %v3361
      %v3363 = vand.u32 %v2258, 4294901760
      %3364 = vmatpush.msra.mxu0 %v3363
      %v3365 = vand.u32 %v2257, 4294901760
      %3366 = vmatpush.msra.mxu0 %v3365
      %v3367 = vand.u32 %v2256, 4294901760
      %3368 = vmatpush.msra.mxu0 %v3367
      %v3369 = vand.u32 %v2255, 4294901760
      %3370 = vmatpush.msra.mxu0 %v3369
      %v3371 = vand.u32 %v2254, 4294901760
      %3372 = vmatpush.msra.mxu0 %v3371
      %v3373 = vand.u32 %v2253, 4294901760
      %3374 = vmatpush.msra.mxu0 %v3373
      %v3375 = vand.u32 %v2252, 4294901760
      %3376 = vmatpush.msra.mxu0 %v3375
      %v3377 = vand.u32 %v2251, 4294901760
      %3378 = vmatpush.msra.mxu0 %v3377
      %v3379 = vand.u32 %v2250, 4294901760
      %3380 = vmatpush.msra.mxu0 %v3379
      %v3381 = vand.u32 %v2249, 4294901760
      %3382 = vmatpush.msra.mxu0 %v3381
      %v3383 = vand.u32 %v2248, 4294901760
      %3384 = vmatpush.msra.mxu0 %v3383
      %v3385 = vand.u32 %v2247, 4294901760
      %3386 = vmatpush.msra.mxu0 %v3385
      %v3387 = vand.u32 %v2246, 4294901760
      %3388 = vmatpush.msra.mxu0 %v3387
      %v3389 = vand.u32 %v3102, 4294901760
      %v3390 = vsub.f32 %v3102, %v3389
      %v3391 = vand.u32 %v3390, 4294901760
      %3392 = vmatmul.f32.gmra.mxu0 %v3391
      %v3393 = vpop.f32.mrf.mxu0
      %v3394 = vadd.f32 %v3340, %v3393
      %v3395 = vand.u32 %v3104, 4294901760
      %v3396 = vsub.f32 %v3104, %v3395
      %v3397 = vand.u32 %v3396, 4294901760
      %3398 = vmatmul.f32.gmra.mxu0 %v3397
      %v3399 = vpop.f32.mrf.mxu0
      %v3400 = vadd.f32 %v3345, %v3399
      %v3401 = vand.u32 %v3106, 4294901760
      %v3402 = vsub.f32 %v3106, %v3401
      %v3403 = vand.u32 %v3402, 4294901760
      %3404 = vmatmul.f32.gmra.mxu0 %v3403
      %v3405 = vpop.f32.mrf.mxu0
      %v3406 = vadd.f32 %v3350, %v3405
      %v3407 = vand.u32 %v3108, 4294901760
      %v3408 = vsub.f32 %v3108, %v3407
      %v3409 = vand.u32 %v3408, 4294901760
      %3410 = vmatmul.f32.gmra.mxu0 %v3409
      %v3411 = vpop.f32.mrf.mxu0
      %v3412 = vadd.f32 %v3355, %v3411
      %3413 = vdwg.mxu0
      %v3414 = vand.u32 %v2261, 4294901760
      %v3415 = vsub.f32 %v2261, %v3414
      %v3416 = vand.u32 %v3415, 4294901760
      %3417 = vmatpush.msra.mxu0 %v3416
      %v3418 = vand.u32 %v2260, 4294901760
      %v3419 = vsub.f32 %v2260, %v3418
      %v3420 = vand.u32 %v3419, 4294901760
      %3421 = vmatpush.msra.mxu0 %v3420
      %v3422 = vand.u32 %v2259, 4294901760
      %v3423 = vsub.f32 %v2259, %v3422
      %v3424 = vand.u32 %v3423, 4294901760
      %3425 = vmatpush.msra.mxu0 %v3424
      %v3426 = vand.u32 %v2258, 4294901760
      %v3427 = vsub.f32 %v2258, %v3426
      %v3428 = vand.u32 %v3427, 4294901760
      %3429 = vmatpush.msra.mxu0 %v3428
      %v3430 = vand.u32 %v2257, 4294901760
      %v3431 = vsub.f32 %v2257, %v3430
      %v3432 = vand.u32 %v3431, 4294901760
      %3433 = vmatpush.msra.mxu0 %v3432
      %v3434 = vand.u32 %v2256, 4294901760
      %v3435 = vsub.f32 %v2256, %v3434
      %v3436 = vand.u32 %v3435, 4294901760
      %3437 = vmatpush.msra.mxu0 %v3436
      %v3438 = vand.u32 %v2255, 4294901760
      %v3439 = vsub.f32 %v2255, %v3438
      %v3440 = vand.u32 %v3439, 4294901760
      %3441 = vmatpush.msra.mxu0 %v3440
      %v3442 = vand.u32 %v2254, 4294901760
      %v3443 = vsub.f32 %v2254, %v3442
      %v3444 = vand.u32 %v3443, 4294901760
      %3445 = vmatpush.msra.mxu0 %v3444
      %v3446 = vand.u32 %v2253, 4294901760
      %v3447 = vsub.f32 %v2253, %v3446
      %v3448 = vand.u32 %v3447, 4294901760
      %3449 = vmatpush.msra.mxu0 %v3448
      %v3450 = vand.u32 %v2252, 4294901760
      %v3451 = vsub.f32 %v2252, %v3450
      %v3452 = vand.u32 %v3451, 4294901760
      %3453 = vmatpush.msra.mxu0 %v3452
      %v3454 = vand.u32 %v2251, 4294901760
      %v3455 = vsub.f32 %v2251, %v3454
      %v3456 = vand.u32 %v3455, 4294901760
      %3457 = vmatpush.msra.mxu0 %v3456
      %v3458 = vand.u32 %v2250, 4294901760
      %v3459 = vsub.f32 %v2250, %v3458
      %v3460 = vand.u32 %v3459, 4294901760
      %3461 = vmatpush.msra.mxu0 %v3460
      %v3462 = vand.u32 %v2249, 4294901760
      %v3463 = vsub.f32 %v2249, %v3462
      %v3464 = vand.u32 %v3463, 4294901760
      %3465 = vmatpush.msra.mxu0 %v3464
      %v3466 = vand.u32 %v2248, 4294901760
      %v3467 = vsub.f32 %v2248, %v3466
      %v3468 = vand.u32 %v3467, 4294901760
      %3469 = vmatpush.msra.mxu0 %v3468
      %v3470 = vand.u32 %v2247, 4294901760
      %v3471 = vsub.f32 %v2247, %v3470
      %v3472 = vand.u32 %v3471, 4294901760
      %3473 = vmatpush.msra.mxu0 %v3472
      %v3474 = vand.u32 %v2246, 4294901760
      %v3475 = vsub.f32 %v2246, %v3474
      %v3476 = vand.u32 %v3475, 4294901760
      %3477 = vmatpush.msra.mxu0 %v3476
      %v3478 = vand.u32 %v3102, 4294901760
      %3479 = vmatmul.f32.gmra.mxu0 %v3478
      %v3480 = vpop.f32.mrf.mxu0
      %v3481 = vadd.f32 %v3394, %v3480
      %v3482 = vand.u32 %v3104, 4294901760
      %3483 = vmatmul.f32.gmra.mxu0 %v3482
      %v3484 = vpop.f32.mrf.mxu0
      %v3485 = vadd.f32 %v3400, %v3484
      %v3486 = vand.u32 %v3106, 4294901760
      %3487 = vmatmul.f32.gmra.mxu0 %v3486
      %v3488 = vpop.f32.mrf.mxu0
      %v3489 = vadd.f32 %v3406, %v3488
      %v3490 = vand.u32 %v3108, 4294901760
      %3491 = vmatmul.f32.gmra.mxu0 %v3490
      %v3492 = vpop.f32.mrf.mxu0
      %v3493 = vadd.f32 %v3412, %v3492
      %3494 = vdwg.mxu0
      %v3495 = vand.u32 %v2261, 4294901760
      %3496 = vmatpush.msra.mxu0 %v3495
      %v3497 = vand.u32 %v2260, 4294901760
      %3498 = vmatpush.msra.mxu0 %v3497
      %v3499 = vand.u32 %v2259, 4294901760
      %3500 = vmatpush.msra.mxu0 %v3499
      %v3501 = vand.u32 %v2258, 4294901760
      %3502 = vmatpush.msra.mxu0 %v3501
      %v3503 = vand.u32 %v2257, 4294901760
      %3504 = vmatpush.msra.mxu0 %v3503
      %v3505 = vand.u32 %v2256, 4294901760
      %3506 = vmatpush.msra.mxu0 %v3505
      %v3507 = vand.u32 %v2255, 4294901760
      %3508 = vmatpush.msra.mxu0 %v3507
      %v3509 = vand.u32 %v2254, 4294901760
      %3510 = vmatpush.msra.mxu0 %v3509
      %v3511 = vand.u32 %v2253, 4294901760
      %3512 = vmatpush.msra.mxu0 %v3511
      %v3513 = vand.u32 %v2252, 4294901760
      %3514 = vmatpush.msra.mxu0 %v3513
      %v3515 = vand.u32 %v2251, 4294901760
      %3516 = vmatpush.msra.mxu0 %v3515
      %v3517 = vand.u32 %v2250, 4294901760
      %3518 = vmatpush.msra.mxu0 %v3517
      %v3519 = vand.u32 %v2249, 4294901760
      %3520 = vmatpush.msra.mxu0 %v3519
      %v3521 = vand.u32 %v2248, 4294901760
      %3522 = vmatpush.msra.mxu0 %v3521
      %v3523 = vand.u32 %v2247, 4294901760
      %3524 = vmatpush.msra.mxu0 %v3523
      %v3525 = vand.u32 %v2246, 4294901760
      %3526 = vmatpush.msra.mxu0 %v3525
      %v3527 = vand.u32 %v3102, 4294901760
      %3528 = vmatmul.f32.gmra.mxu0 %v3527
      %v3529 = vpop.f32.mrf.mxu0
      %v3530 = vadd.f32 %v3481, %v3529
      %v3531 = vand.u32 %v3104, 4294901760
      %3532 = vmatmul.f32.gmra.mxu0 %v3531
      %v3533 = vpop.f32.mrf.mxu0
      %v3534 = vadd.f32 %v3485, %v3533
      %v3535 = vand.u32 %v3106, 4294901760
      %3536 = vmatmul.f32.gmra.mxu0 %v3535
      %v3537 = vpop.f32.mrf.mxu0
      %v3538 = vadd.f32 %v3489, %v3537
      %v3539 = vand.u32 %v3108, 4294901760
      %3540 = vmatmul.f32.gmra.mxu0 %v3539
      %v3541 = vpop.f32.mrf.mxu0
      %v3542 = vadd.f32 %v3493, %v3541
      %3543 = vdwg.mxu0
      %v3544 = vand.u32 %v2277, 4294901760
      %3545 = vmatpush.msra.mxu0 %v3544
      %v3546 = vand.u32 %v2276, 4294901760
      %3547 = vmatpush.msra.mxu0 %v3546
      %v3548 = vand.u32 %v2275, 4294901760
      %3549 = vmatpush.msra.mxu0 %v3548
      %v3550 = vand.u32 %v2274, 4294901760
      %3551 = vmatpush.msra.mxu0 %v3550
      %v3552 = vand.u32 %v2273, 4294901760
      %3553 = vmatpush.msra.mxu0 %v3552
      %v3554 = vand.u32 %v2272, 4294901760
      %3555 = vmatpush.msra.mxu0 %v3554
      %v3556 = vand.u32 %v2271, 4294901760
      %3557 = vmatpush.msra.mxu0 %v3556
      %v3558 = vand.u32 %v2270, 4294901760
      %3559 = vmatpush.msra.mxu0 %v3558
      %v3560 = vand.u32 %v2269, 4294901760
      %3561 = vmatpush.msra.mxu0 %v3560
      %v3562 = vand.u32 %v2268, 4294901760
      %3563 = vmatpush.msra.mxu0 %v3562
      %v3564 = vand.u32 %v2267, 4294901760
      %3565 = vmatpush.msra.mxu0 %v3564
      %v3566 = vand.u32 %v2266, 4294901760
      %3567 = vmatpush.msra.mxu0 %v3566
      %v3568 = vand.u32 %v2265, 4294901760
      %3569 = vmatpush.msra.mxu0 %v3568
      %v3570 = vand.u32 %v2264, 4294901760
      %3571 = vmatpush.msra.mxu0 %v3570
      %v3572 = vand.u32 %v2263, 4294901760
      %3573 = vmatpush.msra.mxu0 %v3572
      %v3574 = vand.u32 %v2262, 4294901760
      %3575 = vmatpush.msra.mxu0 %v3574
      %v3576 = vand.u32 %v3103, 4294901760
      %v3577 = vsub.f32 %v3103, %v3576
      %v3578 = vand.u32 %v3577, 4294901760
      %v3579 = vsub.f32 %v3577, %v3578
      %v3580 = vand.u32 %v3579, 4294901760
      %3581 = vmatmul.f32.gmra.mxu0 %v3580
      %v3582 = vpop.f32.mrf.mxu0
      %v3583 = vadd.f32 %v3530, %v3582
      %v3584 = vand.u32 %v3105, 4294901760
      %v3585 = vsub.f32 %v3105, %v3584
      %v3586 = vand.u32 %v3585, 4294901760
      %v3587 = vsub.f32 %v3585, %v3586
      %v3588 = vand.u32 %v3587, 4294901760
      %3589 = vmatmul.f32.gmra.mxu0 %v3588
      %v3590 = vpop.f32.mrf.mxu0
      %v3591 = vadd.f32 %v3534, %v3590
      %v3592 = vand.u32 %v3107, 4294901760
      %v3593 = vsub.f32 %v3107, %v3592
      %v3594 = vand.u32 %v3593, 4294901760
      %v3595 = vsub.f32 %v3593, %v3594
      %v3596 = vand.u32 %v3595, 4294901760
      %3597 = vmatmul.f32.gmra.mxu0 %v3596
      %v3598 = vpop.f32.mrf.mxu0
      %v3599 = vadd.f32 %v3538, %v3598
      %v3600 = vand.u32 %v3109, 4294901760
      %v3601 = vsub.f32 %v3109, %v3600
      %v3602 = vand.u32 %v3601, 4294901760
      %v3603 = vsub.f32 %v3601, %v3602
      %v3604 = vand.u32 %v3603, 4294901760
      %3605 = vmatmul.f32.gmra.mxu0 %v3604
      %v3606 = vpop.f32.mrf.mxu0
      %v3607 = vadd.f32 %v3542, %v3606
      %3608 = vdwg.mxu0
      %v3609 = vand.u32 %v2277, 4294901760
      %v3610 = vsub.f32 %v2277, %v3609
      %v3611 = vand.u32 %v3610, 4294901760
      %v3612 = vsub.f32 %v3610, %v3611
      %v3613 = vand.u32 %v3612, 4294901760
      %3614 = vmatpush.msra.mxu0 %v3613
      %v3615 = vand.u32 %v2276, 4294901760
      %v3616 = vsub.f32 %v2276, %v3615
      %v3617 = vand.u32 %v3616, 4294901760
      %v3618 = vsub.f32 %v3616, %v3617
      %v3619 = vand.u32 %v3618, 4294901760
      %3620 = vmatpush.msra.mxu0 %v3619
      %v3621 = vand.u32 %v2275, 4294901760
      %v3622 = vsub.f32 %v2275, %v3621
      %v3623 = vand.u32 %v3622, 4294901760
      %v3624 = vsub.f32 %v3622, %v3623
      %v3625 = vand.u32 %v3624, 4294901760
      %3626 = vmatpush.msra.mxu0 %v3625
      %v3627 = vand.u32 %v2274, 4294901760
      %v3628 = vsub.f32 %v2274, %v3627
      %v3629 = vand.u32 %v3628, 4294901760
      %v3630 = vsub.f32 %v3628, %v3629
      %v3631 = vand.u32 %v3630, 4294901760
      %3632 = vmatpush.msra.mxu0 %v3631
      %v3633 = vand.u32 %v2273, 4294901760
      %v3634 = vsub.f32 %v2273, %v3633
      %v3635 = vand.u32 %v3634, 4294901760
      %v3636 = vsub.f32 %v3634, %v3635
      %v3637 = vand.u32 %v3636, 4294901760
      %3638 = vmatpush.msra.mxu0 %v3637
      %v3639 = vand.u32 %v2272, 4294901760
      %v3640 = vsub.f32 %v2272, %v3639
      %v3641 = vand.u32 %v3640, 4294901760
      %v3642 = vsub.f32 %v3640, %v3641
      %v3643 = vand.u32 %v3642, 4294901760
      %3644 = vmatpush.msra.mxu0 %v3643
      %v3645 = vand.u32 %v2271, 4294901760
      %v3646 = vsub.f32 %v2271, %v3645
      %v3647 = vand.u32 %v3646, 4294901760
      %v3648 = vsub.f32 %v3646, %v3647
      %v3649 = vand.u32 %v3648, 4294901760
      %3650 = vmatpush.msra.mxu0 %v3649
      %v3651 = vand.u32 %v2270, 4294901760
      %v3652 = vsub.f32 %v2270, %v3651
      %v3653 = vand.u32 %v3652, 4294901760
      %v3654 = vsub.f32 %v3652, %v3653
      %v3655 = vand.u32 %v3654, 4294901760
      %3656 = vmatpush.msra.mxu0 %v3655
      %v3657 = vand.u32 %v2269, 4294901760
      %v3658 = vsub.f32 %v2269, %v3657
      %v3659 = vand.u32 %v3658, 4294901760
      %v3660 = vsub.f32 %v3658, %v3659
      %v3661 = vand.u32 %v3660, 4294901760
      %3662 = vmatpush.msra.mxu0 %v3661
      %v3663 = vand.u32 %v2268, 4294901760
      %v3664 = vsub.f32 %v2268, %v3663
      %v3665 = vand.u32 %v3664, 4294901760
      %v3666 = vsub.f32 %v3664, %v3665
      %v3667 = vand.u32 %v3666, 4294901760
      %3668 = vmatpush.msra.mxu0 %v3667
      %v3669 = vand.u32 %v2267, 4294901760
      %v3670 = vsub.f32 %v2267, %v3669
      %v3671 = vand.u32 %v3670, 4294901760
      %v3672 = vsub.f32 %v3670, %v3671
      %v3673 = vand.u32 %v3672, 4294901760
      %3674 = vmatpush.msra.mxu0 %v3673
      %v3675 = vand.u32 %v2266, 4294901760
      %v3676 = vsub.f32 %v2266, %v3675
      %v3677 = vand.u32 %v3676, 4294901760
      %v3678 = vsub.f32 %v3676, %v3677
      %v3679 = vand.u32 %v3678, 4294901760
      %3680 = vmatpush.msra.mxu0 %v3679
      %v3681 = vand.u32 %v2265, 4294901760
      %v3682 = vsub.f32 %v2265, %v3681
      %v3683 = vand.u32 %v3682, 4294901760
      %v3684 = vsub.f32 %v3682, %v3683
      %v3685 = vand.u32 %v3684, 4294901760
      %3686 = vmatpush.msra.mxu0 %v3685
      %v3687 = vand.u32 %v2264, 4294901760
      %v3688 = vsub.f32 %v2264, %v3687
      %v3689 = vand.u32 %v3688, 4294901760
      %v3690 = vsub.f32 %v3688, %v3689
      %v3691 = vand.u32 %v3690, 4294901760
      %3692 = vmatpush.msra.mxu0 %v3691
      %v3693 = vand.u32 %v2263, 4294901760
      %v3694 = vsub.f32 %v2263, %v3693
      %v3695 = vand.u32 %v3694, 4294901760
      %v3696 = vsub.f32 %v3694, %v3695
      %v3697 = vand.u32 %v3696, 4294901760
      %3698 = vmatpush.msra.mxu0 %v3697
      %v3699 = vand.u32 %v2262, 4294901760
      %v3700 = vsub.f32 %v2262, %v3699
      %v3701 = vand.u32 %v3700, 4294901760
      %v3702 = vsub.f32 %v3700, %v3701
      %v3703 = vand.u32 %v3702, 4294901760
      %3704 = vmatpush.msra.mxu0 %v3703
      %v3705 = vand.u32 %v3103, 4294901760
      %3706 = vmatmul.f32.gmra.mxu0 %v3705
      %v3707 = vpop.f32.mrf.mxu0
      %v3708 = vadd.f32 %v3583, %v3707
      %v3709 = vand.u32 %v3105, 4294901760
      %3710 = vmatmul.f32.gmra.mxu0 %v3709
      %v3711 = vpop.f32.mrf.mxu0
      %v3712 = vadd.f32 %v3591, %v3711
      %v3713 = vand.u32 %v3107, 4294901760
      %3714 = vmatmul.f32.gmra.mxu0 %v3713
      %v3715 = vpop.f32.mrf.mxu0
      %v3716 = vadd.f32 %v3599, %v3715
      %v3717 = vand.u32 %v3109, 4294901760
      %3718 = vmatmul.f32.gmra.mxu0 %v3717
      %v3719 = vpop.f32.mrf.mxu0
      %v3720 = vadd.f32 %v3607, %v3719
      %3721 = vdwg.mxu0
      %v3722 = vand.u32 %v2277, 4294901760
      %v3723 = vsub.f32 %v2277, %v3722
      %3724 = vmatpush.msra.mxu0 %v3723
      %v3725 = vand.u32 %v2276, 4294901760
      %v3726 = vsub.f32 %v2276, %v3725
      %3727 = vmatpush.msra.mxu0 %v3726
      %v3728 = vand.u32 %v2275, 4294901760
      %v3729 = vsub.f32 %v2275, %v3728
      %3730 = vmatpush.msra.mxu0 %v3729
      %v3731 = vand.u32 %v2274, 4294901760
      %v3732 = vsub.f32 %v2274, %v3731
      %3733 = vmatpush.msra.mxu0 %v3732
      %v3734 = vand.u32 %v2273, 4294901760
      %v3735 = vsub.f32 %v2273, %v3734
      %3736 = vmatpush.msra.mxu0 %v3735
      %v3737 = vand.u32 %v2272, 4294901760
      %v3738 = vsub.f32 %v2272, %v3737
      %3739 = vmatpush.msra.mxu0 %v3738
      %v3740 = vand.u32 %v2271, 4294901760
      %v3741 = vsub.f32 %v2271, %v3740
      %3742 = vmatpush.msra.mxu0 %v3741
      %v3743 = vand.u32 %v2270, 4294901760
      %v3744 = vsub.f32 %v2270, %v3743
      %3745 = vmatpush.msra.mxu0 %v3744
      %v3746 = vand.u32 %v2269, 4294901760
      %v3747 = vsub.f32 %v2269, %v3746
      %3748 = vmatpush.msra.mxu0 %v3747
      %v3749 = vand.u32 %v2268, 4294901760
      %v3750 = vsub.f32 %v2268, %v3749
      %3751 = vmatpush.msra.mxu0 %v3750
      %v3752 = vand.u32 %v2267, 4294901760
      %v3753 = vsub.f32 %v2267, %v3752
      %3754 = vmatpush.msra.mxu0 %v3753
      %v3755 = vand.u32 %v2266, 4294901760
      %v3756 = vsub.f32 %v2266, %v3755
      %3757 = vmatpush.msra.mxu0 %v3756
      %v3758 = vand.u32 %v2265, 4294901760
      %v3759 = vsub.f32 %v2265, %v3758
      %3760 = vmatpush.msra.mxu0 %v3759
      %v3761 = vand.u32 %v2264, 4294901760
      %v3762 = vsub.f32 %v2264, %v3761
      %3763 = vmatpush.msra.mxu0 %v3762
      %v3764 = vand.u32 %v2263, 4294901760
      %v3765 = vsub.f32 %v2263, %v3764
      %3766 = vmatpush.msra.mxu0 %v3765
      %v3767 = vand.u32 %v2262, 4294901760
      %v3768 = vsub.f32 %v2262, %v3767
      %3769 = vmatpush.msra.mxu0 %v3768
      %v3770 = vand.u32 %v3103, 4294901760
      %v3771 = vsub.f32 %v3103, %v3770
      %3772 = vmatmul.f32.gmra.mxu0 %v3771
      %v3773 = vpop.f32.mrf.mxu0
      %v3774 = vadd.f32 %v3708, %v3773
      %v3775 = vand.u32 %v3105, 4294901760
      %v3776 = vsub.f32 %v3105, %v3775
      %3777 = vmatmul.f32.gmra.mxu0 %v3776
      %v3778 = vpop.f32.mrf.mxu0
      %v3779 = vadd.f32 %v3712, %v3778
      %v3780 = vand.u32 %v3107, 4294901760
      %v3781 = vsub.f32 %v3107, %v3780
      %3782 = vmatmul.f32.gmra.mxu0 %v3781
      %v3783 = vpop.f32.mrf.mxu0
      %v3784 = vadd.f32 %v3716, %v3783
      %v3785 = vand.u32 %v3109, 4294901760
      %v3786 = vsub.f32 %v3109, %v3785
      %3787 = vmatmul.f32.gmra.mxu0 %v3786
      %v3788 = vpop.f32.mrf.mxu0
      %v3789 = vadd.f32 %v3720, %v3788
      %3790 = vdwg.mxu0
      %v3791 = vand.u32 %v2277, 4294901760
      %3792 = vmatpush.msra.mxu0 %v3791
      %v3793 = vand.u32 %v2276, 4294901760
      %3794 = vmatpush.msra.mxu0 %v3793
      %v3795 = vand.u32 %v2275, 4294901760
      %3796 = vmatpush.msra.mxu0 %v3795
      %v3797 = vand.u32 %v2274, 4294901760
      %3798 = vmatpush.msra.mxu0 %v3797
      %v3799 = vand.u32 %v2273, 4294901760
      %3800 = vmatpush.msra.mxu0 %v3799
      %v3801 = vand.u32 %v2272, 4294901760
      %3802 = vmatpush.msra.mxu0 %v3801
      %v3803 = vand.u32 %v2271, 4294901760
      %3804 = vmatpush.msra.mxu0 %v3803
      %v3805 = vand.u32 %v2270, 4294901760
      %3806 = vmatpush.msra.mxu0 %v3805
      %v3807 = vand.u32 %v2269, 4294901760
      %3808 = vmatpush.msra.mxu0 %v3807
      %v3809 = vand.u32 %v2268, 4294901760
      %3810 = vmatpush.msra.mxu0 %v3809
      %v3811 = vand.u32 %v2267, 4294901760
      %3812 = vmatpush.msra.mxu0 %v3811
      %v3813 = vand.u32 %v2266, 4294901760
      %3814 = vmatpush.msra.mxu0 %v3813
      %v3815 = vand.u32 %v2265, 4294901760
      %3816 = vmatpush.msra.mxu0 %v3815
      %v3817 = vand.u32 %v2264, 4294901760
      %3818 = vmatpush.msra.mxu0 %v3817
      %v3819 = vand.u32 %v2263, 4294901760
      %3820 = vmatpush.msra.mxu0 %v3819
      %v3821 = vand.u32 %v2262, 4294901760
      %3822 = vmatpush.msra.mxu0 %v3821
      %v3823 = vand.u32 %v3103, 4294901760
      %v3824 = vsub.f32 %v3103, %v3823
      %v3825 = vand.u32 %v3824, 4294901760
      %3826 = vmatmul.f32.gmra.mxu0 %v3825
      %v3827 = vpop.f32.mrf.mxu0
      %v3828 = vadd.f32 %v3774, %v3827
      %v3829 = vand.u32 %v3105, 4294901760
      %v3830 = vsub.f32 %v3105, %v3829
      %v3831 = vand.u32 %v3830, 4294901760
      %3832 = vmatmul.f32.gmra.mxu0 %v3831
      %v3833 = vpop.f32.mrf.mxu0
      %v3834 = vadd.f32 %v3779, %v3833
      %v3835 = vand.u32 %v3107, 4294901760
      %v3836 = vsub.f32 %v3107, %v3835
      %v3837 = vand.u32 %v3836, 4294901760
      %3838 = vmatmul.f32.gmra.mxu0 %v3837
      %v3839 = vpop.f32.mrf.mxu0
      %v3840 = vadd.f32 %v3784, %v3839
      %v3841 = vand.u32 %v3109, 4294901760
      %v3842 = vsub.f32 %v3109, %v3841
      %v3843 = vand.u32 %v3842, 4294901760
      %3844 = vmatmul.f32.gmra.mxu0 %v3843
      %v3845 = vpop.f32.mrf.mxu0
      %v3846 = vadd.f32 %v3789, %v3845
      %3847 = vdwg.mxu0
      %v3848 = vand.u32 %v2277, 4294901760
      %v3849 = vsub.f32 %v2277, %v3848
      %v3850 = vand.u32 %v3849, 4294901760
      %3851 = vmatpush.msra.mxu0 %v3850
      %v3852 = vand.u32 %v2276, 4294901760
      %v3853 = vsub.f32 %v2276, %v3852
      %v3854 = vand.u32 %v3853, 4294901760
      %3855 = vmatpush.msra.mxu0 %v3854
      %v3856 = vand.u32 %v2275, 4294901760
      %v3857 = vsub.f32 %v2275, %v3856
      %v3858 = vand.u32 %v3857, 4294901760
      %3859 = vmatpush.msra.mxu0 %v3858
      %v3860 = vand.u32 %v2274, 4294901760
      %v3861 = vsub.f32 %v2274, %v3860
      %v3862 = vand.u32 %v3861, 4294901760
      %3863 = vmatpush.msra.mxu0 %v3862
      %v3864 = vand.u32 %v2273, 4294901760
      %v3865 = vsub.f32 %v2273, %v3864
      %v3866 = vand.u32 %v3865, 4294901760
      %3867 = vmatpush.msra.mxu0 %v3866
      %v3868 = vand.u32 %v2272, 4294901760
      %v3869 = vsub.f32 %v2272, %v3868
      %v3870 = vand.u32 %v3869, 4294901760
      %3871 = vmatpush.msra.mxu0 %v3870
      %v3872 = vand.u32 %v2271, 4294901760
      %v3873 = vsub.f32 %v2271, %v3872
      %v3874 = vand.u32 %v3873, 4294901760
      %3875 = vmatpush.msra.mxu0 %v3874
      %v3876 = vand.u32 %v2270, 4294901760
      %v3877 = vsub.f32 %v2270, %v3876
      %v3878 = vand.u32 %v3877, 4294901760
      %3879 = vmatpush.msra.mxu0 %v3878
      %v3880 = vand.u32 %v2269, 4294901760
      %v3881 = vsub.f32 %v2269, %v3880
      %v3882 = vand.u32 %v3881, 4294901760
      %3883 = vmatpush.msra.mxu0 %v3882
      %v3884 = vand.u32 %v2268, 4294901760
      %v3885 = vsub.f32 %v2268, %v3884
      %v3886 = vand.u32 %v3885, 4294901760
      %3887 = vmatpush.msra.mxu0 %v3886
      %v3888 = vand.u32 %v2267, 4294901760
      %v3889 = vsub.f32 %v2267, %v3888
      %v3890 = vand.u32 %v3889, 4294901760
      %3891 = vmatpush.msra.mxu0 %v3890
      %v3892 = vand.u32 %v2266, 4294901760
      %v3893 = vsub.f32 %v2266, %v3892
      %v3894 = vand.u32 %v3893, 4294901760
      %3895 = vmatpush.msra.mxu0 %v3894
      %v3896 = vand.u32 %v2265, 4294901760
      %v3897 = vsub.f32 %v2265, %v3896
      %v3898 = vand.u32 %v3897, 4294901760
      %3899 = vmatpush.msra.mxu0 %v3898
      %v3900 = vand.u32 %v2264, 4294901760
      %v3901 = vsub.f32 %v2264, %v3900
      %v3902 = vand.u32 %v3901, 4294901760
      %3903 = vmatpush.msra.mxu0 %v3902
      %v3904 = vand.u32 %v2263, 4294901760
      %v3905 = vsub.f32 %v2263, %v3904
      %v3906 = vand.u32 %v3905, 4294901760
      %3907 = vmatpush.msra.mxu0 %v3906
      %v3908 = vand.u32 %v2262, 4294901760
      %v3909 = vsub.f32 %v2262, %v3908
      %v3910 = vand.u32 %v3909, 4294901760
      %3911 = vmatpush.msra.mxu0 %v3910
      %v3912 = vand.u32 %v3103, 4294901760
      %3913 = vmatmul.f32.gmra.mxu0 %v3912
      %v3914 = vpop.f32.mrf.mxu0
      %v3915 = vadd.f32 %v3828, %v3914
      %v3916 = vand.u32 %v3105, 4294901760
      %3917 = vmatmul.f32.gmra.mxu0 %v3916
      %v3918 = vpop.f32.mrf.mxu0
      %v3919 = vadd.f32 %v3834, %v3918
      %v3920 = vand.u32 %v3107, 4294901760
      %3921 = vmatmul.f32.gmra.mxu0 %v3920
      %v3922 = vpop.f32.mrf.mxu0
      %v3923 = vadd.f32 %v3840, %v3922
      %v3924 = vand.u32 %v3109, 4294901760
      %3925 = vmatmul.f32.gmra.mxu0 %v3924
      %v3926 = vpop.f32.mrf.mxu0
      %v3927 = vadd.f32 %v3846, %v3926
      %3928 = vdwg.mxu0
      %v3929 = vand.u32 %v2277, 4294901760
      %3930 = vmatpush.msra.mxu0 %v3929
      %v3931 = vand.u32 %v2276, 4294901760
      %3932 = vmatpush.msra.mxu0 %v3931
      %v3933 = vand.u32 %v2275, 4294901760
      %3934 = vmatpush.msra.mxu0 %v3933
      %v3935 = vand.u32 %v2274, 4294901760
      %3936 = vmatpush.msra.mxu0 %v3935
      %v3937 = vand.u32 %v2273, 4294901760
      %3938 = vmatpush.msra.mxu0 %v3937
      %v3939 = vand.u32 %v2272, 4294901760
      %3940 = vmatpush.msra.mxu0 %v3939
      %v3941 = vand.u32 %v2271, 4294901760
      %3942 = vmatpush.msra.mxu0 %v3941
      %v3943 = vand.u32 %v2270, 4294901760
      %3944 = vmatpush.msra.mxu0 %v3943
      %v3945 = vand.u32 %v2269, 4294901760
      %3946 = vmatpush.msra.mxu0 %v3945
      %v3947 = vand.u32 %v2268, 4294901760
      %3948 = vmatpush.msra.mxu0 %v3947
      %v3949 = vand.u32 %v2267, 4294901760
      %3950 = vmatpush.msra.mxu0 %v3949
      %v3951 = vand.u32 %v2266, 4294901760
      %3952 = vmatpush.msra.mxu0 %v3951
      %v3953 = vand.u32 %v2265, 4294901760
      %3954 = vmatpush.msra.mxu0 %v3953
      %v3955 = vand.u32 %v2264, 4294901760
      %3956 = vmatpush.msra.mxu0 %v3955
      %v3957 = vand.u32 %v2263, 4294901760
      %3958 = vmatpush.msra.mxu0 %v3957
      %v3959 = vand.u32 %v2262, 4294901760
      %3960 = vmatpush.msra.mxu0 %v3959
      %v3961 = vand.u32 %v3103, 4294901760
      %3962 = vmatmul.f32.gmra.mxu0 %v3961
      %v3963 = vpop.f32.mrf.mxu0
      %v3964 = vadd.f32 %v3915, %v3963
      %v3965 = vand.u32 %v3105, 4294901760
      %3966 = vmatmul.f32.gmra.mxu0 %v3965
      %v3967 = vpop.f32.mrf.mxu0
      %v3968 = vadd.f32 %v3919, %v3967
      %v3969 = vand.u32 %v3107, 4294901760
      %3970 = vmatmul.f32.gmra.mxu0 %v3969
      %v3971 = vpop.f32.mrf.mxu0
      %v3972 = vadd.f32 %v3923, %v3971
      %v3973 = vand.u32 %v3109, 4294901760
      %3974 = vmatmul.f32.gmra.mxu0 %v3973
      %v3975 = vpop.f32.mrf.mxu0
      %v3976 = vadd.f32 %v3927, %v3975
      %3977 = vdwg.mxu0
      %v3978 = vand.u32 %v1265, 4294901760
      %3979 = vmatpush.msra.mxu0 %v3978
      %v3980 = vand.u32 %v1264, 4294901760
      %3981 = vmatpush.msra.mxu0 %v3980
      %v3982 = vand.u32 %v1263, 4294901760
      %3983 = vmatpush.msra.mxu0 %v3982
      %v3984 = vand.u32 %v1262, 4294901760
      %3985 = vmatpush.msra.mxu0 %v3984
      %v3986 = vand.u32 %v1261, 4294901760
      %3987 = vmatpush.msra.mxu0 %v3986
      %v3988 = vand.u32 %v1260, 4294901760
      %3989 = vmatpush.msra.mxu0 %v3988
      %v3990 = vand.u32 %v1259, 4294901760
      %3991 = vmatpush.msra.mxu0 %v3990
      %v3992 = vand.u32 %v1258, 4294901760
      %3993 = vmatpush.msra.mxu0 %v3992
      %v3994 = vand.u32 %v1257, 4294901760
      %3995 = vmatpush.msra.mxu0 %v3994
      %v3996 = vand.u32 %v1256, 4294901760
      %3997 = vmatpush.msra.mxu0 %v3996
      %v3998 = vand.u32 %v1255, 4294901760
      %3999 = vmatpush.msra.mxu0 %v3998
      %v4000 = vand.u32 %v1254, 4294901760
      %4001 = vmatpush.msra.mxu0 %v4000
      %v4002 = vand.u32 %v1253, 4294901760
      %4003 = vmatpush.msra.mxu0 %v4002
      %v4004 = vand.u32 %v1252, 4294901760
      %4005 = vmatpush.msra.mxu0 %v4004
      %v4006 = vand.u32 %v1251, 4294901760
      %4007 = vmatpush.msra.mxu0 %v4006
      %v4008 = vand.u32 %v1250, 4294901760
      %4009 = vmatpush.msra.mxu0 %v4008
      %v4010 = vand.u32 %v2108, 4294901760
      %v4011 = vsub.f32 %v2108, %v4010
      %v4012 = vand.u32 %v4011, 4294901760
      %v4013 = vsub.f32 %v4011, %v4012
      %v4014 = vand.u32 %v4013, 4294901760
      %4015 = vmatmul.f32.gmra.mxu0 %v4014
      %v4016 = vpop.f32.mrf.mxu0
      %v4017 = vadd.f32 %v3964, %v4016
      %v4018 = vand.u32 %v2110, 4294901760
      %v4019 = vsub.f32 %v2110, %v4018
      %v4020 = vand.u32 %v4019, 4294901760
      %v4021 = vsub.f32 %v4019, %v4020
      %v4022 = vand.u32 %v4021, 4294901760
      %4023 = vmatmul.f32.gmra.mxu0 %v4022
      %v4024 = vpop.f32.mrf.mxu0
      %v4025 = vadd.f32 %v3968, %v4024
      %v4026 = vand.u32 %v2112, 4294901760
      %v4027 = vsub.f32 %v2112, %v4026
      %v4028 = vand.u32 %v4027, 4294901760
      %v4029 = vsub.f32 %v4027, %v4028
      %v4030 = vand.u32 %v4029, 4294901760
      %4031 = vmatmul.f32.gmra.mxu0 %v4030
      %v4032 = vpop.f32.mrf.mxu0
      %v4033 = vadd.f32 %v3972, %v4032
      %v4034 = vand.u32 %v2114, 4294901760
      %v4035 = vsub.f32 %v2114, %v4034
      %v4036 = vand.u32 %v4035, 4294901760
      %v4037 = vsub.f32 %v4035, %v4036
      %v4038 = vand.u32 %v4037, 4294901760
      %4039 = vmatmul.f32.gmra.mxu0 %v4038
      %v4040 = vpop.f32.mrf.mxu0
      %v4041 = vadd.f32 %v3976, %v4040
      %4042 = vdwg.mxu0
      %v4043 = vand.u32 %v1265, 4294901760
      %v4044 = vsub.f32 %v1265, %v4043
      %v4045 = vand.u32 %v4044, 4294901760
      %v4046 = vsub.f32 %v4044, %v4045
      %v4047 = vand.u32 %v4046, 4294901760
      %4048 = vmatpush.msra.mxu0 %v4047
      %v4049 = vand.u32 %v1264, 4294901760
      %v4050 = vsub.f32 %v1264, %v4049
      %v4051 = vand.u32 %v4050, 4294901760
      %v4052 = vsub.f32 %v4050, %v4051
      %v4053 = vand.u32 %v4052, 4294901760
      %4054 = vmatpush.msra.mxu0 %v4053
      %v4055 = vand.u32 %v1263, 4294901760
      %v4056 = vsub.f32 %v1263, %v4055
      %v4057 = vand.u32 %v4056, 4294901760
      %v4058 = vsub.f32 %v4056, %v4057
      %v4059 = vand.u32 %v4058, 4294901760
      %4060 = vmatpush.msra.mxu0 %v4059
      %v4061 = vand.u32 %v1262, 4294901760
      %v4062 = vsub.f32 %v1262, %v4061
      %v4063 = vand.u32 %v4062, 4294901760
      %v4064 = vsub.f32 %v4062, %v4063
      %v4065 = vand.u32 %v4064, 4294901760
      %4066 = vmatpush.msra.mxu0 %v4065
      %v4067 = vand.u32 %v1261, 4294901760
      %v4068 = vsub.f32 %v1261, %v4067
      %v4069 = vand.u32 %v4068, 4294901760
      %v4070 = vsub.f32 %v4068, %v4069
      %v4071 = vand.u32 %v4070, 4294901760
      %4072 = vmatpush.msra.mxu0 %v4071
      %v4073 = vand.u32 %v1260, 4294901760
      %v4074 = vsub.f32 %v1260, %v4073
      %v4075 = vand.u32 %v4074, 4294901760
      %v4076 = vsub.f32 %v4074, %v4075
      %v4077 = vand.u32 %v4076, 4294901760
      %4078 = vmatpush.msra.mxu0 %v4077
      %v4079 = vand.u32 %v1259, 4294901760
      %v4080 = vsub.f32 %v1259, %v4079
      %v4081 = vand.u32 %v4080, 4294901760
      %v4082 = vsub.f32 %v4080, %v4081
      %v4083 = vand.u32 %v4082, 4294901760
      %4084 = vmatpush.msra.mxu0 %v4083
      %v4085 = vand.u32 %v1258, 4294901760
      %v4086 = vsub.f32 %v1258, %v4085
      %v4087 = vand.u32 %v4086, 4294901760
      %v4088 = vsub.f32 %v4086, %v4087
      %v4089 = vand.u32 %v4088, 4294901760
      %4090 = vmatpush.msra.mxu0 %v4089
      %v4091 = vand.u32 %v1257, 4294901760
      %v4092 = vsub.f32 %v1257, %v4091
      %v4093 = vand.u32 %v4092, 4294901760
      %v4094 = vsub.f32 %v4092, %v4093
      %v4095 = vand.u32 %v4094, 4294901760
      %4096 = vmatpush.msra.mxu0 %v4095
      %v4097 = vand.u32 %v1256, 4294901760
      %v4098 = vsub.f32 %v1256, %v4097
      %v4099 = vand.u32 %v4098, 4294901760
      %v4100 = vsub.f32 %v4098, %v4099
      %v4101 = vand.u32 %v4100, 4294901760
      %4102 = vmatpush.msra.mxu0 %v4101
      %v4103 = vand.u32 %v1255, 4294901760
      %v4104 = vsub.f32 %v1255, %v4103
      %v4105 = vand.u32 %v4104, 4294901760
      %v4106 = vsub.f32 %v4104, %v4105
      %v4107 = vand.u32 %v4106, 4294901760
      %4108 = vmatpush.msra.mxu0 %v4107
      %v4109 = vand.u32 %v1254, 4294901760
      %v4110 = vsub.f32 %v1254, %v4109
      %v4111 = vand.u32 %v4110, 4294901760
      %v4112 = vsub.f32 %v4110, %v4111
      %v4113 = vand.u32 %v4112, 4294901760
      %4114 = vmatpush.msra.mxu0 %v4113
      %v4115 = vand.u32 %v1253, 4294901760
      %v4116 = vsub.f32 %v1253, %v4115
      %v4117 = vand.u32 %v4116, 4294901760
      %v4118 = vsub.f32 %v4116, %v4117
      %v4119 = vand.u32 %v4118, 4294901760
      %4120 = vmatpush.msra.mxu0 %v4119
      %v4121 = vand.u32 %v1252, 4294901760
      %v4122 = vsub.f32 %v1252, %v4121
      %v4123 = vand.u32 %v4122, 4294901760
      %v4124 = vsub.f32 %v4122, %v4123
      %v4125 = vand.u32 %v4124, 4294901760
      %4126 = vmatpush.msra.mxu0 %v4125
      %v4127 = vand.u32 %v1251, 4294901760
      %v4128 = vsub.f32 %v1251, %v4127
      %v4129 = vand.u32 %v4128, 4294901760
      %v4130 = vsub.f32 %v4128, %v4129
      %v4131 = vand.u32 %v4130, 4294901760
      %4132 = vmatpush.msra.mxu0 %v4131
      %v4133 = vand.u32 %v1250, 4294901760
      %v4134 = vsub.f32 %v1250, %v4133
      %v4135 = vand.u32 %v4134, 4294901760
      %v4136 = vsub.f32 %v4134, %v4135
      %v4137 = vand.u32 %v4136, 4294901760
      %4138 = vmatpush.msra.mxu0 %v4137
      %v4139 = vand.u32 %v2108, 4294901760
      %4140 = vmatmul.f32.gmra.mxu0 %v4139
      %v4141 = vpop.f32.mrf.mxu0
      %v4142 = vadd.f32 %v4017, %v4141
      %v4143 = vand.u32 %v2110, 4294901760
      %4144 = vmatmul.f32.gmra.mxu0 %v4143
      %v4145 = vpop.f32.mrf.mxu0
      %v4146 = vadd.f32 %v4025, %v4145
      %v4147 = vand.u32 %v2112, 4294901760
      %4148 = vmatmul.f32.gmra.mxu0 %v4147
      %v4149 = vpop.f32.mrf.mxu0
      %v4150 = vadd.f32 %v4033, %v4149
      %v4151 = vand.u32 %v2114, 4294901760
      %4152 = vmatmul.f32.gmra.mxu0 %v4151
      %v4153 = vpop.f32.mrf.mxu0
      %v4154 = vadd.f32 %v4041, %v4153
      %4155 = vdwg.mxu0
      %v4156 = vand.u32 %v1265, 4294901760
      %v4157 = vsub.f32 %v1265, %v4156
      %4158 = vmatpush.msra.mxu0 %v4157
      %v4159 = vand.u32 %v1264, 4294901760
      %v4160 = vsub.f32 %v1264, %v4159
      %4161 = vmatpush.msra.mxu0 %v4160
      %v4162 = vand.u32 %v1263, 4294901760
      %v4163 = vsub.f32 %v1263, %v4162
      %4164 = vmatpush.msra.mxu0 %v4163
      %v4165 = vand.u32 %v1262, 4294901760
      %v4166 = vsub.f32 %v1262, %v4165
      %4167 = vmatpush.msra.mxu0 %v4166
      %v4168 = vand.u32 %v1261, 4294901760
      %v4169 = vsub.f32 %v1261, %v4168
      %4170 = vmatpush.msra.mxu0 %v4169
      %v4171 = vand.u32 %v1260, 4294901760
      %v4172 = vsub.f32 %v1260, %v4171
      %4173 = vmatpush.msra.mxu0 %v4172
      %v4174 = vand.u32 %v1259, 4294901760
      %v4175 = vsub.f32 %v1259, %v4174
      %4176 = vmatpush.msra.mxu0 %v4175
      %v4177 = vand.u32 %v1258, 4294901760
      %v4178 = vsub.f32 %v1258, %v4177
      %4179 = vmatpush.msra.mxu0 %v4178
      %v4180 = vand.u32 %v1257, 4294901760
      %v4181 = vsub.f32 %v1257, %v4180
      %4182 = vmatpush.msra.mxu0 %v4181
      %v4183 = vand.u32 %v1256, 4294901760
      %v4184 = vsub.f32 %v1256, %v4183
      %4185 = vmatpush.msra.mxu0 %v4184
      %v4186 = vand.u32 %v1255, 4294901760
      %v4187 = vsub.f32 %v1255, %v4186
      %4188 = vmatpush.msra.mxu0 %v4187
      %v4189 = vand.u32 %v1254, 4294901760
      %v4190 = vsub.f32 %v1254, %v4189
      %4191 = vmatpush.msra.mxu0 %v4190
      %v4192 = vand.u32 %v1253, 4294901760
      %v4193 = vsub.f32 %v1253, %v4192
      %4194 = vmatpush.msra.mxu0 %v4193
      %v4195 = vand.u32 %v1252, 4294901760
      %v4196 = vsub.f32 %v1252, %v4195
      %4197 = vmatpush.msra.mxu0 %v4196
      %v4198 = vand.u32 %v1251, 4294901760
      %v4199 = vsub.f32 %v1251, %v4198
      %4200 = vmatpush.msra.mxu0 %v4199
      %v4201 = vand.u32 %v1250, 4294901760
      %v4202 = vsub.f32 %v1250, %v4201
      %4203 = vmatpush.msra.mxu0 %v4202
      %v4204 = vand.u32 %v2108, 4294901760
      %v4205 = vsub.f32 %v2108, %v4204
      %4206 = vmatmul.f32.gmra.mxu0 %v4205
      %v4207 = vpop.f32.mrf.mxu0
      %v4208 = vadd.f32 %v4142, %v4207
      %v4209 = vand.u32 %v2110, 4294901760
      %v4210 = vsub.f32 %v2110, %v4209
      %4211 = vmatmul.f32.gmra.mxu0 %v4210
      %v4212 = vpop.f32.mrf.mxu0
      %v4213 = vadd.f32 %v4146, %v4212
      %v4214 = vand.u32 %v2112, 4294901760
      %v4215 = vsub.f32 %v2112, %v4214
      %4216 = vmatmul.f32.gmra.mxu0 %v4215
      %v4217 = vpop.f32.mrf.mxu0
      %v4218 = vadd.f32 %v4150, %v4217
      %v4219 = vand.u32 %v2114, 4294901760
      %v4220 = vsub.f32 %v2114, %v4219
      %4221 = vmatmul.f32.gmra.mxu0 %v4220
      %v4222 = vpop.f32.mrf.mxu0
      %v4223 = vadd.f32 %v4154, %v4222
      %4224 = vdwg.mxu0
      %v4225 = vand.u32 %v1265, 4294901760
      %4226 = vmatpush.msra.mxu0 %v4225
      %v4227 = vand.u32 %v1264, 4294901760
      %4228 = vmatpush.msra.mxu0 %v4227
      %v4229 = vand.u32 %v1263, 4294901760
      %4230 = vmatpush.msra.mxu0 %v4229
      %v4231 = vand.u32 %v1262, 4294901760
      %4232 = vmatpush.msra.mxu0 %v4231
      %v4233 = vand.u32 %v1261, 4294901760
      %4234 = vmatpush.msra.mxu0 %v4233
      %v4235 = vand.u32 %v1260, 4294901760
      %4236 = vmatpush.msra.mxu0 %v4235
      %v4237 = vand.u32 %v1259, 4294901760
      %4238 = vmatpush.msra.mxu0 %v4237
      %v4239 = vand.u32 %v1258, 4294901760
      %4240 = vmatpush.msra.mxu0 %v4239
      %v4241 = vand.u32 %v1257, 4294901760
      %4242 = vmatpush.msra.mxu0 %v4241
      %v4243 = vand.u32 %v1256, 4294901760
      %4244 = vmatpush.msra.mxu0 %v4243
      %v4245 = vand.u32 %v1255, 4294901760
      %4246 = vmatpush.msra.mxu0 %v4245
      %v4247 = vand.u32 %v1254, 4294901760
      %4248 = vmatpush.msra.mxu0 %v4247
      %v4249 = vand.u32 %v1253, 4294901760
      %4250 = vmatpush.msra.mxu0 %v4249
      %v4251 = vand.u32 %v1252, 4294901760
      %4252 = vmatpush.msra.mxu0 %v4251
      %v4253 = vand.u32 %v1251, 4294901760
      %4254 = vmatpush.msra.mxu0 %v4253
      %v4255 = vand.u32 %v1250, 4294901760
      %4256 = vmatpush.msra.mxu0 %v4255
      %v4257 = vand.u32 %v2108, 4294901760
      %v4258 = vsub.f32 %v2108, %v4257
      %v4259 = vand.u32 %v4258, 4294901760
      %4260 = vmatmul.f32.gmra.mxu0 %v4259
      %v4261 = vpop.f32.mrf.mxu0
      %v4262 = vadd.f32 %v4208, %v4261
      %v4263 = vand.u32 %v2110, 4294901760
      %v4264 = vsub.f32 %v2110, %v4263
      %v4265 = vand.u32 %v4264, 4294901760
      %4266 = vmatmul.f32.gmra.mxu0 %v4265
      %v4267 = vpop.f32.mrf.mxu0
      %v4268 = vadd.f32 %v4213, %v4267
      %v4269 = vand.u32 %v2112, 4294901760
      %v4270 = vsub.f32 %v2112, %v4269
      %v4271 = vand.u32 %v4270, 4294901760
      %4272 = vmatmul.f32.gmra.mxu0 %v4271
      %v4273 = vpop.f32.mrf.mxu0
      %v4274 = vadd.f32 %v4218, %v4273
      %v4275 = vand.u32 %v2114, 4294901760
      %v4276 = vsub.f32 %v2114, %v4275
      %v4277 = vand.u32 %v4276, 4294901760
      %4278 = vmatmul.f32.gmra.mxu0 %v4277
      %v4279 = vpop.f32.mrf.mxu0
      %v4280 = vadd.f32 %v4223, %v4279
      %4281 = vdwg.mxu0
      %v4282 = vand.u32 %v1265, 4294901760
      %v4283 = vsub.f32 %v1265, %v4282
      %v4284 = vand.u32 %v4283, 4294901760
      %4285 = vmatpush.msra.mxu0 %v4284
      %v4286 = vand.u32 %v1264, 4294901760
      %v4287 = vsub.f32 %v1264, %v4286
      %v4288 = vand.u32 %v4287, 4294901760
      %4289 = vmatpush.msra.mxu0 %v4288
      %v4290 = vand.u32 %v1263, 4294901760
      %v4291 = vsub.f32 %v1263, %v4290
      %v4292 = vand.u32 %v4291, 4294901760
      %4293 = vmatpush.msra.mxu0 %v4292
      %v4294 = vand.u32 %v1262, 4294901760
      %v4295 = vsub.f32 %v1262, %v4294
      %v4296 = vand.u32 %v4295, 4294901760
      %4297 = vmatpush.msra.mxu0 %v4296
      %v4298 = vand.u32 %v1261, 4294901760
      %v4299 = vsub.f32 %v1261, %v4298
      %v4300 = vand.u32 %v4299, 4294901760
      %4301 = vmatpush.msra.mxu0 %v4300
      %v4302 = vand.u32 %v1260, 4294901760
      %v4303 = vsub.f32 %v1260, %v4302
      %v4304 = vand.u32 %v4303, 4294901760
      %4305 = vmatpush.msra.mxu0 %v4304
      %v4306 = vand.u32 %v1259, 4294901760
      %v4307 = vsub.f32 %v1259, %v4306
      %v4308 = vand.u32 %v4307, 4294901760
      %4309 = vmatpush.msra.mxu0 %v4308
      %v4310 = vand.u32 %v1258, 4294901760
      %v4311 = vsub.f32 %v1258, %v4310
      %v4312 = vand.u32 %v4311, 4294901760
      %4313 = vmatpush.msra.mxu0 %v4312
      %v4314 = vand.u32 %v1257, 4294901760
      %v4315 = vsub.f32 %v1257, %v4314
      %v4316 = vand.u32 %v4315, 4294901760
      %4317 = vmatpush.msra.mxu0 %v4316
      %v4318 = vand.u32 %v1256, 4294901760
      %v4319 = vsub.f32 %v1256, %v4318
      %v4320 = vand.u32 %v4319, 4294901760
      %4321 = vmatpush.msra.mxu0 %v4320
      %v4322 = vand.u32 %v1255, 4294901760
      %v4323 = vsub.f32 %v1255, %v4322
      %v4324 = vand.u32 %v4323, 4294901760
      %4325 = vmatpush.msra.mxu0 %v4324
      %v4326 = vand.u32 %v1254, 4294901760
      %v4327 = vsub.f32 %v1254, %v4326
      %v4328 = vand.u32 %v4327, 4294901760
      %4329 = vmatpush.msra.mxu0 %v4328
      %v4330 = vand.u32 %v1253, 4294901760
      %v4331 = vsub.f32 %v1253, %v4330
      %v4332 = vand.u32 %v4331, 4294901760
      %4333 = vmatpush.msra.mxu0 %v4332
      %v4334 = vand.u32 %v1252, 4294901760
      %v4335 = vsub.f32 %v1252, %v4334
      %v4336 = vand.u32 %v4335, 4294901760
      %4337 = vmatpush.msra.mxu0 %v4336
      %v4338 = vand.u32 %v1251, 4294901760
      %v4339 = vsub.f32 %v1251, %v4338
      %v4340 = vand.u32 %v4339, 4294901760
      %4341 = vmatpush.msra.mxu0 %v4340
      %v4342 = vand.u32 %v1250, 4294901760
      %v4343 = vsub.f32 %v1250, %v4342
      %v4344 = vand.u32 %v4343, 4294901760
      %4345 = vmatpush.msra.mxu0 %v4344
      %v4346 = vand.u32 %v2108, 4294901760
      %4347 = vmatmul.f32.gmra.mxu0 %v4346
      %v4348 = vpop.f32.mrf.mxu0
      %v4349 = vadd.f32 %v4262, %v4348
      %v4350 = vand.u32 %v2110, 4294901760
      %4351 = vmatmul.f32.gmra.mxu0 %v4350
      %v4352 = vpop.f32.mrf.mxu0
      %v4353 = vadd.f32 %v4268, %v4352
      %v4354 = vand.u32 %v2112, 4294901760
      %4355 = vmatmul.f32.gmra.mxu0 %v4354
      %v4356 = vpop.f32.mrf.mxu0
      %v4357 = vadd.f32 %v4274, %v4356
      %v4358 = vand.u32 %v2114, 4294901760
      %4359 = vmatmul.f32.gmra.mxu0 %v4358
      %v4360 = vpop.f32.mrf.mxu0
      %v4361 = vadd.f32 %v4280, %v4360
      %4362 = vdwg.mxu0
      %v4363 = vand.u32 %v1265, 4294901760
      %4364 = vmatpush.msra.mxu0 %v4363
      %v4365 = vand.u32 %v1264, 4294901760
      %4366 = vmatpush.msra.mxu0 %v4365
      %v4367 = vand.u32 %v1263, 4294901760
      %4368 = vmatpush.msra.mxu0 %v4367
      %v4369 = vand.u32 %v1262, 4294901760
      %4370 = vmatpush.msra.mxu0 %v4369
      %v4371 = vand.u32 %v1261, 4294901760
      %4372 = vmatpush.msra.mxu0 %v4371
      %v4373 = vand.u32 %v1260, 4294901760
      %4374 = vmatpush.msra.mxu0 %v4373
      %v4375 = vand.u32 %v1259, 4294901760
      %4376 = vmatpush.msra.mxu0 %v4375
      %v4377 = vand.u32 %v1258, 4294901760
      %4378 = vmatpush.msra.mxu0 %v4377
      %v4379 = vand.u32 %v1257, 4294901760
      %4380 = vmatpush.msra.mxu0 %v4379
      %v4381 = vand.u32 %v1256, 4294901760
      %4382 = vmatpush.msra.mxu0 %v4381
      %v4383 = vand.u32 %v1255, 4294901760
      %4384 = vmatpush.msra.mxu0 %v4383
      %v4385 = vand.u32 %v1254, 4294901760
      %4386 = vmatpush.msra.mxu0 %v4385
      %v4387 = vand.u32 %v1253, 4294901760
      %4388 = vmatpush.msra.mxu0 %v4387
      %v4389 = vand.u32 %v1252, 4294901760
      %4390 = vmatpush.msra.mxu0 %v4389
      %v4391 = vand.u32 %v1251, 4294901760
      %4392 = vmatpush.msra.mxu0 %v4391
      %v4393 = vand.u32 %v1250, 4294901760
      %4394 = vmatpush.msra.mxu0 %v4393
      %v4395 = vand.u32 %v2108, 4294901760
      %4396 = vmatmul.f32.gmra.mxu0 %v4395
      %v4397 = vpop.f32.mrf.mxu0
      %v4398 = vadd.f32 %v4349, %v4397
      %v4399 = vand.u32 %v2110, 4294901760
      %4400 = vmatmul.f32.gmra.mxu0 %v4399
      %v4401 = vpop.f32.mrf.mxu0
      %v4402 = vadd.f32 %v4353, %v4401
      %v4403 = vand.u32 %v2112, 4294901760
      %4404 = vmatmul.f32.gmra.mxu0 %v4403
      %v4405 = vpop.f32.mrf.mxu0
      %v4406 = vadd.f32 %v4357, %v4405
      %v4407 = vand.u32 %v2114, 4294901760
      %4408 = vmatmul.f32.gmra.mxu0 %v4407
      %v4409 = vpop.f32.mrf.mxu0
      %v4410 = vadd.f32 %v4361, %v4409
      %4411 = vdwg.mxu0
      %v4412 = vand.u32 %v1281, 4294901760
      %4413 = vmatpush.msra.mxu0 %v4412
      %v4414 = vand.u32 %v1280, 4294901760
      %4415 = vmatpush.msra.mxu0 %v4414
      %v4416 = vand.u32 %v1279, 4294901760
      %4417 = vmatpush.msra.mxu0 %v4416
      %v4418 = vand.u32 %v1278, 4294901760
      %4419 = vmatpush.msra.mxu0 %v4418
      %v4420 = vand.u32 %v1277, 4294901760
      %4421 = vmatpush.msra.mxu0 %v4420
      %v4422 = vand.u32 %v1276, 4294901760
      %4423 = vmatpush.msra.mxu0 %v4422
      %v4424 = vand.u32 %v1275, 4294901760
      %4425 = vmatpush.msra.mxu0 %v4424
      %v4426 = vand.u32 %v1274, 4294901760
      %4427 = vmatpush.msra.mxu0 %v4426
      %v4428 = vand.u32 %v1273, 4294901760
      %4429 = vmatpush.msra.mxu0 %v4428
      %v4430 = vand.u32 %v1272, 4294901760
      %4431 = vmatpush.msra.mxu0 %v4430
      %v4432 = vand.u32 %v1271, 4294901760
      %4433 = vmatpush.msra.mxu0 %v4432
      %v4434 = vand.u32 %v1270, 4294901760
      %4435 = vmatpush.msra.mxu0 %v4434
      %v4436 = vand.u32 %v1269, 4294901760
      %4437 = vmatpush.msra.mxu0 %v4436
      %v4438 = vand.u32 %v1268, 4294901760
      %4439 = vmatpush.msra.mxu0 %v4438
      %v4440 = vand.u32 %v1267, 4294901760
      %4441 = vmatpush.msra.mxu0 %v4440
      %v4442 = vand.u32 %v1266, 4294901760
      %4443 = vmatpush.msra.mxu0 %v4442
      %v4444 = vand.u32 %v2109, 4294901760
      %v4445 = vsub.f32 %v2109, %v4444
      %v4446 = vand.u32 %v4445, 4294901760
      %v4447 = vsub.f32 %v4445, %v4446
      %v4448 = vand.u32 %v4447, 4294901760
      %4449 = vmatmul.f32.gmra.mxu0 %v4448
      %v4450 = vpop.f32.mrf.mxu0
      %v4451 = vadd.f32 %v4398, %v4450
      %v4452 = vand.u32 %v2111, 4294901760
      %v4453 = vsub.f32 %v2111, %v4452
      %v4454 = vand.u32 %v4453, 4294901760
      %v4455 = vsub.f32 %v4453, %v4454
      %v4456 = vand.u32 %v4455, 4294901760
      %4457 = vmatmul.f32.gmra.mxu0 %v4456
      %v4458 = vpop.f32.mrf.mxu0
      %v4459 = vadd.f32 %v4402, %v4458
      %v4460 = vand.u32 %v2113, 4294901760
      %v4461 = vsub.f32 %v2113, %v4460
      %v4462 = vand.u32 %v4461, 4294901760
      %v4463 = vsub.f32 %v4461, %v4462
      %v4464 = vand.u32 %v4463, 4294901760
      %4465 = vmatmul.f32.gmra.mxu0 %v4464
      %v4466 = vpop.f32.mrf.mxu0
      %v4467 = vadd.f32 %v4406, %v4466
      %v4468 = vand.u32 %v2115, 4294901760
      %v4469 = vsub.f32 %v2115, %v4468
      %v4470 = vand.u32 %v4469, 4294901760
      %v4471 = vsub.f32 %v4469, %v4470
      %v4472 = vand.u32 %v4471, 4294901760
      %4473 = vmatmul.f32.gmra.mxu0 %v4472
      %v4474 = vpop.f32.mrf.mxu0
      %v4475 = vadd.f32 %v4410, %v4474
      %4476 = vdwg.mxu0
      %v4477 = vand.u32 %v1281, 4294901760
      %v4478 = vsub.f32 %v1281, %v4477
      %v4479 = vand.u32 %v4478, 4294901760
      %v4480 = vsub.f32 %v4478, %v4479
      %v4481 = vand.u32 %v4480, 4294901760
      %4482 = vmatpush.msra.mxu0 %v4481
      %v4483 = vand.u32 %v1280, 4294901760
      %v4484 = vsub.f32 %v1280, %v4483
      %v4485 = vand.u32 %v4484, 4294901760
      %v4486 = vsub.f32 %v4484, %v4485
      %v4487 = vand.u32 %v4486, 4294901760
      %4488 = vmatpush.msra.mxu0 %v4487
      %v4489 = vand.u32 %v1279, 4294901760
      %v4490 = vsub.f32 %v1279, %v4489
      %v4491 = vand.u32 %v4490, 4294901760
      %v4492 = vsub.f32 %v4490, %v4491
      %v4493 = vand.u32 %v4492, 4294901760
      %4494 = vmatpush.msra.mxu0 %v4493
      %v4495 = vand.u32 %v1278, 4294901760
      %v4496 = vsub.f32 %v1278, %v4495
      %v4497 = vand.u32 %v4496, 4294901760
      %v4498 = vsub.f32 %v4496, %v4497
      %v4499 = vand.u32 %v4498, 4294901760
      %4500 = vmatpush.msra.mxu0 %v4499
      %v4501 = vand.u32 %v1277, 4294901760
      %v4502 = vsub.f32 %v1277, %v4501
      %v4503 = vand.u32 %v4502, 4294901760
      %v4504 = vsub.f32 %v4502, %v4503
      %v4505 = vand.u32 %v4504, 4294901760
      %4506 = vmatpush.msra.mxu0 %v4505
      %v4507 = vand.u32 %v1276, 4294901760
      %v4508 = vsub.f32 %v1276, %v4507
      %v4509 = vand.u32 %v4508, 4294901760
      %v4510 = vsub.f32 %v4508, %v4509
      %v4511 = vand.u32 %v4510, 4294901760
      %4512 = vmatpush.msra.mxu0 %v4511
      %v4513 = vand.u32 %v1275, 4294901760
      %v4514 = vsub.f32 %v1275, %v4513
      %v4515 = vand.u32 %v4514, 4294901760
      %v4516 = vsub.f32 %v4514, %v4515
      %v4517 = vand.u32 %v4516, 4294901760
      %4518 = vmatpush.msra.mxu0 %v4517
      %v4519 = vand.u32 %v1274, 4294901760
      %v4520 = vsub.f32 %v1274, %v4519
      %v4521 = vand.u32 %v4520, 4294901760
      %v4522 = vsub.f32 %v4520, %v4521
      %v4523 = vand.u32 %v4522, 4294901760
      %4524 = vmatpush.msra.mxu0 %v4523
      %v4525 = vand.u32 %v1273, 4294901760
      %v4526 = vsub.f32 %v1273, %v4525
      %v4527 = vand.u32 %v4526, 4294901760
      %v4528 = vsub.f32 %v4526, %v4527
      %v4529 = vand.u32 %v4528, 4294901760
      %4530 = vmatpush.msra.mxu0 %v4529
      %v4531 = vand.u32 %v1272, 4294901760
      %v4532 = vsub.f32 %v1272, %v4531
      %v4533 = vand.u32 %v4532, 4294901760
      %v4534 = vsub.f32 %v4532, %v4533
      %v4535 = vand.u32 %v4534, 4294901760
      %4536 = vmatpush.msra.mxu0 %v4535
      %v4537 = vand.u32 %v1271, 4294901760
      %v4538 = vsub.f32 %v1271, %v4537
      %v4539 = vand.u32 %v4538, 4294901760
      %v4540 = vsub.f32 %v4538, %v4539
      %v4541 = vand.u32 %v4540, 4294901760
      %4542 = vmatpush.msra.mxu0 %v4541
      %v4543 = vand.u32 %v1270, 4294901760
      %v4544 = vsub.f32 %v1270, %v4543
      %v4545 = vand.u32 %v4544, 4294901760
      %v4546 = vsub.f32 %v4544, %v4545
      %v4547 = vand.u32 %v4546, 4294901760
      %4548 = vmatpush.msra.mxu0 %v4547
      %v4549 = vand.u32 %v1269, 4294901760
      %v4550 = vsub.f32 %v1269, %v4549
      %v4551 = vand.u32 %v4550, 4294901760
      %v4552 = vsub.f32 %v4550, %v4551
      %v4553 = vand.u32 %v4552, 4294901760
      %4554 = vmatpush.msra.mxu0 %v4553
      %v4555 = vand.u32 %v1268, 4294901760
      %v4556 = vsub.f32 %v1268, %v4555
      %v4557 = vand.u32 %v4556, 4294901760
      %v4558 = vsub.f32 %v4556, %v4557
      %v4559 = vand.u32 %v4558, 4294901760
      %4560 = vmatpush.msra.mxu0 %v4559
      %v4561 = vand.u32 %v1267, 4294901760
      %v4562 = vsub.f32 %v1267, %v4561
      %v4563 = vand.u32 %v4562, 4294901760
      %v4564 = vsub.f32 %v4562, %v4563
      %v4565 = vand.u32 %v4564, 4294901760
      %4566 = vmatpush.msra.mxu0 %v4565
      %v4567 = vand.u32 %v1266, 4294901760
      %v4568 = vsub.f32 %v1266, %v4567
      %v4569 = vand.u32 %v4568, 4294901760
      %v4570 = vsub.f32 %v4568, %v4569
      %v4571 = vand.u32 %v4570, 4294901760
      %4572 = vmatpush.msra.mxu0 %v4571
      %v4573 = vand.u32 %v2109, 4294901760
      %4574 = vmatmul.f32.gmra.mxu0 %v4573
      %v4575 = vpop.f32.mrf.mxu0
      %v4576 = vadd.f32 %v4451, %v4575
      %v4577 = vand.u32 %v2111, 4294901760
      %4578 = vmatmul.f32.gmra.mxu0 %v4577
      %v4579 = vpop.f32.mrf.mxu0
      %v4580 = vadd.f32 %v4459, %v4579
      %v4581 = vand.u32 %v2113, 4294901760
      %4582 = vmatmul.f32.gmra.mxu0 %v4581
      %v4583 = vpop.f32.mrf.mxu0
      %v4584 = vadd.f32 %v4467, %v4583
      %v4585 = vand.u32 %v2115, 4294901760
      %4586 = vmatmul.f32.gmra.mxu0 %v4585
      %v4587 = vpop.f32.mrf.mxu0
      %v4588 = vadd.f32 %v4475, %v4587
      %4589 = vdwg.mxu0
      %v4590 = vand.u32 %v1281, 4294901760
      %v4591 = vsub.f32 %v1281, %v4590
      %4592 = vmatpush.msra.mxu0 %v4591
      %v4593 = vand.u32 %v1280, 4294901760
      %v4594 = vsub.f32 %v1280, %v4593
      %4595 = vmatpush.msra.mxu0 %v4594
      %v4596 = vand.u32 %v1279, 4294901760
      %v4597 = vsub.f32 %v1279, %v4596
      %4598 = vmatpush.msra.mxu0 %v4597
      %v4599 = vand.u32 %v1278, 4294901760
      %v4600 = vsub.f32 %v1278, %v4599
      %4601 = vmatpush.msra.mxu0 %v4600
      %v4602 = vand.u32 %v1277, 4294901760
      %v4603 = vsub.f32 %v1277, %v4602
      %4604 = vmatpush.msra.mxu0 %v4603
      %v4605 = vand.u32 %v1276, 4294901760
      %v4606 = vsub.f32 %v1276, %v4605
      %4607 = vmatpush.msra.mxu0 %v4606
      %v4608 = vand.u32 %v1275, 4294901760
      %v4609 = vsub.f32 %v1275, %v4608
      %4610 = vmatpush.msra.mxu0 %v4609
      %v4611 = vand.u32 %v1274, 4294901760
      %v4612 = vsub.f32 %v1274, %v4611
      %4613 = vmatpush.msra.mxu0 %v4612
      %v4614 = vand.u32 %v1273, 4294901760
      %v4615 = vsub.f32 %v1273, %v4614
      %4616 = vmatpush.msra.mxu0 %v4615
      %v4617 = vand.u32 %v1272, 4294901760
      %v4618 = vsub.f32 %v1272, %v4617
      %4619 = vmatpush.msra.mxu0 %v4618
      %v4620 = vand.u32 %v1271, 4294901760
      %v4621 = vsub.f32 %v1271, %v4620
      %4622 = vmatpush.msra.mxu0 %v4621
      %v4623 = vand.u32 %v1270, 4294901760
      %v4624 = vsub.f32 %v1270, %v4623
      %4625 = vmatpush.msra.mxu0 %v4624
      %v4626 = vand.u32 %v1269, 4294901760
      %v4627 = vsub.f32 %v1269, %v4626
      %4628 = vmatpush.msra.mxu0 %v4627
      %v4629 = vand.u32 %v1268, 4294901760
      %v4630 = vsub.f32 %v1268, %v4629
      %4631 = vmatpush.msra.mxu0 %v4630
      %v4632 = vand.u32 %v1267, 4294901760
      %v4633 = vsub.f32 %v1267, %v4632
      %4634 = vmatpush.msra.mxu0 %v4633
      %v4635 = vand.u32 %v1266, 4294901760
      %v4636 = vsub.f32 %v1266, %v4635
      %4637 = vmatpush.msra.mxu0 %v4636
      %v4638 = vand.u32 %v2109, 4294901760
      %v4639 = vsub.f32 %v2109, %v4638
      %4640 = vmatmul.f32.gmra.mxu0 %v4639
      %v4641 = vpop.f32.mrf.mxu0
      %v4642 = vadd.f32 %v4576, %v4641
      %v4643 = vand.u32 %v2111, 4294901760
      %v4644 = vsub.f32 %v2111, %v4643
      %4645 = vmatmul.f32.gmra.mxu0 %v4644
      %v4646 = vpop.f32.mrf.mxu0
      %v4647 = vadd.f32 %v4580, %v4646
      %v4648 = vand.u32 %v2113, 4294901760
      %v4649 = vsub.f32 %v2113, %v4648
      %4650 = vmatmul.f32.gmra.mxu0 %v4649
      %v4651 = vpop.f32.mrf.mxu0
      %v4652 = vadd.f32 %v4584, %v4651
      %v4653 = vand.u32 %v2115, 4294901760
      %v4654 = vsub.f32 %v2115, %v4653
      %4655 = vmatmul.f32.gmra.mxu0 %v4654
      %v4656 = vpop.f32.mrf.mxu0
      %v4657 = vadd.f32 %v4588, %v4656
      %4658 = vdwg.mxu0
      %v4659 = vand.u32 %v1281, 4294901760
      %4660 = vmatpush.msra.mxu0 %v4659
      %v4661 = vand.u32 %v1280, 4294901760
      %4662 = vmatpush.msra.mxu0 %v4661
      %v4663 = vand.u32 %v1279, 4294901760
      %4664 = vmatpush.msra.mxu0 %v4663
      %v4665 = vand.u32 %v1278, 4294901760
      %4666 = vmatpush.msra.mxu0 %v4665
      %v4667 = vand.u32 %v1277, 4294901760
      %4668 = vmatpush.msra.mxu0 %v4667
      %v4669 = vand.u32 %v1276, 4294901760
      %4670 = vmatpush.msra.mxu0 %v4669
      %v4671 = vand.u32 %v1275, 4294901760
      %4672 = vmatpush.msra.mxu0 %v4671
      %v4673 = vand.u32 %v1274, 4294901760
      %4674 = vmatpush.msra.mxu0 %v4673
      %v4675 = vand.u32 %v1273, 4294901760
      %4676 = vmatpush.msra.mxu0 %v4675
      %v4677 = vand.u32 %v1272, 4294901760
      %4678 = vmatpush.msra.mxu0 %v4677
      %v4679 = vand.u32 %v1271, 4294901760
      %4680 = vmatpush.msra.mxu0 %v4679
      %v4681 = vand.u32 %v1270, 4294901760
      %4682 = vmatpush.msra.mxu0 %v4681
      %v4683 = vand.u32 %v1269, 4294901760
      %4684 = vmatpush.msra.mxu0 %v4683
      %v4685 = vand.u32 %v1268, 4294901760
      %4686 = vmatpush.msra.mxu0 %v4685
      %v4687 = vand.u32 %v1267, 4294901760
      %4688 = vmatpush.msra.mxu0 %v4687
      %v4689 = vand.u32 %v1266, 4294901760
      %4690 = vmatpush.msra.mxu0 %v4689
      %v4691 = vand.u32 %v2109, 4294901760
      %v4692 = vsub.f32 %v2109, %v4691
      %v4693 = vand.u32 %v4692, 4294901760
      %4694 = vmatmul.f32.gmra.mxu0 %v4693
      %v4695 = vpop.f32.mrf.mxu0
      %v4696 = vadd.f32 %v4642, %v4695
      %v4697 = vand.u32 %v2111, 4294901760
      %v4698 = vsub.f32 %v2111, %v4697
      %v4699 = vand.u32 %v4698, 4294901760
      %4700 = vmatmul.f32.gmra.mxu0 %v4699
      %v4701 = vpop.f32.mrf.mxu0
      %v4702 = vadd.f32 %v4647, %v4701
      %v4703 = vand.u32 %v2113, 4294901760
      %v4704 = vsub.f32 %v2113, %v4703
      %v4705 = vand.u32 %v4704, 4294901760
      %4706 = vmatmul.f32.gmra.mxu0 %v4705
      %v4707 = vpop.f32.mrf.mxu0
      %v4708 = vadd.f32 %v4652, %v4707
      %v4709 = vand.u32 %v2115, 4294901760
      %v4710 = vsub.f32 %v2115, %v4709
      %v4711 = vand.u32 %v4710, 4294901760
      %4712 = vmatmul.f32.gmra.mxu0 %v4711
      %v4713 = vpop.f32.mrf.mxu0
      %v4714 = vadd.f32 %v4657, %v4713
      %4715 = vdwg.mxu0
      %v4716 = vand.u32 %v1281, 4294901760
      %v4717 = vsub.f32 %v1281, %v4716
      %v4718 = vand.u32 %v4717, 4294901760
      %4719 = vmatpush.msra.mxu0 %v4718
      %v4720 = vand.u32 %v1280, 4294901760
      %v4721 = vsub.f32 %v1280, %v4720
      %v4722 = vand.u32 %v4721, 4294901760
      %4723 = vmatpush.msra.mxu0 %v4722
      %v4724 = vand.u32 %v1279, 4294901760
      %v4725 = vsub.f32 %v1279, %v4724
      %v4726 = vand.u32 %v4725, 4294901760
      %4727 = vmatpush.msra.mxu0 %v4726
      %v4728 = vand.u32 %v1278, 4294901760
      %v4729 = vsub.f32 %v1278, %v4728
      %v4730 = vand.u32 %v4729, 4294901760
      %4731 = vmatpush.msra.mxu0 %v4730
      %v4732 = vand.u32 %v1277, 4294901760
      %v4733 = vsub.f32 %v1277, %v4732
      %v4734 = vand.u32 %v4733, 4294901760
      %4735 = vmatpush.msra.mxu0 %v4734
      %v4736 = vand.u32 %v1276, 4294901760
      %v4737 = vsub.f32 %v1276, %v4736
      %v4738 = vand.u32 %v4737, 4294901760
      %4739 = vmatpush.msra.mxu0 %v4738
      %v4740 = vand.u32 %v1275, 4294901760
      %v4741 = vsub.f32 %v1275, %v4740
      %v4742 = vand.u32 %v4741, 4294901760
      %4743 = vmatpush.msra.mxu0 %v4742
      %v4744 = vand.u32 %v1274, 4294901760
      %v4745 = vsub.f32 %v1274, %v4744
      %v4746 = vand.u32 %v4745, 4294901760
      %4747 = vmatpush.msra.mxu0 %v4746
      %v4748 = vand.u32 %v1273, 4294901760
      %v4749 = vsub.f32 %v1273, %v4748
      %v4750 = vand.u32 %v4749, 4294901760
      %4751 = vmatpush.msra.mxu0 %v4750
      %v4752 = vand.u32 %v1272, 4294901760
      %v4753 = vsub.f32 %v1272, %v4752
      %v4754 = vand.u32 %v4753, 4294901760
      %4755 = vmatpush.msra.mxu0 %v4754
      %v4756 = vand.u32 %v1271, 4294901760
      %v4757 = vsub.f32 %v1271, %v4756
      %v4758 = vand.u32 %v4757, 4294901760
      %4759 = vmatpush.msra.mxu0 %v4758
      %v4760 = vand.u32 %v1270, 4294901760
      %v4761 = vsub.f32 %v1270, %v4760
      %v4762 = vand.u32 %v4761, 4294901760
      %4763 = vmatpush.msra.mxu0 %v4762
      %v4764 = vand.u32 %v1269, 4294901760
      %v4765 = vsub.f32 %v1269, %v4764
      %v4766 = vand.u32 %v4765, 4294901760
      %4767 = vmatpush.msra.mxu0 %v4766
      %v4768 = vand.u32 %v1268, 4294901760
      %v4769 = vsub.f32 %v1268, %v4768
      %v4770 = vand.u32 %v4769, 4294901760
      %4771 = vmatpush.msra.mxu0 %v4770
      %v4772 = vand.u32 %v1267, 4294901760
      %v4773 = vsub.f32 %v1267, %v4772
      %v4774 = vand.u32 %v4773, 4294901760
      %4775 = vmatpush.msra.mxu0 %v4774
      %v4776 = vand.u32 %v1266, 4294901760
      %v4777 = vsub.f32 %v1266, %v4776
      %v4778 = vand.u32 %v4777, 4294901760
      %4779 = vmatpush.msra.mxu0 %v4778
      %v4780 = vand.u32 %v2109, 4294901760
      %4781 = vmatmul.f32.gmra.mxu0 %v4780
      %v4782 = vpop.f32.mrf.mxu0
      %v4783 = vadd.f32 %v4696, %v4782
      %v4784 = vand.u32 %v2111, 4294901760
      %4785 = vmatmul.f32.gmra.mxu0 %v4784
      %v4786 = vpop.f32.mrf.mxu0
      %v4787 = vadd.f32 %v4702, %v4786
      %v4788 = vand.u32 %v2113, 4294901760
      %4789 = vmatmul.f32.gmra.mxu0 %v4788
      %v4790 = vpop.f32.mrf.mxu0
      %v4791 = vadd.f32 %v4708, %v4790
      %v4792 = vand.u32 %v2115, 4294901760
      %4793 = vmatmul.f32.gmra.mxu0 %v4792
      %v4794 = vpop.f32.mrf.mxu0
      %v4795 = vadd.f32 %v4714, %v4794
      %4796 = vdwg.mxu0
      %v4797 = vand.u32 %v1281, 4294901760
      %4798 = vmatpush.msra.mxu0 %v4797
      %v4799 = vand.u32 %v1280, 4294901760
      %4800 = vmatpush.msra.mxu0 %v4799
      %v4801 = vand.u32 %v1279, 4294901760
      %4802 = vmatpush.msra.mxu0 %v4801
      %v4803 = vand.u32 %v1278, 4294901760
      %4804 = vmatpush.msra.mxu0 %v4803
      %v4805 = vand.u32 %v1277, 4294901760
      %4806 = vmatpush.msra.mxu0 %v4805
      %v4807 = vand.u32 %v1276, 4294901760
      %4808 = vmatpush.msra.mxu0 %v4807
      %v4809 = vand.u32 %v1275, 4294901760
      %4810 = vmatpush.msra.mxu0 %v4809
      %v4811 = vand.u32 %v1274, 4294901760
      %4812 = vmatpush.msra.mxu0 %v4811
      %v4813 = vand.u32 %v1273, 4294901760
      %4814 = vmatpush.msra.mxu0 %v4813
      %v4815 = vand.u32 %v1272, 4294901760
      %4816 = vmatpush.msra.mxu0 %v4815
      %v4817 = vand.u32 %v1271, 4294901760
      %4818 = vmatpush.msra.mxu0 %v4817
      %v4819 = vand.u32 %v1270, 4294901760
      %4820 = vmatpush.msra.mxu0 %v4819
      %v4821 = vand.u32 %v1269, 4294901760
      %4822 = vmatpush.msra.mxu0 %v4821
      %v4823 = vand.u32 %v1268, 4294901760
      %4824 = vmatpush.msra.mxu0 %v4823
      %v4825 = vand.u32 %v1267, 4294901760
      %4826 = vmatpush.msra.mxu0 %v4825
      %v4827 = vand.u32 %v1266, 4294901760
      %4828 = vmatpush.msra.mxu0 %v4827
      %v4829 = vand.u32 %v2109, 4294901760
      %4830 = vmatmul.f32.gmra.mxu0 %v4829
      %v4831 = vpop.f32.mrf.mxu0
      %v4832 = vadd.f32 %v4783, %v4831
      %v4833 = vand.u32 %v2111, 4294901760
      %4834 = vmatmul.f32.gmra.mxu0 %v4833
      %v4835 = vpop.f32.mrf.mxu0
      %v4836 = vadd.f32 %v4787, %v4835
      %v4837 = vand.u32 %v2113, 4294901760
      %4838 = vmatmul.f32.gmra.mxu0 %v4837
      %v4839 = vpop.f32.mrf.mxu0
      %v4840 = vadd.f32 %v4791, %v4839
      %v4841 = vand.u32 %v2115, 4294901760
      %4842 = vmatmul.f32.gmra.mxu0 %v4841
      %v4843 = vpop.f32.mrf.mxu0
      %v4844 = vadd.f32 %v4795, %v4843
      %4845 = vdwg.mxu0
      %vm4846 = vcmask 359744
      %v4847 = vsel %vm4846, %v747, -inf
      %4848 = vmax.xlane.f32.xlu0 %v4847
      %v4849 = vpop.xlane.xlu0 %4848
      %v4850 = vsel %vm4846, %v751, -inf
      %4851 = vmax.xlane.f32.xlu0 %v4850
      %v4852 = vpop.xlane.xlu0 %4851
      %v4853 = vsel %vm4846, %v755, -inf
      %4854 = vmax.xlane.f32.xlu0 %v4853
      %v4855 = vpop.xlane.xlu0 %4854
      %v4856 = vsel %vm4846, %v759, -inf
      %4857 = vmax.xlane.f32.xlu0 %v4856
      %v4858 = vpop.xlane.xlu0 %4857
      %v4859 = vsub.f32 %v747, %v4849
      %v4860 = vsub.f32 %v751, %v4852
      %v4861 = vsub.f32 %v755, %v4855
      %v4862 = vsub.f32 %v759, %v4858
      %v4863 = vmul.f32 %v4859, 1.442695
      %v4864 = vpow.pop %v4863
      %v4865 = vmul.f32 %v4860, 1.442695
      %v4866 = vpow.pop %v4865
      %v4867 = vmul.f32 %v4861, 1.442695
      %v4868 = vpow.pop %v4867
      %v4869 = vmul.f32 %v4862, 1.442695
      %v4870 = vpow.pop %v4869
      %4875 = vrot.lane.b32.xlu0 %v4864, 88
      %v4876 = vpop.permute.xlu0 %4875
      %4877 = vrot.lane.b32.xlu0 %v4866, 88
      %v4878 = vpop.permute.xlu0 %4877
      %4879 = vrot.lane.b32.xlu0 %v4868, 88
      %v4880 = vpop.permute.xlu0 %4879
      %4881 = vrot.lane.b32.xlu0 %v4870, 88
      %v4882 = vpop.permute.xlu0 %4881
      %v4887 = vsel %vm1097, %v4876, 0.0
      %4888 = vadd.xlane.f32.xlu0 %v4887
      %v4889 = vpop.xlane.xlu0 %4888
      %v4890 = vsel %vm1097, %v4878, 0.0
      %4891 = vadd.xlane.f32.xlu0 %v4890
      %v4892 = vpop.xlane.xlu0 %4891
      %v4893 = vsel %vm1097, %v4880, 0.0
      %4894 = vadd.xlane.f32.xlu0 %v4893
      %v4895 = vpop.xlane.xlu0 %4894
      %v4896 = vsel %vm1097, %v4882, 0.0
      %4897 = vadd.xlane.f32.xlu0 %v4896
      %v4898 = vpop.xlane.xlu0 %4897
      %v4899 = vrcp.pop %v4889
      %v4900 = vmul.f32 %v4889, %v4899
      %v4901 = vsub.f32 1.0, %v4900
      %v4902 = vmul.f32 %v4899, %v4901
      %v4903 = vadd.f32 %v4899, %v4902
      %vm4904 = vweird.f32 %v4889
      %vm4905 = vweird.f32 %v4899
      %vm4906 = vmor %vm4904, %vm4905
      %v4907 = vsel %vm4906, %v4899, %v4903
      %v4908 = vand.u32 2147483647, %v4889
      %vm4909 = vcmp.eq.f32.partialorder %v4908, 8.507059e+37
      %v4910 = vand.u32 %v4889, 2147483648
      %v4911 = vor.u32 1.1754944e-38, %v4910
      %v4912 = vsel %vm4909, %v4911, %v4907
      %v4913 = vmul.f32 %v4864, %v4912
      %v4914 = vrcp.pop %v4892
      %v4915 = vmul.f32 %v4892, %v4914
      %v4916 = vsub.f32 1.0, %v4915
      %v4917 = vmul.f32 %v4914, %v4916
      %v4918 = vadd.f32 %v4914, %v4917
      %vm4919 = vweird.f32 %v4892
      %vm4920 = vweird.f32 %v4914
      %vm4921 = vmor %vm4919, %vm4920
      %v4922 = vsel %vm4921, %v4914, %v4918
      %v4923 = vand.u32 2147483647, %v4892
      %vm4924 = vcmp.eq.f32.partialorder %v4923, 8.507059e+37
      %v4925 = vand.u32 %v4892, 2147483648
      %v4926 = vor.u32 1.1754944e-38, %v4925
      %v4927 = vsel %vm4924, %v4926, %v4922
      %v4928 = vmul.f32 %v4866, %v4927
      %v4929 = vrcp.pop %v4895
      %v4930 = vmul.f32 %v4895, %v4929
      %v4931 = vsub.f32 1.0, %v4930
      %v4932 = vmul.f32 %v4929, %v4931
      %v4933 = vadd.f32 %v4929, %v4932
      %vm4934 = vweird.f32 %v4895
      %vm4935 = vweird.f32 %v4929
      %vm4936 = vmor %vm4934, %vm4935
      %v4937 = vsel %vm4936, %v4929, %v4933
      %v4938 = vand.u32 2147483647, %v4895
      %vm4939 = vcmp.eq.f32.partialorder %v4938, 8.507059e+37
      %v4940 = vand.u32 %v4895, 2147483648
      %v4941 = vor.u32 1.1754944e-38, %v4940
      %v4942 = vsel %vm4939, %v4941, %v4937
      %v4943 = vmul.f32 %v4868, %v4942
      %v4944 = vrcp.pop %v4898
      %v4945 = vmul.f32 %v4898, %v4944
      %v4946 = vsub.f32 1.0, %v4945
      %v4947 = vmul.f32 %v4944, %v4946
      %v4948 = vadd.f32 %v4944, %v4947
      %vm4949 = vweird.f32 %v4898
      %vm4950 = vweird.f32 %v4944
      %vm4951 = vmor %vm4949, %vm4950
      %v4952 = vsel %vm4951, %v4944, %v4948
      %v4953 = vand.u32 2147483647, %v4898
      %vm4954 = vcmp.eq.f32.partialorder %v4953, 8.507059e+37
      %v4955 = vand.u32 %v4898, 2147483648
      %v4956 = vor.u32 1.1754944e-38, %v4955
      %v4957 = vsel %vm4954, %v4956, %v4952
      %v4958 = vmul.f32 %v4870, %v4957
      %v4959 = vmul.f32 %v4913, %v1175
      %v4960 = vmul.f32 %v4928, %v1177
      %v4961 = vmul.f32 %v4943, %v1179
      %v4962 = vmul.f32 %v4958, %v1181
      %v4963 = vmul.f32 %v4913, %v1195
      %v4964 = vmul.f32 %v4928, %v1197
      %v4965 = vmul.f32 %v4943, %v1199
      %v4966 = vmul.f32 %v4958, %v1201
      %v4967 = vmul.f32 %v4913, %v1215
      %v4968 = vmul.f32 %v4928, %v1217
      %v4969 = vmul.f32 %v4943, %v1219
      %v4970 = vmul.f32 %v4958, %v1221
      %v4971 = vmul.f32 %v4913, %v1235
      %v4972 = vmul.f32 %v4928, %v1237
      %v4973 = vmul.f32 %v4943, %v1239
      %v4974 = vmul.f32 %v4958, %v1241
      %s4975 = scalar_lea.vmem %s439, 512
      %v4976 = vld [vmem:[%s4975] sm:$0xff]
      %v4977 = vld [vmem:[%s4975 + $0x8] sm:$0xff]
      %v4978 = vld [vmem:[%s4975 + $0x10] sm:$0xff]
      %v4979 = vld [vmem:[%s4975 + $0x18] sm:$0xff]
      %v4980 = vld [vmem:[%s4975 + $0x20] sm:$0xff]
      %v4981 = vld [vmem:[%s4975 + $0x28] sm:$0xff]
      %v4982 = vld [vmem:[%s4975 + $0x30] sm:$0xff]
      %v4983 = vld [vmem:[%s4975 + $0x38] sm:$0xff]
      %v4984 = vld [vmem:[%s4975 + $0x40] sm:$0xff]
      %v4985 = vld [vmem:[%s4975 + $0x48] sm:$0xff]
      %v4986 = vld [vmem:[%s4975 + $0x50] sm:$0xff]
      %v4987 = vld [vmem:[%s4975 + $0x58] sm:$0xff]
      %v4988 = vld [vmem:[%s4975 + $0x60] sm:$0xff]
      %v4989 = vld [vmem:[%s4975 + $0x68] sm:$0xff]
      %v4990 = vld [vmem:[%s4975 + $0x70] sm:$0xff]
      %v4991 = vld [vmem:[%s4975 + $0x78] sm:$0xff]
      %v4992 = vld [vmem:[%s4975 + $0x80] sm:$0xff]
      %v4993 = vld [vmem:[%s4975 + $0x88] sm:$0xff]
      %v4994 = vld [vmem:[%s4975 + $0x90] sm:$0xff]
      %v4995 = vld [vmem:[%s4975 + $0x98] sm:$0xff]
      %v4996 = vld [vmem:[%s4975 + $0xa0] sm:$0xff]
      %v4997 = vld [vmem:[%s4975 + $0xa8] sm:$0xff]
      %v4998 = vld [vmem:[%s4975 + $0xb0] sm:$0xff]
      %v4999 = vld [vmem:[%s4975 + $0xb8] sm:$0xff]
      %v5000 = vld [vmem:[%s4975 + $0xc0] sm:$0xff]
      %v5001 = vld [vmem:[%s4975 + $0xc8] sm:$0xff]
      %v5002 = vld [vmem:[%s4975 + $0xd0] sm:$0xff]
      %v5003 = vld [vmem:[%s4975 + $0xd8] sm:$0xff]
      %v5004 = vld [vmem:[%s4975 + $0xe0] sm:$0xff]
      %v5005 = vld [vmem:[%s4975 + $0xe8] sm:$0xff]
      %v5006 = vld [vmem:[%s4975 + $0xf0] sm:$0xff]
      %v5007 = vld [vmem:[%s4975 + $0xf8] sm:$0xff]
      %5008 = vset.pattern.permute.xlu0 24
      %5009 = vperm.xlu0 %5008, %v1049
      %v5010 = vpop.permute.xlu0 %5009
      %5011 = vset.pattern.permute.xlu0 24
      %5012 = vperm.xlu0 %5011, %v1050
      %v5013 = vpop.permute.xlu0 %5012
      %5014 = vset.pattern.permute.xlu0 24
      %5015 = vperm.xlu0 %5014, %v1051
      %v5016 = vpop.permute.xlu0 %5015
      %5017 = vset.pattern.permute.xlu0 24
      %5018 = vperm.xlu0 %5017, %v1052
      %v5019 = vpop.permute.xlu0 %5018
      %vm5020 = vcmp.eq.s32.totalorder %v1054, %v5010
      %vm5021 = vcmp.eq.s32.totalorder %v1055, %v5010
      %vm5022 = vcmp.eq.s32.totalorder %v1054, %v5013
      %vm5023 = vcmp.eq.s32.totalorder %v1055, %v5013
      %vm5024 = vcmp.eq.s32.totalorder %v1054, %v5016
      %vm5025 = vcmp.eq.s32.totalorder %v1055, %v5016
      %vm5026 = vcmp.eq.s32.totalorder %v1054, %v5019
      %vm5027 = vcmp.eq.s32.totalorder %v1055, %v5019
      %5029 = vset.pattern.permute.xlu0 40
      %5030 = vperm.xlu0 %5029, %v4959
      %v5031 = vpop.permute.xlu0 %5030
      %5034 = vset.pattern.permute.xlu0 40
      %5035 = vperm.xlu0 %5034, %v4960
      %v5036 = vpop.permute.xlu0 %5035
      %5039 = vset.pattern.permute.xlu0 40
      %5040 = vperm.xlu0 %5039, %v4961
      %v5041 = vpop.permute.xlu0 %5040
      %5044 = vset.pattern.permute.xlu0 40
      %5045 = vperm.xlu0 %5044, %v4962
      %v5046 = vpop.permute.xlu0 %5045
      %v5048 = vsel %vm5020, %v5031, 0.0
      %v5049 = vsel %vm5021, %v5031, 0.0
      %v5050 = vsel %vm5022, %v5036, 0.0
      %v5051 = vsel %vm5023, %v5036, 0.0
      %v5052 = vsel %vm5024, %v5041, 0.0
      %v5053 = vsel %vm5025, %v5041, 0.0
      %v5054 = vsel %vm5026, %v5046, 0.0
      %v5055 = vsel %vm5027, %v5046, 0.0
      %v5056 = vadd.f32 %v5048, 0.0
      %v5057 = vadd.f32 %v5049, 0.0
      %v5058 = vadd.f32 %v5050, 0.0
      %v5059 = vadd.f32 %v5051, 0.0
      %v5060 = vadd.f32 %v5052, 0.0
      %v5061 = vadd.f32 %v5053, 0.0
      %v5062 = vadd.f32 %v5054, 0.0
      %v5063 = vadd.f32 %v5055, 0.0
      %5065 = vset.pattern.permute.xlu0 40
      %5066 = vperm.xlu0 %5065, %v4963
      %v5067 = vpop.permute.xlu0 %5066
      %5070 = vset.pattern.permute.xlu0 40
      %5071 = vperm.xlu0 %5070, %v4964
      %v5072 = vpop.permute.xlu0 %5071
      %5075 = vset.pattern.permute.xlu0 40
      %5076 = vperm.xlu0 %5075, %v4965
      %v5077 = vpop.permute.xlu0 %5076
      %5080 = vset.pattern.permute.xlu0 40
      %5081 = vperm.xlu0 %5080, %v4966
      %v5082 = vpop.permute.xlu0 %5081
      %v5084 = vsel %vm5020, %v5067, 0.0
      %v5085 = vsel %vm5021, %v5067, 0.0
      %v5086 = vsel %vm5022, %v5072, 0.0
      %v5087 = vsel %vm5023, %v5072, 0.0
      %v5088 = vsel %vm5024, %v5077, 0.0
      %v5089 = vsel %vm5025, %v5077, 0.0
      %v5090 = vsel %vm5026, %v5082, 0.0
      %v5091 = vsel %vm5027, %v5082, 0.0
      %5092 = vrot.lane.b32.xlu0 %v5084, 1
      %v5093 = vpop.permute.xlu0 %5092
      %5094 = vrot.lane.b32.xlu0 %v5086, 1
      %v5095 = vpop.permute.xlu0 %5094
      %5096 = vrot.lane.b32.xlu0 %v5088, 1
      %v5097 = vpop.permute.xlu0 %5096
      %5098 = vrot.lane.b32.xlu0 %v5090, 1
      %v5099 = vpop.permute.xlu0 %5098
      %5100 = vrot.lane.b32.xlu0 %v5085, 1
      %v5101 = vpop.permute.xlu0 %5100
      %5102 = vrot.lane.b32.xlu0 %v5087, 1
      %v5103 = vpop.permute.xlu0 %5102
      %5104 = vrot.lane.b32.xlu0 %v5089, 1
      %v5105 = vpop.permute.xlu0 %5104
      %5106 = vrot.lane.b32.xlu0 %v5091, 1
      %v5107 = vpop.permute.xlu0 %5106
      %v5108 = vsel %vm1382, %v5093, %v5101
      %v5109 = vsel %vm1382, %v5095, %v5103
      %v5110 = vsel %vm1382, %v5097, %v5105
      %v5111 = vsel %vm1382, %v5099, %v5107
      %v5112 = vsel %vm1382, %v5101, %v5093
      %v5113 = vsel %vm1382, %v5103, %v5095
      %v5114 = vsel %vm1382, %v5105, %v5097
      %v5115 = vsel %vm1382, %v5107, %v5099
      %v5116 = vadd.f32 %v5056, %v5112
      %v5117 = vadd.f32 %v5057, %v5108
      %v5118 = vadd.f32 %v5058, %v5113
      %v5119 = vadd.f32 %v5059, %v5109
      %v5120 = vadd.f32 %v5060, %v5114
      %v5121 = vadd.f32 %v5061, %v5110
      %v5122 = vadd.f32 %v5062, %v5115
      %v5123 = vadd.f32 %v5063, %v5111
      %5125 = vset.pattern.permute.xlu0 40
      %5126 = vperm.xlu0 %5125, %v4967
      %v5127 = vpop.permute.xlu0 %5126
      %5130 = vset.pattern.permute.xlu0 40
      %5131 = vperm.xlu0 %5130, %v4968
      %v5132 = vpop.permute.xlu0 %5131
      %5135 = vset.pattern.permute.xlu0 40
      %5136 = vperm.xlu0 %5135, %v4969
      %v5137 = vpop.permute.xlu0 %5136
      %5140 = vset.pattern.permute.xlu0 40
      %5141 = vperm.xlu0 %5140, %v4970
      %v5142 = vpop.permute.xlu0 %5141
      %v5144 = vsel %vm5020, %v5127, 0.0
      %v5145 = vsel %vm5021, %v5127, 0.0
      %v5146 = vsel %vm5022, %v5132, 0.0
      %v5147 = vsel %vm5023, %v5132, 0.0
      %v5148 = vsel %vm5024, %v5137, 0.0
      %v5149 = vsel %vm5025, %v5137, 0.0
      %v5150 = vsel %vm5026, %v5142, 0.0
      %v5151 = vsel %vm5027, %v5142, 0.0
      %v5152 = vadd.f32 %v5144, 0.0
      %v5153 = vadd.f32 %v5145, 0.0
      %v5154 = vadd.f32 %v5146, 0.0
      %v5155 = vadd.f32 %v5147, 0.0
      %v5156 = vadd.f32 %v5148, 0.0
      %v5157 = vadd.f32 %v5149, 0.0
      %v5158 = vadd.f32 %v5150, 0.0
      %v5159 = vadd.f32 %v5151, 0.0
      %5161 = vset.pattern.permute.xlu0 40
      %5162 = vperm.xlu0 %5161, %v4971
      %v5163 = vpop.permute.xlu0 %5162
      %5166 = vset.pattern.permute.xlu0 40
      %5167 = vperm.xlu0 %5166, %v4972
      %v5168 = vpop.permute.xlu0 %5167
      %5171 = vset.pattern.permute.xlu0 40
      %5172 = vperm.xlu0 %5171, %v4973
      %v5173 = vpop.permute.xlu0 %5172
      %5176 = vset.pattern.permute.xlu0 40
      %5177 = vperm.xlu0 %5176, %v4974
      %v5178 = vpop.permute.xlu0 %5177
      %v5180 = vsel %vm5020, %v5163, 0.0
      %v5181 = vsel %vm5021, %v5163, 0.0
      %v5182 = vsel %vm5022, %v5168, 0.0
      %v5183 = vsel %vm5023, %v5168, 0.0
      %v5184 = vsel %vm5024, %v5173, 0.0
      %v5185 = vsel %vm5025, %v5173, 0.0
      %v5186 = vsel %vm5026, %v5178, 0.0
      %v5187 = vsel %vm5027, %v5178, 0.0
      %5188 = vrot.lane.b32.xlu0 %v5180, 1
      %v5189 = vpop.permute.xlu0 %5188
      %5190 = vrot.lane.b32.xlu0 %v5182, 1
      %v5191 = vpop.permute.xlu0 %5190
      %5192 = vrot.lane.b32.xlu0 %v5184, 1
      %v5193 = vpop.permute.xlu0 %5192
      %5194 = vrot.lane.b32.xlu0 %v5186, 1
      %v5195 = vpop.permute.xlu0 %5194
      %5196 = vrot.lane.b32.xlu0 %v5181, 1
      %v5197 = vpop.permute.xlu0 %5196
      %5198 = vrot.lane.b32.xlu0 %v5183, 1
      %v5199 = vpop.permute.xlu0 %5198
      %5200 = vrot.lane.b32.xlu0 %v5185, 1
      %v5201 = vpop.permute.xlu0 %5200
      %5202 = vrot.lane.b32.xlu0 %v5187, 1
      %v5203 = vpop.permute.xlu0 %5202
      %v5204 = vsel %vm1382, %v5189, %v5197
      %v5205 = vsel %vm1382, %v5191, %v5199
      %v5206 = vsel %vm1382, %v5193, %v5201
      %v5207 = vsel %vm1382, %v5195, %v5203
      %v5208 = vsel %vm1382, %v5197, %v5189
      %v5209 = vsel %vm1382, %v5199, %v5191
      %v5210 = vsel %vm1382, %v5201, %v5193
      %v5211 = vsel %vm1382, %v5203, %v5195
      %v5212 = vadd.f32 %v5152, %v5208
      %v5213 = vadd.f32 %v5153, %v5204
      %v5214 = vadd.f32 %v5154, %v5209
      %v5215 = vadd.f32 %v5155, %v5205
      %v5216 = vadd.f32 %v5156, %v5210
      %v5217 = vadd.f32 %v5157, %v5206
      %v5218 = vadd.f32 %v5158, %v5211
      %v5219 = vadd.f32 %v5159, %v5207
      %5220 = vset.pattern.permute.xlu0 25
      %5221 = vperm.xlu0 %5220, %v1049
      %v5222 = vpop.permute.xlu0 %5221
      %5223 = vset.pattern.permute.xlu0 25
      %5224 = vperm.xlu0 %5223, %v1050
      %v5225 = vpop.permute.xlu0 %5224
      %5226 = vset.pattern.permute.xlu0 25
      %5227 = vperm.xlu0 %5226, %v1051
      %v5228 = vpop.permute.xlu0 %5227
      %5229 = vset.pattern.permute.xlu0 25
      %5230 = vperm.xlu0 %5229, %v1052
      %v5231 = vpop.permute.xlu0 %5230
      %vm5232 = vcmp.eq.s32.totalorder %v1054, %v5222
      %vm5233 = vcmp.eq.s32.totalorder %v1055, %v5222
      %vm5234 = vcmp.eq.s32.totalorder %v1054, %v5225
      %vm5235 = vcmp.eq.s32.totalorder %v1055, %v5225
      %vm5236 = vcmp.eq.s32.totalorder %v1054, %v5228
      %vm5237 = vcmp.eq.s32.totalorder %v1055, %v5228
      %vm5238 = vcmp.eq.s32.totalorder %v1054, %v5231
      %vm5239 = vcmp.eq.s32.totalorder %v1055, %v5231
      %5240 = vset.pattern.permute.xlu0 41
      %5241 = vperm.xlu0 %5240, %v4959
      %v5242 = vpop.permute.xlu0 %5241
      %5244 = vset.pattern.permute.xlu0 41
      %5245 = vperm.xlu0 %5244, %v4960
      %v5246 = vpop.permute.xlu0 %5245
      %5248 = vset.pattern.permute.xlu0 41
      %5249 = vperm.xlu0 %5248, %v4961
      %v5250 = vpop.permute.xlu0 %5249
      %5252 = vset.pattern.permute.xlu0 41
      %5253 = vperm.xlu0 %5252, %v4962
      %v5254 = vpop.permute.xlu0 %5253
      %v5256 = vsel %vm5232, %v5242, 0.0
      %v5257 = vsel %vm5233, %v5242, 0.0
      %v5258 = vsel %vm5234, %v5246, 0.0
      %v5259 = vsel %vm5235, %v5246, 0.0
      %v5260 = vsel %vm5236, %v5250, 0.0
      %v5261 = vsel %vm5237, %v5250, 0.0
      %v5262 = vsel %vm5238, %v5254, 0.0
      %v5263 = vsel %vm5239, %v5254, 0.0
      %v5264 = vadd.f32 %v5116, %v5256
      %v5265 = vadd.f32 %v5117, %v5257
      %v5266 = vadd.f32 %v5118, %v5258
      %v5267 = vadd.f32 %v5119, %v5259
      %v5268 = vadd.f32 %v5120, %v5260
      %v5269 = vadd.f32 %v5121, %v5261
      %v5270 = vadd.f32 %v5122, %v5262
      %v5271 = vadd.f32 %v5123, %v5263
      %5272 = vset.pattern.permute.xlu0 41
      %5273 = vperm.xlu0 %5272, %v4963
      %v5274 = vpop.permute.xlu0 %5273
      %5276 = vset.pattern.permute.xlu0 41
      %5277 = vperm.xlu0 %5276, %v4964
      %v5278 = vpop.permute.xlu0 %5277
      %5280 = vset.pattern.permute.xlu0 41
      %5281 = vperm.xlu0 %5280, %v4965
      %v5282 = vpop.permute.xlu0 %5281
      %5284 = vset.pattern.permute.xlu0 41
      %5285 = vperm.xlu0 %5284, %v4966
      %v5286 = vpop.permute.xlu0 %5285
      %v5288 = vsel %vm5232, %v5274, 0.0
      %v5289 = vsel %vm5233, %v5274, 0.0
      %v5290 = vsel %vm5234, %v5278, 0.0
      %v5291 = vsel %vm5235, %v5278, 0.0
      %v5292 = vsel %vm5236, %v5282, 0.0
      %v5293 = vsel %vm5237, %v5282, 0.0
      %v5294 = vsel %vm5238, %v5286, 0.0
      %v5295 = vsel %vm5239, %v5286, 0.0
      %5296 = vrot.lane.b32.xlu0 %v5288, 1
      %v5297 = vpop.permute.xlu0 %5296
      %5298 = vrot.lane.b32.xlu0 %v5290, 1
      %v5299 = vpop.permute.xlu0 %5298
      %5300 = vrot.lane.b32.xlu0 %v5292, 1
      %v5301 = vpop.permute.xlu0 %5300
      %5302 = vrot.lane.b32.xlu0 %v5294, 1
      %v5303 = vpop.permute.xlu0 %5302
      %5304 = vrot.lane.b32.xlu0 %v5289, 1
      %v5305 = vpop.permute.xlu0 %5304
      %5306 = vrot.lane.b32.xlu0 %v5291, 1
      %v5307 = vpop.permute.xlu0 %5306
      %5308 = vrot.lane.b32.xlu0 %v5293, 1
      %v5309 = vpop.permute.xlu0 %5308
      %5310 = vrot.lane.b32.xlu0 %v5295, 1
      %v5311 = vpop.permute.xlu0 %5310
      %v5312 = vsel %vm1382, %v5297, %v5305
      %v5313 = vsel %vm1382, %v5299, %v5307
      %v5314 = vsel %vm1382, %v5301, %v5309
      %v5315 = vsel %vm1382, %v5303, %v5311
      %v5316 = vsel %vm1382, %v5305, %v5297
      %v5317 = vsel %vm1382, %v5307, %v5299
      %v5318 = vsel %vm1382, %v5309, %v5301
      %v5319 = vsel %vm1382, %v5311, %v5303
      %v5320 = vadd.f32 %v5264, %v5316
      %v5321 = vadd.f32 %v5265, %v5312
      %v5322 = vadd.f32 %v5266, %v5317
      %v5323 = vadd.f32 %v5267, %v5313
      %v5324 = vadd.f32 %v5268, %v5318
      %v5325 = vadd.f32 %v5269, %v5314
      %v5326 = vadd.f32 %v5270, %v5319
      %v5327 = vadd.f32 %v5271, %v5315
      %5328 = vset.pattern.permute.xlu0 41
      %5329 = vperm.xlu0 %5328, %v4967
      %v5330 = vpop.permute.xlu0 %5329
      %5332 = vset.pattern.permute.xlu0 41
      %5333 = vperm.xlu0 %5332, %v4968
      %v5334 = vpop.permute.xlu0 %5333
      %5336 = vset.pattern.permute.xlu0 41
      %5337 = vperm.xlu0 %5336, %v4969
      %v5338 = vpop.permute.xlu0 %5337
      %5340 = vset.pattern.permute.xlu0 41
      %5341 = vperm.xlu0 %5340, %v4970
      %v5342 = vpop.permute.xlu0 %5341
      %v5344 = vsel %vm5232, %v5330, 0.0
      %v5345 = vsel %vm5233, %v5330, 0.0
      %v5346 = vsel %vm5234, %v5334, 0.0
      %v5347 = vsel %vm5235, %v5334, 0.0
      %v5348 = vsel %vm5236, %v5338, 0.0
      %v5349 = vsel %vm5237, %v5338, 0.0
      %v5350 = vsel %vm5238, %v5342, 0.0
      %v5351 = vsel %vm5239, %v5342, 0.0
      %v5352 = vadd.f32 %v5212, %v5344
      %v5353 = vadd.f32 %v5213, %v5345
      %v5354 = vadd.f32 %v5214, %v5346
      %v5355 = vadd.f32 %v5215, %v5347
      %v5356 = vadd.f32 %v5216, %v5348
      %v5357 = vadd.f32 %v5217, %v5349
      %v5358 = vadd.f32 %v5218, %v5350
      %v5359 = vadd.f32 %v5219, %v5351
      %5360 = vset.pattern.permute.xlu0 41
      %5361 = vperm.xlu0 %5360, %v4971
      %v5362 = vpop.permute.xlu0 %5361
      %5364 = vset.pattern.permute.xlu0 41
      %5365 = vperm.xlu0 %5364, %v4972
      %v5366 = vpop.permute.xlu0 %5365
      %5368 = vset.pattern.permute.xlu0 41
      %5369 = vperm.xlu0 %5368, %v4973
      %v5370 = vpop.permute.xlu0 %5369
      %5372 = vset.pattern.permute.xlu0 41
      %5373 = vperm.xlu0 %5372, %v4974
      %v5374 = vpop.permute.xlu0 %5373
      %v5376 = vsel %vm5232, %v5362, 0.0
      %v5377 = vsel %vm5233, %v5362, 0.0
      %v5378 = vsel %vm5234, %v5366, 0.0
      %v5379 = vsel %vm5235, %v5366, 0.0
      %v5380 = vsel %vm5236, %v5370, 0.0
      %v5381 = vsel %vm5237, %v5370, 0.0
      %v5382 = vsel %vm5238, %v5374, 0.0
      %v5383 = vsel %vm5239, %v5374, 0.0
      %5384 = vrot.lane.b32.xlu0 %v5376, 1
      %v5385 = vpop.permute.xlu0 %5384
      %5386 = vrot.lane.b32.xlu0 %v5378, 1
      %v5387 = vpop.permute.xlu0 %5386
      %5388 = vrot.lane.b32.xlu0 %v5380, 1
      %v5389 = vpop.permute.xlu0 %5388
      %5390 = vrot.lane.b32.xlu0 %v5382, 1
      %v5391 = vpop.permute.xlu0 %5390
      %5392 = vrot.lane.b32.xlu0 %v5377, 1
      %v5393 = vpop.permute.xlu0 %5392
      %5394 = vrot.lane.b32.xlu0 %v5379, 1
      %v5395 = vpop.permute.xlu0 %5394
      %5396 = vrot.lane.b32.xlu0 %v5381, 1
      %v5397 = vpop.permute.xlu0 %5396
      %5398 = vrot.lane.b32.xlu0 %v5383, 1
      %v5399 = vpop.permute.xlu0 %5398
      %v5400 = vsel %vm1382, %v5385, %v5393
      %v5401 = vsel %vm1382, %v5387, %v5395
      %v5402 = vsel %vm1382, %v5389, %v5397
      %v5403 = vsel %vm1382, %v5391, %v5399
      %v5404 = vsel %vm1382, %v5393, %v5385
      %v5405 = vsel %vm1382, %v5395, %v5387
      %v5406 = vsel %vm1382, %v5397, %v5389
      %v5407 = vsel %vm1382, %v5399, %v5391
      %v5408 = vadd.f32 %v5352, %v5404
      %v5409 = vadd.f32 %v5353, %v5400
      %v5410 = vadd.f32 %v5354, %v5405
      %v5411 = vadd.f32 %v5355, %v5401
      %v5412 = vadd.f32 %v5356, %v5406
      %v5413 = vadd.f32 %v5357, %v5402
      %v5414 = vadd.f32 %v5358, %v5407
      %v5415 = vadd.f32 %v5359, %v5403
      %5416 = vset.pattern.permute.xlu0 26
      %5417 = vperm.xlu0 %5416, %v1049
      %v5418 = vpop.permute.xlu0 %5417
      %5419 = vset.pattern.permute.xlu0 26
      %5420 = vperm.xlu0 %5419, %v1050
      %v5421 = vpop.permute.xlu0 %5420
      %5422 = vset.pattern.permute.xlu0 26
      %5423 = vperm.xlu0 %5422, %v1051
      %v5424 = vpop.permute.xlu0 %5423
      %5425 = vset.pattern.permute.xlu0 26
      %5426 = vperm.xlu0 %5425, %v1052
      %v5427 = vpop.permute.xlu0 %5426
      %vm5428 = vcmp.eq.s32.totalorder %v1054, %v5418
      %vm5429 = vcmp.eq.s32.totalorder %v1055, %v5418
      %vm5430 = vcmp.eq.s32.totalorder %v1054, %v5421
      %vm5431 = vcmp.eq.s32.totalorder %v1055, %v5421
      %vm5432 = vcmp.eq.s32.totalorder %v1054, %v5424
      %vm5433 = vcmp.eq.s32.totalorder %v1055, %v5424
      %vm5434 = vcmp.eq.s32.totalorder %v1054, %v5427
      %vm5435 = vcmp.eq.s32.totalorder %v1055, %v5427
      %5436 = vset.pattern.permute.xlu0 42
      %5437 = vperm.xlu0 %5436, %v4959
      %v5438 = vpop.permute.xlu0 %5437
      %5440 = vset.pattern.permute.xlu0 42
      %5441 = vperm.xlu0 %5440, %v4960
      %v5442 = vpop.permute.xlu0 %5441
      %5444 = vset.pattern.permute.xlu0 42
      %5445 = vperm.xlu0 %5444, %v4961
      %v5446 = vpop.permute.xlu0 %5445
      %5448 = vset.pattern.permute.xlu0 42
      %5449 = vperm.xlu0 %5448, %v4962
      %v5450 = vpop.permute.xlu0 %5449
      %v5452 = vsel %vm5428, %v5438, 0.0
      %v5453 = vsel %vm5429, %v5438, 0.0
      %v5454 = vsel %vm5430, %v5442, 0.0
      %v5455 = vsel %vm5431, %v5442, 0.0
      %v5456 = vsel %vm5432, %v5446, 0.0
      %v5457 = vsel %vm5433, %v5446, 0.0
      %v5458 = vsel %vm5434, %v5450, 0.0
      %v5459 = vsel %vm5435, %v5450, 0.0
      %v5460 = vadd.f32 %v5320, %v5452
      %v5461 = vadd.f32 %v5321, %v5453
      %v5462 = vadd.f32 %v5322, %v5454
      %v5463 = vadd.f32 %v5323, %v5455
      %v5464 = vadd.f32 %v5324, %v5456
      %v5465 = vadd.f32 %v5325, %v5457
      %v5466 = vadd.f32 %v5326, %v5458
      %v5467 = vadd.f32 %v5327, %v5459
      %5468 = vset.pattern.permute.xlu0 42
      %5469 = vperm.xlu0 %5468, %v4963
      %v5470 = vpop.permute.xlu0 %5469
      %5472 = vset.pattern.permute.xlu0 42
      %5473 = vperm.xlu0 %5472, %v4964
      %v5474 = vpop.permute.xlu0 %5473
      %5476 = vset.pattern.permute.xlu0 42
      %5477 = vperm.xlu0 %5476, %v4965
      %v5478 = vpop.permute.xlu0 %5477
      %5480 = vset.pattern.permute.xlu0 42
      %5481 = vperm.xlu0 %5480, %v4966
      %v5482 = vpop.permute.xlu0 %5481
      %v5484 = vsel %vm5428, %v5470, 0.0
      %v5485 = vsel %vm5429, %v5470, 0.0
      %v5486 = vsel %vm5430, %v5474, 0.0
      %v5487 = vsel %vm5431, %v5474, 0.0
      %v5488 = vsel %vm5432, %v5478, 0.0
      %v5489 = vsel %vm5433, %v5478, 0.0
      %v5490 = vsel %vm5434, %v5482, 0.0
      %v5491 = vsel %vm5435, %v5482, 0.0
      %5492 = vrot.lane.b32.xlu0 %v5484, 1
      %v5493 = vpop.permute.xlu0 %5492
      %5494 = vrot.lane.b32.xlu0 %v5486, 1
      %v5495 = vpop.permute.xlu0 %5494
      %5496 = vrot.lane.b32.xlu0 %v5488, 1
      %v5497 = vpop.permute.xlu0 %5496
      %5498 = vrot.lane.b32.xlu0 %v5490, 1
      %v5499 = vpop.permute.xlu0 %5498
      %5500 = vrot.lane.b32.xlu0 %v5485, 1
      %v5501 = vpop.permute.xlu0 %5500
      %5502 = vrot.lane.b32.xlu0 %v5487, 1
      %v5503 = vpop.permute.xlu0 %5502
      %5504 = vrot.lane.b32.xlu0 %v5489, 1
      %v5505 = vpop.permute.xlu0 %5504
      %5506 = vrot.lane.b32.xlu0 %v5491, 1
      %v5507 = vpop.permute.xlu0 %5506
      %v5508 = vsel %vm1382, %v5493, %v5501
      %v5509 = vsel %vm1382, %v5495, %v5503
      %v5510 = vsel %vm1382, %v5497, %v5505
      %v5511 = vsel %vm1382, %v5499, %v5507
      %v5512 = vsel %vm1382, %v5501, %v5493
      %v5513 = vsel %vm1382, %v5503, %v5495
      %v5514 = vsel %vm1382, %v5505, %v5497
      %v5515 = vsel %vm1382, %v5507, %v5499
      %v5516 = vadd.f32 %v5460, %v5512
      %v5517 = vadd.f32 %v5461, %v5508
      %v5518 = vadd.f32 %v5462, %v5513
      %v5519 = vadd.f32 %v5463, %v5509
      %v5520 = vadd.f32 %v5464, %v5514
      %v5521 = vadd.f32 %v5465, %v5510
      %v5522 = vadd.f32 %v5466, %v5515
      %v5523 = vadd.f32 %v5467, %v5511
      %5524 = vset.pattern.permute.xlu0 42
      %5525 = vperm.xlu0 %5524, %v4967
      %v5526 = vpop.permute.xlu0 %5525
      %5528 = vset.pattern.permute.xlu0 42
      %5529 = vperm.xlu0 %5528, %v4968
      %v5530 = vpop.permute.xlu0 %5529
      %5532 = vset.pattern.permute.xlu0 42
      %5533 = vperm.xlu0 %5532, %v4969
      %v5534 = vpop.permute.xlu0 %5533
      %5536 = vset.pattern.permute.xlu0 42
      %5537 = vperm.xlu0 %5536, %v4970
      %v5538 = vpop.permute.xlu0 %5537
      %v5540 = vsel %vm5428, %v5526, 0.0
      %v5541 = vsel %vm5429, %v5526, 0.0
      %v5542 = vsel %vm5430, %v5530, 0.0
      %v5543 = vsel %vm5431, %v5530, 0.0
      %v5544 = vsel %vm5432, %v5534, 0.0
      %v5545 = vsel %vm5433, %v5534, 0.0
      %v5546 = vsel %vm5434, %v5538, 0.0
      %v5547 = vsel %vm5435, %v5538, 0.0
      %v5548 = vadd.f32 %v5408, %v5540
      %v5549 = vadd.f32 %v5409, %v5541
      %v5550 = vadd.f32 %v5410, %v5542
      %v5551 = vadd.f32 %v5411, %v5543
      %v5552 = vadd.f32 %v5412, %v5544
      %v5553 = vadd.f32 %v5413, %v5545
      %v5554 = vadd.f32 %v5414, %v5546
      %v5555 = vadd.f32 %v5415, %v5547
      %5556 = vset.pattern.permute.xlu0 42
      %5557 = vperm.xlu0 %5556, %v4971
      %v5558 = vpop.permute.xlu0 %5557
      %5560 = vset.pattern.permute.xlu0 42
      %5561 = vperm.xlu0 %5560, %v4972
      %v5562 = vpop.permute.xlu0 %5561
      %5564 = vset.pattern.permute.xlu0 42
      %5565 = vperm.xlu0 %5564, %v4973
      %v5566 = vpop.permute.xlu0 %5565
      %5568 = vset.pattern.permute.xlu0 42
      %5569 = vperm.xlu0 %5568, %v4974
      %v5570 = vpop.permute.xlu0 %5569
      %v5572 = vsel %vm5428, %v5558, 0.0
      %v5573 = vsel %vm5429, %v5558, 0.0
      %v5574 = vsel %vm5430, %v5562, 0.0
      %v5575 = vsel %vm5431, %v5562, 0.0
      %v5576 = vsel %vm5432, %v5566, 0.0
      %v5577 = vsel %vm5433, %v5566, 0.0
      %v5578 = vsel %vm5434, %v5570, 0.0
      %v5579 = vsel %vm5435, %v5570, 0.0
      %5580 = vrot.lane.b32.xlu0 %v5572, 1
      %v5581 = vpop.permute.xlu0 %5580
      %5582 = vrot.lane.b32.xlu0 %v5574, 1
      %v5583 = vpop.permute.xlu0 %5582
      %5584 = vrot.lane.b32.xlu0 %v5576, 1
      %v5585 = vpop.permute.xlu0 %5584
      %5586 = vrot.lane.b32.xlu0 %v5578, 1
      %v5587 = vpop.permute.xlu0 %5586
      %5588 = vrot.lane.b32.xlu0 %v5573, 1
      %v5589 = vpop.permute.xlu0 %5588
      %5590 = vrot.lane.b32.xlu0 %v5575, 1
      %v5591 = vpop.permute.xlu0 %5590
      %5592 = vrot.lane.b32.xlu0 %v5577, 1
      %v5593 = vpop.permute.xlu0 %5592
      %5594 = vrot.lane.b32.xlu0 %v5579, 1
      %v5595 = vpop.permute.xlu0 %5594
      %v5596 = vsel %vm1382, %v5581, %v5589
      %v5597 = vsel %vm1382, %v5583, %v5591
      %v5598 = vsel %vm1382, %v5585, %v5593
      %v5599 = vsel %vm1382, %v5587, %v5595
      %v5600 = vsel %vm1382, %v5589, %v5581
      %v5601 = vsel %vm1382, %v5591, %v5583
      %v5602 = vsel %vm1382, %v5593, %v5585
      %v5603 = vsel %vm1382, %v5595, %v5587
      %v5604 = vadd.f32 %v5548, %v5600
      %v5605 = vadd.f32 %v5549, %v5596
      %v5606 = vadd.f32 %v5550, %v5601
      %v5607 = vadd.f32 %v5551, %v5597
      %v5608 = vadd.f32 %v5552, %v5602
      %v5609 = vadd.f32 %v5553, %v5598
      %v5610 = vadd.f32 %v5554, %v5603
      %v5611 = vadd.f32 %v5555, %v5599
      %5612 = vset.pattern.permute.xlu0 27
      %5613 = vperm.xlu0 %5612, %v1049
      %v5614 = vpop.permute.xlu0 %5613
      %5615 = vset.pattern.permute.xlu0 27
      %5616 = vperm.xlu0 %5615, %v1050
      %v5617 = vpop.permute.xlu0 %5616
      %5618 = vset.pattern.permute.xlu0 27
      %5619 = vperm.xlu0 %5618, %v1051
      %v5620 = vpop.permute.xlu0 %5619
      %5621 = vset.pattern.permute.xlu0 27
      %5622 = vperm.xlu0 %5621, %v1052
      %v5623 = vpop.permute.xlu0 %5622
      %vm5624 = vcmp.eq.s32.totalorder %v1054, %v5614
      %vm5625 = vcmp.eq.s32.totalorder %v1055, %v5614
      %vm5626 = vcmp.eq.s32.totalorder %v1054, %v5617
      %vm5627 = vcmp.eq.s32.totalorder %v1055, %v5617
      %vm5628 = vcmp.eq.s32.totalorder %v1054, %v5620
      %vm5629 = vcmp.eq.s32.totalorder %v1055, %v5620
      %vm5630 = vcmp.eq.s32.totalorder %v1054, %v5623
      %vm5631 = vcmp.eq.s32.totalorder %v1055, %v5623
      %5632 = vset.pattern.permute.xlu0 43
      %5633 = vperm.xlu0 %5632, %v4959
      %v5634 = vpop.permute.xlu0 %5633
      %5636 = vset.pattern.permute.xlu0 43
      %5637 = vperm.xlu0 %5636, %v4960
      %v5638 = vpop.permute.xlu0 %5637
      %5640 = vset.pattern.permute.xlu0 43
      %5641 = vperm.xlu0 %5640, %v4961
      %v5642 = vpop.permute.xlu0 %5641
      %5644 = vset.pattern.permute.xlu0 43
      %5645 = vperm.xlu0 %5644, %v4962
      %v5646 = vpop.permute.xlu0 %5645
      %v5648 = vsel %vm5624, %v5634, 0.0
      %v5649 = vsel %vm5625, %v5634, 0.0
      %v5650 = vsel %vm5626, %v5638, 0.0
      %v5651 = vsel %vm5627, %v5638, 0.0
      %v5652 = vsel %vm5628, %v5642, 0.0
      %v5653 = vsel %vm5629, %v5642, 0.0
      %v5654 = vsel %vm5630, %v5646, 0.0
      %v5655 = vsel %vm5631, %v5646, 0.0
      %v5656 = vadd.f32 %v5516, %v5648
      %v5657 = vadd.f32 %v5517, %v5649
      %v5658 = vadd.f32 %v5518, %v5650
      %v5659 = vadd.f32 %v5519, %v5651
      %v5660 = vadd.f32 %v5520, %v5652
      %v5661 = vadd.f32 %v5521, %v5653
      %v5662 = vadd.f32 %v5522, %v5654
      %v5663 = vadd.f32 %v5523, %v5655
      %5664 = vset.pattern.permute.xlu0 43
      %5665 = vperm.xlu0 %5664, %v4963
      %v5666 = vpop.permute.xlu0 %5665
      %5668 = vset.pattern.permute.xlu0 43
      %5669 = vperm.xlu0 %5668, %v4964
      %v5670 = vpop.permute.xlu0 %5669
      %5672 = vset.pattern.permute.xlu0 43
      %5673 = vperm.xlu0 %5672, %v4965
      %v5674 = vpop.permute.xlu0 %5673
      %5676 = vset.pattern.permute.xlu0 43
      %5677 = vperm.xlu0 %5676, %v4966
      %v5678 = vpop.permute.xlu0 %5677
      %v5680 = vsel %vm5624, %v5666, 0.0
      %v5681 = vsel %vm5625, %v5666, 0.0
      %v5682 = vsel %vm5626, %v5670, 0.0
      %v5683 = vsel %vm5627, %v5670, 0.0
      %v5684 = vsel %vm5628, %v5674, 0.0
      %v5685 = vsel %vm5629, %v5674, 0.0
      %v5686 = vsel %vm5630, %v5678, 0.0
      %v5687 = vsel %vm5631, %v5678, 0.0
      %5688 = vrot.lane.b32.xlu0 %v5680, 1
      %v5689 = vpop.permute.xlu0 %5688
      %5690 = vrot.lane.b32.xlu0 %v5682, 1
      %v5691 = vpop.permute.xlu0 %5690
      %5692 = vrot.lane.b32.xlu0 %v5684, 1
      %v5693 = vpop.permute.xlu0 %5692
      %5694 = vrot.lane.b32.xlu0 %v5686, 1
      %v5695 = vpop.permute.xlu0 %5694
      %5696 = vrot.lane.b32.xlu0 %v5681, 1
      %v5697 = vpop.permute.xlu0 %5696
      %5698 = vrot.lane.b32.xlu0 %v5683, 1
      %v5699 = vpop.permute.xlu0 %5698
      %5700 = vrot.lane.b32.xlu0 %v5685, 1
      %v5701 = vpop.permute.xlu0 %5700
      %5702 = vrot.lane.b32.xlu0 %v5687, 1
      %v5703 = vpop.permute.xlu0 %5702
      %v5704 = vsel %vm1382, %v5689, %v5697
      %v5705 = vsel %vm1382, %v5691, %v5699
      %v5706 = vsel %vm1382, %v5693, %v5701
      %v5707 = vsel %vm1382, %v5695, %v5703
      %v5708 = vsel %vm1382, %v5697, %v5689
      %v5709 = vsel %vm1382, %v5699, %v5691
      %v5710 = vsel %vm1382, %v5701, %v5693
      %v5711 = vsel %vm1382, %v5703, %v5695
      %v5712 = vadd.f32 %v5656, %v5708
      %v5713 = vadd.f32 %v5657, %v5704
      %v5714 = vadd.f32 %v5658, %v5709
      %v5715 = vadd.f32 %v5659, %v5705
      %v5716 = vadd.f32 %v5660, %v5710
      %v5717 = vadd.f32 %v5661, %v5706
      %v5718 = vadd.f32 %v5662, %v5711
      %v5719 = vadd.f32 %v5663, %v5707
      %5720 = vset.pattern.permute.xlu0 43
      %5721 = vperm.xlu0 %5720, %v4967
      %v5722 = vpop.permute.xlu0 %5721
      %5724 = vset.pattern.permute.xlu0 43
      %5725 = vperm.xlu0 %5724, %v4968
      %v5726 = vpop.permute.xlu0 %5725
      %5728 = vset.pattern.permute.xlu0 43
      %5729 = vperm.xlu0 %5728, %v4969
      %v5730 = vpop.permute.xlu0 %5729
      %5732 = vset.pattern.permute.xlu0 43
      %5733 = vperm.xlu0 %5732, %v4970
      %v5734 = vpop.permute.xlu0 %5733
      %v5736 = vsel %vm5624, %v5722, 0.0
      %v5737 = vsel %vm5625, %v5722, 0.0
      %v5738 = vsel %vm5626, %v5726, 0.0
      %v5739 = vsel %vm5627, %v5726, 0.0
      %v5740 = vsel %vm5628, %v5730, 0.0
      %v5741 = vsel %vm5629, %v5730, 0.0
      %v5742 = vsel %vm5630, %v5734, 0.0
      %v5743 = vsel %vm5631, %v5734, 0.0
      %v5744 = vadd.f32 %v5604, %v5736
      %v5745 = vadd.f32 %v5605, %v5737
      %v5746 = vadd.f32 %v5606, %v5738
      %v5747 = vadd.f32 %v5607, %v5739
      %v5748 = vadd.f32 %v5608, %v5740
      %v5749 = vadd.f32 %v5609, %v5741
      %v5750 = vadd.f32 %v5610, %v5742
      %v5751 = vadd.f32 %v5611, %v5743
      %5752 = vset.pattern.permute.xlu0 43
      %5753 = vperm.xlu0 %5752, %v4971
      %v5754 = vpop.permute.xlu0 %5753
      %5756 = vset.pattern.permute.xlu0 43
      %5757 = vperm.xlu0 %5756, %v4972
      %v5758 = vpop.permute.xlu0 %5757
      %5760 = vset.pattern.permute.xlu0 43
      %5761 = vperm.xlu0 %5760, %v4973
      %v5762 = vpop.permute.xlu0 %5761
      %5764 = vset.pattern.permute.xlu0 43
      %5765 = vperm.xlu0 %5764, %v4974
      %v5766 = vpop.permute.xlu0 %5765
      %v5768 = vsel %vm5624, %v5754, 0.0
      %v5769 = vsel %vm5625, %v5754, 0.0
      %v5770 = vsel %vm5626, %v5758, 0.0
      %v5771 = vsel %vm5627, %v5758, 0.0
      %v5772 = vsel %vm5628, %v5762, 0.0
      %v5773 = vsel %vm5629, %v5762, 0.0
      %v5774 = vsel %vm5630, %v5766, 0.0
      %v5775 = vsel %vm5631, %v5766, 0.0
      %5776 = vrot.lane.b32.xlu0 %v5768, 1
      %v5777 = vpop.permute.xlu0 %5776
      %5778 = vrot.lane.b32.xlu0 %v5770, 1
      %v5779 = vpop.permute.xlu0 %5778
      %5780 = vrot.lane.b32.xlu0 %v5772, 1
      %v5781 = vpop.permute.xlu0 %5780
      %5782 = vrot.lane.b32.xlu0 %v5774, 1
      %v5783 = vpop.permute.xlu0 %5782
      %5784 = vrot.lane.b32.xlu0 %v5769, 1
      %v5785 = vpop.permute.xlu0 %5784
      %5786 = vrot.lane.b32.xlu0 %v5771, 1
      %v5787 = vpop.permute.xlu0 %5786
      %5788 = vrot.lane.b32.xlu0 %v5773, 1
      %v5789 = vpop.permute.xlu0 %5788
      %5790 = vrot.lane.b32.xlu0 %v5775, 1
      %v5791 = vpop.permute.xlu0 %5790
      %v5792 = vsel %vm1382, %v5777, %v5785
      %v5793 = vsel %vm1382, %v5779, %v5787
      %v5794 = vsel %vm1382, %v5781, %v5789
      %v5795 = vsel %vm1382, %v5783, %v5791
      %v5796 = vsel %vm1382, %v5785, %v5777
      %v5797 = vsel %vm1382, %v5787, %v5779
      %v5798 = vsel %vm1382, %v5789, %v5781
      %v5799 = vsel %vm1382, %v5791, %v5783
      %v5800 = vadd.f32 %v5744, %v5796
      %v5801 = vadd.f32 %v5745, %v5792
      %v5802 = vadd.f32 %v5746, %v5797
      %v5803 = vadd.f32 %v5747, %v5793
      %v5804 = vadd.f32 %v5748, %v5798
      %v5805 = vadd.f32 %v5749, %v5794
      %v5806 = vadd.f32 %v5750, %v5799
      %v5807 = vadd.f32 %v5751, %v5795
      %5808 = vrot.lane.b32.xlu0 %v5800, 16
      %v5809 = vpop.permute.xlu0 %5808
      %5810 = vrot.lane.b32.xlu0 %v5802, 16
      %v5811 = vpop.permute.xlu0 %5810
      %5812 = vrot.lane.b32.xlu0 %v5804, 16
      %v5813 = vpop.permute.xlu0 %5812
      %5814 = vrot.lane.b32.xlu0 %v5806, 16
      %v5815 = vpop.permute.xlu0 %5814
      %5816 = vrot.lane.b32.xlu0 %v5801, 16
      %v5817 = vpop.permute.xlu0 %5816
      %5818 = vrot.lane.b32.xlu0 %v5803, 16
      %v5819 = vpop.permute.xlu0 %5818
      %5820 = vrot.lane.b32.xlu0 %v5805, 16
      %v5821 = vpop.permute.xlu0 %5820
      %5822 = vrot.lane.b32.xlu0 %v5807, 16
      %v5823 = vpop.permute.xlu0 %5822
      %v5824 = vsel %vm2099, %v5809, %v5817
      %v5825 = vsel %vm2099, %v5811, %v5819
      %v5826 = vsel %vm2099, %v5813, %v5821
      %v5827 = vsel %vm2099, %v5815, %v5823
      %v5828 = vsel %vm2099, %v5817, %v5809
      %v5829 = vsel %vm2099, %v5819, %v5811
      %v5830 = vsel %vm2099, %v5821, %v5813
      %v5831 = vsel %vm2099, %v5823, %v5815
      %v5832 = vadd.f32 %v5712, %v5828
      %v5833 = vadd.f32 %v5713, %v5824
      %v5834 = vadd.f32 %v5714, %v5829
      %v5835 = vadd.f32 %v5715, %v5825
      %v5836 = vadd.f32 %v5716, %v5830
      %v5837 = vadd.f32 %v5717, %v5826
      %v5838 = vadd.f32 %v5718, %v5831
      %v5839 = vadd.f32 %v5719, %v5827
      %v5840 = vand.u32 %v4991, 4294901760
      %5841 = vmatpush.msra.mxu0 %v5840
      %v5842 = vand.u32 %v4990, 4294901760
      %5843 = vmatpush.msra.mxu0 %v5842
      %v5844 = vand.u32 %v4989, 4294901760
      %5845 = vmatpush.msra.mxu0 %v5844
      %v5846 = vand.u32 %v4988, 4294901760
      %5847 = vmatpush.msra.mxu0 %v5846
      %v5848 = vand.u32 %v4987, 4294901760
      %5849 = vmatpush.msra.mxu0 %v5848
      %v5850 = vand.u32 %v4986, 4294901760
      %5851 = vmatpush.msra.mxu0 %v5850
      %v5852 = vand.u32 %v4985, 4294901760
      %5853 = vmatpush.msra.mxu0 %v5852
      %v5854 = vand.u32 %v4984, 4294901760
      %5855 = vmatpush.msra.mxu0 %v5854
      %v5856 = vand.u32 %v4983, 4294901760
      %5857 = vmatpush.msra.mxu0 %v5856
      %v5858 = vand.u32 %v4982, 4294901760
      %5859 = vmatpush.msra.mxu0 %v5858
      %v5860 = vand.u32 %v4981, 4294901760
      %5861 = vmatpush.msra.mxu0 %v5860
      %v5862 = vand.u32 %v4980, 4294901760
      %5863 = vmatpush.msra.mxu0 %v5862
      %v5864 = vand.u32 %v4979, 4294901760
      %5865 = vmatpush.msra.mxu0 %v5864
      %v5866 = vand.u32 %v4978, 4294901760
      %5867 = vmatpush.msra.mxu0 %v5866
      %v5868 = vand.u32 %v4977, 4294901760
      %5869 = vmatpush.msra.mxu0 %v5868
      %v5870 = vand.u32 %v4976, 4294901760
      %5871 = vmatpush.msra.mxu0 %v5870
      %v5872 = vand.u32 %v5832, 4294901760
      %v5873 = vsub.f32 %v5832, %v5872
      %v5874 = vand.u32 %v5873, 4294901760
      %v5875 = vsub.f32 %v5873, %v5874
      %v5876 = vand.u32 %v5875, 4294901760
      %5877 = vmatmul.f32.gmra.mxu0 %v5876
      %v5878 = vpop.f32.mrf.mxu0
      %v5879 = vadd.f32 0.0, %v5878
      %v5880 = vand.u32 %v5834, 4294901760
      %v5881 = vsub.f32 %v5834, %v5880
      %v5882 = vand.u32 %v5881, 4294901760
      %v5883 = vsub.f32 %v5881, %v5882
      %v5884 = vand.u32 %v5883, 4294901760
      %5885 = vmatmul.f32.gmra.mxu0 %v5884
      %v5886 = vpop.f32.mrf.mxu0
      %v5887 = vadd.f32 0.0, %v5886
      %v5888 = vand.u32 %v5836, 4294901760
      %v5889 = vsub.f32 %v5836, %v5888
      %v5890 = vand.u32 %v5889, 4294901760
      %v5891 = vsub.f32 %v5889, %v5890
      %v5892 = vand.u32 %v5891, 4294901760
      %5893 = vmatmul.f32.gmra.mxu0 %v5892
      %v5894 = vpop.f32.mrf.mxu0
      %v5895 = vadd.f32 0.0, %v5894
      %v5896 = vand.u32 %v5838, 4294901760
      %v5897 = vsub.f32 %v5838, %v5896
      %v5898 = vand.u32 %v5897, 4294901760
      %v5899 = vsub.f32 %v5897, %v5898
      %v5900 = vand.u32 %v5899, 4294901760
      %5901 = vmatmul.f32.gmra.mxu0 %v5900
      %v5902 = vpop.f32.mrf.mxu0
      %v5903 = vadd.f32 0.0, %v5902
      %5904 = vdwg.mxu0
      %v5905 = vand.u32 %v4991, 4294901760
      %v5906 = vsub.f32 %v4991, %v5905
      %v5907 = vand.u32 %v5906, 4294901760
      %v5908 = vsub.f32 %v5906, %v5907
      %v5909 = vand.u32 %v5908, 4294901760
      %5910 = vmatpush.msra.mxu0 %v5909
      %v5911 = vand.u32 %v4990, 4294901760
      %v5912 = vsub.f32 %v4990, %v5911
      %v5913 = vand.u32 %v5912, 4294901760
      %v5914 = vsub.f32 %v5912, %v5913
      %v5915 = vand.u32 %v5914, 4294901760
      %5916 = vmatpush.msra.mxu0 %v5915
      %v5917 = vand.u32 %v4989, 4294901760
      %v5918 = vsub.f32 %v4989, %v5917
      %v5919 = vand.u32 %v5918, 4294901760
      %v5920 = vsub.f32 %v5918, %v5919
      %v5921 = vand.u32 %v5920, 4294901760
      %5922 = vmatpush.msra.mxu0 %v5921
      %v5923 = vand.u32 %v4988, 4294901760
      %v5924 = vsub.f32 %v4988, %v5923
      %v5925 = vand.u32 %v5924, 4294901760
      %v5926 = vsub.f32 %v5924, %v5925
      %v5927 = vand.u32 %v5926, 4294901760
      %5928 = vmatpush.msra.mxu0 %v5927
      %v5929 = vand.u32 %v4987, 4294901760
      %v5930 = vsub.f32 %v4987, %v5929
      %v5931 = vand.u32 %v5930, 4294901760
      %v5932 = vsub.f32 %v5930, %v5931
      %v5933 = vand.u32 %v5932, 4294901760
      %5934 = vmatpush.msra.mxu0 %v5933
      %v5935 = vand.u32 %v4986, 4294901760
      %v5936 = vsub.f32 %v4986, %v5935
      %v5937 = vand.u32 %v5936, 4294901760
      %v5938 = vsub.f32 %v5936, %v5937
      %v5939 = vand.u32 %v5938, 4294901760
      %5940 = vmatpush.msra.mxu0 %v5939
      %v5941 = vand.u32 %v4985, 4294901760
      %v5942 = vsub.f32 %v4985, %v5941
      %v5943 = vand.u32 %v5942, 4294901760
      %v5944 = vsub.f32 %v5942, %v5943
      %v5945 = vand.u32 %v5944, 4294901760
      %5946 = vmatpush.msra.mxu0 %v5945
      %v5947 = vand.u32 %v4984, 4294901760
      %v5948 = vsub.f32 %v4984, %v5947
      %v5949 = vand.u32 %v5948, 4294901760
      %v5950 = vsub.f32 %v5948, %v5949
      %v5951 = vand.u32 %v5950, 4294901760
      %5952 = vmatpush.msra.mxu0 %v5951
      %v5953 = vand.u32 %v4983, 4294901760
      %v5954 = vsub.f32 %v4983, %v5953
      %v5955 = vand.u32 %v5954, 4294901760
      %v5956 = vsub.f32 %v5954, %v5955
      %v5957 = vand.u32 %v5956, 4294901760
      %5958 = vmatpush.msra.mxu0 %v5957
      %v5959 = vand.u32 %v4982, 4294901760
      %v5960 = vsub.f32 %v4982, %v5959
      %v5961 = vand.u32 %v5960, 4294901760
      %v5962 = vsub.f32 %v5960, %v5961
      %v5963 = vand.u32 %v5962, 4294901760
      %5964 = vmatpush.msra.mxu0 %v5963
      %v5965 = vand.u32 %v4981, 4294901760
      %v5966 = vsub.f32 %v4981, %v5965
      %v5967 = vand.u32 %v5966, 4294901760
      %v5968 = vsub.f32 %v5966, %v5967
      %v5969 = vand.u32 %v5968, 4294901760
      %5970 = vmatpush.msra.mxu0 %v5969
      %v5971 = vand.u32 %v4980, 4294901760
      %v5972 = vsub.f32 %v4980, %v5971
      %v5973 = vand.u32 %v5972, 4294901760
      %v5974 = vsub.f32 %v5972, %v5973
      %v5975 = vand.u32 %v5974, 4294901760
      %5976 = vmatpush.msra.mxu0 %v5975
      %v5977 = vand.u32 %v4979, 4294901760
      %v5978 = vsub.f32 %v4979, %v5977
      %v5979 = vand.u32 %v5978, 4294901760
      %v5980 = vsub.f32 %v5978, %v5979
      %v5981 = vand.u32 %v5980, 4294901760
      %5982 = vmatpush.msra.mxu0 %v5981
      %v5983 = vand.u32 %v4978, 4294901760
      %v5984 = vsub.f32 %v4978, %v5983
      %v5985 = vand.u32 %v5984, 4294901760
      %v5986 = vsub.f32 %v5984, %v5985
      %v5987 = vand.u32 %v5986, 4294901760
      %5988 = vmatpush.msra.mxu0 %v5987
      %v5989 = vand.u32 %v4977, 4294901760
      %v5990 = vsub.f32 %v4977, %v5989
      %v5991 = vand.u32 %v5990, 4294901760
      %v5992 = vsub.f32 %v5990, %v5991
      %v5993 = vand.u32 %v5992, 4294901760
      %5994 = vmatpush.msra.mxu0 %v5993
      %v5995 = vand.u32 %v4976, 4294901760
      %v5996 = vsub.f32 %v4976, %v5995
      %v5997 = vand.u32 %v5996, 4294901760
      %v5998 = vsub.f32 %v5996, %v5997
      %v5999 = vand.u32 %v5998, 4294901760
      %6000 = vmatpush.msra.mxu0 %v5999
      %v6001 = vand.u32 %v5832, 4294901760
      %6002 = vmatmul.f32.gmra.mxu0 %v6001
      %v6003 = vpop.f32.mrf.mxu0
      %v6004 = vadd.f32 %v5879, %v6003
      %v6005 = vand.u32 %v5834, 4294901760
      %6006 = vmatmul.f32.gmra.mxu0 %v6005
      %v6007 = vpop.f32.mrf.mxu0
      %v6008 = vadd.f32 %v5887, %v6007
      %v6009 = vand.u32 %v5836, 4294901760
      %6010 = vmatmul.f32.gmra.mxu0 %v6009
      %v6011 = vpop.f32.mrf.mxu0
      %v6012 = vadd.f32 %v5895, %v6011
      %v6013 = vand.u32 %v5838, 4294901760
      %6014 = vmatmul.f32.gmra.mxu0 %v6013
      %v6015 = vpop.f32.mrf.mxu0
      %v6016 = vadd.f32 %v5903, %v6015
      %6017 = vdwg.mxu0
      %v6018 = vand.u32 %v4991, 4294901760
      %v6019 = vsub.f32 %v4991, %v6018
      %6020 = vmatpush.msra.mxu0 %v6019
      %v6021 = vand.u32 %v4990, 4294901760
      %v6022 = vsub.f32 %v4990, %v6021
      %6023 = vmatpush.msra.mxu0 %v6022
      %v6024 = vand.u32 %v4989, 4294901760
      %v6025 = vsub.f32 %v4989, %v6024
      %6026 = vmatpush.msra.mxu0 %v6025
      %v6027 = vand.u32 %v4988, 4294901760
      %v6028 = vsub.f32 %v4988, %v6027
      %6029 = vmatpush.msra.mxu0 %v6028
      %v6030 = vand.u32 %v4987, 4294901760
      %v6031 = vsub.f32 %v4987, %v6030
      %6032 = vmatpush.msra.mxu0 %v6031
      %v6033 = vand.u32 %v4986, 4294901760
      %v6034 = vsub.f32 %v4986, %v6033
      %6035 = vmatpush.msra.mxu0 %v6034
      %v6036 = vand.u32 %v4985, 4294901760
      %v6037 = vsub.f32 %v4985, %v6036
      %6038 = vmatpush.msra.mxu0 %v6037
      %v6039 = vand.u32 %v4984, 4294901760
      %v6040 = vsub.f32 %v4984, %v6039
      %6041 = vmatpush.msra.mxu0 %v6040
      %v6042 = vand.u32 %v4983, 4294901760
      %v6043 = vsub.f32 %v4983, %v6042
      %6044 = vmatpush.msra.mxu0 %v6043
      %v6045 = vand.u32 %v4982, 4294901760
      %v6046 = vsub.f32 %v4982, %v6045
      %6047 = vmatpush.msra.mxu0 %v6046
      %v6048 = vand.u32 %v4981, 4294901760
      %v6049 = vsub.f32 %v4981, %v6048
      %6050 = vmatpush.msra.mxu0 %v6049
      %v6051 = vand.u32 %v4980, 4294901760
      %v6052 = vsub.f32 %v4980, %v6051
      %6053 = vmatpush.msra.mxu0 %v6052
      %v6054 = vand.u32 %v4979, 4294901760
      %v6055 = vsub.f32 %v4979, %v6054
      %6056 = vmatpush.msra.mxu0 %v6055
      %v6057 = vand.u32 %v4978, 4294901760
      %v6058 = vsub.f32 %v4978, %v6057
      %6059 = vmatpush.msra.mxu0 %v6058
      %v6060 = vand.u32 %v4977, 4294901760
      %v6061 = vsub.f32 %v4977, %v6060
      %6062 = vmatpush.msra.mxu0 %v6061
      %v6063 = vand.u32 %v4976, 4294901760
      %v6064 = vsub.f32 %v4976, %v6063
      %6065 = vmatpush.msra.mxu0 %v6064
      %v6066 = vand.u32 %v5832, 4294901760
      %v6067 = vsub.f32 %v5832, %v6066
      %6068 = vmatmul.f32.gmra.mxu0 %v6067
      %v6069 = vpop.f32.mrf.mxu0
      %v6070 = vadd.f32 %v6004, %v6069
      %v6071 = vand.u32 %v5834, 4294901760
      %v6072 = vsub.f32 %v5834, %v6071
      %6073 = vmatmul.f32.gmra.mxu0 %v6072
      %v6074 = vpop.f32.mrf.mxu0
      %v6075 = vadd.f32 %v6008, %v6074
      %v6076 = vand.u32 %v5836, 4294901760
      %v6077 = vsub.f32 %v5836, %v6076
      %6078 = vmatmul.f32.gmra.mxu0 %v6077
      %v6079 = vpop.f32.mrf.mxu0
      %v6080 = vadd.f32 %v6012, %v6079
      %v6081 = vand.u32 %v5838, 4294901760
      %v6082 = vsub.f32 %v5838, %v6081
      %6083 = vmatmul.f32.gmra.mxu0 %v6082
      %v6084 = vpop.f32.mrf.mxu0
      %v6085 = vadd.f32 %v6016, %v6084
      %6086 = vdwg.mxu0
      %v6087 = vand.u32 %v4991, 4294901760
      %6088 = vmatpush.msra.mxu0 %v6087
      %v6089 = vand.u32 %v4990, 4294901760
      %6090 = vmatpush.msra.mxu0 %v6089
      %v6091 = vand.u32 %v4989, 4294901760
      %6092 = vmatpush.msra.mxu0 %v6091
      %v6093 = vand.u32 %v4988, 4294901760
      %6094 = vmatpush.msra.mxu0 %v6093
      %v6095 = vand.u32 %v4987, 4294901760
      %6096 = vmatpush.msra.mxu0 %v6095
      %v6097 = vand.u32 %v4986, 4294901760
      %6098 = vmatpush.msra.mxu0 %v6097
      %v6099 = vand.u32 %v4985, 4294901760
      %6100 = vmatpush.msra.mxu0 %v6099
      %v6101 = vand.u32 %v4984, 4294901760
      %6102 = vmatpush.msra.mxu0 %v6101
      %v6103 = vand.u32 %v4983, 4294901760
      %6104 = vmatpush.msra.mxu0 %v6103
      %v6105 = vand.u32 %v4982, 4294901760
      %6106 = vmatpush.msra.mxu0 %v6105
      %v6107 = vand.u32 %v4981, 4294901760
      %6108 = vmatpush.msra.mxu0 %v6107
      %v6109 = vand.u32 %v4980, 4294901760
      %6110 = vmatpush.msra.mxu0 %v6109
      %v6111 = vand.u32 %v4979, 4294901760
      %6112 = vmatpush.msra.mxu0 %v6111
      %v6113 = vand.u32 %v4978, 4294901760
      %6114 = vmatpush.msra.mxu0 %v6113
      %v6115 = vand.u32 %v4977, 4294901760
      %6116 = vmatpush.msra.mxu0 %v6115
      %v6117 = vand.u32 %v4976, 4294901760
      %6118 = vmatpush.msra.mxu0 %v6117
      %v6119 = vand.u32 %v5832, 4294901760
      %v6120 = vsub.f32 %v5832, %v6119
      %v6121 = vand.u32 %v6120, 4294901760
      %6122 = vmatmul.f32.gmra.mxu0 %v6121
      %v6123 = vpop.f32.mrf.mxu0
      %v6124 = vadd.f32 %v6070, %v6123
      %v6125 = vand.u32 %v5834, 4294901760
      %v6126 = vsub.f32 %v5834, %v6125
      %v6127 = vand.u32 %v6126, 4294901760
      %6128 = vmatmul.f32.gmra.mxu0 %v6127
      %v6129 = vpop.f32.mrf.mxu0
      %v6130 = vadd.f32 %v6075, %v6129
      %v6131 = vand.u32 %v5836, 4294901760
      %v6132 = vsub.f32 %v5836, %v6131
      %v6133 = vand.u32 %v6132, 4294901760
      %6134 = vmatmul.f32.gmra.mxu0 %v6133
      %v6135 = vpop.f32.mrf.mxu0
      %v6136 = vadd.f32 %v6080, %v6135
      %v6137 = vand.u32 %v5838, 4294901760
      %v6138 = vsub.f32 %v5838, %v6137
      %v6139 = vand.u32 %v6138, 4294901760
      %6140 = vmatmul.f32.gmra.mxu0 %v6139
      %v6141 = vpop.f32.mrf.mxu0
      %v6142 = vadd.f32 %v6085, %v6141
      %6143 = vdwg.mxu0
      %v6144 = vand.u32 %v4991, 4294901760
      %v6145 = vsub.f32 %v4991, %v6144
      %v6146 = vand.u32 %v6145, 4294901760
      %6147 = vmatpush.msra.mxu0 %v6146
      %v6148 = vand.u32 %v4990, 4294901760
      %v6149 = vsub.f32 %v4990, %v6148
      %v6150 = vand.u32 %v6149, 4294901760
      %6151 = vmatpush.msra.mxu0 %v6150
      %v6152 = vand.u32 %v4989, 4294901760
      %v6153 = vsub.f32 %v4989, %v6152
      %v6154 = vand.u32 %v6153, 4294901760
      %6155 = vmatpush.msra.mxu0 %v6154
      %v6156 = vand.u32 %v4988, 4294901760
      %v6157 = vsub.f32 %v4988, %v6156
      %v6158 = vand.u32 %v6157, 4294901760
      %6159 = vmatpush.msra.mxu0 %v6158
      %v6160 = vand.u32 %v4987, 4294901760
      %v6161 = vsub.f32 %v4987, %v6160
      %v6162 = vand.u32 %v6161, 4294901760
      %6163 = vmatpush.msra.mxu0 %v6162
      %v6164 = vand.u32 %v4986, 4294901760
      %v6165 = vsub.f32 %v4986, %v6164
      %v6166 = vand.u32 %v6165, 4294901760
      %6167 = vmatpush.msra.mxu0 %v6166
      %v6168 = vand.u32 %v4985, 4294901760
      %v6169 = vsub.f32 %v4985, %v6168
      %v6170 = vand.u32 %v6169, 4294901760
      %6171 = vmatpush.msra.mxu0 %v6170
      %v6172 = vand.u32 %v4984, 4294901760
      %v6173 = vsub.f32 %v4984, %v6172
      %v6174 = vand.u32 %v6173, 4294901760
      %6175 = vmatpush.msra.mxu0 %v6174
      %v6176 = vand.u32 %v4983, 4294901760
      %v6177 = vsub.f32 %v4983, %v6176
      %v6178 = vand.u32 %v6177, 4294901760
      %6179 = vmatpush.msra.mxu0 %v6178
      %v6180 = vand.u32 %v4982, 4294901760
      %v6181 = vsub.f32 %v4982, %v6180
      %v6182 = vand.u32 %v6181, 4294901760
      %6183 = vmatpush.msra.mxu0 %v6182
      %v6184 = vand.u32 %v4981, 4294901760
      %v6185 = vsub.f32 %v4981, %v6184
      %v6186 = vand.u32 %v6185, 4294901760
      %6187 = vmatpush.msra.mxu0 %v6186
      %v6188 = vand.u32 %v4980, 4294901760
      %v6189 = vsub.f32 %v4980, %v6188
      %v6190 = vand.u32 %v6189, 4294901760
      %6191 = vmatpush.msra.mxu0 %v6190
      %v6192 = vand.u32 %v4979, 4294901760
      %v6193 = vsub.f32 %v4979, %v6192
      %v6194 = vand.u32 %v6193, 4294901760
      %6195 = vmatpush.msra.mxu0 %v6194
      %v6196 = vand.u32 %v4978, 4294901760
      %v6197 = vsub.f32 %v4978, %v6196
      %v6198 = vand.u32 %v6197, 4294901760
      %6199 = vmatpush.msra.mxu0 %v6198
      %v6200 = vand.u32 %v4977, 4294901760
      %v6201 = vsub.f32 %v4977, %v6200
      %v6202 = vand.u32 %v6201, 4294901760
      %6203 = vmatpush.msra.mxu0 %v6202
      %v6204 = vand.u32 %v4976, 4294901760
      %v6205 = vsub.f32 %v4976, %v6204
      %v6206 = vand.u32 %v6205, 4294901760
      %6207 = vmatpush.msra.mxu0 %v6206
      %v6208 = vand.u32 %v5832, 4294901760
      %6209 = vmatmul.f32.gmra.mxu0 %v6208
      %v6210 = vpop.f32.mrf.mxu0
      %v6211 = vadd.f32 %v6124, %v6210
      %v6212 = vand.u32 %v5834, 4294901760
      %6213 = vmatmul.f32.gmra.mxu0 %v6212
      %v6214 = vpop.f32.mrf.mxu0
      %v6215 = vadd.f32 %v6130, %v6214
      %v6216 = vand.u32 %v5836, 4294901760
      %6217 = vmatmul.f32.gmra.mxu0 %v6216
      %v6218 = vpop.f32.mrf.mxu0
      %v6219 = vadd.f32 %v6136, %v6218
      %v6220 = vand.u32 %v5838, 4294901760
      %6221 = vmatmul.f32.gmra.mxu0 %v6220
      %v6222 = vpop.f32.mrf.mxu0
      %v6223 = vadd.f32 %v6142, %v6222
      %6224 = vdwg.mxu0
      %v6225 = vand.u32 %v4991, 4294901760
      %6226 = vmatpush.msra.mxu0 %v6225
      %v6227 = vand.u32 %v4990, 4294901760
      %6228 = vmatpush.msra.mxu0 %v6227
      %v6229 = vand.u32 %v4989, 4294901760
      %6230 = vmatpush.msra.mxu0 %v6229
      %v6231 = vand.u32 %v4988, 4294901760
      %6232 = vmatpush.msra.mxu0 %v6231
      %v6233 = vand.u32 %v4987, 4294901760
      %6234 = vmatpush.msra.mxu0 %v6233
      %v6235 = vand.u32 %v4986, 4294901760
      %6236 = vmatpush.msra.mxu0 %v6235
      %v6237 = vand.u32 %v4985, 4294901760
      %6238 = vmatpush.msra.mxu0 %v6237
      %v6239 = vand.u32 %v4984, 4294901760
      %6240 = vmatpush.msra.mxu0 %v6239
      %v6241 = vand.u32 %v4983, 4294901760
      %6242 = vmatpush.msra.mxu0 %v6241
      %v6243 = vand.u32 %v4982, 4294901760
      %6244 = vmatpush.msra.mxu0 %v6243
      %v6245 = vand.u32 %v4981, 4294901760
      %6246 = vmatpush.msra.mxu0 %v6245
      %v6247 = vand.u32 %v4980, 4294901760
      %6248 = vmatpush.msra.mxu0 %v6247
      %v6249 = vand.u32 %v4979, 4294901760
      %6250 = vmatpush.msra.mxu0 %v6249
      %v6251 = vand.u32 %v4978, 4294901760
      %6252 = vmatpush.msra.mxu0 %v6251
      %v6253 = vand.u32 %v4977, 4294901760
      %6254 = vmatpush.msra.mxu0 %v6253
      %v6255 = vand.u32 %v4976, 4294901760
      %6256 = vmatpush.msra.mxu0 %v6255
      %v6257 = vand.u32 %v5832, 4294901760
      %6258 = vmatmul.f32.gmra.mxu0 %v6257
      %v6259 = vpop.f32.mrf.mxu0
      %v6260 = vadd.f32 %v6211, %v6259
      %v6261 = vand.u32 %v5834, 4294901760
      %6262 = vmatmul.f32.gmra.mxu0 %v6261
      %v6263 = vpop.f32.mrf.mxu0
      %v6264 = vadd.f32 %v6215, %v6263
      %v6265 = vand.u32 %v5836, 4294901760
      %6266 = vmatmul.f32.gmra.mxu0 %v6265
      %v6267 = vpop.f32.mrf.mxu0
      %v6268 = vadd.f32 %v6219, %v6267
      %v6269 = vand.u32 %v5838, 4294901760
      %6270 = vmatmul.f32.gmra.mxu0 %v6269
      %v6271 = vpop.f32.mrf.mxu0
      %v6272 = vadd.f32 %v6223, %v6271
      %6273 = vdwg.mxu0
      %v6274 = vand.u32 %v5007, 4294901760
      %6275 = vmatpush.msra.mxu0 %v6274
      %v6276 = vand.u32 %v5006, 4294901760
      %6277 = vmatpush.msra.mxu0 %v6276
      %v6278 = vand.u32 %v5005, 4294901760
      %6279 = vmatpush.msra.mxu0 %v6278
      %v6280 = vand.u32 %v5004, 4294901760
      %6281 = vmatpush.msra.mxu0 %v6280
      %v6282 = vand.u32 %v5003, 4294901760
      %6283 = vmatpush.msra.mxu0 %v6282
      %v6284 = vand.u32 %v5002, 4294901760
      %6285 = vmatpush.msra.mxu0 %v6284
      %v6286 = vand.u32 %v5001, 4294901760
      %6287 = vmatpush.msra.mxu0 %v6286
      %v6288 = vand.u32 %v5000, 4294901760
      %6289 = vmatpush.msra.mxu0 %v6288
      %v6290 = vand.u32 %v4999, 4294901760
      %6291 = vmatpush.msra.mxu0 %v6290
      %v6292 = vand.u32 %v4998, 4294901760
      %6293 = vmatpush.msra.mxu0 %v6292
      %v6294 = vand.u32 %v4997, 4294901760
      %6295 = vmatpush.msra.mxu0 %v6294
      %v6296 = vand.u32 %v4996, 4294901760
      %6297 = vmatpush.msra.mxu0 %v6296
      %v6298 = vand.u32 %v4995, 4294901760
      %6299 = vmatpush.msra.mxu0 %v6298
      %v6300 = vand.u32 %v4994, 4294901760
      %6301 = vmatpush.msra.mxu0 %v6300
      %v6302 = vand.u32 %v4993, 4294901760
      %6303 = vmatpush.msra.mxu0 %v6302
      %v6304 = vand.u32 %v4992, 4294901760
      %6305 = vmatpush.msra.mxu0 %v6304
      %v6306 = vand.u32 %v5833, 4294901760
      %v6307 = vsub.f32 %v5833, %v6306
      %v6308 = vand.u32 %v6307, 4294901760
      %v6309 = vsub.f32 %v6307, %v6308
      %v6310 = vand.u32 %v6309, 4294901760
      %6311 = vmatmul.f32.gmra.mxu0 %v6310
      %v6312 = vpop.f32.mrf.mxu0
      %v6313 = vadd.f32 %v6260, %v6312
      %v6314 = vand.u32 %v5835, 4294901760
      %v6315 = vsub.f32 %v5835, %v6314
      %v6316 = vand.u32 %v6315, 4294901760
      %v6317 = vsub.f32 %v6315, %v6316
      %v6318 = vand.u32 %v6317, 4294901760
      %6319 = vmatmul.f32.gmra.mxu0 %v6318
      %v6320 = vpop.f32.mrf.mxu0
      %v6321 = vadd.f32 %v6264, %v6320
      %v6322 = vand.u32 %v5837, 4294901760
      %v6323 = vsub.f32 %v5837, %v6322
      %v6324 = vand.u32 %v6323, 4294901760
      %v6325 = vsub.f32 %v6323, %v6324
      %v6326 = vand.u32 %v6325, 4294901760
      %6327 = vmatmul.f32.gmra.mxu0 %v6326
      %v6328 = vpop.f32.mrf.mxu0
      %v6329 = vadd.f32 %v6268, %v6328
      %v6330 = vand.u32 %v5839, 4294901760
      %v6331 = vsub.f32 %v5839, %v6330
      %v6332 = vand.u32 %v6331, 4294901760
      %v6333 = vsub.f32 %v6331, %v6332
      %v6334 = vand.u32 %v6333, 4294901760
      %6335 = vmatmul.f32.gmra.mxu0 %v6334
      %v6336 = vpop.f32.mrf.mxu0
      %v6337 = vadd.f32 %v6272, %v6336
      %6338 = vdwg.mxu0
      %v6339 = vand.u32 %v5007, 4294901760
      %v6340 = vsub.f32 %v5007, %v6339
      %v6341 = vand.u32 %v6340, 4294901760
      %v6342 = vsub.f32 %v6340, %v6341
      %v6343 = vand.u32 %v6342, 4294901760
      %6344 = vmatpush.msra.mxu0 %v6343
      %v6345 = vand.u32 %v5006, 4294901760
      %v6346 = vsub.f32 %v5006, %v6345
      %v6347 = vand.u32 %v6346, 4294901760
      %v6348 = vsub.f32 %v6346, %v6347
      %v6349 = vand.u32 %v6348, 4294901760
      %6350 = vmatpush.msra.mxu0 %v6349
      %v6351 = vand.u32 %v5005, 4294901760
      %v6352 = vsub.f32 %v5005, %v6351
      %v6353 = vand.u32 %v6352, 4294901760
      %v6354 = vsub.f32 %v6352, %v6353
      %v6355 = vand.u32 %v6354, 4294901760
      %6356 = vmatpush.msra.mxu0 %v6355
      %v6357 = vand.u32 %v5004, 4294901760
      %v6358 = vsub.f32 %v5004, %v6357
      %v6359 = vand.u32 %v6358, 4294901760
      %v6360 = vsub.f32 %v6358, %v6359
      %v6361 = vand.u32 %v6360, 4294901760
      %6362 = vmatpush.msra.mxu0 %v6361
      %v6363 = vand.u32 %v5003, 4294901760
      %v6364 = vsub.f32 %v5003, %v6363
      %v6365 = vand.u32 %v6364, 4294901760
      %v6366 = vsub.f32 %v6364, %v6365
      %v6367 = vand.u32 %v6366, 4294901760
      %6368 = vmatpush.msra.mxu0 %v6367
      %v6369 = vand.u32 %v5002, 4294901760
      %v6370 = vsub.f32 %v5002, %v6369
      %v6371 = vand.u32 %v6370, 4294901760
      %v6372 = vsub.f32 %v6370, %v6371
      %v6373 = vand.u32 %v6372, 4294901760
      %6374 = vmatpush.msra.mxu0 %v6373
      %v6375 = vand.u32 %v5001, 4294901760
      %v6376 = vsub.f32 %v5001, %v6375
      %v6377 = vand.u32 %v6376, 4294901760
      %v6378 = vsub.f32 %v6376, %v6377
      %v6379 = vand.u32 %v6378, 4294901760
      %6380 = vmatpush.msra.mxu0 %v6379
      %v6381 = vand.u32 %v5000, 4294901760
      %v6382 = vsub.f32 %v5000, %v6381
      %v6383 = vand.u32 %v6382, 4294901760
      %v6384 = vsub.f32 %v6382, %v6383
      %v6385 = vand.u32 %v6384, 4294901760
      %6386 = vmatpush.msra.mxu0 %v6385
      %v6387 = vand.u32 %v4999, 4294901760
      %v6388 = vsub.f32 %v4999, %v6387
      %v6389 = vand.u32 %v6388, 4294901760
      %v6390 = vsub.f32 %v6388, %v6389
      %v6391 = vand.u32 %v6390, 4294901760
      %6392 = vmatpush.msra.mxu0 %v6391
      %v6393 = vand.u32 %v4998, 4294901760
      %v6394 = vsub.f32 %v4998, %v6393
      %v6395 = vand.u32 %v6394, 4294901760
      %v6396 = vsub.f32 %v6394, %v6395
      %v6397 = vand.u32 %v6396, 4294901760
      %6398 = vmatpush.msra.mxu0 %v6397
      %v6399 = vand.u32 %v4997, 4294901760
      %v6400 = vsub.f32 %v4997, %v6399
      %v6401 = vand.u32 %v6400, 4294901760
      %v6402 = vsub.f32 %v6400, %v6401
      %v6403 = vand.u32 %v6402, 4294901760
      %6404 = vmatpush.msra.mxu0 %v6403
      %v6405 = vand.u32 %v4996, 4294901760
      %v6406 = vsub.f32 %v4996, %v6405
      %v6407 = vand.u32 %v6406, 4294901760
      %v6408 = vsub.f32 %v6406, %v6407
      %v6409 = vand.u32 %v6408, 4294901760
      %6410 = vmatpush.msra.mxu0 %v6409
      %v6411 = vand.u32 %v4995, 4294901760
      %v6412 = vsub.f32 %v4995, %v6411
      %v6413 = vand.u32 %v6412, 4294901760
      %v6414 = vsub.f32 %v6412, %v6413
      %v6415 = vand.u32 %v6414, 4294901760
      %6416 = vmatpush.msra.mxu0 %v6415
      %v6417 = vand.u32 %v4994, 4294901760
      %v6418 = vsub.f32 %v4994, %v6417
      %v6419 = vand.u32 %v6418, 4294901760
      %v6420 = vsub.f32 %v6418, %v6419
      %v6421 = vand.u32 %v6420, 4294901760
      %6422 = vmatpush.msra.mxu0 %v6421
      %v6423 = vand.u32 %v4993, 4294901760
      %v6424 = vsub.f32 %v4993, %v6423
      %v6425 = vand.u32 %v6424, 4294901760
      %v6426 = vsub.f32 %v6424, %v6425
      %v6427 = vand.u32 %v6426, 4294901760
      %6428 = vmatpush.msra.mxu0 %v6427
      %v6429 = vand.u32 %v4992, 4294901760
      %v6430 = vsub.f32 %v4992, %v6429
      %v6431 = vand.u32 %v6430, 4294901760
      %v6432 = vsub.f32 %v6430, %v6431
      %v6433 = vand.u32 %v6432, 4294901760
      %6434 = vmatpush.msra.mxu0 %v6433
      %v6435 = vand.u32 %v5833, 4294901760
      %6436 = vmatmul.f32.gmra.mxu0 %v6435
      %v6437 = vpop.f32.mrf.mxu0
      %v6438 = vadd.f32 %v6313, %v6437
      %v6439 = vand.u32 %v5835, 4294901760
      %6440 = vmatmul.f32.gmra.mxu0 %v6439
      %v6441 = vpop.f32.mrf.mxu0
      %v6442 = vadd.f32 %v6321, %v6441
      %v6443 = vand.u32 %v5837, 4294901760
      %6444 = vmatmul.f32.gmra.mxu0 %v6443
      %v6445 = vpop.f32.mrf.mxu0
      %v6446 = vadd.f32 %v6329, %v6445
      %v6447 = vand.u32 %v5839, 4294901760
      %6448 = vmatmul.f32.gmra.mxu0 %v6447
      %v6449 = vpop.f32.mrf.mxu0
      %v6450 = vadd.f32 %v6337, %v6449
      %6451 = vdwg.mxu0
      %v6452 = vand.u32 %v5007, 4294901760
      %v6453 = vsub.f32 %v5007, %v6452
      %6454 = vmatpush.msra.mxu0 %v6453
      %v6455 = vand.u32 %v5006, 4294901760
      %v6456 = vsub.f32 %v5006, %v6455
      %6457 = vmatpush.msra.mxu0 %v6456
      %v6458 = vand.u32 %v5005, 4294901760
      %v6459 = vsub.f32 %v5005, %v6458
      %6460 = vmatpush.msra.mxu0 %v6459
      %v6461 = vand.u32 %v5004, 4294901760
      %v6462 = vsub.f32 %v5004, %v6461
      %6463 = vmatpush.msra.mxu0 %v6462
      %v6464 = vand.u32 %v5003, 4294901760
      %v6465 = vsub.f32 %v5003, %v6464
      %6466 = vmatpush.msra.mxu0 %v6465
      %v6467 = vand.u32 %v5002, 4294901760
      %v6468 = vsub.f32 %v5002, %v6467
      %6469 = vmatpush.msra.mxu0 %v6468
      %v6470 = vand.u32 %v5001, 4294901760
      %v6471 = vsub.f32 %v5001, %v6470
      %6472 = vmatpush.msra.mxu0 %v6471
      %v6473 = vand.u32 %v5000, 4294901760
      %v6474 = vsub.f32 %v5000, %v6473
      %6475 = vmatpush.msra.mxu0 %v6474
      %v6476 = vand.u32 %v4999, 4294901760
      %v6477 = vsub.f32 %v4999, %v6476
      %6478 = vmatpush.msra.mxu0 %v6477
      %v6479 = vand.u32 %v4998, 4294901760
      %v6480 = vsub.f32 %v4998, %v6479
      %6481 = vmatpush.msra.mxu0 %v6480
      %v6482 = vand.u32 %v4997, 4294901760
      %v6483 = vsub.f32 %v4997, %v6482
      %6484 = vmatpush.msra.mxu0 %v6483
      %v6485 = vand.u32 %v4996, 4294901760
      %v6486 = vsub.f32 %v4996, %v6485
      %6487 = vmatpush.msra.mxu0 %v6486
      %v6488 = vand.u32 %v4995, 4294901760
      %v6489 = vsub.f32 %v4995, %v6488
      %6490 = vmatpush.msra.mxu0 %v6489
      %v6491 = vand.u32 %v4994, 4294901760
      %v6492 = vsub.f32 %v4994, %v6491
      %6493 = vmatpush.msra.mxu0 %v6492
      %v6494 = vand.u32 %v4993, 4294901760
      %v6495 = vsub.f32 %v4993, %v6494
      %6496 = vmatpush.msra.mxu0 %v6495
      %v6497 = vand.u32 %v4992, 4294901760
      %v6498 = vsub.f32 %v4992, %v6497
      %6499 = vmatpush.msra.mxu0 %v6498
      %v6500 = vand.u32 %v5833, 4294901760
      %v6501 = vsub.f32 %v5833, %v6500
      %6502 = vmatmul.f32.gmra.mxu0 %v6501
      %v6503 = vpop.f32.mrf.mxu0
      %v6504 = vadd.f32 %v6438, %v6503
      %v6505 = vand.u32 %v5835, 4294901760
      %v6506 = vsub.f32 %v5835, %v6505
      %6507 = vmatmul.f32.gmra.mxu0 %v6506
      %v6508 = vpop.f32.mrf.mxu0
      %v6509 = vadd.f32 %v6442, %v6508
      %v6510 = vand.u32 %v5837, 4294901760
      %v6511 = vsub.f32 %v5837, %v6510
      %6512 = vmatmul.f32.gmra.mxu0 %v6511
      %v6513 = vpop.f32.mrf.mxu0
      %v6514 = vadd.f32 %v6446, %v6513
      %v6515 = vand.u32 %v5839, 4294901760
      %v6516 = vsub.f32 %v5839, %v6515
      %6517 = vmatmul.f32.gmra.mxu0 %v6516
      %v6518 = vpop.f32.mrf.mxu0
      %v6519 = vadd.f32 %v6450, %v6518
      %6520 = vdwg.mxu0
      %v6521 = vand.u32 %v5007, 4294901760
      %6522 = vmatpush.msra.mxu0 %v6521
      %v6523 = vand.u32 %v5006, 4294901760
      %6524 = vmatpush.msra.mxu0 %v6523
      %v6525 = vand.u32 %v5005, 4294901760
      %6526 = vmatpush.msra.mxu0 %v6525
      %v6527 = vand.u32 %v5004, 4294901760
      %6528 = vmatpush.msra.mxu0 %v6527
      %v6529 = vand.u32 %v5003, 4294901760
      %6530 = vmatpush.msra.mxu0 %v6529
      %v6531 = vand.u32 %v5002, 4294901760
      %6532 = vmatpush.msra.mxu0 %v6531
      %v6533 = vand.u32 %v5001, 4294901760
      %6534 = vmatpush.msra.mxu0 %v6533
      %v6535 = vand.u32 %v5000, 4294901760
      %6536 = vmatpush.msra.mxu0 %v6535
      %v6537 = vand.u32 %v4999, 4294901760
      %6538 = vmatpush.msra.mxu0 %v6537
      %v6539 = vand.u32 %v4998, 4294901760
      %6540 = vmatpush.msra.mxu0 %v6539
      %v6541 = vand.u32 %v4997, 4294901760
      %6542 = vmatpush.msra.mxu0 %v6541
      %v6543 = vand.u32 %v4996, 4294901760
      %6544 = vmatpush.msra.mxu0 %v6543
      %v6545 = vand.u32 %v4995, 4294901760
      %6546 = vmatpush.msra.mxu0 %v6545
      %v6547 = vand.u32 %v4994, 4294901760
      %6548 = vmatpush.msra.mxu0 %v6547
      %v6549 = vand.u32 %v4993, 4294901760
      %6550 = vmatpush.msra.mxu0 %v6549
      %v6551 = vand.u32 %v4992, 4294901760
      %6552 = vmatpush.msra.mxu0 %v6551
      %v6553 = vand.u32 %v5833, 4294901760
      %v6554 = vsub.f32 %v5833, %v6553
      %v6555 = vand.u32 %v6554, 4294901760
      %6556 = vmatmul.f32.gmra.mxu0 %v6555
      %v6557 = vpop.f32.mrf.mxu0
      %v6558 = vadd.f32 %v6504, %v6557
      %v6559 = vand.u32 %v5835, 4294901760
      %v6560 = vsub.f32 %v5835, %v6559
      %v6561 = vand.u32 %v6560, 4294901760
      %6562 = vmatmul.f32.gmra.mxu0 %v6561
      %v6563 = vpop.f32.mrf.mxu0
      %v6564 = vadd.f32 %v6509, %v6563
      %v6565 = vand.u32 %v5837, 4294901760
      %v6566 = vsub.f32 %v5837, %v6565
      %v6567 = vand.u32 %v6566, 4294901760
      %6568 = vmatmul.f32.gmra.mxu0 %v6567
      %v6569 = vpop.f32.mrf.mxu0
      %v6570 = vadd.f32 %v6514, %v6569
      %v6571 = vand.u32 %v5839, 4294901760
      %v6572 = vsub.f32 %v5839, %v6571
      %v6573 = vand.u32 %v6572, 4294901760
      %6574 = vmatmul.f32.gmra.mxu0 %v6573
      %v6575 = vpop.f32.mrf.mxu0
      %v6576 = vadd.f32 %v6519, %v6575
      %6577 = vdwg.mxu0
      %v6578 = vand.u32 %v5007, 4294901760
      %v6579 = vsub.f32 %v5007, %v6578
      %v6580 = vand.u32 %v6579, 4294901760
      %6581 = vmatpush.msra.mxu0 %v6580
      %v6582 = vand.u32 %v5006, 4294901760
      %v6583 = vsub.f32 %v5006, %v6582
      %v6584 = vand.u32 %v6583, 4294901760
      %6585 = vmatpush.msra.mxu0 %v6584
      %v6586 = vand.u32 %v5005, 4294901760
      %v6587 = vsub.f32 %v5005, %v6586
      %v6588 = vand.u32 %v6587, 4294901760
      %6589 = vmatpush.msra.mxu0 %v6588
      %v6590 = vand.u32 %v5004, 4294901760
      %v6591 = vsub.f32 %v5004, %v6590
      %v6592 = vand.u32 %v6591, 4294901760
      %6593 = vmatpush.msra.mxu0 %v6592
      %v6594 = vand.u32 %v5003, 4294901760
      %v6595 = vsub.f32 %v5003, %v6594
      %v6596 = vand.u32 %v6595, 4294901760
      %6597 = vmatpush.msra.mxu0 %v6596
      %v6598 = vand.u32 %v5002, 4294901760
      %v6599 = vsub.f32 %v5002, %v6598
      %v6600 = vand.u32 %v6599, 4294901760
      %6601 = vmatpush.msra.mxu0 %v6600
      %v6602 = vand.u32 %v5001, 4294901760
      %v6603 = vsub.f32 %v5001, %v6602
      %v6604 = vand.u32 %v6603, 4294901760
      %6605 = vmatpush.msra.mxu0 %v6604
      %v6606 = vand.u32 %v5000, 4294901760
      %v6607 = vsub.f32 %v5000, %v6606
      %v6608 = vand.u32 %v6607, 4294901760
      %6609 = vmatpush.msra.mxu0 %v6608
      %v6610 = vand.u32 %v4999, 4294901760
      %v6611 = vsub.f32 %v4999, %v6610
      %v6612 = vand.u32 %v6611, 4294901760
      %6613 = vmatpush.msra.mxu0 %v6612
      %v6614 = vand.u32 %v4998, 4294901760
      %v6615 = vsub.f32 %v4998, %v6614
      %v6616 = vand.u32 %v6615, 4294901760
      %6617 = vmatpush.msra.mxu0 %v6616
      %v6618 = vand.u32 %v4997, 4294901760
      %v6619 = vsub.f32 %v4997, %v6618
      %v6620 = vand.u32 %v6619, 4294901760
      %6621 = vmatpush.msra.mxu0 %v6620
      %v6622 = vand.u32 %v4996, 4294901760
      %v6623 = vsub.f32 %v4996, %v6622
      %v6624 = vand.u32 %v6623, 4294901760
      %6625 = vmatpush.msra.mxu0 %v6624
      %v6626 = vand.u32 %v4995, 4294901760
      %v6627 = vsub.f32 %v4995, %v6626
      %v6628 = vand.u32 %v6627, 4294901760
      %6629 = vmatpush.msra.mxu0 %v6628
      %v6630 = vand.u32 %v4994, 4294901760
      %v6631 = vsub.f32 %v4994, %v6630
      %v6632 = vand.u32 %v6631, 4294901760
      %6633 = vmatpush.msra.mxu0 %v6632
      %v6634 = vand.u32 %v4993, 4294901760
      %v6635 = vsub.f32 %v4993, %v6634
      %v6636 = vand.u32 %v6635, 4294901760
      %6637 = vmatpush.msra.mxu0 %v6636
      %v6638 = vand.u32 %v4992, 4294901760
      %v6639 = vsub.f32 %v4992, %v6638
      %v6640 = vand.u32 %v6639, 4294901760
      %6641 = vmatpush.msra.mxu0 %v6640
      %v6642 = vand.u32 %v5833, 4294901760
      %6643 = vmatmul.f32.gmra.mxu0 %v6642
      %v6644 = vpop.f32.mrf.mxu0
      %v6645 = vadd.f32 %v6558, %v6644
      %v6646 = vand.u32 %v5835, 4294901760
      %6647 = vmatmul.f32.gmra.mxu0 %v6646
      %v6648 = vpop.f32.mrf.mxu0
      %v6649 = vadd.f32 %v6564, %v6648
      %v6650 = vand.u32 %v5837, 4294901760
      %6651 = vmatmul.f32.gmra.mxu0 %v6650
      %v6652 = vpop.f32.mrf.mxu0
      %v6653 = vadd.f32 %v6570, %v6652
      %v6654 = vand.u32 %v5839, 4294901760
      %6655 = vmatmul.f32.gmra.mxu0 %v6654
      %v6656 = vpop.f32.mrf.mxu0
      %v6657 = vadd.f32 %v6576, %v6656
      %6658 = vdwg.mxu0
      %v6659 = vand.u32 %v5007, 4294901760
      %6660 = vmatpush.msra.mxu0 %v6659
      %v6661 = vand.u32 %v5006, 4294901760
      %6662 = vmatpush.msra.mxu0 %v6661
      %v6663 = vand.u32 %v5005, 4294901760
      %6664 = vmatpush.msra.mxu0 %v6663
      %v6665 = vand.u32 %v5004, 4294901760
      %6666 = vmatpush.msra.mxu0 %v6665
      %v6667 = vand.u32 %v5003, 4294901760
      %6668 = vmatpush.msra.mxu0 %v6667
      %v6669 = vand.u32 %v5002, 4294901760
      %6670 = vmatpush.msra.mxu0 %v6669
      %v6671 = vand.u32 %v5001, 4294901760
      %6672 = vmatpush.msra.mxu0 %v6671
      %v6673 = vand.u32 %v5000, 4294901760
      %6674 = vmatpush.msra.mxu0 %v6673
      %v6675 = vand.u32 %v4999, 4294901760
      %6676 = vmatpush.msra.mxu0 %v6675
      %v6677 = vand.u32 %v4998, 4294901760
      %6678 = vmatpush.msra.mxu0 %v6677
      %v6679 = vand.u32 %v4997, 4294901760
      %6680 = vmatpush.msra.mxu0 %v6679
      %v6681 = vand.u32 %v4996, 4294901760
      %6682 = vmatpush.msra.mxu0 %v6681
      %v6683 = vand.u32 %v4995, 4294901760
      %6684 = vmatpush.msra.mxu0 %v6683
      %v6685 = vand.u32 %v4994, 4294901760
      %6686 = vmatpush.msra.mxu0 %v6685
      %v6687 = vand.u32 %v4993, 4294901760
      %6688 = vmatpush.msra.mxu0 %v6687
      %v6689 = vand.u32 %v4992, 4294901760
      %6690 = vmatpush.msra.mxu0 %v6689
      %v6691 = vand.u32 %v5833, 4294901760
      %6692 = vmatmul.f32.gmra.mxu0 %v6691
      %v6693 = vpop.f32.mrf.mxu0
      %v6694 = vadd.f32 %v6645, %v6693
      %v6695 = vand.u32 %v5835, 4294901760
      %6696 = vmatmul.f32.gmra.mxu0 %v6695
      %v6697 = vpop.f32.mrf.mxu0
      %v6698 = vadd.f32 %v6649, %v6697
      %v6699 = vand.u32 %v5837, 4294901760
      %6700 = vmatmul.f32.gmra.mxu0 %v6699
      %v6701 = vpop.f32.mrf.mxu0
      %v6702 = vadd.f32 %v6653, %v6701
      %v6703 = vand.u32 %v5839, 4294901760
      %6704 = vmatmul.f32.gmra.mxu0 %v6703
      %v6705 = vpop.f32.mrf.mxu0
      %v6706 = vadd.f32 %v6657, %v6705
      %6707 = vdwg.mxu0
      %v6708 = vadd.f32 %v4832, %v6694
      %v6709 = vadd.f32 %v4836, %v6698
      %v6710 = vadd.f32 %v4840, %v6702
      %v6711 = vadd.f32 %v4844, %v6706
      %vm6712 = vcmask 392544
      %v6713 = vsel %vm6712, %v747, -inf
      %6714 = vmax.xlane.f32.xlu0 %v6713
      %v6715 = vpop.xlane.xlu0 %6714
      %v6716 = vsel %vm6712, %v751, -inf
      %6717 = vmax.xlane.f32.xlu0 %v6716
      %v6718 = vpop.xlane.xlu0 %6717
      %v6719 = vsel %vm6712, %v755, -inf
      %6720 = vmax.xlane.f32.xlu0 %v6719
      %v6721 = vpop.xlane.xlu0 %6720
      %v6722 = vsel %vm6712, %v759, -inf
      %6723 = vmax.xlane.f32.xlu0 %v6722
      %v6724 = vpop.xlane.xlu0 %6723
      %v6725 = vsub.f32 %v747, %v6715
      %v6726 = vsub.f32 %v751, %v6718
      %v6727 = vsub.f32 %v755, %v6721
      %v6728 = vsub.f32 %v759, %v6724
      %v6729 = vmul.f32 %v6725, 1.442695
      %v6730 = vpow.pop %v6729
      %v6731 = vmul.f32 %v6726, 1.442695
      %v6732 = vpow.pop %v6731
      %v6733 = vmul.f32 %v6727, 1.442695
      %v6734 = vpow.pop %v6733
      %v6735 = vmul.f32 %v6728, 1.442695
      %v6736 = vpow.pop %v6735
      %6741 = vrot.lane.b32.xlu0 %v6730, 84
      %v6742 = vpop.permute.xlu0 %6741
      %6743 = vrot.lane.b32.xlu0 %v6732, 84
      %v6744 = vpop.permute.xlu0 %6743
      %6745 = vrot.lane.b32.xlu0 %v6734, 84
      %v6746 = vpop.permute.xlu0 %6745
      %6747 = vrot.lane.b32.xlu0 %v6736, 84
      %v6748 = vpop.permute.xlu0 %6747
      %v6753 = vsel %vm1097, %v6742, 0.0
      %6754 = vadd.xlane.f32.xlu0 %v6753
      %v6755 = vpop.xlane.xlu0 %6754
      %v6756 = vsel %vm1097, %v6744, 0.0
      %6757 = vadd.xlane.f32.xlu0 %v6756
      %v6758 = vpop.xlane.xlu0 %6757
      %v6759 = vsel %vm1097, %v6746, 0.0
      %6760 = vadd.xlane.f32.xlu0 %v6759
      %v6761 = vpop.xlane.xlu0 %6760
      %v6762 = vsel %vm1097, %v6748, 0.0
      %6763 = vadd.xlane.f32.xlu0 %v6762
      %v6764 = vpop.xlane.xlu0 %6763
      %v6765 = vrcp.pop %v6755
      %v6766 = vmul.f32 %v6755, %v6765
      %v6767 = vsub.f32 1.0, %v6766
      %v6768 = vmul.f32 %v6765, %v6767
      %v6769 = vadd.f32 %v6765, %v6768
      %vm6770 = vweird.f32 %v6755
      %vm6771 = vweird.f32 %v6765
      %vm6772 = vmor %vm6770, %vm6771
      %v6773 = vsel %vm6772, %v6765, %v6769
      %v6774 = vand.u32 2147483647, %v6755
      %vm6775 = vcmp.eq.f32.partialorder %v6774, 8.507059e+37
      %v6776 = vand.u32 %v6755, 2147483648
      %v6777 = vor.u32 1.1754944e-38, %v6776
      %v6778 = vsel %vm6775, %v6777, %v6773
      %v6779 = vmul.f32 %v6730, %v6778
      %v6780 = vrcp.pop %v6758
      %v6781 = vmul.f32 %v6758, %v6780
      %v6782 = vsub.f32 1.0, %v6781
      %v6783 = vmul.f32 %v6780, %v6782
      %v6784 = vadd.f32 %v6780, %v6783
      %vm6785 = vweird.f32 %v6758
      %vm6786 = vweird.f32 %v6780
      %vm6787 = vmor %vm6785, %vm6786
      %v6788 = vsel %vm6787, %v6780, %v6784
      %v6789 = vand.u32 2147483647, %v6758
      %vm6790 = vcmp.eq.f32.partialorder %v6789, 8.507059e+37
      %v6791 = vand.u32 %v6758, 2147483648
      %v6792 = vor.u32 1.1754944e-38, %v6791
      %v6793 = vsel %vm6790, %v6792, %v6788
      %v6794 = vmul.f32 %v6732, %v6793
      %v6795 = vrcp.pop %v6761
      %v6796 = vmul.f32 %v6761, %v6795
      %v6797 = vsub.f32 1.0, %v6796
      %v6798 = vmul.f32 %v6795, %v6797
      %v6799 = vadd.f32 %v6795, %v6798
      %vm6800 = vweird.f32 %v6761
      %vm6801 = vweird.f32 %v6795
      %vm6802 = vmor %vm6800, %vm6801
      %v6803 = vsel %vm6802, %v6795, %v6799
      %v6804 = vand.u32 2147483647, %v6761
      %vm6805 = vcmp.eq.f32.partialorder %v6804, 8.507059e+37
      %v6806 = vand.u32 %v6761, 2147483648
      %v6807 = vor.u32 1.1754944e-38, %v6806
      %v6808 = vsel %vm6805, %v6807, %v6803
      %v6809 = vmul.f32 %v6734, %v6808
      %v6810 = vrcp.pop %v6764
      %v6811 = vmul.f32 %v6764, %v6810
      %v6812 = vsub.f32 1.0, %v6811
      %v6813 = vmul.f32 %v6810, %v6812
      %v6814 = vadd.f32 %v6810, %v6813
      %vm6815 = vweird.f32 %v6764
      %vm6816 = vweird.f32 %v6810
      %vm6817 = vmor %vm6815, %vm6816
      %v6818 = vsel %vm6817, %v6810, %v6814
      %v6819 = vand.u32 2147483647, %v6764
      %vm6820 = vcmp.eq.f32.partialorder %v6819, 8.507059e+37
      %v6821 = vand.u32 %v6764, 2147483648
      %v6822 = vor.u32 1.1754944e-38, %v6821
      %v6823 = vsel %vm6820, %v6822, %v6818
      %v6824 = vmul.f32 %v6736, %v6823
      %v6825 = vmul.f32 %v6779, %v1175
      %v6826 = vmul.f32 %v6794, %v1177
      %v6827 = vmul.f32 %v6809, %v1179
      %v6828 = vmul.f32 %v6824, %v1181
      %v6829 = vmul.f32 %v6779, %v1195
      %v6830 = vmul.f32 %v6794, %v1197
      %v6831 = vmul.f32 %v6809, %v1199
      %v6832 = vmul.f32 %v6824, %v1201
      %v6833 = vmul.f32 %v6779, %v1215
      %v6834 = vmul.f32 %v6794, %v1217
      %v6835 = vmul.f32 %v6809, %v1219
      %v6836 = vmul.f32 %v6824, %v1221
      %v6837 = vmul.f32 %v6779, %v1235
      %v6838 = vmul.f32 %v6794, %v1237
      %v6839 = vmul.f32 %v6809, %v1239
      %v6840 = vmul.f32 %v6824, %v1241
      %s6841 = scalar_lea.vmem %s439, 768
      %v6842 = vld [vmem:[%s6841] sm:$0xff]
      %v6843 = vld [vmem:[%s6841 + $0x8] sm:$0xff]
      %v6844 = vld [vmem:[%s6841 + $0x10] sm:$0xff]
      %v6845 = vld [vmem:[%s6841 + $0x18] sm:$0xff]
      %v6846 = vld [vmem:[%s6841 + $0x20] sm:$0xff]
      %v6847 = vld [vmem:[%s6841 + $0x28] sm:$0xff]
      %v6848 = vld [vmem:[%s6841 + $0x30] sm:$0xff]
      %v6849 = vld [vmem:[%s6841 + $0x38] sm:$0xff]
      %v6850 = vld [vmem:[%s6841 + $0x40] sm:$0xff]
      %v6851 = vld [vmem:[%s6841 + $0x48] sm:$0xff]
      %v6852 = vld [vmem:[%s6841 + $0x50] sm:$0xff]
      %v6853 = vld [vmem:[%s6841 + $0x58] sm:$0xff]
      %v6854 = vld [vmem:[%s6841 + $0x60] sm:$0xff]
      %v6855 = vld [vmem:[%s6841 + $0x68] sm:$0xff]
      %v6856 = vld [vmem:[%s6841 + $0x70] sm:$0xff]
      %v6857 = vld [vmem:[%s6841 + $0x78] sm:$0xff]
      %v6858 = vld [vmem:[%s6841 + $0x80] sm:$0xff]
      %v6859 = vld [vmem:[%s6841 + $0x88] sm:$0xff]
      %v6860 = vld [vmem:[%s6841 + $0x90] sm:$0xff]
      %v6861 = vld [vmem:[%s6841 + $0x98] sm:$0xff]
      %v6862 = vld [vmem:[%s6841 + $0xa0] sm:$0xff]
      %v6863 = vld [vmem:[%s6841 + $0xa8] sm:$0xff]
      %v6864 = vld [vmem:[%s6841 + $0xb0] sm:$0xff]
      %v6865 = vld [vmem:[%s6841 + $0xb8] sm:$0xff]
      %v6866 = vld [vmem:[%s6841 + $0xc0] sm:$0xff]
      %v6867 = vld [vmem:[%s6841 + $0xc8] sm:$0xff]
      %v6868 = vld [vmem:[%s6841 + $0xd0] sm:$0xff]
      %v6869 = vld [vmem:[%s6841 + $0xd8] sm:$0xff]
      %v6870 = vld [vmem:[%s6841 + $0xe0] sm:$0xff]
      %v6871 = vld [vmem:[%s6841 + $0xe8] sm:$0xff]
      %v6872 = vld [vmem:[%s6841 + $0xf0] sm:$0xff]
      %v6873 = vld [vmem:[%s6841 + $0xf8] sm:$0xff]
      %6874 = vset.pattern.permute.xlu0 28
      %6875 = vperm.xlu0 %6874, %v1049
      %v6876 = vpop.permute.xlu0 %6875
      %6877 = vset.pattern.permute.xlu0 28
      %6878 = vperm.xlu0 %6877, %v1050
      %v6879 = vpop.permute.xlu0 %6878
      %6880 = vset.pattern.permute.xlu0 28
      %6881 = vperm.xlu0 %6880, %v1051
      %v6882 = vpop.permute.xlu0 %6881
      %6883 = vset.pattern.permute.xlu0 28
      %6884 = vperm.xlu0 %6883, %v1052
      %v6885 = vpop.permute.xlu0 %6884
      %vm6886 = vcmp.eq.s32.totalorder %v1054, %v6876
      %vm6887 = vcmp.eq.s32.totalorder %v1055, %v6876
      %vm6888 = vcmp.eq.s32.totalorder %v1054, %v6879
      %vm6889 = vcmp.eq.s32.totalorder %v1055, %v6879
      %vm6890 = vcmp.eq.s32.totalorder %v1054, %v6882
      %vm6891 = vcmp.eq.s32.totalorder %v1055, %v6882
      %vm6892 = vcmp.eq.s32.totalorder %v1054, %v6885
      %vm6893 = vcmp.eq.s32.totalorder %v1055, %v6885
      %6895 = vset.pattern.permute.xlu0 44
      %6896 = vperm.xlu0 %6895, %v6825
      %v6897 = vpop.permute.xlu0 %6896
      %6900 = vset.pattern.permute.xlu0 44
      %6901 = vperm.xlu0 %6900, %v6826
      %v6902 = vpop.permute.xlu0 %6901
      %6905 = vset.pattern.permute.xlu0 44
      %6906 = vperm.xlu0 %6905, %v6827
      %v6907 = vpop.permute.xlu0 %6906
      %6910 = vset.pattern.permute.xlu0 44
      %6911 = vperm.xlu0 %6910, %v6828
      %v6912 = vpop.permute.xlu0 %6911
      %v6914 = vsel %vm6886, %v6897, 0.0
      %v6915 = vsel %vm6887, %v6897, 0.0
      %v6916 = vsel %vm6888, %v6902, 0.0
      %v6917 = vsel %vm6889, %v6902, 0.0
      %v6918 = vsel %vm6890, %v6907, 0.0
      %v6919 = vsel %vm6891, %v6907, 0.0
      %v6920 = vsel %vm6892, %v6912, 0.0
      %v6921 = vsel %vm6893, %v6912, 0.0
      %v6922 = vadd.f32 %v6914, 0.0
      %v6923 = vadd.f32 %v6915, 0.0
      %v6924 = vadd.f32 %v6916, 0.0
      %v6925 = vadd.f32 %v6917, 0.0
      %v6926 = vadd.f32 %v6918, 0.0
      %v6927 = vadd.f32 %v6919, 0.0
      %v6928 = vadd.f32 %v6920, 0.0
      %v6929 = vadd.f32 %v6921, 0.0
      %6931 = vset.pattern.permute.xlu0 44
      %6932 = vperm.xlu0 %6931, %v6829
      %v6933 = vpop.permute.xlu0 %6932
      %6936 = vset.pattern.permute.xlu0 44
      %6937 = vperm.xlu0 %6936, %v6830
      %v6938 = vpop.permute.xlu0 %6937
      %6941 = vset.pattern.permute.xlu0 44
      %6942 = vperm.xlu0 %6941, %v6831
      %v6943 = vpop.permute.xlu0 %6942
      %6946 = vset.pattern.permute.xlu0 44
      %6947 = vperm.xlu0 %6946, %v6832
      %v6948 = vpop.permute.xlu0 %6947
      %v6950 = vsel %vm6886, %v6933, 0.0
      %v6951 = vsel %vm6887, %v6933, 0.0
      %v6952 = vsel %vm6888, %v6938, 0.0
      %v6953 = vsel %vm6889, %v6938, 0.0
      %v6954 = vsel %vm6890, %v6943, 0.0
      %v6955 = vsel %vm6891, %v6943, 0.0
      %v6956 = vsel %vm6892, %v6948, 0.0
      %v6957 = vsel %vm6893, %v6948, 0.0
      %6958 = vrot.lane.b32.xlu0 %v6950, 1
      %v6959 = vpop.permute.xlu0 %6958
      %6960 = vrot.lane.b32.xlu0 %v6952, 1
      %v6961 = vpop.permute.xlu0 %6960
      %6962 = vrot.lane.b32.xlu0 %v6954, 1
      %v6963 = vpop.permute.xlu0 %6962
      %6964 = vrot.lane.b32.xlu0 %v6956, 1
      %v6965 = vpop.permute.xlu0 %6964
      %6966 = vrot.lane.b32.xlu0 %v6951, 1
      %v6967 = vpop.permute.xlu0 %6966
      %6968 = vrot.lane.b32.xlu0 %v6953, 1
      %v6969 = vpop.permute.xlu0 %6968
      %6970 = vrot.lane.b32.xlu0 %v6955, 1
      %v6971 = vpop.permute.xlu0 %6970
      %6972 = vrot.lane.b32.xlu0 %v6957, 1
      %v6973 = vpop.permute.xlu0 %6972
      %v6974 = vsel %vm1382, %v6959, %v6967
      %v6975 = vsel %vm1382, %v6961, %v6969
      %v6976 = vsel %vm1382, %v6963, %v6971
      %v6977 = vsel %vm1382, %v6965, %v6973
      %v6978 = vsel %vm1382, %v6967, %v6959
      %v6979 = vsel %vm1382, %v6969, %v6961
      %v6980 = vsel %vm1382, %v6971, %v6963
      %v6981 = vsel %vm1382, %v6973, %v6965
      %v6982 = vadd.f32 %v6922, %v6978
      %v6983 = vadd.f32 %v6923, %v6974
      %v6984 = vadd.f32 %v6924, %v6979
      %v6985 = vadd.f32 %v6925, %v6975
      %v6986 = vadd.f32 %v6926, %v6980
      %v6987 = vadd.f32 %v6927, %v6976
      %v6988 = vadd.f32 %v6928, %v6981
      %v6989 = vadd.f32 %v6929, %v6977
      %6991 = vset.pattern.permute.xlu0 44
      %6992 = vperm.xlu0 %6991, %v6833
      %v6993 = vpop.permute.xlu0 %6992
      %6996 = vset.pattern.permute.xlu0 44
      %6997 = vperm.xlu0 %6996, %v6834
      %v6998 = vpop.permute.xlu0 %6997
      %7001 = vset.pattern.permute.xlu0 44
      %7002 = vperm.xlu0 %7001, %v6835
      %v7003 = vpop.permute.xlu0 %7002
      %7006 = vset.pattern.permute.xlu0 44
      %7007 = vperm.xlu0 %7006, %v6836
      %v7008 = vpop.permute.xlu0 %7007
      %v7010 = vsel %vm6886, %v6993, 0.0
      %v7011 = vsel %vm6887, %v6993, 0.0
      %v7012 = vsel %vm6888, %v6998, 0.0
      %v7013 = vsel %vm6889, %v6998, 0.0
      %v7014 = vsel %vm6890, %v7003, 0.0
      %v7015 = vsel %vm6891, %v7003, 0.0
      %v7016 = vsel %vm6892, %v7008, 0.0
      %v7017 = vsel %vm6893, %v7008, 0.0
      %v7018 = vadd.f32 %v7010, 0.0
      %v7019 = vadd.f32 %v7011, 0.0
      %v7020 = vadd.f32 %v7012, 0.0
      %v7021 = vadd.f32 %v7013, 0.0
      %v7022 = vadd.f32 %v7014, 0.0
      %v7023 = vadd.f32 %v7015, 0.0
      %v7024 = vadd.f32 %v7016, 0.0
      %v7025 = vadd.f32 %v7017, 0.0
      %7027 = vset.pattern.permute.xlu0 44
      %7028 = vperm.xlu0 %7027, %v6837
      %v7029 = vpop.permute.xlu0 %7028
      %7032 = vset.pattern.permute.xlu0 44
      %7033 = vperm.xlu0 %7032, %v6838
      %v7034 = vpop.permute.xlu0 %7033
      %7037 = vset.pattern.permute.xlu0 44
      %7038 = vperm.xlu0 %7037, %v6839
      %v7039 = vpop.permute.xlu0 %7038
      %7042 = vset.pattern.permute.xlu0 44
      %7043 = vperm.xlu0 %7042, %v6840
      %v7044 = vpop.permute.xlu0 %7043
      %v7046 = vsel %vm6886, %v7029, 0.0
      %v7047 = vsel %vm6887, %v7029, 0.0
      %v7048 = vsel %vm6888, %v7034, 0.0
      %v7049 = vsel %vm6889, %v7034, 0.0
      %v7050 = vsel %vm6890, %v7039, 0.0
      %v7051 = vsel %vm6891, %v7039, 0.0
      %v7052 = vsel %vm6892, %v7044, 0.0
      %v7053 = vsel %vm6893, %v7044, 0.0
      %7054 = vrot.lane.b32.xlu0 %v7046, 1
      %v7055 = vpop.permute.xlu0 %7054
      %7056 = vrot.lane.b32.xlu0 %v7048, 1
      %v7057 = vpop.permute.xlu0 %7056
      %7058 = vrot.lane.b32.xlu0 %v7050, 1
      %v7059 = vpop.permute.xlu0 %7058
      %7060 = vrot.lane.b32.xlu0 %v7052, 1
      %v7061 = vpop.permute.xlu0 %7060
      %7062 = vrot.lane.b32.xlu0 %v7047, 1
      %v7063 = vpop.permute.xlu0 %7062
      %7064 = vrot.lane.b32.xlu0 %v7049, 1
      %v7065 = vpop.permute.xlu0 %7064
      %7066 = vrot.lane.b32.xlu0 %v7051, 1
      %v7067 = vpop.permute.xlu0 %7066
      %7068 = vrot.lane.b32.xlu0 %v7053, 1
      %v7069 = vpop.permute.xlu0 %7068
      %v7070 = vsel %vm1382, %v7055, %v7063
      %v7071 = vsel %vm1382, %v7057, %v7065
      %v7072 = vsel %vm1382, %v7059, %v7067
      %v7073 = vsel %vm1382, %v7061, %v7069
      %v7074 = vsel %vm1382, %v7063, %v7055
      %v7075 = vsel %vm1382, %v7065, %v7057
      %v7076 = vsel %vm1382, %v7067, %v7059
      %v7077 = vsel %vm1382, %v7069, %v7061
      %v7078 = vadd.f32 %v7018, %v7074
      %v7079 = vadd.f32 %v7019, %v7070
      %v7080 = vadd.f32 %v7020, %v7075
      %v7081 = vadd.f32 %v7021, %v7071
      %v7082 = vadd.f32 %v7022, %v7076
      %v7083 = vadd.f32 %v7023, %v7072
      %v7084 = vadd.f32 %v7024, %v7077
      %v7085 = vadd.f32 %v7025, %v7073
      %7086 = vset.pattern.permute.xlu0 29
      %7087 = vperm.xlu0 %7086, %v1049
      %v7088 = vpop.permute.xlu0 %7087
      %7089 = vset.pattern.permute.xlu0 29
      %7090 = vperm.xlu0 %7089, %v1050
      %v7091 = vpop.permute.xlu0 %7090
      %7092 = vset.pattern.permute.xlu0 29
      %7093 = vperm.xlu0 %7092, %v1051
      %v7094 = vpop.permute.xlu0 %7093
      %7095 = vset.pattern.permute.xlu0 29
      %7096 = vperm.xlu0 %7095, %v1052
      %v7097 = vpop.permute.xlu0 %7096
      %vm7098 = vcmp.eq.s32.totalorder %v1054, %v7088
      %vm7099 = vcmp.eq.s32.totalorder %v1055, %v7088
      %vm7100 = vcmp.eq.s32.totalorder %v1054, %v7091
      %vm7101 = vcmp.eq.s32.totalorder %v1055, %v7091
      %vm7102 = vcmp.eq.s32.totalorder %v1054, %v7094
      %vm7103 = vcmp.eq.s32.totalorder %v1055, %v7094
      %vm7104 = vcmp.eq.s32.totalorder %v1054, %v7097
      %vm7105 = vcmp.eq.s32.totalorder %v1055, %v7097
      %7106 = vset.pattern.permute.xlu0 45
      %7107 = vperm.xlu0 %7106, %v6825
      %v7108 = vpop.permute.xlu0 %7107
      %7110 = vset.pattern.permute.xlu0 45
      %7111 = vperm.xlu0 %7110, %v6826
      %v7112 = vpop.permute.xlu0 %7111
      %7114 = vset.pattern.permute.xlu0 45
      %7115 = vperm.xlu0 %7114, %v6827
      %v7116 = vpop.permute.xlu0 %7115
      %7118 = vset.pattern.permute.xlu0 45
      %7119 = vperm.xlu0 %7118, %v6828
      %v7120 = vpop.permute.xlu0 %7119
      %v7122 = vsel %vm7098, %v7108, 0.0
      %v7123 = vsel %vm7099, %v7108, 0.0
      %v7124 = vsel %vm7100, %v7112, 0.0
      %v7125 = vsel %vm7101, %v7112, 0.0
      %v7126 = vsel %vm7102, %v7116, 0.0
      %v7127 = vsel %vm7103, %v7116, 0.0
      %v7128 = vsel %vm7104, %v7120, 0.0
      %v7129 = vsel %vm7105, %v7120, 0.0
      %v7130 = vadd.f32 %v6982, %v7122
      %v7131 = vadd.f32 %v6983, %v7123
      %v7132 = vadd.f32 %v6984, %v7124
      %v7133 = vadd.f32 %v6985, %v7125
      %v7134 = vadd.f32 %v6986, %v7126
      %v7135 = vadd.f32 %v6987, %v7127
      %v7136 = vadd.f32 %v6988, %v7128
      %v7137 = vadd.f32 %v6989, %v7129
      %7138 = vset.pattern.permute.xlu0 45
      %7139 = vperm.xlu0 %7138, %v6829
      %v7140 = vpop.permute.xlu0 %7139
      %7142 = vset.pattern.permute.xlu0 45
      %7143 = vperm.xlu0 %7142, %v6830
      %v7144 = vpop.permute.xlu0 %7143
      %7146 = vset.pattern.permute.xlu0 45
      %7147 = vperm.xlu0 %7146, %v6831
      %v7148 = vpop.permute.xlu0 %7147
      %7150 = vset.pattern.permute.xlu0 45
      %7151 = vperm.xlu0 %7150, %v6832
      %v7152 = vpop.permute.xlu0 %7151
      %v7154 = vsel %vm7098, %v7140, 0.0
      %v7155 = vsel %vm7099, %v7140, 0.0
      %v7156 = vsel %vm7100, %v7144, 0.0
      %v7157 = vsel %vm7101, %v7144, 0.0
      %v7158 = vsel %vm7102, %v7148, 0.0
      %v7159 = vsel %vm7103, %v7148, 0.0
      %v7160 = vsel %vm7104, %v7152, 0.0
      %v7161 = vsel %vm7105, %v7152, 0.0
      %7162 = vrot.lane.b32.xlu0 %v7154, 1
      %v7163 = vpop.permute.xlu0 %7162
      %7164 = vrot.lane.b32.xlu0 %v7156, 1
      %v7165 = vpop.permute.xlu0 %7164
      %7166 = vrot.lane.b32.xlu0 %v7158, 1
      %v7167 = vpop.permute.xlu0 %7166
      %7168 = vrot.lane.b32.xlu0 %v7160, 1
      %v7169 = vpop.permute.xlu0 %7168
      %7170 = vrot.lane.b32.xlu0 %v7155, 1
      %v7171 = vpop.permute.xlu0 %7170
      %7172 = vrot.lane.b32.xlu0 %v7157, 1
      %v7173 = vpop.permute.xlu0 %7172
      %7174 = vrot.lane.b32.xlu0 %v7159, 1
      %v7175 = vpop.permute.xlu0 %7174
      %7176 = vrot.lane.b32.xlu0 %v7161, 1
      %v7177 = vpop.permute.xlu0 %7176
      %v7178 = vsel %vm1382, %v7163, %v7171
      %v7179 = vsel %vm1382, %v7165, %v7173
      %v7180 = vsel %vm1382, %v7167, %v7175
      %v7181 = vsel %vm1382, %v7169, %v7177
      %v7182 = vsel %vm1382, %v7171, %v7163
      %v7183 = vsel %vm1382, %v7173, %v7165
      %v7184 = vsel %vm1382, %v7175, %v7167
      %v7185 = vsel %vm1382, %v7177, %v7169
      %v7186 = vadd.f32 %v7130, %v7182
      %v7187 = vadd.f32 %v7131, %v7178
      %v7188 = vadd.f32 %v7132, %v7183
      %v7189 = vadd.f32 %v7133, %v7179
      %v7190 = vadd.f32 %v7134, %v7184
      %v7191 = vadd.f32 %v7135, %v7180
      %v7192 = vadd.f32 %v7136, %v7185
      %v7193 = vadd.f32 %v7137, %v7181
      %7194 = vset.pattern.permute.xlu0 45
      %7195 = vperm.xlu0 %7194, %v6833
      %v7196 = vpop.permute.xlu0 %7195
      %7198 = vset.pattern.permute.xlu0 45
      %7199 = vperm.xlu0 %7198, %v6834
      %v7200 = vpop.permute.xlu0 %7199
      %7202 = vset.pattern.permute.xlu0 45
      %7203 = vperm.xlu0 %7202, %v6835
      %v7204 = vpop.permute.xlu0 %7203
      %7206 = vset.pattern.permute.xlu0 45
      %7207 = vperm.xlu0 %7206, %v6836
      %v7208 = vpop.permute.xlu0 %7207
      %v7210 = vsel %vm7098, %v7196, 0.0
      %v7211 = vsel %vm7099, %v7196, 0.0
      %v7212 = vsel %vm7100, %v7200, 0.0
      %v7213 = vsel %vm7101, %v7200, 0.0
      %v7214 = vsel %vm7102, %v7204, 0.0
      %v7215 = vsel %vm7103, %v7204, 0.0
      %v7216 = vsel %vm7104, %v7208, 0.0
      %v7217 = vsel %vm7105, %v7208, 0.0
      %v7218 = vadd.f32 %v7078, %v7210
      %v7219 = vadd.f32 %v7079, %v7211
      %v7220 = vadd.f32 %v7080, %v7212
      %v7221 = vadd.f32 %v7081, %v7213
      %v7222 = vadd.f32 %v7082, %v7214
      %v7223 = vadd.f32 %v7083, %v7215
      %v7224 = vadd.f32 %v7084, %v7216
      %v7225 = vadd.f32 %v7085, %v7217
      %7226 = vset.pattern.permute.xlu0 45
      %7227 = vperm.xlu0 %7226, %v6837
      %v7228 = vpop.permute.xlu0 %7227
      %7230 = vset.pattern.permute.xlu0 45
      %7231 = vperm.xlu0 %7230, %v6838
      %v7232 = vpop.permute.xlu0 %7231
      %7234 = vset.pattern.permute.xlu0 45
      %7235 = vperm.xlu0 %7234, %v6839
      %v7236 = vpop.permute.xlu0 %7235
      %7238 = vset.pattern.permute.xlu0 45
      %7239 = vperm.xlu0 %7238, %v6840
      %v7240 = vpop.permute.xlu0 %7239
      %v7242 = vsel %vm7098, %v7228, 0.0
      %v7243 = vsel %vm7099, %v7228, 0.0
      %v7244 = vsel %vm7100, %v7232, 0.0
      %v7245 = vsel %vm7101, %v7232, 0.0
      %v7246 = vsel %vm7102, %v7236, 0.0
      %v7247 = vsel %vm7103, %v7236, 0.0
      %v7248 = vsel %vm7104, %v7240, 0.0
      %v7249 = vsel %vm7105, %v7240, 0.0
      %7250 = vrot.lane.b32.xlu0 %v7242, 1
      %v7251 = vpop.permute.xlu0 %7250
      %7252 = vrot.lane.b32.xlu0 %v7244, 1
      %v7253 = vpop.permute.xlu0 %7252
      %7254 = vrot.lane.b32.xlu0 %v7246, 1
      %v7255 = vpop.permute.xlu0 %7254
      %7256 = vrot.lane.b32.xlu0 %v7248, 1
      %v7257 = vpop.permute.xlu0 %7256
      %7258 = vrot.lane.b32.xlu0 %v7243, 1
      %v7259 = vpop.permute.xlu0 %7258
      %7260 = vrot.lane.b32.xlu0 %v7245, 1
      %v7261 = vpop.permute.xlu0 %7260
      %7262 = vrot.lane.b32.xlu0 %v7247, 1
      %v7263 = vpop.permute.xlu0 %7262
      %7264 = vrot.lane.b32.xlu0 %v7249, 1
      %v7265 = vpop.permute.xlu0 %7264
      %v7266 = vsel %vm1382, %v7251, %v7259
      %v7267 = vsel %vm1382, %v7253, %v7261
      %v7268 = vsel %vm1382, %v7255, %v7263
      %v7269 = vsel %vm1382, %v7257, %v7265
      %v7270 = vsel %vm1382, %v7259, %v7251
      %v7271 = vsel %vm1382, %v7261, %v7253
      %v7272 = vsel %vm1382, %v7263, %v7255
      %v7273 = vsel %vm1382, %v7265, %v7257
      %v7274 = vadd.f32 %v7218, %v7270
      %v7275 = vadd.f32 %v7219, %v7266
      %v7276 = vadd.f32 %v7220, %v7271
      %v7277 = vadd.f32 %v7221, %v7267
      %v7278 = vadd.f32 %v7222, %v7272
      %v7279 = vadd.f32 %v7223, %v7268
      %v7280 = vadd.f32 %v7224, %v7273
      %v7281 = vadd.f32 %v7225, %v7269
      %7282 = vset.pattern.permute.xlu0 30
      %7283 = vperm.xlu0 %7282, %v1049
      %v7284 = vpop.permute.xlu0 %7283
      %7285 = vset.pattern.permute.xlu0 30
      %7286 = vperm.xlu0 %7285, %v1050
      %v7287 = vpop.permute.xlu0 %7286
      %7288 = vset.pattern.permute.xlu0 30
      %7289 = vperm.xlu0 %7288, %v1051
      %v7290 = vpop.permute.xlu0 %7289
      %7291 = vset.pattern.permute.xlu0 30
      %7292 = vperm.xlu0 %7291, %v1052
      %v7293 = vpop.permute.xlu0 %7292
      %vm7294 = vcmp.eq.s32.totalorder %v1054, %v7284
      %vm7295 = vcmp.eq.s32.totalorder %v1055, %v7284
      %vm7296 = vcmp.eq.s32.totalorder %v1054, %v7287
      %vm7297 = vcmp.eq.s32.totalorder %v1055, %v7287
      %vm7298 = vcmp.eq.s32.totalorder %v1054, %v7290
      %vm7299 = vcmp.eq.s32.totalorder %v1055, %v7290
      %vm7300 = vcmp.eq.s32.totalorder %v1054, %v7293
      %vm7301 = vcmp.eq.s32.totalorder %v1055, %v7293
      %7302 = vset.pattern.permute.xlu0 46
      %7303 = vperm.xlu0 %7302, %v6825
      %v7304 = vpop.permute.xlu0 %7303
      %7306 = vset.pattern.permute.xlu0 46
      %7307 = vperm.xlu0 %7306, %v6826
      %v7308 = vpop.permute.xlu0 %7307
      %7310 = vset.pattern.permute.xlu0 46
      %7311 = vperm.xlu0 %7310, %v6827
      %v7312 = vpop.permute.xlu0 %7311
      %7314 = vset.pattern.permute.xlu0 46
      %7315 = vperm.xlu0 %7314, %v6828
      %v7316 = vpop.permute.xlu0 %7315
      %v7318 = vsel %vm7294, %v7304, 0.0
      %v7319 = vsel %vm7295, %v7304, 0.0
      %v7320 = vsel %vm7296, %v7308, 0.0
      %v7321 = vsel %vm7297, %v7308, 0.0
      %v7322 = vsel %vm7298, %v7312, 0.0
      %v7323 = vsel %vm7299, %v7312, 0.0
      %v7324 = vsel %vm7300, %v7316, 0.0
      %v7325 = vsel %vm7301, %v7316, 0.0
      %v7326 = vadd.f32 %v7186, %v7318
      %v7327 = vadd.f32 %v7187, %v7319
      %v7328 = vadd.f32 %v7188, %v7320
      %v7329 = vadd.f32 %v7189, %v7321
      %v7330 = vadd.f32 %v7190, %v7322
      %v7331 = vadd.f32 %v7191, %v7323
      %v7332 = vadd.f32 %v7192, %v7324
      %v7333 = vadd.f32 %v7193, %v7325
      %7334 = vset.pattern.permute.xlu0 46
      %7335 = vperm.xlu0 %7334, %v6829
      %v7336 = vpop.permute.xlu0 %7335
      %7338 = vset.pattern.permute.xlu0 46
      %7339 = vperm.xlu0 %7338, %v6830
      %v7340 = vpop.permute.xlu0 %7339
      %7342 = vset.pattern.permute.xlu0 46
      %7343 = vperm.xlu0 %7342, %v6831
      %v7344 = vpop.permute.xlu0 %7343
      %7346 = vset.pattern.permute.xlu0 46
      %7347 = vperm.xlu0 %7346, %v6832
      %v7348 = vpop.permute.xlu0 %7347
      %v7350 = vsel %vm7294, %v7336, 0.0
      %v7351 = vsel %vm7295, %v7336, 0.0
      %v7352 = vsel %vm7296, %v7340, 0.0
      %v7353 = vsel %vm7297, %v7340, 0.0
      %v7354 = vsel %vm7298, %v7344, 0.0
      %v7355 = vsel %vm7299, %v7344, 0.0
      %v7356 = vsel %vm7300, %v7348, 0.0
      %v7357 = vsel %vm7301, %v7348, 0.0
      %7358 = vrot.lane.b32.xlu0 %v7350, 1
      %v7359 = vpop.permute.xlu0 %7358
      %7360 = vrot.lane.b32.xlu0 %v7352, 1
      %v7361 = vpop.permute.xlu0 %7360
      %7362 = vrot.lane.b32.xlu0 %v7354, 1
      %v7363 = vpop.permute.xlu0 %7362
      %7364 = vrot.lane.b32.xlu0 %v7356, 1
      %v7365 = vpop.permute.xlu0 %7364
      %7366 = vrot.lane.b32.xlu0 %v7351, 1
      %v7367 = vpop.permute.xlu0 %7366
      %7368 = vrot.lane.b32.xlu0 %v7353, 1
      %v7369 = vpop.permute.xlu0 %7368
      %7370 = vrot.lane.b32.xlu0 %v7355, 1
      %v7371 = vpop.permute.xlu0 %7370
      %7372 = vrot.lane.b32.xlu0 %v7357, 1
      %v7373 = vpop.permute.xlu0 %7372
      %v7374 = vsel %vm1382, %v7359, %v7367
      %v7375 = vsel %vm1382, %v7361, %v7369
      %v7376 = vsel %vm1382, %v7363, %v7371
      %v7377 = vsel %vm1382, %v7365, %v7373
      %v7378 = vsel %vm1382, %v7367, %v7359
      %v7379 = vsel %vm1382, %v7369, %v7361
      %v7380 = vsel %vm1382, %v7371, %v7363
      %v7381 = vsel %vm1382, %v7373, %v7365
      %v7382 = vadd.f32 %v7326, %v7378
      %v7383 = vadd.f32 %v7327, %v7374
      %v7384 = vadd.f32 %v7328, %v7379
      %v7385 = vadd.f32 %v7329, %v7375
      %v7386 = vadd.f32 %v7330, %v7380
      %v7387 = vadd.f32 %v7331, %v7376
      %v7388 = vadd.f32 %v7332, %v7381
      %v7389 = vadd.f32 %v7333, %v7377
      %7390 = vset.pattern.permute.xlu0 46
      %7391 = vperm.xlu0 %7390, %v6833
      %v7392 = vpop.permute.xlu0 %7391
      %7394 = vset.pattern.permute.xlu0 46
      %7395 = vperm.xlu0 %7394, %v6834
      %v7396 = vpop.permute.xlu0 %7395
      %7398 = vset.pattern.permute.xlu0 46
      %7399 = vperm.xlu0 %7398, %v6835
      %v7400 = vpop.permute.xlu0 %7399
      %7402 = vset.pattern.permute.xlu0 46
      %7403 = vperm.xlu0 %7402, %v6836
      %v7404 = vpop.permute.xlu0 %7403
      %v7406 = vsel %vm7294, %v7392, 0.0
      %v7407 = vsel %vm7295, %v7392, 0.0
      %v7408 = vsel %vm7296, %v7396, 0.0
      %v7409 = vsel %vm7297, %v7396, 0.0
      %v7410 = vsel %vm7298, %v7400, 0.0
      %v7411 = vsel %vm7299, %v7400, 0.0
      %v7412 = vsel %vm7300, %v7404, 0.0
      %v7413 = vsel %vm7301, %v7404, 0.0
      %v7414 = vadd.f32 %v7274, %v7406
      %v7415 = vadd.f32 %v7275, %v7407
      %v7416 = vadd.f32 %v7276, %v7408
      %v7417 = vadd.f32 %v7277, %v7409
      %v7418 = vadd.f32 %v7278, %v7410
      %v7419 = vadd.f32 %v7279, %v7411
      %v7420 = vadd.f32 %v7280, %v7412
      %v7421 = vadd.f32 %v7281, %v7413
      %7422 = vset.pattern.permute.xlu0 46
      %7423 = vperm.xlu0 %7422, %v6837
      %v7424 = vpop.permute.xlu0 %7423
      %7426 = vset.pattern.permute.xlu0 46
      %7427 = vperm.xlu0 %7426, %v6838
      %v7428 = vpop.permute.xlu0 %7427
      %7430 = vset.pattern.permute.xlu0 46
      %7431 = vperm.xlu0 %7430, %v6839
      %v7432 = vpop.permute.xlu0 %7431
      %7434 = vset.pattern.permute.xlu0 46
      %7435 = vperm.xlu0 %7434, %v6840
      %v7436 = vpop.permute.xlu0 %7435
      %v7438 = vsel %vm7294, %v7424, 0.0
      %v7439 = vsel %vm7295, %v7424, 0.0
      %v7440 = vsel %vm7296, %v7428, 0.0
      %v7441 = vsel %vm7297, %v7428, 0.0
      %v7442 = vsel %vm7298, %v7432, 0.0
      %v7443 = vsel %vm7299, %v7432, 0.0
      %v7444 = vsel %vm7300, %v7436, 0.0
      %v7445 = vsel %vm7301, %v7436, 0.0
      %7446 = vrot.lane.b32.xlu0 %v7438, 1
      %v7447 = vpop.permute.xlu0 %7446
      %7448 = vrot.lane.b32.xlu0 %v7440, 1
      %v7449 = vpop.permute.xlu0 %7448
      %7450 = vrot.lane.b32.xlu0 %v7442, 1
      %v7451 = vpop.permute.xlu0 %7450
      %7452 = vrot.lane.b32.xlu0 %v7444, 1
      %v7453 = vpop.permute.xlu0 %7452
      %7454 = vrot.lane.b32.xlu0 %v7439, 1
      %v7455 = vpop.permute.xlu0 %7454
      %7456 = vrot.lane.b32.xlu0 %v7441, 1
      %v7457 = vpop.permute.xlu0 %7456
      %7458 = vrot.lane.b32.xlu0 %v7443, 1
      %v7459 = vpop.permute.xlu0 %7458
      %7460 = vrot.lane.b32.xlu0 %v7445, 1
      %v7461 = vpop.permute.xlu0 %7460
      %v7462 = vsel %vm1382, %v7447, %v7455
      %v7463 = vsel %vm1382, %v7449, %v7457
      %v7464 = vsel %vm1382, %v7451, %v7459
      %v7465 = vsel %vm1382, %v7453, %v7461
      %v7466 = vsel %vm1382, %v7455, %v7447
      %v7467 = vsel %vm1382, %v7457, %v7449
      %v7468 = vsel %vm1382, %v7459, %v7451
      %v7469 = vsel %vm1382, %v7461, %v7453
      %v7470 = vadd.f32 %v7414, %v7466
      %v7471 = vadd.f32 %v7415, %v7462
      %v7472 = vadd.f32 %v7416, %v7467
      %v7473 = vadd.f32 %v7417, %v7463
      %v7474 = vadd.f32 %v7418, %v7468
      %v7475 = vadd.f32 %v7419, %v7464
      %v7476 = vadd.f32 %v7420, %v7469
      %v7477 = vadd.f32 %v7421, %v7465
      %7478 = vset.pattern.permute.xlu0 31
      %7479 = vperm.xlu0 %7478, %v1049
      %v7480 = vpop.permute.xlu0 %7479
      %7481 = vset.pattern.permute.xlu0 31
      %7482 = vperm.xlu0 %7481, %v1050
      %v7483 = vpop.permute.xlu0 %7482
      %7484 = vset.pattern.permute.xlu0 31
      %7485 = vperm.xlu0 %7484, %v1051
      %v7486 = vpop.permute.xlu0 %7485
      %7487 = vset.pattern.permute.xlu0 31
      %7488 = vperm.xlu0 %7487, %v1052
      %v7489 = vpop.permute.xlu0 %7488
      %vm7490 = vcmp.eq.s32.totalorder %v1054, %v7480
      %vm7491 = vcmp.eq.s32.totalorder %v1055, %v7480
      %vm7492 = vcmp.eq.s32.totalorder %v1054, %v7483
      %vm7493 = vcmp.eq.s32.totalorder %v1055, %v7483
      %vm7494 = vcmp.eq.s32.totalorder %v1054, %v7486
      %vm7495 = vcmp.eq.s32.totalorder %v1055, %v7486
      %vm7496 = vcmp.eq.s32.totalorder %v1054, %v7489
      %vm7497 = vcmp.eq.s32.totalorder %v1055, %v7489
      %7498 = vset.pattern.permute.xlu0 47
      %7499 = vperm.xlu0 %7498, %v6825
      %v7500 = vpop.permute.xlu0 %7499
      %7502 = vset.pattern.permute.xlu0 47
      %7503 = vperm.xlu0 %7502, %v6826
      %v7504 = vpop.permute.xlu0 %7503
      %7506 = vset.pattern.permute.xlu0 47
      %7507 = vperm.xlu0 %7506, %v6827
      %v7508 = vpop.permute.xlu0 %7507
      %7510 = vset.pattern.permute.xlu0 47
      %7511 = vperm.xlu0 %7510, %v6828
      %v7512 = vpop.permute.xlu0 %7511
      %v7514 = vsel %vm7490, %v7500, 0.0
      %v7515 = vsel %vm7491, %v7500, 0.0
      %v7516 = vsel %vm7492, %v7504, 0.0
      %v7517 = vsel %vm7493, %v7504, 0.0
      %v7518 = vsel %vm7494, %v7508, 0.0
      %v7519 = vsel %vm7495, %v7508, 0.0
      %v7520 = vsel %vm7496, %v7512, 0.0
      %v7521 = vsel %vm7497, %v7512, 0.0
      %v7522 = vadd.f32 %v7382, %v7514
      %v7523 = vadd.f32 %v7383, %v7515
      %v7524 = vadd.f32 %v7384, %v7516
      %v7525 = vadd.f32 %v7385, %v7517
      %v7526 = vadd.f32 %v7386, %v7518
      %v7527 = vadd.f32 %v7387, %v7519
      %v7528 = vadd.f32 %v7388, %v7520
      %v7529 = vadd.f32 %v7389, %v7521
      %7530 = vset.pattern.permute.xlu0 47
      %7531 = vperm.xlu0 %7530, %v6829
      %v7532 = vpop.permute.xlu0 %7531
      %7534 = vset.pattern.permute.xlu0 47
      %7535 = vperm.xlu0 %7534, %v6830
      %v7536 = vpop.permute.xlu0 %7535
      %7538 = vset.pattern.permute.xlu0 47
      %7539 = vperm.xlu0 %7538, %v6831
      %v7540 = vpop.permute.xlu0 %7539
      %7542 = vset.pattern.permute.xlu0 47
      %7543 = vperm.xlu0 %7542, %v6832
      %v7544 = vpop.permute.xlu0 %7543
      %v7546 = vsel %vm7490, %v7532, 0.0
      %v7547 = vsel %vm7491, %v7532, 0.0
      %v7548 = vsel %vm7492, %v7536, 0.0
      %v7549 = vsel %vm7493, %v7536, 0.0
      %v7550 = vsel %vm7494, %v7540, 0.0
      %v7551 = vsel %vm7495, %v7540, 0.0
      %v7552 = vsel %vm7496, %v7544, 0.0
      %v7553 = vsel %vm7497, %v7544, 0.0
      %7554 = vrot.lane.b32.xlu0 %v7546, 1
      %v7555 = vpop.permute.xlu0 %7554
      %7556 = vrot.lane.b32.xlu0 %v7548, 1
      %v7557 = vpop.permute.xlu0 %7556
      %7558 = vrot.lane.b32.xlu0 %v7550, 1
      %v7559 = vpop.permute.xlu0 %7558
      %7560 = vrot.lane.b32.xlu0 %v7552, 1
      %v7561 = vpop.permute.xlu0 %7560
      %7562 = vrot.lane.b32.xlu0 %v7547, 1
      %v7563 = vpop.permute.xlu0 %7562
      %7564 = vrot.lane.b32.xlu0 %v7549, 1
      %v7565 = vpop.permute.xlu0 %7564
      %7566 = vrot.lane.b32.xlu0 %v7551, 1
      %v7567 = vpop.permute.xlu0 %7566
      %7568 = vrot.lane.b32.xlu0 %v7553, 1
      %v7569 = vpop.permute.xlu0 %7568
      %v7570 = vsel %vm1382, %v7555, %v7563
      %v7571 = vsel %vm1382, %v7557, %v7565
      %v7572 = vsel %vm1382, %v7559, %v7567
      %v7573 = vsel %vm1382, %v7561, %v7569
      %v7574 = vsel %vm1382, %v7563, %v7555
      %v7575 = vsel %vm1382, %v7565, %v7557
      %v7576 = vsel %vm1382, %v7567, %v7559
      %v7577 = vsel %vm1382, %v7569, %v7561
      %v7578 = vadd.f32 %v7522, %v7574
      %v7579 = vadd.f32 %v7523, %v7570
      %v7580 = vadd.f32 %v7524, %v7575
      %v7581 = vadd.f32 %v7525, %v7571
      %v7582 = vadd.f32 %v7526, %v7576
      %v7583 = vadd.f32 %v7527, %v7572
      %v7584 = vadd.f32 %v7528, %v7577
      %v7585 = vadd.f32 %v7529, %v7573
      %7586 = vset.pattern.permute.xlu0 47
      %7587 = vperm.xlu0 %7586, %v6833
      %v7588 = vpop.permute.xlu0 %7587
      %7590 = vset.pattern.permute.xlu0 47
      %7591 = vperm.xlu0 %7590, %v6834
      %v7592 = vpop.permute.xlu0 %7591
      %7594 = vset.pattern.permute.xlu0 47
      %7595 = vperm.xlu0 %7594, %v6835
      %v7596 = vpop.permute.xlu0 %7595
      %7598 = vset.pattern.permute.xlu0 47
      %7599 = vperm.xlu0 %7598, %v6836
      %v7600 = vpop.permute.xlu0 %7599
      %v7602 = vsel %vm7490, %v7588, 0.0
      %v7603 = vsel %vm7491, %v7588, 0.0
      %v7604 = vsel %vm7492, %v7592, 0.0
      %v7605 = vsel %vm7493, %v7592, 0.0
      %v7606 = vsel %vm7494, %v7596, 0.0
      %v7607 = vsel %vm7495, %v7596, 0.0
      %v7608 = vsel %vm7496, %v7600, 0.0
      %v7609 = vsel %vm7497, %v7600, 0.0
      %v7610 = vadd.f32 %v7470, %v7602
      %v7611 = vadd.f32 %v7471, %v7603
      %v7612 = vadd.f32 %v7472, %v7604
      %v7613 = vadd.f32 %v7473, %v7605
      %v7614 = vadd.f32 %v7474, %v7606
      %v7615 = vadd.f32 %v7475, %v7607
      %v7616 = vadd.f32 %v7476, %v7608
      %v7617 = vadd.f32 %v7477, %v7609
      %7618 = vset.pattern.permute.xlu0 47
      %7619 = vperm.xlu0 %7618, %v6837
      %v7620 = vpop.permute.xlu0 %7619
      %7622 = vset.pattern.permute.xlu0 47
      %7623 = vperm.xlu0 %7622, %v6838
      %v7624 = vpop.permute.xlu0 %7623
      %7626 = vset.pattern.permute.xlu0 47
      %7627 = vperm.xlu0 %7626, %v6839
      %v7628 = vpop.permute.xlu0 %7627
      %7630 = vset.pattern.permute.xlu0 47
      %7631 = vperm.xlu0 %7630, %v6840
      %v7632 = vpop.permute.xlu0 %7631
      %v7634 = vsel %vm7490, %v7620, 0.0
      %v7635 = vsel %vm7491, %v7620, 0.0
      %v7636 = vsel %vm7492, %v7624, 0.0
      %v7637 = vsel %vm7493, %v7624, 0.0
      %v7638 = vsel %vm7494, %v7628, 0.0
      %v7639 = vsel %vm7495, %v7628, 0.0
      %v7640 = vsel %vm7496, %v7632, 0.0
      %v7641 = vsel %vm7497, %v7632, 0.0
      %7642 = vrot.lane.b32.xlu0 %v7634, 1
      %v7643 = vpop.permute.xlu0 %7642
      %7644 = vrot.lane.b32.xlu0 %v7636, 1
      %v7645 = vpop.permute.xlu0 %7644
      %7646 = vrot.lane.b32.xlu0 %v7638, 1
      %v7647 = vpop.permute.xlu0 %7646
      %7648 = vrot.lane.b32.xlu0 %v7640, 1
      %v7649 = vpop.permute.xlu0 %7648
      %7650 = vrot.lane.b32.xlu0 %v7635, 1
      %v7651 = vpop.permute.xlu0 %7650
      %7652 = vrot.lane.b32.xlu0 %v7637, 1
      %v7653 = vpop.permute.xlu0 %7652
      %7654 = vrot.lane.b32.xlu0 %v7639, 1
      %v7655 = vpop.permute.xlu0 %7654
      %7656 = vrot.lane.b32.xlu0 %v7641, 1
      %v7657 = vpop.permute.xlu0 %7656
      %v7658 = vsel %vm1382, %v7643, %v7651
      %v7659 = vsel %vm1382, %v7645, %v7653
      %v7660 = vsel %vm1382, %v7647, %v7655
      %v7661 = vsel %vm1382, %v7649, %v7657
      %v7662 = vsel %vm1382, %v7651, %v7643
      %v7663 = vsel %vm1382, %v7653, %v7645
      %v7664 = vsel %vm1382, %v7655, %v7647
      %v7665 = vsel %vm1382, %v7657, %v7649
      %v7666 = vadd.f32 %v7610, %v7662
      %v7667 = vadd.f32 %v7611, %v7658
      %v7668 = vadd.f32 %v7612, %v7663
      %v7669 = vadd.f32 %v7613, %v7659
      %v7670 = vadd.f32 %v7614, %v7664
      %v7671 = vadd.f32 %v7615, %v7660
      %v7672 = vadd.f32 %v7616, %v7665
      %v7673 = vadd.f32 %v7617, %v7661
      %7674 = vrot.lane.b32.xlu0 %v7666, 16
      %v7675 = vpop.permute.xlu0 %7674
      %7676 = vrot.lane.b32.xlu0 %v7668, 16
      %v7677 = vpop.permute.xlu0 %7676
      %7678 = vrot.lane.b32.xlu0 %v7670, 16
      %v7679 = vpop.permute.xlu0 %7678
      %7680 = vrot.lane.b32.xlu0 %v7672, 16
      %v7681 = vpop.permute.xlu0 %7680
      %7682 = vrot.lane.b32.xlu0 %v7667, 16
      %v7683 = vpop.permute.xlu0 %7682
      %7684 = vrot.lane.b32.xlu0 %v7669, 16
      %v7685 = vpop.permute.xlu0 %7684
      %7686 = vrot.lane.b32.xlu0 %v7671, 16
      %v7687 = vpop.permute.xlu0 %7686
      %7688 = vrot.lane.b32.xlu0 %v7673, 16
      %v7689 = vpop.permute.xlu0 %7688
      %v7690 = vsel %vm2099, %v7675, %v7683
      %v7691 = vsel %vm2099, %v7677, %v7685
      %v7692 = vsel %vm2099, %v7679, %v7687
      %v7693 = vsel %vm2099, %v7681, %v7689
      %v7694 = vsel %vm2099, %v7683, %v7675
      %v7695 = vsel %vm2099, %v7685, %v7677
      %v7696 = vsel %vm2099, %v7687, %v7679
      %v7697 = vsel %vm2099, %v7689, %v7681
      %v7698 = vadd.f32 %v7578, %v7694
      %v7699 = vadd.f32 %v7579, %v7690
      %v7700 = vadd.f32 %v7580, %v7695
      %v7701 = vadd.f32 %v7581, %v7691
      %v7702 = vadd.f32 %v7582, %v7696
      %v7703 = vadd.f32 %v7583, %v7692
      %v7704 = vadd.f32 %v7584, %v7697
      %v7705 = vadd.f32 %v7585, %v7693
      %v7706 = vand.u32 %v6857, 4294901760
      %7707 = vmatpush.msra.mxu0 %v7706
      %v7708 = vand.u32 %v6856, 4294901760
      %7709 = vmatpush.msra.mxu0 %v7708
      %v7710 = vand.u32 %v6855, 4294901760
      %7711 = vmatpush.msra.mxu0 %v7710
      %v7712 = vand.u32 %v6854, 4294901760
      %7713 = vmatpush.msra.mxu0 %v7712
      %v7714 = vand.u32 %v6853, 4294901760
      %7715 = vmatpush.msra.mxu0 %v7714
      %v7716 = vand.u32 %v6852, 4294901760
      %7717 = vmatpush.msra.mxu0 %v7716
      %v7718 = vand.u32 %v6851, 4294901760
      %7719 = vmatpush.msra.mxu0 %v7718
      %v7720 = vand.u32 %v6850, 4294901760
      %7721 = vmatpush.msra.mxu0 %v7720
      %v7722 = vand.u32 %v6849, 4294901760
      %7723 = vmatpush.msra.mxu0 %v7722
      %v7724 = vand.u32 %v6848, 4294901760
      %7725 = vmatpush.msra.mxu0 %v7724
      %v7726 = vand.u32 %v6847, 4294901760
      %7727 = vmatpush.msra.mxu0 %v7726
      %v7728 = vand.u32 %v6846, 4294901760
      %7729 = vmatpush.msra.mxu0 %v7728
      %v7730 = vand.u32 %v6845, 4294901760
      %7731 = vmatpush.msra.mxu0 %v7730
      %v7732 = vand.u32 %v6844, 4294901760
      %7733 = vmatpush.msra.mxu0 %v7732
      %v7734 = vand.u32 %v6843, 4294901760
      %7735 = vmatpush.msra.mxu0 %v7734
      %v7736 = vand.u32 %v6842, 4294901760
      %7737 = vmatpush.msra.mxu0 %v7736
      %v7738 = vand.u32 %v7698, 4294901760
      %v7739 = vsub.f32 %v7698, %v7738
      %v7740 = vand.u32 %v7739, 4294901760
      %v7741 = vsub.f32 %v7739, %v7740
      %v7742 = vand.u32 %v7741, 4294901760
      %7743 = vmatmul.f32.gmra.mxu0 %v7742
      %v7744 = vpop.f32.mrf.mxu0
      %v7745 = vadd.f32 0.0, %v7744
      %v7746 = vand.u32 %v7700, 4294901760
      %v7747 = vsub.f32 %v7700, %v7746
      %v7748 = vand.u32 %v7747, 4294901760
      %v7749 = vsub.f32 %v7747, %v7748
      %v7750 = vand.u32 %v7749, 4294901760
      %7751 = vmatmul.f32.gmra.mxu0 %v7750
      %v7752 = vpop.f32.mrf.mxu0
      %v7753 = vadd.f32 0.0, %v7752
      %v7754 = vand.u32 %v7702, 4294901760
      %v7755 = vsub.f32 %v7702, %v7754
      %v7756 = vand.u32 %v7755, 4294901760
      %v7757 = vsub.f32 %v7755, %v7756
      %v7758 = vand.u32 %v7757, 4294901760
      %7759 = vmatmul.f32.gmra.mxu0 %v7758
      %v7760 = vpop.f32.mrf.mxu0
      %v7761 = vadd.f32 0.0, %v7760
      %v7762 = vand.u32 %v7704, 4294901760
      %v7763 = vsub.f32 %v7704, %v7762
      %v7764 = vand.u32 %v7763, 4294901760
      %v7765 = vsub.f32 %v7763, %v7764
      %v7766 = vand.u32 %v7765, 4294901760
      %7767 = vmatmul.f32.gmra.mxu0 %v7766
      %v7768 = vpop.f32.mrf.mxu0
      %v7769 = vadd.f32 0.0, %v7768
      %7770 = vdwg.mxu0
      %v7771 = vand.u32 %v6857, 4294901760
      %v7772 = vsub.f32 %v6857, %v7771
      %v7773 = vand.u32 %v7772, 4294901760
      %v7774 = vsub.f32 %v7772, %v7773
      %v7775 = vand.u32 %v7774, 4294901760
      %7776 = vmatpush.msra.mxu0 %v7775
      %v7777 = vand.u32 %v6856, 4294901760
      %v7778 = vsub.f32 %v6856, %v7777
      %v7779 = vand.u32 %v7778, 4294901760
      %v7780 = vsub.f32 %v7778, %v7779
      %v7781 = vand.u32 %v7780, 4294901760
      %7782 = vmatpush.msra.mxu0 %v7781
      %v7783 = vand.u32 %v6855, 4294901760
      %v7784 = vsub.f32 %v6855, %v7783
      %v7785 = vand.u32 %v7784, 4294901760
      %v7786 = vsub.f32 %v7784, %v7785
      %v7787 = vand.u32 %v7786, 4294901760
      %7788 = vmatpush.msra.mxu0 %v7787
      %v7789 = vand.u32 %v6854, 4294901760
      %v7790 = vsub.f32 %v6854, %v7789
      %v7791 = vand.u32 %v7790, 4294901760
      %v7792 = vsub.f32 %v7790, %v7791
      %v7793 = vand.u32 %v7792, 4294901760
      %7794 = vmatpush.msra.mxu0 %v7793
      %v7795 = vand.u32 %v6853, 4294901760
      %v7796 = vsub.f32 %v6853, %v7795
      %v7797 = vand.u32 %v7796, 4294901760
      %v7798 = vsub.f32 %v7796, %v7797
      %v7799 = vand.u32 %v7798, 4294901760
      %7800 = vmatpush.msra.mxu0 %v7799
      %v7801 = vand.u32 %v6852, 4294901760
      %v7802 = vsub.f32 %v6852, %v7801
      %v7803 = vand.u32 %v7802, 4294901760
      %v7804 = vsub.f32 %v7802, %v7803
      %v7805 = vand.u32 %v7804, 4294901760
      %7806 = vmatpush.msra.mxu0 %v7805
      %v7807 = vand.u32 %v6851, 4294901760
      %v7808 = vsub.f32 %v6851, %v7807
      %v7809 = vand.u32 %v7808, 4294901760
      %v7810 = vsub.f32 %v7808, %v7809
      %v7811 = vand.u32 %v7810, 4294901760
      %7812 = vmatpush.msra.mxu0 %v7811
      %v7813 = vand.u32 %v6850, 4294901760
      %v7814 = vsub.f32 %v6850, %v7813
      %v7815 = vand.u32 %v7814, 4294901760
      %v7816 = vsub.f32 %v7814, %v7815
      %v7817 = vand.u32 %v7816, 4294901760
      %7818 = vmatpush.msra.mxu0 %v7817
      %v7819 = vand.u32 %v6849, 4294901760
      %v7820 = vsub.f32 %v6849, %v7819
      %v7821 = vand.u32 %v7820, 4294901760
      %v7822 = vsub.f32 %v7820, %v7821
      %v7823 = vand.u32 %v7822, 4294901760
      %7824 = vmatpush.msra.mxu0 %v7823
      %v7825 = vand.u32 %v6848, 4294901760
      %v7826 = vsub.f32 %v6848, %v7825
      %v7827 = vand.u32 %v7826, 4294901760
      %v7828 = vsub.f32 %v7826, %v7827
      %v7829 = vand.u32 %v7828, 4294901760
      %7830 = vmatpush.msra.mxu0 %v7829
      %v7831 = vand.u32 %v6847, 4294901760
      %v7832 = vsub.f32 %v6847, %v7831
      %v7833 = vand.u32 %v7832, 4294901760
      %v7834 = vsub.f32 %v7832, %v7833
      %v7835 = vand.u32 %v7834, 4294901760
      %7836 = vmatpush.msra.mxu0 %v7835
      %v7837 = vand.u32 %v6846, 4294901760
      %v7838 = vsub.f32 %v6846, %v7837
      %v7839 = vand.u32 %v7838, 4294901760
      %v7840 = vsub.f32 %v7838, %v7839
      %v7841 = vand.u32 %v7840, 4294901760
      %7842 = vmatpush.msra.mxu0 %v7841
      %v7843 = vand.u32 %v6845, 4294901760
      %v7844 = vsub.f32 %v6845, %v7843
      %v7845 = vand.u32 %v7844, 4294901760
      %v7846 = vsub.f32 %v7844, %v7845
      %v7847 = vand.u32 %v7846, 4294901760
      %7848 = vmatpush.msra.mxu0 %v7847
      %v7849 = vand.u32 %v6844, 4294901760
      %v7850 = vsub.f32 %v6844, %v7849
      %v7851 = vand.u32 %v7850, 4294901760
      %v7852 = vsub.f32 %v7850, %v7851
      %v7853 = vand.u32 %v7852, 4294901760
      %7854 = vmatpush.msra.mxu0 %v7853
      %v7855 = vand.u32 %v6843, 4294901760
      %v7856 = vsub.f32 %v6843, %v7855
      %v7857 = vand.u32 %v7856, 4294901760
      %v7858 = vsub.f32 %v7856, %v7857
      %v7859 = vand.u32 %v7858, 4294901760
      %7860 = vmatpush.msra.mxu0 %v7859
      %v7861 = vand.u32 %v6842, 4294901760
      %v7862 = vsub.f32 %v6842, %v7861
      %v7863 = vand.u32 %v7862, 4294901760
      %v7864 = vsub.f32 %v7862, %v7863
      %v7865 = vand.u32 %v7864, 4294901760
      %7866 = vmatpush.msra.mxu0 %v7865
      %v7867 = vand.u32 %v7698, 4294901760
      %7868 = vmatmul.f32.gmra.mxu0 %v7867
      %v7869 = vpop.f32.mrf.mxu0
      %v7870 = vadd.f32 %v7745, %v7869
      %v7871 = vand.u32 %v7700, 4294901760
      %7872 = vmatmul.f32.gmra.mxu0 %v7871
      %v7873 = vpop.f32.mrf.mxu0
      %v7874 = vadd.f32 %v7753, %v7873
      %v7875 = vand.u32 %v7702, 4294901760
      %7876 = vmatmul.f32.gmra.mxu0 %v7875
      %v7877 = vpop.f32.mrf.mxu0
      %v7878 = vadd.f32 %v7761, %v7877
      %v7879 = vand.u32 %v7704, 4294901760
      %7880 = vmatmul.f32.gmra.mxu0 %v7879
      %v7881 = vpop.f32.mrf.mxu0
      %v7882 = vadd.f32 %v7769, %v7881
      %7883 = vdwg.mxu0
      %v7884 = vand.u32 %v6857, 4294901760
      %v7885 = vsub.f32 %v6857, %v7884
      %7886 = vmatpush.msra.mxu0 %v7885
      %v7887 = vand.u32 %v6856, 4294901760
      %v7888 = vsub.f32 %v6856, %v7887
      %7889 = vmatpush.msra.mxu0 %v7888
      %v7890 = vand.u32 %v6855, 4294901760
      %v7891 = vsub.f32 %v6855, %v7890
      %7892 = vmatpush.msra.mxu0 %v7891
      %v7893 = vand.u32 %v6854, 4294901760
      %v7894 = vsub.f32 %v6854, %v7893
      %7895 = vmatpush.msra.mxu0 %v7894
      %v7896 = vand.u32 %v6853, 4294901760
      %v7897 = vsub.f32 %v6853, %v7896
      %7898 = vmatpush.msra.mxu0 %v7897
      %v7899 = vand.u32 %v6852, 4294901760
      %v7900 = vsub.f32 %v6852, %v7899
      %7901 = vmatpush.msra.mxu0 %v7900
      %v7902 = vand.u32 %v6851, 4294901760
      %v7903 = vsub.f32 %v6851, %v7902
      %7904 = vmatpush.msra.mxu0 %v7903
      %v7905 = vand.u32 %v6850, 4294901760
      %v7906 = vsub.f32 %v6850, %v7905
      %7907 = vmatpush.msra.mxu0 %v7906
      %v7908 = vand.u32 %v6849, 4294901760
      %v7909 = vsub.f32 %v6849, %v7908
      %7910 = vmatpush.msra.mxu0 %v7909
      %v7911 = vand.u32 %v6848, 4294901760
      %v7912 = vsub.f32 %v6848, %v7911
      %7913 = vmatpush.msra.mxu0 %v7912
      %v7914 = vand.u32 %v6847, 4294901760
      %v7915 = vsub.f32 %v6847, %v7914
      %7916 = vmatpush.msra.mxu0 %v7915
      %v7917 = vand.u32 %v6846, 4294901760
      %v7918 = vsub.f32 %v6846, %v7917
      %7919 = vmatpush.msra.mxu0 %v7918
      %v7920 = vand.u32 %v6845, 4294901760
      %v7921 = vsub.f32 %v6845, %v7920
      %7922 = vmatpush.msra.mxu0 %v7921
      %v7923 = vand.u32 %v6844, 4294901760
      %v7924 = vsub.f32 %v6844, %v7923
      %7925 = vmatpush.msra.mxu0 %v7924
      %v7926 = vand.u32 %v6843, 4294901760
      %v7927 = vsub.f32 %v6843, %v7926
      %7928 = vmatpush.msra.mxu0 %v7927
      %v7929 = vand.u32 %v6842, 4294901760
      %v7930 = vsub.f32 %v6842, %v7929
      %7931 = vmatpush.msra.mxu0 %v7930
      %v7932 = vand.u32 %v7698, 4294901760
      %v7933 = vsub.f32 %v7698, %v7932
      %7934 = vmatmul.f32.gmra.mxu0 %v7933
      %v7935 = vpop.f32.mrf.mxu0
      %v7936 = vadd.f32 %v7870, %v7935
      %v7937 = vand.u32 %v7700, 4294901760
      %v7938 = vsub.f32 %v7700, %v7937
      %7939 = vmatmul.f32.gmra.mxu0 %v7938
      %v7940 = vpop.f32.mrf.mxu0
      %v7941 = vadd.f32 %v7874, %v7940
      %v7942 = vand.u32 %v7702, 4294901760
      %v7943 = vsub.f32 %v7702, %v7942
      %7944 = vmatmul.f32.gmra.mxu0 %v7943
      %v7945 = vpop.f32.mrf.mxu0
      %v7946 = vadd.f32 %v7878, %v7945
      %v7947 = vand.u32 %v7704, 4294901760
      %v7948 = vsub.f32 %v7704, %v7947
      %7949 = vmatmul.f32.gmra.mxu0 %v7948
      %v7950 = vpop.f32.mrf.mxu0
      %v7951 = vadd.f32 %v7882, %v7950
      %7952 = vdwg.mxu0
      %v7953 = vand.u32 %v6857, 4294901760
      %7954 = vmatpush.msra.mxu0 %v7953
      %v7955 = vand.u32 %v6856, 4294901760
      %7956 = vmatpush.msra.mxu0 %v7955
      %v7957 = vand.u32 %v6855, 4294901760
      %7958 = vmatpush.msra.mxu0 %v7957
      %v7959 = vand.u32 %v6854, 4294901760
      %7960 = vmatpush.msra.mxu0 %v7959
      %v7961 = vand.u32 %v6853, 4294901760
      %7962 = vmatpush.msra.mxu0 %v7961
      %v7963 = vand.u32 %v6852, 4294901760
      %7964 = vmatpush.msra.mxu0 %v7963
      %v7965 = vand.u32 %v6851, 4294901760
      %7966 = vmatpush.msra.mxu0 %v7965
      %v7967 = vand.u32 %v6850, 4294901760
      %7968 = vmatpush.msra.mxu0 %v7967
      %v7969 = vand.u32 %v6849, 4294901760
      %7970 = vmatpush.msra.mxu0 %v7969
      %v7971 = vand.u32 %v6848, 4294901760
      %7972 = vmatpush.msra.mxu0 %v7971
      %v7973 = vand.u32 %v6847, 4294901760
      %7974 = vmatpush.msra.mxu0 %v7973
      %v7975 = vand.u32 %v6846, 4294901760
      %7976 = vmatpush.msra.mxu0 %v7975
      %v7977 = vand.u32 %v6845, 4294901760
      %7978 = vmatpush.msra.mxu0 %v7977
      %v7979 = vand.u32 %v6844, 4294901760
      %7980 = vmatpush.msra.mxu0 %v7979
      %v7981 = vand.u32 %v6843, 4294901760
      %7982 = vmatpush.msra.mxu0 %v7981
      %v7983 = vand.u32 %v6842, 4294901760
      %7984 = vmatpush.msra.mxu0 %v7983
      %v7985 = vand.u32 %v7698, 4294901760
      %v7986 = vsub.f32 %v7698, %v7985
      %v7987 = vand.u32 %v7986, 4294901760
      %7988 = vmatmul.f32.gmra.mxu0 %v7987
      %v7989 = vpop.f32.mrf.mxu0
      %v7990 = vadd.f32 %v7936, %v7989
      %v7991 = vand.u32 %v7700, 4294901760
      %v7992 = vsub.f32 %v7700, %v7991
      %v7993 = vand.u32 %v7992, 4294901760
      %7994 = vmatmul.f32.gmra.mxu0 %v7993
      %v7995 = vpop.f32.mrf.mxu0
      %v7996 = vadd.f32 %v7941, %v7995
      %v7997 = vand.u32 %v7702, 4294901760
      %v7998 = vsub.f32 %v7702, %v7997
      %v7999 = vand.u32 %v7998, 4294901760
      %8000 = vmatmul.f32.gmra.mxu0 %v7999
      %v8001 = vpop.f32.mrf.mxu0
      %v8002 = vadd.f32 %v7946, %v8001
      %v8003 = vand.u32 %v7704, 4294901760
      %v8004 = vsub.f32 %v7704, %v8003
      %v8005 = vand.u32 %v8004, 4294901760
      %8006 = vmatmul.f32.gmra.mxu0 %v8005
      %v8007 = vpop.f32.mrf.mxu0
      %v8008 = vadd.f32 %v7951, %v8007
      %8009 = vdwg.mxu0
      %v8010 = vand.u32 %v6857, 4294901760
      %v8011 = vsub.f32 %v6857, %v8010
      %v8012 = vand.u32 %v8011, 4294901760
      %8013 = vmatpush.msra.mxu0 %v8012
      %v8014 = vand.u32 %v6856, 4294901760
      %v8015 = vsub.f32 %v6856, %v8014
      %v8016 = vand.u32 %v8015, 4294901760
      %8017 = vmatpush.msra.mxu0 %v8016
      %v8018 = vand.u32 %v6855, 4294901760
      %v8019 = vsub.f32 %v6855, %v8018
      %v8020 = vand.u32 %v8019, 4294901760
      %8021 = vmatpush.msra.mxu0 %v8020
      %v8022 = vand.u32 %v6854, 4294901760
      %v8023 = vsub.f32 %v6854, %v8022
      %v8024 = vand.u32 %v8023, 4294901760
      %8025 = vmatpush.msra.mxu0 %v8024
      %v8026 = vand.u32 %v6853, 4294901760
      %v8027 = vsub.f32 %v6853, %v8026
      %v8028 = vand.u32 %v8027, 4294901760
      %8029 = vmatpush.msra.mxu0 %v8028
      %v8030 = vand.u32 %v6852, 4294901760
      %v8031 = vsub.f32 %v6852, %v8030
      %v8032 = vand.u32 %v8031, 4294901760
      %8033 = vmatpush.msra.mxu0 %v8032
      %v8034 = vand.u32 %v6851, 4294901760
      %v8035 = vsub.f32 %v6851, %v8034
      %v8036 = vand.u32 %v8035, 4294901760
      %8037 = vmatpush.msra.mxu0 %v8036
      %v8038 = vand.u32 %v6850, 4294901760
      %v8039 = vsub.f32 %v6850, %v8038
      %v8040 = vand.u32 %v8039, 4294901760
      %8041 = vmatpush.msra.mxu0 %v8040
      %v8042 = vand.u32 %v6849, 4294901760
      %v8043 = vsub.f32 %v6849, %v8042
      %v8044 = vand.u32 %v8043, 4294901760
      %8045 = vmatpush.msra.mxu0 %v8044
      %v8046 = vand.u32 %v6848, 4294901760
      %v8047 = vsub.f32 %v6848, %v8046
      %v8048 = vand.u32 %v8047, 4294901760
      %8049 = vmatpush.msra.mxu0 %v8048
      %v8050 = vand.u32 %v6847, 4294901760
      %v8051 = vsub.f32 %v6847, %v8050
      %v8052 = vand.u32 %v8051, 4294901760
      %8053 = vmatpush.msra.mxu0 %v8052
      %v8054 = vand.u32 %v6846, 4294901760
      %v8055 = vsub.f32 %v6846, %v8054
      %v8056 = vand.u32 %v8055, 4294901760
      %8057 = vmatpush.msra.mxu0 %v8056
      %v8058 = vand.u32 %v6845, 4294901760
      %v8059 = vsub.f32 %v6845, %v8058
      %v8060 = vand.u32 %v8059, 4294901760
      %8061 = vmatpush.msra.mxu0 %v8060
      %v8062 = vand.u32 %v6844, 4294901760
      %v8063 = vsub.f32 %v6844, %v8062
      %v8064 = vand.u32 %v8063, 4294901760
      %8065 = vmatpush.msra.mxu0 %v8064
      %v8066 = vand.u32 %v6843, 4294901760
      %v8067 = vsub.f32 %v6843, %v8066
      %v8068 = vand.u32 %v8067, 4294901760
      %8069 = vmatpush.msra.mxu0 %v8068
      %v8070 = vand.u32 %v6842, 4294901760
      %v8071 = vsub.f32 %v6842, %v8070
      %v8072 = vand.u32 %v8071, 4294901760
      %8073 = vmatpush.msra.mxu0 %v8072
      %v8074 = vand.u32 %v7698, 4294901760
      %8075 = vmatmul.f32.gmra.mxu0 %v8074
      %v8076 = vpop.f32.mrf.mxu0
      %v8077 = vadd.f32 %v7990, %v8076
      %v8078 = vand.u32 %v7700, 4294901760
      %8079 = vmatmul.f32.gmra.mxu0 %v8078
      %v8080 = vpop.f32.mrf.mxu0
      %v8081 = vadd.f32 %v7996, %v8080
      %v8082 = vand.u32 %v7702, 4294901760
      %8083 = vmatmul.f32.gmra.mxu0 %v8082
      %v8084 = vpop.f32.mrf.mxu0
      %v8085 = vadd.f32 %v8002, %v8084
      %v8086 = vand.u32 %v7704, 4294901760
      %8087 = vmatmul.f32.gmra.mxu0 %v8086
      %v8088 = vpop.f32.mrf.mxu0
      %v8089 = vadd.f32 %v8008, %v8088
      %8090 = vdwg.mxu0
      %v8091 = vand.u32 %v6857, 4294901760
      %8092 = vmatpush.msra.mxu0 %v8091
      %v8093 = vand.u32 %v6856, 4294901760
      %8094 = vmatpush.msra.mxu0 %v8093
      %v8095 = vand.u32 %v6855, 4294901760
      %8096 = vmatpush.msra.mxu0 %v8095
      %v8097 = vand.u32 %v6854, 4294901760
      %8098 = vmatpush.msra.mxu0 %v8097
      %v8099 = vand.u32 %v6853, 4294901760
      %8100 = vmatpush.msra.mxu0 %v8099
      %v8101 = vand.u32 %v6852, 4294901760
      %8102 = vmatpush.msra.mxu0 %v8101
      %v8103 = vand.u32 %v6851, 4294901760
      %8104 = vmatpush.msra.mxu0 %v8103
      %v8105 = vand.u32 %v6850, 4294901760
      %8106 = vmatpush.msra.mxu0 %v8105
      %v8107 = vand.u32 %v6849, 4294901760
      %8108 = vmatpush.msra.mxu0 %v8107
      %v8109 = vand.u32 %v6848, 4294901760
      %8110 = vmatpush.msra.mxu0 %v8109
      %v8111 = vand.u32 %v6847, 4294901760
      %8112 = vmatpush.msra.mxu0 %v8111
      %v8113 = vand.u32 %v6846, 4294901760
      %8114 = vmatpush.msra.mxu0 %v8113
      %v8115 = vand.u32 %v6845, 4294901760
      %8116 = vmatpush.msra.mxu0 %v8115
      %v8117 = vand.u32 %v6844, 4294901760
      %8118 = vmatpush.msra.mxu0 %v8117
      %v8119 = vand.u32 %v6843, 4294901760
      %8120 = vmatpush.msra.mxu0 %v8119
      %v8121 = vand.u32 %v6842, 4294901760
      %8122 = vmatpush.msra.mxu0 %v8121
      %v8123 = vand.u32 %v7698, 4294901760
      %8124 = vmatmul.f32.gmra.mxu0 %v8123
      %v8125 = vpop.f32.mrf.mxu0
      %v8126 = vadd.f32 %v8077, %v8125
      %v8127 = vand.u32 %v7700, 4294901760
      %8128 = vmatmul.f32.gmra.mxu0 %v8127
      %v8129 = vpop.f32.mrf.mxu0
      %v8130 = vadd.f32 %v8081, %v8129
      %v8131 = vand.u32 %v7702, 4294901760
      %8132 = vmatmul.f32.gmra.mxu0 %v8131
      %v8133 = vpop.f32.mrf.mxu0
      %v8134 = vadd.f32 %v8085, %v8133
      %v8135 = vand.u32 %v7704, 4294901760
      %8136 = vmatmul.f32.gmra.mxu0 %v8135
      %v8137 = vpop.f32.mrf.mxu0
      %v8138 = vadd.f32 %v8089, %v8137
      %8139 = vdwg.mxu0
      %v8140 = vand.u32 %v6873, 4294901760
      %8141 = vmatpush.msra.mxu0 %v8140
      %v8142 = vand.u32 %v6872, 4294901760
      %8143 = vmatpush.msra.mxu0 %v8142
      %v8144 = vand.u32 %v6871, 4294901760
      %8145 = vmatpush.msra.mxu0 %v8144
      %v8146 = vand.u32 %v6870, 4294901760
      %8147 = vmatpush.msra.mxu0 %v8146
      %v8148 = vand.u32 %v6869, 4294901760
      %8149 = vmatpush.msra.mxu0 %v8148
      %v8150 = vand.u32 %v6868, 4294901760
      %8151 = vmatpush.msra.mxu0 %v8150
      %v8152 = vand.u32 %v6867, 4294901760
      %8153 = vmatpush.msra.mxu0 %v8152
      %v8154 = vand.u32 %v6866, 4294901760
      %8155 = vmatpush.msra.mxu0 %v8154
      %v8156 = vand.u32 %v6865, 4294901760
      %8157 = vmatpush.msra.mxu0 %v8156
      %v8158 = vand.u32 %v6864, 4294901760
      %8159 = vmatpush.msra.mxu0 %v8158
      %v8160 = vand.u32 %v6863, 4294901760
      %8161 = vmatpush.msra.mxu0 %v8160
      %v8162 = vand.u32 %v6862, 4294901760
      %8163 = vmatpush.msra.mxu0 %v8162
      %v8164 = vand.u32 %v6861, 4294901760
      %8165 = vmatpush.msra.mxu0 %v8164
      %v8166 = vand.u32 %v6860, 4294901760
      %8167 = vmatpush.msra.mxu0 %v8166
      %v8168 = vand.u32 %v6859, 4294901760
      %8169 = vmatpush.msra.mxu0 %v8168
      %v8170 = vand.u32 %v6858, 4294901760
      %8171 = vmatpush.msra.mxu0 %v8170
      %v8172 = vand.u32 %v7699, 4294901760
      %v8173 = vsub.f32 %v7699, %v8172
      %v8174 = vand.u32 %v8173, 4294901760
      %v8175 = vsub.f32 %v8173, %v8174
      %v8176 = vand.u32 %v8175, 4294901760
      %8177 = vmatmul.f32.gmra.mxu0 %v8176
      %v8178 = vpop.f32.mrf.mxu0
      %v8179 = vadd.f32 %v8126, %v8178
      %v8180 = vand.u32 %v7701, 4294901760
      %v8181 = vsub.f32 %v7701, %v8180
      %v8182 = vand.u32 %v8181, 4294901760
      %v8183 = vsub.f32 %v8181, %v8182
      %v8184 = vand.u32 %v8183, 4294901760
      %8185 = vmatmul.f32.gmra.mxu0 %v8184
      %v8186 = vpop.f32.mrf.mxu0
      %v8187 = vadd.f32 %v8130, %v8186
      %v8188 = vand.u32 %v7703, 4294901760
      %v8189 = vsub.f32 %v7703, %v8188
      %v8190 = vand.u32 %v8189, 4294901760
      %v8191 = vsub.f32 %v8189, %v8190
      %v8192 = vand.u32 %v8191, 4294901760
      %8193 = vmatmul.f32.gmra.mxu0 %v8192
      %v8194 = vpop.f32.mrf.mxu0
      %v8195 = vadd.f32 %v8134, %v8194
      %v8196 = vand.u32 %v7705, 4294901760
      %v8197 = vsub.f32 %v7705, %v8196
      %v8198 = vand.u32 %v8197, 4294901760
      %v8199 = vsub.f32 %v8197, %v8198
      %v8200 = vand.u32 %v8199, 4294901760
      %8201 = vmatmul.f32.gmra.mxu0 %v8200
      %v8202 = vpop.f32.mrf.mxu0
      %v8203 = vadd.f32 %v8138, %v8202
      %8204 = vdwg.mxu0
      %v8205 = vand.u32 %v6873, 4294901760
      %v8206 = vsub.f32 %v6873, %v8205
      %v8207 = vand.u32 %v8206, 4294901760
      %v8208 = vsub.f32 %v8206, %v8207
      %v8209 = vand.u32 %v8208, 4294901760
      %8210 = vmatpush.msra.mxu0 %v8209
      %v8211 = vand.u32 %v6872, 4294901760
      %v8212 = vsub.f32 %v6872, %v8211
      %v8213 = vand.u32 %v8212, 4294901760
      %v8214 = vsub.f32 %v8212, %v8213
      %v8215 = vand.u32 %v8214, 4294901760
      %8216 = vmatpush.msra.mxu0 %v8215
      %v8217 = vand.u32 %v6871, 4294901760
      %v8218 = vsub.f32 %v6871, %v8217
      %v8219 = vand.u32 %v8218, 4294901760
      %v8220 = vsub.f32 %v8218, %v8219
      %v8221 = vand.u32 %v8220, 4294901760
      %8222 = vmatpush.msra.mxu0 %v8221
      %v8223 = vand.u32 %v6870, 4294901760
      %v8224 = vsub.f32 %v6870, %v8223
      %v8225 = vand.u32 %v8224, 4294901760
      %v8226 = vsub.f32 %v8224, %v8225
      %v8227 = vand.u32 %v8226, 4294901760
      %8228 = vmatpush.msra.mxu0 %v8227
      %v8229 = vand.u32 %v6869, 4294901760
      %v8230 = vsub.f32 %v6869, %v8229
      %v8231 = vand.u32 %v8230, 4294901760
      %v8232 = vsub.f32 %v8230, %v8231
      %v8233 = vand.u32 %v8232, 4294901760
      %8234 = vmatpush.msra.mxu0 %v8233
      %v8235 = vand.u32 %v6868, 4294901760
      %v8236 = vsub.f32 %v6868, %v8235
      %v8237 = vand.u32 %v8236, 4294901760
      %v8238 = vsub.f32 %v8236, %v8237
      %v8239 = vand.u32 %v8238, 4294901760
      %8240 = vmatpush.msra.mxu0 %v8239
      %v8241 = vand.u32 %v6867, 4294901760
      %v8242 = vsub.f32 %v6867, %v8241
      %v8243 = vand.u32 %v8242, 4294901760
      %v8244 = vsub.f32 %v8242, %v8243
      %v8245 = vand.u32 %v8244, 4294901760
      %8246 = vmatpush.msra.mxu0 %v8245
      %v8247 = vand.u32 %v6866, 4294901760
      %v8248 = vsub.f32 %v6866, %v8247
      %v8249 = vand.u32 %v8248, 4294901760
      %v8250 = vsub.f32 %v8248, %v8249
      %v8251 = vand.u32 %v8250, 4294901760
      %8252 = vmatpush.msra.mxu0 %v8251
      %v8253 = vand.u32 %v6865, 4294901760
      %v8254 = vsub.f32 %v6865, %v8253
      %v8255 = vand.u32 %v8254, 4294901760
      %v8256 = vsub.f32 %v8254, %v8255
      %v8257 = vand.u32 %v8256, 4294901760
      %8258 = vmatpush.msra.mxu0 %v8257
      %v8259 = vand.u32 %v6864, 4294901760
      %v8260 = vsub.f32 %v6864, %v8259
      %v8261 = vand.u32 %v8260, 4294901760
      %v8262 = vsub.f32 %v8260, %v8261
      %v8263 = vand.u32 %v8262, 4294901760
      %8264 = vmatpush.msra.mxu0 %v8263
      %v8265 = vand.u32 %v6863, 4294901760
      %v8266 = vsub.f32 %v6863, %v8265
      %v8267 = vand.u32 %v8266, 4294901760
      %v8268 = vsub.f32 %v8266, %v8267
      %v8269 = vand.u32 %v8268, 4294901760
      %8270 = vmatpush.msra.mxu0 %v8269
      %v8271 = vand.u32 %v6862, 4294901760
      %v8272 = vsub.f32 %v6862, %v8271
      %v8273 = vand.u32 %v8272, 4294901760
      %v8274 = vsub.f32 %v8272, %v8273
      %v8275 = vand.u32 %v8274, 4294901760
      %8276 = vmatpush.msra.mxu0 %v8275
      %v8277 = vand.u32 %v6861, 4294901760
      %v8278 = vsub.f32 %v6861, %v8277
      %v8279 = vand.u32 %v8278, 4294901760
      %v8280 = vsub.f32 %v8278, %v8279
      %v8281 = vand.u32 %v8280, 4294901760
      %8282 = vmatpush.msra.mxu0 %v8281
      %v8283 = vand.u32 %v6860, 4294901760
      %v8284 = vsub.f32 %v6860, %v8283
      %v8285 = vand.u32 %v8284, 4294901760
      %v8286 = vsub.f32 %v8284, %v8285
      %v8287 = vand.u32 %v8286, 4294901760
      %8288 = vmatpush.msra.mxu0 %v8287
      %v8289 = vand.u32 %v6859, 4294901760
      %v8290 = vsub.f32 %v6859, %v8289
      %v8291 = vand.u32 %v8290, 4294901760
      %v8292 = vsub.f32 %v8290, %v8291
      %v8293 = vand.u32 %v8292, 4294901760
      %8294 = vmatpush.msra.mxu0 %v8293
      %v8295 = vand.u32 %v6858, 4294901760
      %v8296 = vsub.f32 %v6858, %v8295
      %v8297 = vand.u32 %v8296, 4294901760
      %v8298 = vsub.f32 %v8296, %v8297
      %v8299 = vand.u32 %v8298, 4294901760
      %8300 = vmatpush.msra.mxu0 %v8299
      %v8301 = vand.u32 %v7699, 4294901760
      %8302 = vmatmul.f32.gmra.mxu0 %v8301
      %v8303 = vpop.f32.mrf.mxu0
      %v8304 = vadd.f32 %v8179, %v8303
      %v8305 = vand.u32 %v7701, 4294901760
      %8306 = vmatmul.f32.gmra.mxu0 %v8305
      %v8307 = vpop.f32.mrf.mxu0
      %v8308 = vadd.f32 %v8187, %v8307
      %v8309 = vand.u32 %v7703, 4294901760
      %8310 = vmatmul.f32.gmra.mxu0 %v8309
      %v8311 = vpop.f32.mrf.mxu0
      %v8312 = vadd.f32 %v8195, %v8311
      %v8313 = vand.u32 %v7705, 4294901760
      %8314 = vmatmul.f32.gmra.mxu0 %v8313
      %v8315 = vpop.f32.mrf.mxu0
      %v8316 = vadd.f32 %v8203, %v8315
      %8317 = vdwg.mxu0
      %v8318 = vand.u32 %v6873, 4294901760
      %v8319 = vsub.f32 %v6873, %v8318
      %8320 = vmatpush.msra.mxu0 %v8319
      %v8321 = vand.u32 %v6872, 4294901760
      %v8322 = vsub.f32 %v6872, %v8321
      %8323 = vmatpush.msra.mxu0 %v8322
      %v8324 = vand.u32 %v6871, 4294901760
      %v8325 = vsub.f32 %v6871, %v8324
      %8326 = vmatpush.msra.mxu0 %v8325
      %v8327 = vand.u32 %v6870, 4294901760
      %v8328 = vsub.f32 %v6870, %v8327
      %8329 = vmatpush.msra.mxu0 %v8328
      %v8330 = vand.u32 %v6869, 4294901760
      %v8331 = vsub.f32 %v6869, %v8330
      %8332 = vmatpush.msra.mxu0 %v8331
      %v8333 = vand.u32 %v6868, 4294901760
      %v8334 = vsub.f32 %v6868, %v8333
      %8335 = vmatpush.msra.mxu0 %v8334
      %v8336 = vand.u32 %v6867, 4294901760
      %v8337 = vsub.f32 %v6867, %v8336
      %8338 = vmatpush.msra.mxu0 %v8337
      %v8339 = vand.u32 %v6866, 4294901760
      %v8340 = vsub.f32 %v6866, %v8339
      %8341 = vmatpush.msra.mxu0 %v8340
      %v8342 = vand.u32 %v6865, 4294901760
      %v8343 = vsub.f32 %v6865, %v8342
      %8344 = vmatpush.msra.mxu0 %v8343
      %v8345 = vand.u32 %v6864, 4294901760
      %v8346 = vsub.f32 %v6864, %v8345
      %8347 = vmatpush.msra.mxu0 %v8346
      %v8348 = vand.u32 %v6863, 4294901760
      %v8349 = vsub.f32 %v6863, %v8348
      %8350 = vmatpush.msra.mxu0 %v8349
      %v8351 = vand.u32 %v6862, 4294901760
      %v8352 = vsub.f32 %v6862, %v8351
      %8353 = vmatpush.msra.mxu0 %v8352
      %v8354 = vand.u32 %v6861, 4294901760
      %v8355 = vsub.f32 %v6861, %v8354
      %8356 = vmatpush.msra.mxu0 %v8355
      %v8357 = vand.u32 %v6860, 4294901760
      %v8358 = vsub.f32 %v6860, %v8357
      %8359 = vmatpush.msra.mxu0 %v8358
      %v8360 = vand.u32 %v6859, 4294901760
      %v8361 = vsub.f32 %v6859, %v8360
      %8362 = vmatpush.msra.mxu0 %v8361
      %v8363 = vand.u32 %v6858, 4294901760
      %v8364 = vsub.f32 %v6858, %v8363
      %8365 = vmatpush.msra.mxu0 %v8364
      %v8366 = vand.u32 %v7699, 4294901760
      %v8367 = vsub.f32 %v7699, %v8366
      %8368 = vmatmul.f32.gmra.mxu0 %v8367
      %v8369 = vpop.f32.mrf.mxu0
      %v8370 = vadd.f32 %v8304, %v8369
      %v8371 = vand.u32 %v7701, 4294901760
      %v8372 = vsub.f32 %v7701, %v8371
      %8373 = vmatmul.f32.gmra.mxu0 %v8372
      %v8374 = vpop.f32.mrf.mxu0
      %v8375 = vadd.f32 %v8308, %v8374
      %v8376 = vand.u32 %v7703, 4294901760
      %v8377 = vsub.f32 %v7703, %v8376
      %8378 = vmatmul.f32.gmra.mxu0 %v8377
      %v8379 = vpop.f32.mrf.mxu0
      %v8380 = vadd.f32 %v8312, %v8379
      %v8381 = vand.u32 %v7705, 4294901760
      %v8382 = vsub.f32 %v7705, %v8381
      %8383 = vmatmul.f32.gmra.mxu0 %v8382
      %v8384 = vpop.f32.mrf.mxu0
      %v8385 = vadd.f32 %v8316, %v8384
      %8386 = vdwg.mxu0
      %v8387 = vand.u32 %v6873, 4294901760
      %8388 = vmatpush.msra.mxu0 %v8387
      %v8389 = vand.u32 %v6872, 4294901760
      %8390 = vmatpush.msra.mxu0 %v8389
      %v8391 = vand.u32 %v6871, 4294901760
      %8392 = vmatpush.msra.mxu0 %v8391
      %v8393 = vand.u32 %v6870, 4294901760
      %8394 = vmatpush.msra.mxu0 %v8393
      %v8395 = vand.u32 %v6869, 4294901760
      %8396 = vmatpush.msra.mxu0 %v8395
      %v8397 = vand.u32 %v6868, 4294901760
      %8398 = vmatpush.msra.mxu0 %v8397
      %v8399 = vand.u32 %v6867, 4294901760
      %8400 = vmatpush.msra.mxu0 %v8399
      %v8401 = vand.u32 %v6866, 4294901760
      %8402 = vmatpush.msra.mxu0 %v8401
      %v8403 = vand.u32 %v6865, 4294901760
      %8404 = vmatpush.msra.mxu0 %v8403
      %v8405 = vand.u32 %v6864, 4294901760
      %8406 = vmatpush.msra.mxu0 %v8405
      %v8407 = vand.u32 %v6863, 4294901760
      %8408 = vmatpush.msra.mxu0 %v8407
      %v8409 = vand.u32 %v6862, 4294901760
      %8410 = vmatpush.msra.mxu0 %v8409
      %v8411 = vand.u32 %v6861, 4294901760
      %8412 = vmatpush.msra.mxu0 %v8411
      %v8413 = vand.u32 %v6860, 4294901760
      %8414 = vmatpush.msra.mxu0 %v8413
      %v8415 = vand.u32 %v6859, 4294901760
      %8416 = vmatpush.msra.mxu0 %v8415
      %v8417 = vand.u32 %v6858, 4294901760
      %8418 = vmatpush.msra.mxu0 %v8417
      %v8419 = vand.u32 %v7699, 4294901760
      %v8420 = vsub.f32 %v7699, %v8419
      %v8421 = vand.u32 %v8420, 4294901760
      %8422 = vmatmul.f32.gmra.mxu0 %v8421
      %v8423 = vpop.f32.mrf.mxu0
      %v8424 = vadd.f32 %v8370, %v8423
      %v8425 = vand.u32 %v7701, 4294901760
      %v8426 = vsub.f32 %v7701, %v8425
      %v8427 = vand.u32 %v8426, 4294901760
      %8428 = vmatmul.f32.gmra.mxu0 %v8427
      %v8429 = vpop.f32.mrf.mxu0
      %v8430 = vadd.f32 %v8375, %v8429
      %v8431 = vand.u32 %v7703, 4294901760
      %v8432 = vsub.f32 %v7703, %v8431
      %v8433 = vand.u32 %v8432, 4294901760
      %8434 = vmatmul.f32.gmra.mxu0 %v8433
      %v8435 = vpop.f32.mrf.mxu0
      %v8436 = vadd.f32 %v8380, %v8435
      %v8437 = vand.u32 %v7705, 4294901760
      %v8438 = vsub.f32 %v7705, %v8437
      %v8439 = vand.u32 %v8438, 4294901760
      %8440 = vmatmul.f32.gmra.mxu0 %v8439
      %v8441 = vpop.f32.mrf.mxu0
      %v8442 = vadd.f32 %v8385, %v8441
      %8443 = vdwg.mxu0
      %v8444 = vand.u32 %v6873, 4294901760
      %v8445 = vsub.f32 %v6873, %v8444
      %v8446 = vand.u32 %v8445, 4294901760
      %8447 = vmatpush.msra.mxu0 %v8446
      %v8448 = vand.u32 %v6872, 4294901760
      %v8449 = vsub.f32 %v6872, %v8448
      %v8450 = vand.u32 %v8449, 4294901760
      %8451 = vmatpush.msra.mxu0 %v8450
      %v8452 = vand.u32 %v6871, 4294901760
      %v8453 = vsub.f32 %v6871, %v8452
      %v8454 = vand.u32 %v8453, 4294901760
      %8455 = vmatpush.msra.mxu0 %v8454
      %v8456 = vand.u32 %v6870, 4294901760
      %v8457 = vsub.f32 %v6870, %v8456
      %v8458 = vand.u32 %v8457, 4294901760
      %8459 = vmatpush.msra.mxu0 %v8458
      %v8460 = vand.u32 %v6869, 4294901760
      %v8461 = vsub.f32 %v6869, %v8460
      %v8462 = vand.u32 %v8461, 4294901760
      %8463 = vmatpush.msra.mxu0 %v8462
      %v8464 = vand.u32 %v6868, 4294901760
      %v8465 = vsub.f32 %v6868, %v8464
      %v8466 = vand.u32 %v8465, 4294901760
      %8467 = vmatpush.msra.mxu0 %v8466
      %v8468 = vand.u32 %v6867, 4294901760
      %v8469 = vsub.f32 %v6867, %v8468
      %v8470 = vand.u32 %v8469, 4294901760
      %8471 = vmatpush.msra.mxu0 %v8470
      %v8472 = vand.u32 %v6866, 4294901760
      %v8473 = vsub.f32 %v6866, %v8472
      %v8474 = vand.u32 %v8473, 4294901760
      %8475 = vmatpush.msra.mxu0 %v8474
      %v8476 = vand.u32 %v6865, 4294901760
      %v8477 = vsub.f32 %v6865, %v8476
      %v8478 = vand.u32 %v8477, 4294901760
      %8479 = vmatpush.msra.mxu0 %v8478
      %v8480 = vand.u32 %v6864, 4294901760
      %v8481 = vsub.f32 %v6864, %v8480
      %v8482 = vand.u32 %v8481, 4294901760
      %8483 = vmatpush.msra.mxu0 %v8482
      %v8484 = vand.u32 %v6863, 4294901760
      %v8485 = vsub.f32 %v6863, %v8484
      %v8486 = vand.u32 %v8485, 4294901760
      %8487 = vmatpush.msra.mxu0 %v8486
      %v8488 = vand.u32 %v6862, 4294901760
      %v8489 = vsub.f32 %v6862, %v8488
      %v8490 = vand.u32 %v8489, 4294901760
      %8491 = vmatpush.msra.mxu0 %v8490
      %v8492 = vand.u32 %v6861, 4294901760
      %v8493 = vsub.f32 %v6861, %v8492
      %v8494 = vand.u32 %v8493, 4294901760
      %8495 = vmatpush.msra.mxu0 %v8494
      %v8496 = vand.u32 %v6860, 4294901760
      %v8497 = vsub.f32 %v6860, %v8496
      %v8498 = vand.u32 %v8497, 4294901760
      %8499 = vmatpush.msra.mxu0 %v8498
      %v8500 = vand.u32 %v6859, 4294901760
      %v8501 = vsub.f32 %v6859, %v8500
      %v8502 = vand.u32 %v8501, 4294901760
      %8503 = vmatpush.msra.mxu0 %v8502
      %v8504 = vand.u32 %v6858, 4294901760
      %v8505 = vsub.f32 %v6858, %v8504
      %v8506 = vand.u32 %v8505, 4294901760
      %8507 = vmatpush.msra.mxu0 %v8506
      %v8508 = vand.u32 %v7699, 4294901760
      %8509 = vmatmul.f32.gmra.mxu0 %v8508
      %v8510 = vpop.f32.mrf.mxu0
      %v8511 = vadd.f32 %v8424, %v8510
      %v8512 = vand.u32 %v7701, 4294901760
      %8513 = vmatmul.f32.gmra.mxu0 %v8512
      %v8514 = vpop.f32.mrf.mxu0
      %v8515 = vadd.f32 %v8430, %v8514
      %v8516 = vand.u32 %v7703, 4294901760
      %8517 = vmatmul.f32.gmra.mxu0 %v8516
      %v8518 = vpop.f32.mrf.mxu0
      %v8519 = vadd.f32 %v8436, %v8518
      %v8520 = vand.u32 %v7705, 4294901760
      %8521 = vmatmul.f32.gmra.mxu0 %v8520
      %v8522 = vpop.f32.mrf.mxu0
      %v8523 = vadd.f32 %v8442, %v8522
      %8524 = vdwg.mxu0
      %v8525 = vand.u32 %v6873, 4294901760
      %8526 = vmatpush.msra.mxu0 %v8525
      %v8527 = vand.u32 %v6872, 4294901760
      %8528 = vmatpush.msra.mxu0 %v8527
      %v8529 = vand.u32 %v6871, 4294901760
      %8530 = vmatpush.msra.mxu0 %v8529
      %v8531 = vand.u32 %v6870, 4294901760
      %8532 = vmatpush.msra.mxu0 %v8531
      %v8533 = vand.u32 %v6869, 4294901760
      %8534 = vmatpush.msra.mxu0 %v8533
      %v8535 = vand.u32 %v6868, 4294901760
      %8536 = vmatpush.msra.mxu0 %v8535
      %v8537 = vand.u32 %v6867, 4294901760
      %8538 = vmatpush.msra.mxu0 %v8537
      %v8539 = vand.u32 %v6866, 4294901760
      %8540 = vmatpush.msra.mxu0 %v8539
      %v8541 = vand.u32 %v6865, 4294901760
      %8542 = vmatpush.msra.mxu0 %v8541
      %v8543 = vand.u32 %v6864, 4294901760
      %8544 = vmatpush.msra.mxu0 %v8543
      %v8545 = vand.u32 %v6863, 4294901760
      %8546 = vmatpush.msra.mxu0 %v8545
      %v8547 = vand.u32 %v6862, 4294901760
      %8548 = vmatpush.msra.mxu0 %v8547
      %v8549 = vand.u32 %v6861, 4294901760
      %8550 = vmatpush.msra.mxu0 %v8549
      %v8551 = vand.u32 %v6860, 4294901760
      %8552 = vmatpush.msra.mxu0 %v8551
      %v8553 = vand.u32 %v6859, 4294901760
      %8554 = vmatpush.msra.mxu0 %v8553
      %v8555 = vand.u32 %v6858, 4294901760
      %8556 = vmatpush.msra.mxu0 %v8555
      %v8557 = vand.u32 %v7699, 4294901760
      %8558 = vmatmul.f32.gmra.mxu0 %v8557
      %v8559 = vpop.f32.mrf.mxu0
      %v8560 = vadd.f32 %v8511, %v8559
      %v8561 = vand.u32 %v7701, 4294901760
      %8562 = vmatmul.f32.gmra.mxu0 %v8561
      %v8563 = vpop.f32.mrf.mxu0
      %v8564 = vadd.f32 %v8515, %v8563
      %v8565 = vand.u32 %v7703, 4294901760
      %8566 = vmatmul.f32.gmra.mxu0 %v8565
      %v8567 = vpop.f32.mrf.mxu0
      %v8568 = vadd.f32 %v8519, %v8567
      %v8569 = vand.u32 %v7705, 4294901760
      %8570 = vmatmul.f32.gmra.mxu0 %v8569
      %v8571 = vpop.f32.mrf.mxu0
      %v8572 = vadd.f32 %v8523, %v8571
      %8573 = vdwg.mxu0
      %v8574 = vadd.f32 %v6708, %v8560
      %v8575 = vadd.f32 %v6709, %v8564
      %v8576 = vadd.f32 %v6710, %v8568
      %v8577 = vadd.f32 %v6711, %v8572
      %v8578 = vld [vmem:[%s6] sm:$0x1]
      %v8580 = vperm.slane %v8578, 0
      %v8582 = vadd.f32 %v8574, %v8580
      %v8583 = vadd.f32 %v8575, %v8580
      %v8584 = vadd.f32 %v8576, %v8580
      %v8585 = vadd.f32 %v8577, %v8580
      %v8586 = vadd.f32 %v8582, %v450
      %v8587 = vadd.f32 %v8583, %v451
      %v8588 = vadd.f32 %v8584, %v452
      %v8589 = vadd.f32 %v8585, %v453
      %v8590 = vld [vmem:[%s7] sm:$0xff]
      %v8591 = vld [vmem:[%s7 + $0x8] sm:$0xff]
      %v8592 = vld [vmem:[%s7 + $0x10] sm:$0xff]
      %v8593 = vld [vmem:[%s7 + $0x18] sm:$0xff]
      %v8594 = vld [vmem:[%s8] sm:$0x1]
      %v8596 = vperm.slane %v8594, 0
      %v8599 = vsel %vm470, %v8586, 0
      %v8602 = vsel %vm470, %v8587, 0
      %v8605 = vsel %vm470, %v8588, 0
      %v8608 = vsel %vm470, %v8589, 0
      %8610 = vmatpush.msra.mxu0 0.0
      %8611 = vmatpush.msra.mxu0 0.0
      %8612 = vmatpush.msra.mxu0 0.0
      %8613 = vmatpush.msra.mxu0 0.0
      %8614 = vmatpush.msra.mxu0 0.0
      %8615 = vmatpush.msra.mxu0 0.0
      %8616 = vmatpush.msra.mxu0 0.0
      %8617 = vmatpush.msra.mxu0 0.0
      %8618 = vmatpush.msra.mxu0 0.0
      %8619 = vmatpush.msra.mxu0 0.0
      %8620 = vmatpush.msra.mxu0 0.0
      %8621 = vmatpush.msra.mxu0 0.0
      %v8622 = vand.u32 %v8593, 4294901760
      %8623 = vmatpush.msra.mxu0 %v8622
      %v8624 = vand.u32 %v8592, 4294901760
      %8625 = vmatpush.msra.mxu0 %v8624
      %v8626 = vand.u32 %v8591, 4294901760
      %8627 = vmatpush.msra.mxu0 %v8626
      %v8628 = vand.u32 %v8590, 4294901760
      %8629 = vmatpush.msra.mxu0 %v8628
      %v8630 = vand.u32 %v8599, 4294901760
      %v8631 = vsub.f32 %v8599, %v8630
      %v8632 = vand.u32 %v8631, 4294901760
      %v8633 = vsub.f32 %v8631, %v8632
      %v8634 = vand.u32 %v8633, 4294901760
      %8635 = vmatmul.f32.gmra.mxu0 %v8634
      %v8636 = vpop.f32.mrf.mxu0
      %v8637 = vadd.f32 %v8596, %v8636
      %v8638 = vand.u32 %v8602, 4294901760
      %v8639 = vsub.f32 %v8602, %v8638
      %v8640 = vand.u32 %v8639, 4294901760
      %v8641 = vsub.f32 %v8639, %v8640
      %v8642 = vand.u32 %v8641, 4294901760
      %8643 = vmatmul.f32.gmra.mxu0 %v8642
      %v8644 = vpop.f32.mrf.mxu0
      %v8645 = vadd.f32 %v8596, %v8644
      %v8646 = vand.u32 %v8605, 4294901760
      %v8647 = vsub.f32 %v8605, %v8646
      %v8648 = vand.u32 %v8647, 4294901760
      %v8649 = vsub.f32 %v8647, %v8648
      %v8650 = vand.u32 %v8649, 4294901760
      %8651 = vmatmul.f32.gmra.mxu0 %v8650
      %v8652 = vpop.f32.mrf.mxu0
      %v8653 = vadd.f32 %v8596, %v8652
      %v8654 = vand.u32 %v8608, 4294901760
      %v8655 = vsub.f32 %v8608, %v8654
      %v8656 = vand.u32 %v8655, 4294901760
      %v8657 = vsub.f32 %v8655, %v8656
      %v8658 = vand.u32 %v8657, 4294901760
      %8659 = vmatmul.f32.gmra.mxu0 %v8658
      %v8660 = vpop.f32.mrf.mxu0
      %v8661 = vadd.f32 %v8596, %v8660
      %8662 = vdwg.mxu0
      %8663 = vmatpush.msra.mxu0 0.0
      %8664 = vmatpush.msra.mxu0 0.0
      %8665 = vmatpush.msra.mxu0 0.0
      %8666 = vmatpush.msra.mxu0 0.0
      %8667 = vmatpush.msra.mxu0 0.0
      %8668 = vmatpush.msra.mxu0 0.0
      %8669 = vmatpush.msra.mxu0 0.0
      %8670 = vmatpush.msra.mxu0 0.0
      %8671 = vmatpush.msra.mxu0 0.0
      %8672 = vmatpush.msra.mxu0 0.0
      %8673 = vmatpush.msra.mxu0 0.0
      %8674 = vmatpush.msra.mxu0 0.0
      %v8675 = vand.u32 %v8593, 4294901760
      %v8676 = vsub.f32 %v8593, %v8675
      %v8677 = vand.u32 %v8676, 4294901760
      %v8678 = vsub.f32 %v8676, %v8677
      %v8679 = vand.u32 %v8678, 4294901760
      %8680 = vmatpush.msra.mxu0 %v8679
      %v8681 = vand.u32 %v8592, 4294901760
      %v8682 = vsub.f32 %v8592, %v8681
      %v8683 = vand.u32 %v8682, 4294901760
      %v8684 = vsub.f32 %v8682, %v8683
      %v8685 = vand.u32 %v8684, 4294901760
      %8686 = vmatpush.msra.mxu0 %v8685
      %v8687 = vand.u32 %v8591, 4294901760
      %v8688 = vsub.f32 %v8591, %v8687
      %v8689 = vand.u32 %v8688, 4294901760
      %v8690 = vsub.f32 %v8688, %v8689
      %v8691 = vand.u32 %v8690, 4294901760
      %8692 = vmatpush.msra.mxu0 %v8691
      %v8693 = vand.u32 %v8590, 4294901760
      %v8694 = vsub.f32 %v8590, %v8693
      %v8695 = vand.u32 %v8694, 4294901760
      %v8696 = vsub.f32 %v8694, %v8695
      %v8697 = vand.u32 %v8696, 4294901760
      %8698 = vmatpush.msra.mxu0 %v8697
      %v8699 = vand.u32 %v8599, 4294901760
      %8700 = vmatmul.f32.gmra.mxu0 %v8699
      %v8701 = vpop.f32.mrf.mxu0
      %v8702 = vadd.f32 %v8637, %v8701
      %v8703 = vand.u32 %v8602, 4294901760
      %8704 = vmatmul.f32.gmra.mxu0 %v8703
      %v8705 = vpop.f32.mrf.mxu0
      %v8706 = vadd.f32 %v8645, %v8705
      %v8707 = vand.u32 %v8605, 4294901760
      %8708 = vmatmul.f32.gmra.mxu0 %v8707
      %v8709 = vpop.f32.mrf.mxu0
      %v8710 = vadd.f32 %v8653, %v8709
      %v8711 = vand.u32 %v8608, 4294901760
      %8712 = vmatmul.f32.gmra.mxu0 %v8711
      %v8713 = vpop.f32.mrf.mxu0
      %v8714 = vadd.f32 %v8661, %v8713
      %8715 = vdwg.mxu0
      %8716 = vmatpush.msra.mxu0 0.0
      %8717 = vmatpush.msra.mxu0 0.0
      %8718 = vmatpush.msra.mxu0 0.0
      %8719 = vmatpush.msra.mxu0 0.0
      %8720 = vmatpush.msra.mxu0 0.0
      %8721 = vmatpush.msra.mxu0 0.0
      %8722 = vmatpush.msra.mxu0 0.0
      %8723 = vmatpush.msra.mxu0 0.0
      %8724 = vmatpush.msra.mxu0 0.0
      %8725 = vmatpush.msra.mxu0 0.0
      %8726 = vmatpush.msra.mxu0 0.0
      %8727 = vmatpush.msra.mxu0 0.0
      %v8728 = vand.u32 %v8593, 4294901760
      %v8729 = vsub.f32 %v8593, %v8728
      %8730 = vmatpush.msra.mxu0 %v8729
      %v8731 = vand.u32 %v8592, 4294901760
      %v8732 = vsub.f32 %v8592, %v8731
      %8733 = vmatpush.msra.mxu0 %v8732
      %v8734 = vand.u32 %v8591, 4294901760
      %v8735 = vsub.f32 %v8591, %v8734
      %8736 = vmatpush.msra.mxu0 %v8735
      %v8737 = vand.u32 %v8590, 4294901760
      %v8738 = vsub.f32 %v8590, %v8737
      %8739 = vmatpush.msra.mxu0 %v8738
      %v8740 = vand.u32 %v8599, 4294901760
      %v8741 = vsub.f32 %v8599, %v8740
      %8742 = vmatmul.f32.gmra.mxu0 %v8741
      %v8743 = vpop.f32.mrf.mxu0
      %v8744 = vadd.f32 %v8702, %v8743
      %v8745 = vand.u32 %v8602, 4294901760
      %v8746 = vsub.f32 %v8602, %v8745
      %8747 = vmatmul.f32.gmra.mxu0 %v8746
      %v8748 = vpop.f32.mrf.mxu0
      %v8749 = vadd.f32 %v8706, %v8748
      %v8750 = vand.u32 %v8605, 4294901760
      %v8751 = vsub.f32 %v8605, %v8750
      %8752 = vmatmul.f32.gmra.mxu0 %v8751
      %v8753 = vpop.f32.mrf.mxu0
      %v8754 = vadd.f32 %v8710, %v8753
      %v8755 = vand.u32 %v8608, 4294901760
      %v8756 = vsub.f32 %v8608, %v8755
      %8757 = vmatmul.f32.gmra.mxu0 %v8756
      %v8758 = vpop.f32.mrf.mxu0
      %v8759 = vadd.f32 %v8714, %v8758
      %8760 = vdwg.mxu0
      %8761 = vmatpush.msra.mxu0 0.0
      %8762 = vmatpush.msra.mxu0 0.0
      %8763 = vmatpush.msra.mxu0 0.0
      %8764 = vmatpush.msra.mxu0 0.0
      %8765 = vmatpush.msra.mxu0 0.0
      %8766 = vmatpush.msra.mxu0 0.0
      %8767 = vmatpush.msra.mxu0 0.0
      %8768 = vmatpush.msra.mxu0 0.0
      %8769 = vmatpush.msra.mxu0 0.0
      %8770 = vmatpush.msra.mxu0 0.0
      %8771 = vmatpush.msra.mxu0 0.0
      %8772 = vmatpush.msra.mxu0 0.0
      %v8773 = vand.u32 %v8593, 4294901760
      %8774 = vmatpush.msra.mxu0 %v8773
      %v8775 = vand.u32 %v8592, 4294901760
      %8776 = vmatpush.msra.mxu0 %v8775
      %v8777 = vand.u32 %v8591, 4294901760
      %8778 = vmatpush.msra.mxu0 %v8777
      %v8779 = vand.u32 %v8590, 4294901760
      %8780 = vmatpush.msra.mxu0 %v8779
      %v8781 = vand.u32 %v8599, 4294901760
      %v8782 = vsub.f32 %v8599, %v8781
      %v8783 = vand.u32 %v8782, 4294901760
      %8784 = vmatmul.f32.gmra.mxu0 %v8783
      %v8785 = vpop.f32.mrf.mxu0
      %v8786 = vadd.f32 %v8744, %v8785
      %v8787 = vand.u32 %v8602, 4294901760
      %v8788 = vsub.f32 %v8602, %v8787
      %v8789 = vand.u32 %v8788, 4294901760
      %8790 = vmatmul.f32.gmra.mxu0 %v8789
      %v8791 = vpop.f32.mrf.mxu0
      %v8792 = vadd.f32 %v8749, %v8791
      %v8793 = vand.u32 %v8605, 4294901760
      %v8794 = vsub.f32 %v8605, %v8793
      %v8795 = vand.u32 %v8794, 4294901760
      %8796 = vmatmul.f32.gmra.mxu0 %v8795
      %v8797 = vpop.f32.mrf.mxu0
      %v8798 = vadd.f32 %v8754, %v8797
      %v8799 = vand.u32 %v8608, 4294901760
      %v8800 = vsub.f32 %v8608, %v8799
      %v8801 = vand.u32 %v8800, 4294901760
      %8802 = vmatmul.f32.gmra.mxu0 %v8801
      %v8803 = vpop.f32.mrf.mxu0
      %v8804 = vadd.f32 %v8759, %v8803
      %8805 = vdwg.mxu0
      %8806 = vmatpush.msra.mxu0 0.0
      %8807 = vmatpush.msra.mxu0 0.0
      %8808 = vmatpush.msra.mxu0 0.0
      %8809 = vmatpush.msra.mxu0 0.0
      %8810 = vmatpush.msra.mxu0 0.0
      %8811 = vmatpush.msra.mxu0 0.0
      %8812 = vmatpush.msra.mxu0 0.0
      %8813 = vmatpush.msra.mxu0 0.0
      %8814 = vmatpush.msra.mxu0 0.0
      %8815 = vmatpush.msra.mxu0 0.0
      %8816 = vmatpush.msra.mxu0 0.0
      %8817 = vmatpush.msra.mxu0 0.0
      %v8818 = vand.u32 %v8593, 4294901760
      %v8819 = vsub.f32 %v8593, %v8818
      %v8820 = vand.u32 %v8819, 4294901760
      %8821 = vmatpush.msra.mxu0 %v8820
      %v8822 = vand.u32 %v8592, 4294901760
      %v8823 = vsub.f32 %v8592, %v8822
      %v8824 = vand.u32 %v8823, 4294901760
      %8825 = vmatpush.msra.mxu0 %v8824
      %v8826 = vand.u32 %v8591, 4294901760
      %v8827 = vsub.f32 %v8591, %v8826
      %v8828 = vand.u32 %v8827, 4294901760
      %8829 = vmatpush.msra.mxu0 %v8828
      %v8830 = vand.u32 %v8590, 4294901760
      %v8831 = vsub.f32 %v8590, %v8830
      %v8832 = vand.u32 %v8831, 4294901760
      %8833 = vmatpush.msra.mxu0 %v8832
      %v8834 = vand.u32 %v8599, 4294901760
      %8835 = vmatmul.f32.gmra.mxu0 %v8834
      %v8836 = vpop.f32.mrf.mxu0
      %v8837 = vadd.f32 %v8786, %v8836
      %v8838 = vand.u32 %v8602, 4294901760
      %8839 = vmatmul.f32.gmra.mxu0 %v8838
      %v8840 = vpop.f32.mrf.mxu0
      %v8841 = vadd.f32 %v8792, %v8840
      %v8842 = vand.u32 %v8605, 4294901760
      %8843 = vmatmul.f32.gmra.mxu0 %v8842
      %v8844 = vpop.f32.mrf.mxu0
      %v8845 = vadd.f32 %v8798, %v8844
      %v8846 = vand.u32 %v8608, 4294901760
      %8847 = vmatmul.f32.gmra.mxu0 %v8846
      %v8848 = vpop.f32.mrf.mxu0
      %v8849 = vadd.f32 %v8804, %v8848
      %8850 = vdwg.mxu0
      %8851 = vmatpush.msra.mxu0 0.0
      %8852 = vmatpush.msra.mxu0 0.0
      %8853 = vmatpush.msra.mxu0 0.0
      %8854 = vmatpush.msra.mxu0 0.0
      %8855 = vmatpush.msra.mxu0 0.0
      %8856 = vmatpush.msra.mxu0 0.0
      %8857 = vmatpush.msra.mxu0 0.0
      %8858 = vmatpush.msra.mxu0 0.0
      %8859 = vmatpush.msra.mxu0 0.0
      %8860 = vmatpush.msra.mxu0 0.0
      %8861 = vmatpush.msra.mxu0 0.0
      %8862 = vmatpush.msra.mxu0 0.0
      %v8863 = vand.u32 %v8593, 4294901760
      %8864 = vmatpush.msra.mxu0 %v8863
      %v8865 = vand.u32 %v8592, 4294901760
      %8866 = vmatpush.msra.mxu0 %v8865
      %v8867 = vand.u32 %v8591, 4294901760
      %8868 = vmatpush.msra.mxu0 %v8867
      %v8869 = vand.u32 %v8590, 4294901760
      %8870 = vmatpush.msra.mxu0 %v8869
      %v8871 = vand.u32 %v8599, 4294901760
      %8872 = vmatmul.f32.gmra.mxu0 %v8871
      %v8873 = vpop.f32.mrf.mxu0
      %v8874 = vadd.f32 %v8837, %v8873
      %v8875 = vand.u32 %v8602, 4294901760
      %8876 = vmatmul.f32.gmra.mxu0 %v8875
      %v8877 = vpop.f32.mrf.mxu0
      %v8878 = vadd.f32 %v8841, %v8877
      %v8879 = vand.u32 %v8605, 4294901760
      %8880 = vmatmul.f32.gmra.mxu0 %v8879
      %v8881 = vpop.f32.mrf.mxu0
      %v8882 = vadd.f32 %v8845, %v8881
      %v8883 = vand.u32 %v8608, 4294901760
      %8884 = vmatmul.f32.gmra.mxu0 %v8883
      %v8885 = vpop.f32.mrf.mxu0
      %v8886 = vadd.f32 %v8849, %v8885
      %8887 = vdwg.mxu0
      %v8888 = vadd.f32 %v8874, %v454
      %v8889 = vadd.f32 %v8878, %v455
      %v8890 = vadd.f32 %v8882, %v456
      %v8891 = vadd.f32 %v8886, %v457
      %8892 = vst.msk [vmem:[%s448] sm:$0xff] %vm470, %v8888
      %8893 = vst.msk [vmem:[%s448 + $0x8] sm:$0xff] %vm470, %v8889
      %8894 = vst.msk [vmem:[%s448 + $0x10] sm:$0xff] %vm470, %v8890
      %8895 = vst.msk [vmem:[%s448 + $0x18] sm:$0xff] %vm470, %v8891
      %s8896 = smul.u32 4, %s25
      %p8897 = scmp.lt.s32.totalorder %s24, 1
      %s8898 = scalar_select %p8897, %s24, 1
      %p8899 = scmp.lt.s32.totalorder %s8896, 31
      %s8900 = scalar_select %p8899, %s8896, 31
      %s8901 = smul.addr %s8898, 32
      %s8902 = sadd.s32 %s8900, %s8901
      %s8903 = smul.addr %s8902, 8
      %s8904 = scalar_lea.vmem %s9, %s8903
      // Predicated region
      $region57: #{tpu_custom_call.1} parent=55 // pred_check
        %p8905 = pneg %p265
      $region58: #{tpu_custom_call.1} parent=55 // pred_check_branch
        %8907 = sbr.rel (%p8905) target = $region60
      $region59: #{tpu_custom_call.1} parent=55 // pred_region
        %s8908 = smul.u32 4, %s25
      $region60: #{tpu_custom_call.1} parent=55 // pred_fallthru
        _
    $region56: #{tpu_custom_call.1} parent=5 // pred_fallthru
      _
    %p8909 = scmp.le.s32.totalorder 2, %s15
    // Predicated region
    $region61: #{tpu_custom_call.1} parent=5 // pred_check
      %p8910 = pneg %p8909
    $region62: #{tpu_custom_call.1} parent=5 // pred_check_branch
      %8912 = sbr.rel (%p8910) target = $region64
    $region63: #{tpu_custom_call.1} parent=5 // pred_region
      %s8913 = ssub.s32 %s15, 2
      // Predicated region
      $region65: #{tpu_custom_call.1} parent=63 // pred_check
        %p8914 = pneg %p271
      $region66: #{tpu_custom_call.1} parent=63 // pred_check_branch
        %8916 = sbr.rel (%p8914) target = $region68
      $region67: #{tpu_custom_call.1} parent=63 // pred_region
        %s8917 = smul.u32 4, %s27
        %p8918 = scmp.lt.s32.totalorder %s26, 1
        %s8919 = scalar_select %p8918, %s26, 1
        %p8920 = scmp.lt.s32.totalorder %s8917, 31
        %s8921 = scalar_select %p8920, %s8917, 31
        %s8922 = smul.addr %s8919, 32
        %s8923 = sadd.s32 %s8921, %s8922
        %s8924 = smul.addr %s8923, 8
        %s8925 = scalar_lea.vmem %s9, %s8924
      $region68: #{tpu_custom_call.1} parent=63 // pred_fallthru
        _
    $region64: #{tpu_custom_call.1} parent=5 // pred_fallthru
      _
  $region6: #{tpu_custom_call.1} parent=0 // loop_footer
    %s19 = sadd.s32 1, %s15
  $region7: #{tpu_custom_call.1} parent=0 // loop_footer_branch
    %14 = sbr.rel target = $region3
  $region8: #{tpu_custom_call.1} parent=0 // loop_exit
    _

</llo_original>
